<compile_context>
chip_gen: v7x
topology: tpu7x:2x2x1
jax: 0.10.0
libtpu: 0.0.40
codegen_flags: <defaults>
</compile_context>

<pallas_src>
import jax
import jax.numpy as jnp
from jax.experimental import pallas as pl
from jax.experimental.pallas import tpu as pltpu

LAYER_SIZES = [1024, 1024, 1024, 512, 512, 64, 10]   # fc1..fc7 output dims
NUM_LAYERS = len(LAYER_SIZES)
BN_EPS = 1e-5
_BIAS_ROWS = 8                      # sublane-aligned packing of the 7 bias rows
_BIAS_COLS = max(LAYER_SIZES)       # 1024


# --------------------------------------------------------------------------- #
# Kernel
# --------------------------------------------------------------------------- #
def fcmetanet_kernel(x_ref, *refs):
    """Fused 7-layer MLP forward.

    refs = (w1..w7 [bf16, (in,out), BN pre-folded], bias_packed [(8,1024) f32],
            out_ref [(TB,10) f32]).
    """
    w_refs = refs[:NUM_LAYERS]
    b_all = refs[NUM_LAYERS][...]            # (8, 1024) f32, row i = bias of layer i
    out_ref = refs[NUM_LAYERS + 1]

    h = x_ref[...]                           # (TB, d_in) f32
    logits = None
    for i in range(NUM_LAYERS):
        out_dim = LAYER_SIZES[i]
        b = b_all[i:i + 1, :out_dim]         # static slice -> (1, out_dim)
        z = jnp.dot(h.astype(jnp.bfloat16), w_refs[i][...],
                    preferred_element_type=jnp.float32) + b
        if i < NUM_LAYERS - 1:
            h = jnp.maximum(z, 0.0)          # ReLU (BN affine folded into next layer)
        else:
            logits = z                       # fc7: no ReLU

    # log_softmax over dim=1 (numerically stable)
    m = jnp.max(logits, axis=-1, keepdims=True)
    lse = m + jnp.log(jnp.sum(jnp.exp(logits - m), axis=-1, keepdims=True))
    out_ref[...] = logits - lse


# --------------------------------------------------------------------------- #
# Host-side parameter preparation (pure glue, runs once per parameter set)
# --------------------------------------------------------------------------- #
def fold_and_pack_params(params):
    """Fold eval-mode BN (applied after ReLU in this model) into the following
    Linear layer, cast weights to bf16, pack all biases into one f32 array.

    Per layer i (eval mode):
        h_i     = relu(z_i) * s_i + t_i,   s_i = gamma_i / sqrt(var_i + eps)
                                           t_i = beta_i - mean_i * s_i
        z_{i+1} = h_i @ W_{i+1} + b_{i+1}
                = relu(z_i) @ (diag(s_i) W_{i+1}) + (t_i @ W_{i+1} + b_{i+1})
    """
    ws, bs = [], []
    prev_s = prev_t = None
    for i, p in enumerate(params):
        w = p["w"].astype(jnp.float32)                # (in, out)
        b = p["b"].reshape(-1).astype(jnp.float32)    # (out,)
        if prev_s is not None:
            b = b + prev_t @ w                        # uses the un-scaled W
            w = prev_s[:, None] * w
        if i < NUM_LAYERS - 1:
            s = p["gamma"].reshape(-1) / jnp.sqrt(p["var"].reshape(-1) + BN_EPS)
            t = p["beta"].reshape(-1) - p["mean"].reshape(-1) * s
            prev_s, prev_t = s, t
        ws.append(w.astype(jnp.bfloat16))
        bs.append(b)

    b_packed = jnp.zeros((_BIAS_ROWS, _BIAS_COLS), jnp.float32)
    for i, b in enumerate(bs):
        b_packed = b_packed.at[i, :b.shape[0]].set(b)
    return ws, b_packed


# --------------------------------------------------------------------------- #
# pallas_call wrapper
# --------------------------------------------------------------------------- #
def _fcmetanet_call(x, ws, b_packed, *, block_batch=None):
    B, d_in = x.shape
    if block_batch is None:
        block_batch = B if B <= 512 else 512
    tb = min(block_batch, B)
    if tb < B and tb % 8 != 0:
        raise ValueError("block_batch must be a multiple of 8 when smaller than batch")
    grid = (pl.cdiv(B, tb),)

    in_specs = [pl.BlockSpec((tb, d_in), lambda i: (i, 0))]        # x: tiled on batch
    # Weights & packed biases: full-array blocks whose index never changes, so
    # they stay VMEM-resident across batch tiles (no re-DMA per grid step).
    for w in ws:
        in_specs.append(pl.BlockSpec(w.shape, lambda i: (0, 0)))
    in_specs.append(pl.BlockSpec(b_packed.shape, lambda i: (0, 0)))
    out_spec = pl.BlockSpec((tb, LAYER_SIZES[-1]), lambda i: (i, 0))

    dims = [d_in] + LAYER_SIZES
    flops = 2 * B * sum(dims[i] * dims[i + 1] for i in range(NUM_LAYERS))
    weight_bytes = sum(int(w.size) * w.dtype.itemsize for w in ws)
    bytes_accessed = (weight_bytes + int(b_packed.size) * 4
                      + B * (d_in + LAYER_SIZES[-1]) * 4)
    cost = pl.CostEstimate(flops=flops,
                           transcendentals=B * LAYER_SIZES[-1],
                           bytes_accessed=bytes_accessed)

    return pl.pallas_call(
        fcmetanet_kernel,
        out_shape=jax.ShapeDtypeStruct((B, LAYER_SIZES[-1]), jnp.float32),
        grid=grid,
        in_specs=in_specs,
        out_specs=out_spec,
        compiler_params=pltpu.CompilerParams(
            dimension_semantics=("parallel",),       # v7x: split batch tiles across TCs
            vmem_limit_bytes=32 << 20,               # safe on v5e/v6e (128 MiB) and v7x (64 MiB)
        ),
        cost_estimate=cost,
    )(x, *ws, b_packed)


def fcmetanet_forward(x, params, *, block_batch=None):
    ws, b_packed = fold_and_pack_params(params)
    return _fcmetanet_call(x, ws, b_packed, block_batch=block_batch)


# --------------------------------------------------------------------------- #
# Deterministic synthetic parameters (PyTorch-default-style Linear init)
# --------------------------------------------------------------------------- #
def init_params(key, first_layer_size):
    dims = [first_layer_size] + LAYER_SIZES
    params = []
    for i in range(NUM_LAYERS):
        fan_in, fan_out = dims[i], dims[i + 1]
        key, kw, kb = jax.random.split(key, 3)
        bound = 1.0 / (fan_in ** 0.5)
        w = jax.random.uniform(kw, (fan_in, fan_out), jnp.float32, -bound, bound)
        b = jax.random.uniform(kb, (1, fan_out), jnp.float32, -bound, bound)
        entry = {"w": w, "b": b}
        if i < NUM_LAYERS - 1:  # BatchNorm1d after fc1..fc6
            key, kg, kbt, km, kv = jax.random.split(key, 5)
            entry["gamma"] = 1.0 + 0.1 * jax.random.normal(kg, (1, fan_out), jnp.float32)
            entry["beta"] = 0.1 * jax.random.normal(kbt, (1, fan_out), jnp.float32)
            entry["mean"] = 0.1 * jax.random.normal(km, (1, fan_out), jnp.float32)
            entry["var"] = jnp.abs(1.0 + 0.1 * jax.random.normal(kv, (1, fan_out), jnp.float32))
        params.append(entry)
    return params


# --------------------------------------------------------------------------- #
# References
# --------------------------------------------------------------------------- #
def fcmetanet_reference_f32(x, params):
    """Pure-f32 eval-mode reference matching the PyTorch forward exactly:
    fc -> ReLU -> BN for layers 1..6, dropout identity, fc7, log_softmax."""
    h = x
    for i, p in enumerate(params):
        h = h @ p["w"] + p["b"]
        if i < NUM_LAYERS - 1:
            h = jnp.maximum(h, 0.0)
            s = p["gamma"] / jnp.sqrt(p["var"] + BN_EPS)
            t = p["beta"] - p["mean"] * s
            h = h * s + t
    return jax.nn.log_softmax(h, axis=1)


def fcmetanet_reference_folded_bf16(x, ws, b_packed):
    """Reference with exactly the kernel's numerics (folded BN, bf16 matmul
    operands, f32 accumulation)."""
    h = x
    for i, w in enumerate(ws):
        out_dim = LAYER_SIZES[i]
        b = b_packed[i, :out_dim]
        h = jnp.dot(h.astype(jnp.bfloat16), w, preferred_element_type=jnp.float32) + b
        if i < NUM_LAYERS - 1:
            h = jnp.maximum(h, 0.0)
    return jax.nn.log_softmax(h, axis=1)


# --------------------------------------------------------------------------- #
if __name__ == "__main__":
    key = jax.random.PRNGKey(0)
    key, kx, kp = jax.random.split(key, 3)

    BATCH = 8
    FIRST_LAYER_SIZE = 128  # "first_layer_size" constructor arg (small, lane-aligned)

    x = jax.random.normal(kx, (BATCH, FIRST_LAYER_SIZE), jnp.float32)
    params = init_params(kp, FIRST_LAYER_SIZE)
    ws, b_packed = fold_and_pack_params(params)

    out = _fcmetanet_call(x, ws, b_packed)
    out = jax.block_until_ready(out)
    assert out.shape == (BATCH, 10)

    # Tight check against a reference with identical numerics (bf16 weights, folded BN).
    ref_exact = fcmetanet_reference_folded_bf16(x, ws, b_packed)
    assert jnp.allclose(out, ref_exact, atol=2e-3, rtol=2e-3), \
        "mismatch vs bf16-matched reference"

    # Looser semantic check against the full-f32 unfolded eval-mode reference.
    ref_f32 = fcmetanet_reference_f32(x, params)
    assert jnp.allclose(out, ref_f32, atol=5e-2, rtol=5e-2), \
        "mismatch vs f32 eval-mode reference"

    # Exercise the batch grid (multiple batch tiles, VMEM-resident weights).
    x2 = jax.random.normal(key, (32, FIRST_LAYER_SIZE), jnp.float32)
    out2 = jax.block_until_ready(_fcmetanet_call(x2, ws, b_packed, block_batch=8))
    ref2 = fcmetanet_reference_folded_bf16(x2, ws, b_packed)
    assert jnp.allclose(out2, ref2, atol=2e-3, rtol=2e-3), "mismatch on tiled batch"

    print("KERNEL_OK")
</pallas_src>

<mosaic_0001>
module attributes {stable_mosaic.version = 11 : i64} {
  func.func @fcmetanet_kernel(%arg0: i32, %arg1: memref<8x128xf32, #tpu.memory_space<vmem>>, %arg2: memref<128x1024xbf16, #tpu.memory_space<vmem>>, %arg3: memref<1024x1024xbf16, #tpu.memory_space<vmem>>, %arg4: memref<1024x1024xbf16, #tpu.memory_space<vmem>>, %arg5: memref<1024x512xbf16, #tpu.memory_space<vmem>>, %arg6: memref<512x512xbf16, #tpu.memory_space<vmem>>, %arg7: memref<512x64xbf16, #tpu.memory_space<vmem>>, %arg8: memref<64x10xbf16, #tpu.memory_space<vmem>>, %arg9: memref<8x1024xf32, #tpu.memory_space<vmem>>, %arg10: memref<8x10xf32, #tpu.memory_space<vmem>>) attributes {dimension_semantics = [#tpu.dimension_semantics<parallel>], iteration_bounds = array<i64: 1>, scalar_prefetch = 0 : i64, scratch_operands = 0 : i64, tpu.core_type = #tpu.core_type<tc>, window_params = [{transform_indices = @transform_0, window_bounds = array<i64: 8, 128>}, {pipeline_mode = #tpu.pipeline_mode<synchronous>, transform_indices = @transform_1, window_bounds = array<i64: 128, 1024>}, {pipeline_mode = #tpu.pipeline_mode<synchronous>, transform_indices = @transform_2, window_bounds = array<i64: 1024, 1024>}, {pipeline_mode = #tpu.pipeline_mode<synchronous>, transform_indices = @transform_3, window_bounds = array<i64: 1024, 1024>}, {pipeline_mode = #tpu.pipeline_mode<synchronous>, transform_indices = @transform_4, window_bounds = array<i64: 1024, 512>}, {pipeline_mode = #tpu.pipeline_mode<synchronous>, transform_indices = @transform_5, window_bounds = array<i64: 512, 512>}, {pipeline_mode = #tpu.pipeline_mode<synchronous>, transform_indices = @transform_6, window_bounds = array<i64: 512, 64>}, {pipeline_mode = #tpu.pipeline_mode<synchronous>, transform_indices = @transform_7, window_bounds = array<i64: 64, 10>}, {pipeline_mode = #tpu.pipeline_mode<synchronous>, transform_indices = @transform_8, window_bounds = array<i64: 8, 1024>}, {transform_indices = @transform_9, window_bounds = array<i64: 8, 10>}]} {
    %c0 = arith.constant 0 : index
    %c0_0 = arith.constant 0 : index
    %0 = vector.load %arg9[%c0, %c0_0] : memref<8x1024xf32, #tpu.memory_space<vmem>>, vector<8x1024xf32>
    %c0_1 = arith.constant 0 : index
    %c0_2 = arith.constant 0 : index
    %1 = vector.load %arg1[%c0_1, %c0_2] : memref<8x128xf32, #tpu.memory_space<vmem>>, vector<8x128xf32>
    %2 = vector.extract_strided_slice %0 {offsets = [0, 0], sizes = [1, 1024], strides = [1, 1]} : vector<8x1024xf32> to vector<1x1024xf32>
    %3 = arith.truncf %1 : vector<8x128xf32> to vector<8x128xbf16>
    %c0_3 = arith.constant 0 : index
    %c0_4 = arith.constant 0 : index
    %4 = vector.load %arg2[%c0_3, %c0_4] : memref<128x1024xbf16, #tpu.memory_space<vmem>>, vector<128x1024xbf16>
    %cst = arith.constant dense<0.000000e+00> : vector<8x1024xf32>
    %5 = tpu.matmul %3, %4, %cst {dimension_numbers = #tpu.dot_dimension_numbers<[1], [0], [0], [1], [0, 0, 1, 1], [], []>} : vector<8x128xbf16>, vector<128x1024xbf16>, vector<8x1024xf32> -> vector<8x1024xf32>
    %6 = vector.broadcast %2 : vector<1x1024xf32> to vector<8x1024xf32>
    %7 = arith.addf %5, %6 : vector<8x1024xf32>
    %cst_5 = arith.constant 0.000000e+00 : f32
    %8 = vector.broadcast %cst_5 : f32 to vector<8x1024xf32>
    %9 = arith.maximumf %7, %8 : vector<8x1024xf32>
    %10 = vector.extract_strided_slice %0 {offsets = [1, 0], sizes = [1, 1024], strides = [1, 1]} : vector<8x1024xf32> to vector<1x1024xf32>
    %11 = arith.truncf %9 : vector<8x1024xf32> to vector<8x1024xbf16>
    %c0_6 = arith.constant 0 : index
    %c0_7 = arith.constant 0 : index
    %12 = vector.load %arg3[%c0_6, %c0_7] : memref<1024x1024xbf16, #tpu.memory_space<vmem>>, vector<1024x1024xbf16>
    %cst_8 = arith.constant dense<0.000000e+00> : vector<8x1024xf32>
    %13 = tpu.matmul %11, %12, %cst_8 {dimension_numbers = #tpu.dot_dimension_numbers<[1], [0], [0], [1], [0, 0, 1, 1], [], []>} : vector<8x1024xbf16>, vector<1024x1024xbf16>, vector<8x1024xf32> -> vector<8x1024xf32>
    %14 = vector.broadcast %10 : vector<1x1024xf32> to vector<8x1024xf32>
    %15 = arith.addf %13, %14 : vector<8x1024xf32>
    %cst_9 = arith.constant 0.000000e+00 : f32
    %16 = vector.broadcast %cst_9 : f32 to vector<8x1024xf32>
    %17 = arith.maximumf %15, %16 : vector<8x1024xf32>
    %18 = vector.extract_strided_slice %0 {offsets = [2, 0], sizes = [1, 1024], strides = [1, 1]} : vector<8x1024xf32> to vector<1x1024xf32>
    %19 = arith.truncf %17 : vector<8x1024xf32> to vector<8x1024xbf16>
    %c0_10 = arith.constant 0 : index
    %c0_11 = arith.constant 0 : index
    %20 = vector.load %arg4[%c0_10, %c0_11] : memref<1024x1024xbf16, #tpu.memory_space<vmem>>, vector<1024x1024xbf16>
    %cst_12 = arith.constant dense<0.000000e+00> : vector<8x1024xf32>
    %21 = tpu.matmul %19, %20, %cst_12 {dimension_numbers = #tpu.dot_dimension_numbers<[1], [0], [0], [1], [0, 0, 1, 1], [], []>} : vector<8x1024xbf16>, vector<1024x1024xbf16>, vector<8x1024xf32> -> vector<8x1024xf32>
    %22 = vector.broadcast %18 : vector<1x1024xf32> to vector<8x1024xf32>
    %23 = arith.addf %21, %22 : vector<8x1024xf32>
    %cst_13 = arith.constant 0.000000e+00 : f32
    %24 = vector.broadcast %cst_13 : f32 to vector<8x1024xf32>
    %25 = arith.maximumf %23, %24 : vector<8x1024xf32>
    %26 = vector.extract_strided_slice %0 {offsets = [3, 0], sizes = [1, 512], strides = [1, 1]} : vector<8x1024xf32> to vector<1x512xf32>
    %27 = arith.truncf %25 : vector<8x1024xf32> to vector<8x1024xbf16>
    %c0_14 = arith.constant 0 : index
    %c0_15 = arith.constant 0 : index
    %28 = vector.load %arg5[%c0_14, %c0_15] : memref<1024x512xbf16, #tpu.memory_space<vmem>>, vector<1024x512xbf16>
    %cst_16 = arith.constant dense<0.000000e+00> : vector<8x512xf32>
    %29 = tpu.matmul %27, %28, %cst_16 {dimension_numbers = #tpu.dot_dimension_numbers<[1], [0], [0], [1], [0, 0, 1, 1], [], []>} : vector<8x1024xbf16>, vector<1024x512xbf16>, vector<8x512xf32> -> vector<8x512xf32>
    %30 = vector.broadcast %26 : vector<1x512xf32> to vector<8x512xf32>
    %31 = arith.addf %29, %30 : vector<8x512xf32>
    %cst_17 = arith.constant 0.000000e+00 : f32
    %32 = vector.broadcast %cst_17 : f32 to vector<8x512xf32>
    %33 = arith.maximumf %31, %32 : vector<8x512xf32>
    %34 = vector.extract_strided_slice %0 {offsets = [4, 0], sizes = [1, 512], strides = [1, 1]} : vector<8x1024xf32> to vector<1x512xf32>
    %35 = arith.truncf %33 : vector<8x512xf32> to vector<8x512xbf16>
    %c0_18 = arith.constant 0 : index
    %c0_19 = arith.constant 0 : index
    %36 = vector.load %arg6[%c0_18, %c0_19] : memref<512x512xbf16, #tpu.memory_space<vmem>>, vector<512x512xbf16>
    %cst_20 = arith.constant dense<0.000000e+00> : vector<8x512xf32>
    %37 = tpu.matmul %35, %36, %cst_20 {dimension_numbers = #tpu.dot_dimension_numbers<[1], [0], [0], [1], [0, 0, 1, 1], [], []>} : vector<8x512xbf16>, vector<512x512xbf16>, vector<8x512xf32> -> vector<8x512xf32>
    %38 = vector.broadcast %34 : vector<1x512xf32> to vector<8x512xf32>
    %39 = arith.addf %37, %38 : vector<8x512xf32>
    %cst_21 = arith.constant 0.000000e+00 : f32
    %40 = vector.broadcast %cst_21 : f32 to vector<8x512xf32>
    %41 = arith.maximumf %39, %40 : vector<8x512xf32>
    %42 = vector.extract_strided_slice %0 {offsets = [5, 0], sizes = [1, 64], strides = [1, 1]} : vector<8x1024xf32> to vector<1x64xf32>
    %43 = arith.truncf %41 : vector<8x512xf32> to vector<8x512xbf16>
    %c0_22 = arith.constant 0 : index
    %c0_23 = arith.constant 0 : index
    %44 = vector.load %arg7[%c0_22, %c0_23] : memref<512x64xbf16, #tpu.memory_space<vmem>>, vector<512x64xbf16>
    %cst_24 = arith.constant dense<0.000000e+00> : vector<8x64xf32>
    %45 = tpu.matmul %43, %44, %cst_24 {dimension_numbers = #tpu.dot_dimension_numbers<[1], [0], [0], [1], [0, 0, 1, 1], [], []>} : vector<8x512xbf16>, vector<512x64xbf16>, vector<8x64xf32> -> vector<8x64xf32>
    %46 = vector.broadcast %42 : vector<1x64xf32> to vector<8x64xf32>
    %47 = arith.addf %45, %46 : vector<8x64xf32>
    %cst_25 = arith.constant 0.000000e+00 : f32
    %48 = vector.broadcast %cst_25 : f32 to vector<8x64xf32>
    %49 = arith.maximumf %47, %48 : vector<8x64xf32>
    %50 = vector.extract_strided_slice %0 {offsets = [6, 0], sizes = [1, 10], strides = [1, 1]} : vector<8x1024xf32> to vector<1x10xf32>
    %51 = arith.truncf %49 : vector<8x64xf32> to vector<8x64xbf16>
    %c0_26 = arith.constant 0 : index
    %c0_27 = arith.constant 0 : index
    %52 = vector.load %arg8[%c0_26, %c0_27] : memref<64x10xbf16, #tpu.memory_space<vmem>>, vector<64x10xbf16>
    %cst_28 = arith.constant dense<0.000000e+00> : vector<8x10xf32>
    %53 = tpu.matmul %51, %52, %cst_28 {dimension_numbers = #tpu.dot_dimension_numbers<[1], [0], [0], [1], [0, 0, 1, 1], [], []>} : vector<8x64xbf16>, vector<64x10xbf16>, vector<8x10xf32> -> vector<8x10xf32>
    %54 = vector.broadcast %50 : vector<1x10xf32> to vector<8x10xf32>
    %55 = arith.addf %53, %54 : vector<8x10xf32>
    %cst_29 = arith.constant dense<0xFF800000> : vector<8xf32>
    %56 = vector.multi_reduction <maximumf>, %55, %cst_29 [1] : vector<8x10xf32> to vector<8xf32>
    %57 = vector.shape_cast %56 : vector<8xf32> to vector<8x1xf32>
    %58 = vector.broadcast %57 : vector<8x1xf32> to vector<8x10xf32>
    %59 = arith.subf %55, %58 : vector<8x10xf32>
    %60 = math.exp %59 : vector<8x10xf32>
    %cst_30 = arith.constant dense<0.000000e+00> : vector<8xf32>
    %61 = vector.multi_reduction <add>, %60, %cst_30 [1] : vector<8x10xf32> to vector<8xf32>
    %62 = vector.shape_cast %61 : vector<8xf32> to vector<8x1xf32>
    %63 = math.log %62 : vector<8x1xf32>
    %64 = arith.addf %57, %63 : vector<8x1xf32>
    %65 = vector.broadcast %64 : vector<8x1xf32> to vector<8x10xf32>
    %66 = arith.subf %55, %65 : vector<8x10xf32>
    %c0_31 = arith.constant 0 : index
    %c0_32 = arith.constant 0 : index
    %67 = vector.load %arg10[%c0_31, %c0_32] : memref<8x10xf32, #tpu.memory_space<vmem>>, vector<8x10xf32>
    tpu.vector_store %arg10[%c0_31, %c0_32], %66 {strides = array<i32>} : memref<8x10xf32, #tpu.memory_space<vmem>>, vector<8x10xf32>,
    return
  }
  func.func @transform_0(%arg0: i32) -> (i32, i32) {
    %c0_i32 = arith.constant 0 : i32
    %c0_i32_0 = arith.constant 0 : i32
    return %arg0, %c0_i32 : i32, i32
  }
  func.func @transform_1(%arg0: i32) -> (i32, i32) {
    %c0_i32 = arith.constant 0 : i32
    %c0_i32_0 = arith.constant 0 : i32
    %c0_i32_1 = arith.constant 0 : i32
    return %c0_i32, %c0_i32_0 : i32, i32
  }
  func.func @transform_2(%arg0: i32) -> (i32, i32) {
    %c0_i32 = arith.constant 0 : i32
    %c0_i32_0 = arith.constant 0 : i32
    %c0_i32_1 = arith.constant 0 : i32
    return %c0_i32, %c0_i32_0 : i32, i32
  }
  func.func @transform_3(%arg0: i32) -> (i32, i32) {
    %c0_i32 = arith.constant 0 : i32
    %c0_i32_0 = arith.constant 0 : i32
    %c0_i32_1 = arith.constant 0 : i32
    return %c0_i32, %c0_i32_0 : i32, i32
  }
  func.func @transform_4(%arg0: i32) -> (i32, i32) {
    %c0_i32 = arith.constant 0 : i32
    %c0_i32_0 = arith.constant 0 : i32
    %c0_i32_1 = arith.constant 0 : i32
    return %c0_i32, %c0_i32_0 : i32, i32
  }
  func.func @transform_5(%arg0: i32) -> (i32, i32) {
    %c0_i32 = arith.constant 0 : i32
    %c0_i32_0 = arith.constant 0 : i32
    %c0_i32_1 = arith.constant 0 : i32
    return %c0_i32, %c0_i32_0 : i32, i32
  }
  func.func @transform_6(%arg0: i32) -> (i32, i32) {
    %c0_i32 = arith.constant 0 : i32
    %c0_i32_0 = arith.constant 0 : i32
    %c0_i32_1 = arith.constant 0 : i32
    return %c0_i32, %c0_i32_0 : i32, i32
  }
  func.func @transform_7(%arg0: i32) -> (i32, i32) {
    %c0_i32 = arith.constant 0 : i32
    %c0_i32_0 = arith.constant 0 : i32
    %c0_i32_1 = arith.constant 0 : i32
    return %c0_i32, %c0_i32_0 : i32, i32
  }
  func.func @transform_8(%arg0: i32) -> (i32, i32) {
    %c0_i32 = arith.constant 0 : i32
    %c0_i32_0 = arith.constant 0 : i32
    %c0_i32_1 = arith.constant 0 : i32
    return %c0_i32, %c0_i32_0 : i32, i32
  }
  func.func @transform_9(%arg0: i32) -> (i32, i32) {
    %c0_i32 = arith.constant 0 : i32
    %c0_i32_0 = arith.constant 0 : i32
    return %arg0, %c0_i32 : i32, i32
  }
}

</mosaic_0001>

<llo_original>
// kernel: tpu_custom_call.1
$region0: #{tpu_custom_call.1}
  #allocation0 [shape = 'u32[]', space=smem, size = 0x4, offset = 0x4, fixed_abs, tag = 'smem constant byte address 0x4 - core index']
  #allocation1 [shape = 'u32[144,128]{1,0:T(1,128)}', space=vmem, size = 0x12000, scoped, tag = 'internal scratch']
  %s0 = inlined_call_operand.hbm [shape: f32[8,128], index: 0, kind: input, shape index: {}]
  %s1 = inlined_call_operand.hbm [shape: bf16[128,1024], index: 1, kind: input, shape index: {}]
  %s2 = inlined_call_operand.hbm [shape: bf16[1024,1024], index: 2, kind: input, shape index: {}]
  %s3 = inlined_call_operand.hbm [shape: bf16[1024,1024], index: 3, kind: input, shape index: {}]
  %s4 = inlined_call_operand.hbm [shape: bf16[1024,512], index: 4, kind: input, shape index: {}]
  %s5 = inlined_call_operand.hbm [shape: bf16[512,512], index: 5, kind: input, shape index: {}]
  %s6 = inlined_call_operand.vmem [shape: bf16[512,64], index: 6, kind: input, shape index: {}]
  %s7 = inlined_call_operand.vmem [shape: bf16[64,10], index: 7, kind: input, shape index: {}]
  %s8 = inlined_call_operand.hbm [shape: f32[8,1024], index: 8, kind: input, shape index: {}]
  %s9 = inlined_call_operand.hbm [shape: f32[8,10], index: 9, kind: output, shape index: {}]
  %s10 = sld [smem:[#allocation0]]
  $region74: #{tpu_custom_call.1} parent=0
    _
  %s12 = ssub.s32 1, %s10
  %s13 = scalar_select 0, %s12, %s10
  $region1: #{tpu_custom_call.1} parent=0
    #allocation2 [shape = 'u8[4096]{0}', space=vmem, size = 0x1000, scoped, tag = 'input window, operand 0, single buffered']
    #allocation3 [shape = 's32[1]{0}', space=sflag, size = 0x4, scoped, tag = 'scoped memory for tpu_custom_call.1']
    #allocation4 [shape = 's32[1]{0}', space=sflag, size = 0x4, scoped, tag = 'scoped memory for tpu_custom_call.1']
    #allocation5 [shape = 'u8[262144]{0}', space=vmem, size = 0x40000, scoped, tag = 'input window, operand 1, single buffered']
    #allocation6 [shape = 's32[1]{0}', space=sflag, size = 0x4, scoped, tag = 'scoped memory for tpu_custom_call.1']
    #allocation7 [shape = 'u8[2097152]{0}', space=vmem, size = 0x200000, scoped, tag = 'input window, operand 2, single buffered']
    #allocation8 [shape = 'u8[2097152]{0}', space=vmem, size = 0x200000, scoped, tag = 'input window, operand 3, single buffered']
    #allocation9 [shape = 's32[1]{0}', space=sflag, size = 0x4, scoped, tag = 'scoped memory for tpu_custom_call.1']
    #allocation10 [shape = 'u8[1048576]{0}', space=vmem, size = 0x100000, scoped, tag = 'input window, operand 4, single buffered']
    #allocation11 [shape = 'u8[524288]{0}', space=vmem, size = 0x80000, scoped, tag = 'input window, operand 5, single buffered']
    #allocation12 [shape = 's32[1]{0}', space=sflag, size = 0x4, scoped, tag = 'scoped memory for tpu_custom_call.1']
    #allocation13 [shape = 'u8[32768]{0}', space=vmem, size = 0x8000, scoped, tag = 'input window, operand 8, single buffered']
    #allocation14 [shape = 'u8[4096]{0}', space=vmem, size = 0x1000, scoped, tag = 'output window, operand 0, single buffered']
    %14 = vsyncpa [#allocation3], 0
    %15 = vsyncpa [#allocation6], 0
    %16 = vsyncpa [#allocation9], 0
    %17 = vsyncpa [#allocation12], 0
    %18 = vsyncpa [#allocation4], 0
    // Predicated region
    $region2: #{tpu_custom_call.1} parent=1 // pred_check
      _
    $region3: #{tpu_custom_call.1} parent=1 // pred_check_branch
      %20 = sbr.rel (0) target = $region5
    $region4: #{tpu_custom_call.1} parent=1 // pred_region
      %s22 = ssub.s32 128, 128
      %23 = vsyncadd [#allocation3], %s22
      %s25 = sshll.u32 [#allocation2], 4
      %s26 = int_to_ptr.vmem [resolvable:$true] %s25
      %28 = dma.hbm_to_vmem [thread:$0]  %s0, 128, %s26, [#allocation3]
    $region5: #{tpu_custom_call.1} parent=1 // pred_fallthru
      _
    // Predicated region
    $region6: #{tpu_custom_call.1} parent=1 // pred_check
      _
    $region7: #{tpu_custom_call.1} parent=1 // pred_check_branch
      %30 = sbr.rel (0) target = $region9
    $region8: #{tpu_custom_call.1} parent=1 // pred_region
      %s32 = ssub.s32 8192, 8192
      %33 = vsyncadd [#allocation6], %s32
      %s34 = sshll.u32 [#allocation5], 4
      %s35 = int_to_ptr.vmem [resolvable:$true] %s34
      %40 = dma.hbm_to_vmem [thread:$0]  %s1, 8192, %s35, [#allocation6], 512, 512, 32
    $region9: #{tpu_custom_call.1} parent=1 // pred_fallthru
      _
    // Predicated region
    $region10: #{tpu_custom_call.1} parent=1 // pred_check
      _
    $region11: #{tpu_custom_call.1} parent=1 // pred_check_branch
      %42 = sbr.rel (0) target = $region13
    $region12: #{tpu_custom_call.1} parent=1 // pred_region
      %s44 = ssub.s32 65536, 65536
      %45 = vsyncadd [#allocation6], %s44
      %s46 = sshll.u32 [#allocation7], 4
      %s47 = int_to_ptr.vmem [resolvable:$true] %s46
      %52 = dma.hbm_to_vmem [thread:$0]  %s2, 65536, %s47, [#allocation6], 512, 512, 32
    $region13: #{tpu_custom_call.1} parent=1 // pred_fallthru
      _
    // Predicated region
    $region14: #{tpu_custom_call.1} parent=1 // pred_check
      _
    $region15: #{tpu_custom_call.1} parent=1 // pred_check_branch
      %54 = sbr.rel (0) target = $region17
    $region16: #{tpu_custom_call.1} parent=1 // pred_region
      %s56 = ssub.s32 65536, 65536
      %57 = vsyncadd [#allocation9], %s56
      %s58 = sshll.u32 [#allocation8], 4
      %s59 = int_to_ptr.vmem [resolvable:$true] %s58
      %64 = dma.hbm_to_vmem [thread:$0]  %s3, 65536, %s59, [#allocation9], 512, 512, 32
    $region17: #{tpu_custom_call.1} parent=1 // pred_fallthru
      _
    // Predicated region
    $region18: #{tpu_custom_call.1} parent=1 // pred_check
      _
    $region19: #{tpu_custom_call.1} parent=1 // pred_check_branch
      %66 = sbr.rel (0) target = $region21
    $region20: #{tpu_custom_call.1} parent=1 // pred_region
      %s68 = ssub.s32 32768, 32768
      %69 = vsyncadd [#allocation9], %s68
      %s70 = sshll.u32 [#allocation10], 4
      %s71 = int_to_ptr.vmem [resolvable:$true] %s70
      %76 = dma.hbm_to_vmem [thread:$0]  %s4, 32768, %s71, [#allocation9], 256, 256, 16
    $region21: #{tpu_custom_call.1} parent=1 // pred_fallthru
      _
    // Predicated region
    $region22: #{tpu_custom_call.1} parent=1 // pred_check
      _
    $region23: #{tpu_custom_call.1} parent=1 // pred_check_branch
      %78 = sbr.rel (0) target = $region25
    $region24: #{tpu_custom_call.1} parent=1 // pred_region
      %s80 = ssub.s32 16384, 16384
      %81 = vsyncadd [#allocation12], %s80
      %s82 = sshll.u32 [#allocation11], 4
      %s83 = int_to_ptr.vmem [resolvable:$true] %s82
      %88 = dma.hbm_to_vmem [thread:$0]  %s5, 16384, %s83, [#allocation12], 256, 256, 16
    $region25: #{tpu_custom_call.1} parent=1 // pred_fallthru
      _
    // Predicated region
    $region26: #{tpu_custom_call.1} parent=1 // pred_check
      _
    $region27: #{tpu_custom_call.1} parent=1 // pred_check_branch
      %90 = sbr.rel (0) target = $region29
    $region28: #{tpu_custom_call.1} parent=1 // pred_region
      _
    $region29: #{tpu_custom_call.1} parent=1 // pred_fallthru
      _
    // Predicated region
    $region30: #{tpu_custom_call.1} parent=1 // pred_check
      _
    $region31: #{tpu_custom_call.1} parent=1 // pred_check_branch
      %92 = sbr.rel (0) target = $region33
    $region32: #{tpu_custom_call.1} parent=1 // pred_region
      _
    $region33: #{tpu_custom_call.1} parent=1 // pred_fallthru
      _
    // Predicated region
    $region34: #{tpu_custom_call.1} parent=1 // pred_check
      _
    $region35: #{tpu_custom_call.1} parent=1 // pred_check_branch
      %94 = sbr.rel (0) target = $region37
    $region36: #{tpu_custom_call.1} parent=1 // pred_region
      %s96 = ssub.s32 1024, 1024
      %97 = vsyncadd [#allocation12], %s96
      %s99 = sshll.u32 [#allocation13], 4
      %s100 = int_to_ptr.vmem [resolvable:$true] %s99
      %102 = dma.hbm_to_vmem [thread:$0]  %s8, 1024, %s100, [#allocation12]
    $region37: #{tpu_custom_call.1} parent=1 // pred_fallthru
      _
    // Predicated region
    $region38: #{tpu_custom_call.1} parent=1 // pred_check
      _
    $region39: #{tpu_custom_call.1} parent=1 // pred_check_branch
      %104 = sbr.rel (0) target = $region41
    $region40: #{tpu_custom_call.1} parent=1 // pred_region
      %105 = dma.done [#allocation3], 128
    $region41: #{tpu_custom_call.1} parent=1 // pred_fallthru
      _
    // Predicated region
    $region42: #{tpu_custom_call.1} parent=1 // pred_check
      _
    $region43: #{tpu_custom_call.1} parent=1 // pred_check_branch
      %107 = sbr.rel (0) target = $region45
    $region44: #{tpu_custom_call.1} parent=1 // pred_region
      %108 = dma.done [#allocation6], 8192
    $region45: #{tpu_custom_call.1} parent=1 // pred_fallthru
      _
    // Predicated region
    $region46: #{tpu_custom_call.1} parent=1 // pred_check
      _
    $region47: #{tpu_custom_call.1} parent=1 // pred_check_branch
      %110 = sbr.rel (0) target = $region49
    $region48: #{tpu_custom_call.1} parent=1 // pred_region
      %111 = dma.done [#allocation6], 65536
    $region49: #{tpu_custom_call.1} parent=1 // pred_fallthru
      _
    // Predicated region
    $region50: #{tpu_custom_call.1} parent=1 // pred_check
      _
    $region51: #{tpu_custom_call.1} parent=1 // pred_check_branch
      %113 = sbr.rel (0) target = $region53
    $region52: #{tpu_custom_call.1} parent=1 // pred_region
      %114 = dma.done [#allocation9], 65536
    $region53: #{tpu_custom_call.1} parent=1 // pred_fallthru
      _
    // Predicated region
    $region54: #{tpu_custom_call.1} parent=1 // pred_check
      _
    $region55: #{tpu_custom_call.1} parent=1 // pred_check_branch
      %116 = sbr.rel (0) target = $region57
    $region56: #{tpu_custom_call.1} parent=1 // pred_region
      %117 = dma.done [#allocation9], 32768
    $region57: #{tpu_custom_call.1} parent=1 // pred_fallthru
      _
    // Predicated region
    $region58: #{tpu_custom_call.1} parent=1 // pred_check
      _
    $region59: #{tpu_custom_call.1} parent=1 // pred_check_branch
      %119 = sbr.rel (0) target = $region61
    $region60: #{tpu_custom_call.1} parent=1 // pred_region
      %120 = dma.done [#allocation12], 16384
    $region61: #{tpu_custom_call.1} parent=1 // pred_fallthru
      _
    // Predicated region
    $region62: #{tpu_custom_call.1} parent=1 // pred_check
      _
    $region63: #{tpu_custom_call.1} parent=1 // pred_check_branch
      %122 = sbr.rel (0) target = $region65
    $region64: #{tpu_custom_call.1} parent=1 // pred_region
      %123 = dma.done [#allocation12], 1024
    $region65: #{tpu_custom_call.1} parent=1 // pred_fallthru
      _
    %v125 = vld [vmem:[#allocation13] sm:$0xff]
    %v126 = vld [vmem:[#allocation13 + $0x8] sm:$0xff]
    %v127 = vld [vmem:[#allocation13 + $0x10] sm:$0xff]
    %v128 = vld [vmem:[#allocation13 + $0x18] sm:$0xff]
    %v129 = vld [vmem:[#allocation13 + $0x20] sm:$0xff]
    %v130 = vld [vmem:[#allocation13 + $0x28] sm:$0xff]
    %v131 = vld [vmem:[#allocation13 + $0x30] sm:$0xff]
    %v132 = vld [vmem:[#allocation13 + $0x38] sm:$0xff]
    %v133 = vld [vmem:[#allocation2] sm:$0xff]
    %v134 = vpack.c.bf16 %v133, %v133
    %v135 = vld [vmem:[#allocation5] sm:$0xff]
    %v136 = vld [vmem:[#allocation5 + $0x8] sm:$0xff]
    %v137 = vld [vmem:[#allocation5 + $0x10] sm:$0xff]
    %v138 = vld [vmem:[#allocation5 + $0x18] sm:$0xff]
    %v139 = vld [vmem:[#allocation5 + $0x20] sm:$0xff]
    %v140 = vld [vmem:[#allocation5 + $0x28] sm:$0xff]
    %v141 = vld [vmem:[#allocation5 + $0x30] sm:$0xff]
    %v142 = vld [vmem:[#allocation5 + $0x38] sm:$0xff]
    %v143 = vld [vmem:[#allocation5 + $0x40] sm:$0xff]
    %v144 = vld [vmem:[#allocation5 + $0x48] sm:$0xff]
    %v145 = vld [vmem:[#allocation5 + $0x50] sm:$0xff]
    %v146 = vld [vmem:[#allocation5 + $0x58] sm:$0xff]
    %v147 = vld [vmem:[#allocation5 + $0x60] sm:$0xff]
    %v148 = vld [vmem:[#allocation5 + $0x68] sm:$0xff]
    %v149 = vld [vmem:[#allocation5 + $0x70] sm:$0xff]
    %v150 = vld [vmem:[#allocation5 + $0x78] sm:$0xff]
    %v151 = vld [vmem:[#allocation5 + $0x80] sm:$0xff]
    %v152 = vld [vmem:[#allocation5 + $0x88] sm:$0xff]
    %v153 = vld [vmem:[#allocation5 + $0x90] sm:$0xff]
    %v154 = vld [vmem:[#allocation5 + $0x98] sm:$0xff]
    %v155 = vld [vmem:[#allocation5 + $0xa0] sm:$0xff]
    %v156 = vld [vmem:[#allocation5 + $0xa8] sm:$0xff]
    %v157 = vld [vmem:[#allocation5 + $0xb0] sm:$0xff]
    %v158 = vld [vmem:[#allocation5 + $0xb8] sm:$0xff]
    %v159 = vld [vmem:[#allocation5 + $0xc0] sm:$0xff]
    %v160 = vld [vmem:[#allocation5 + $0xc8] sm:$0xff]
    %v161 = vld [vmem:[#allocation5 + $0xd0] sm:$0xff]
    %v162 = vld [vmem:[#allocation5 + $0xd8] sm:$0xff]
    %v163 = vld [vmem:[#allocation5 + $0xe0] sm:$0xff]
    %v164 = vld [vmem:[#allocation5 + $0xe8] sm:$0xff]
    %v165 = vld [vmem:[#allocation5 + $0xf0] sm:$0xff]
    %v166 = vld [vmem:[#allocation5 + $0xf8] sm:$0xff]
    %v167 = vld [vmem:[#allocation5 + $0x100] sm:$0xff]
    %v168 = vld [vmem:[#allocation5 + $0x108] sm:$0xff]
    %v169 = vld [vmem:[#allocation5 + $0x110] sm:$0xff]
    %v170 = vld [vmem:[#allocation5 + $0x118] sm:$0xff]
    %v171 = vld [vmem:[#allocation5 + $0x120] sm:$0xff]
    %v172 = vld [vmem:[#allocation5 + $0x128] sm:$0xff]
    %v173 = vld [vmem:[#allocation5 + $0x130] sm:$0xff]
    %v174 = vld [vmem:[#allocation5 + $0x138] sm:$0xff]
    %v175 = vld [vmem:[#allocation5 + $0x140] sm:$0xff]
    %v176 = vld [vmem:[#allocation5 + $0x148] sm:$0xff]
    %v177 = vld [vmem:[#allocation5 + $0x150] sm:$0xff]
    %v178 = vld [vmem:[#allocation5 + $0x158] sm:$0xff]
    %v179 = vld [vmem:[#allocation5 + $0x160] sm:$0xff]
    %v180 = vld [vmem:[#allocation5 + $0x168] sm:$0xff]
    %v181 = vld [vmem:[#allocation5 + $0x170] sm:$0xff]
    %v182 = vld [vmem:[#allocation5 + $0x178] sm:$0xff]
    %v183 = vld [vmem:[#allocation5 + $0x180] sm:$0xff]
    %v184 = vld [vmem:[#allocation5 + $0x188] sm:$0xff]
    %v185 = vld [vmem:[#allocation5 + $0x190] sm:$0xff]
    %v186 = vld [vmem:[#allocation5 + $0x198] sm:$0xff]
    %v187 = vld [vmem:[#allocation5 + $0x1a0] sm:$0xff]
    %v188 = vld [vmem:[#allocation5 + $0x1a8] sm:$0xff]
    %v189 = vld [vmem:[#allocation5 + $0x1b0] sm:$0xff]
    %v190 = vld [vmem:[#allocation5 + $0x1b8] sm:$0xff]
    %v191 = vld [vmem:[#allocation5 + $0x1c0] sm:$0xff]
    %v192 = vld [vmem:[#allocation5 + $0x1c8] sm:$0xff]
    %v193 = vld [vmem:[#allocation5 + $0x1d0] sm:$0xff]
    %v194 = vld [vmem:[#allocation5 + $0x1d8] sm:$0xff]
    %v195 = vld [vmem:[#allocation5 + $0x1e0] sm:$0xff]
    %v196 = vld [vmem:[#allocation5 + $0x1e8] sm:$0xff]
    %v197 = vld [vmem:[#allocation5 + $0x1f0] sm:$0xff]
    %v198 = vld [vmem:[#allocation5 + $0x1f8] sm:$0xff]
    %v199 = vlaneseq
    %v200 = vshrl.u32 %v199, 7
    %v201 = vsub.s32 0, %v200
    %v202 = vrot.slane %v125, %v201
    %v203 = vlaneseq
    %v204 = vshrl.u32 %v203, 7
    %v205 = vsub.s32 0, %v204
    %v206 = vrot.slane %v126, %v205
    %v207 = vlaneseq
    %v208 = vshrl.u32 %v207, 7
    %v209 = vsub.s32 0, %v208
    %v210 = vrot.slane %v127, %v209
    %v211 = vlaneseq
    %v212 = vshrl.u32 %v211, 7
    %v213 = vsub.s32 0, %v212
    %v214 = vrot.slane %v128, %v213
    %v215 = vlaneseq
    %v216 = vshrl.u32 %v215, 7
    %v217 = vsub.s32 0, %v216
    %v218 = vrot.slane %v129, %v217
    %v219 = vlaneseq
    %v220 = vshrl.u32 %v219, 7
    %v221 = vsub.s32 0, %v220
    %v222 = vrot.slane %v130, %v221
    %v223 = vlaneseq
    %v224 = vshrl.u32 %v223, 7
    %v225 = vsub.s32 0, %v224
    %v226 = vrot.slane %v131, %v225
    %v227 = vlaneseq
    %v228 = vshrl.u32 %v227, 7
    %v229 = vsub.s32 0, %v228
    %v230 = vrot.slane %v132, %v229
    %v295 = vunpack.c.l.b16 %v135
    %v296 = vunpack.c.h.b16 %v135
    %v297 = vunpack.c.l.b16 %v136
    %v298 = vunpack.c.h.b16 %v136
    %v299 = vunpack.c.l.b16 %v137
    %v300 = vunpack.c.h.b16 %v137
    %v301 = vunpack.c.l.b16 %v138
    %v302 = vunpack.c.h.b16 %v138
    %v303 = vunpack.c.l.b16 %v139
    %v304 = vunpack.c.h.b16 %v139
    %v305 = vunpack.c.l.b16 %v140
    %v306 = vunpack.c.h.b16 %v140
    %v307 = vunpack.c.l.b16 %v141
    %v308 = vunpack.c.h.b16 %v141
    %v309 = vunpack.c.l.b16 %v142
    %v310 = vunpack.c.h.b16 %v142
    %v311 = vunpack.c.l.b16 %v143
    %v312 = vunpack.c.h.b16 %v143
    %v313 = vunpack.c.l.b16 %v144
    %v314 = vunpack.c.h.b16 %v144
    %v315 = vunpack.c.l.b16 %v145
    %v316 = vunpack.c.h.b16 %v145
    %v317 = vunpack.c.l.b16 %v146
    %v318 = vunpack.c.h.b16 %v146
    %v319 = vunpack.c.l.b16 %v147
    %v320 = vunpack.c.h.b16 %v147
    %v321 = vunpack.c.l.b16 %v148
    %v322 = vunpack.c.h.b16 %v148
    %v323 = vunpack.c.l.b16 %v149
    %v324 = vunpack.c.h.b16 %v149
    %v325 = vunpack.c.l.b16 %v150
    %v326 = vunpack.c.h.b16 %v150
    %v327 = vunpack.c.l.b16 %v151
    %v328 = vunpack.c.h.b16 %v151
    %v329 = vunpack.c.l.b16 %v152
    %v330 = vunpack.c.h.b16 %v152
    %v331 = vunpack.c.l.b16 %v153
    %v332 = vunpack.c.h.b16 %v153
    %v333 = vunpack.c.l.b16 %v154
    %v334 = vunpack.c.h.b16 %v154
    %v335 = vunpack.c.l.b16 %v155
    %v336 = vunpack.c.h.b16 %v155
    %v337 = vunpack.c.l.b16 %v156
    %v338 = vunpack.c.h.b16 %v156
    %v339 = vunpack.c.l.b16 %v157
    %v340 = vunpack.c.h.b16 %v157
    %v341 = vunpack.c.l.b16 %v158
    %v342 = vunpack.c.h.b16 %v158
    %v343 = vunpack.c.l.b16 %v159
    %v344 = vunpack.c.h.b16 %v159
    %v345 = vunpack.c.l.b16 %v160
    %v346 = vunpack.c.h.b16 %v160
    %v347 = vunpack.c.l.b16 %v161
    %v348 = vunpack.c.h.b16 %v161
    %v349 = vunpack.c.l.b16 %v162
    %v350 = vunpack.c.h.b16 %v162
    %v351 = vunpack.c.l.b16 %v163
    %v352 = vunpack.c.h.b16 %v163
    %v353 = vunpack.c.l.b16 %v164
    %v354 = vunpack.c.h.b16 %v164
    %v355 = vunpack.c.l.b16 %v165
    %v356 = vunpack.c.h.b16 %v165
    %v357 = vunpack.c.l.b16 %v166
    %v358 = vunpack.c.h.b16 %v166
    %v359 = vunpack.c.l.b16 %v167
    %v360 = vunpack.c.h.b16 %v167
    %v361 = vunpack.c.l.b16 %v168
    %v362 = vunpack.c.h.b16 %v168
    %v363 = vunpack.c.l.b16 %v169
    %v364 = vunpack.c.h.b16 %v169
    %v365 = vunpack.c.l.b16 %v170
    %v366 = vunpack.c.h.b16 %v170
    %v367 = vunpack.c.l.b16 %v171
    %v368 = vunpack.c.h.b16 %v171
    %v369 = vunpack.c.l.b16 %v172
    %v370 = vunpack.c.h.b16 %v172
    %v371 = vunpack.c.l.b16 %v173
    %v372 = vunpack.c.h.b16 %v173
    %v373 = vunpack.c.l.b16 %v174
    %v374 = vunpack.c.h.b16 %v174
    %v375 = vunpack.c.l.b16 %v175
    %v376 = vunpack.c.h.b16 %v175
    %v377 = vunpack.c.l.b16 %v176
    %v378 = vunpack.c.h.b16 %v176
    %v379 = vunpack.c.l.b16 %v177
    %v380 = vunpack.c.h.b16 %v177
    %v381 = vunpack.c.l.b16 %v178
    %v382 = vunpack.c.h.b16 %v178
    %v383 = vunpack.c.l.b16 %v179
    %v384 = vunpack.c.h.b16 %v179
    %v385 = vunpack.c.l.b16 %v180
    %v386 = vunpack.c.h.b16 %v180
    %v387 = vunpack.c.l.b16 %v181
    %v388 = vunpack.c.h.b16 %v181
    %v389 = vunpack.c.l.b16 %v182
    %v390 = vunpack.c.h.b16 %v182
    %v391 = vunpack.c.l.b16 %v183
    %v392 = vunpack.c.h.b16 %v183
    %v393 = vunpack.c.l.b16 %v184
    %v394 = vunpack.c.h.b16 %v184
    %v395 = vunpack.c.l.b16 %v185
    %v396 = vunpack.c.h.b16 %v185
    %v397 = vunpack.c.l.b16 %v186
    %v398 = vunpack.c.h.b16 %v186
    %v399 = vunpack.c.l.b16 %v187
    %v400 = vunpack.c.h.b16 %v187
    %v401 = vunpack.c.l.b16 %v188
    %v402 = vunpack.c.h.b16 %v188
    %v403 = vunpack.c.l.b16 %v189
    %v404 = vunpack.c.h.b16 %v189
    %v405 = vunpack.c.l.b16 %v190
    %v406 = vunpack.c.h.b16 %v190
    %v407 = vunpack.c.l.b16 %v191
    %v408 = vunpack.c.h.b16 %v191
    %v409 = vunpack.c.l.b16 %v192
    %v410 = vunpack.c.h.b16 %v192
    %v411 = vunpack.c.l.b16 %v193
    %v412 = vunpack.c.h.b16 %v193
    %v413 = vunpack.c.l.b16 %v194
    %v414 = vunpack.c.h.b16 %v194
    %v415 = vunpack.c.l.b16 %v195
    %v416 = vunpack.c.h.b16 %v195
    %v417 = vunpack.c.l.b16 %v196
    %v418 = vunpack.c.h.b16 %v196
    %v419 = vunpack.c.l.b16 %v197
    %v420 = vunpack.c.h.b16 %v197
    %v421 = vunpack.c.l.b16 %v198
    %v422 = vunpack.c.h.b16 %v198
    %v423 = vpack.c.b16 %v303, %v295
    %v424 = vpack.c.b16 %v304, %v296
    %v425 = vpack.c.b16 %v305, %v297
    %v426 = vpack.c.b16 %v306, %v298
    %v427 = vpack.c.b16 %v307, %v299
    %v428 = vpack.c.b16 %v308, %v300
    %v429 = vpack.c.b16 %v309, %v301
    %v430 = vpack.c.b16 %v310, %v302
    %v431 = vpack.c.b16 %v319, %v311
    %v432 = vpack.c.b16 %v320, %v312
    %v433 = vpack.c.b16 %v321, %v313
    %v434 = vpack.c.b16 %v322, %v314
    %v435 = vpack.c.b16 %v323, %v315
    %v436 = vpack.c.b16 %v324, %v316
    %v437 = vpack.c.b16 %v325, %v317
    %v438 = vpack.c.b16 %v326, %v318
    %v439 = vpack.c.b16 %v335, %v327
    %v440 = vpack.c.b16 %v336, %v328
    %v441 = vpack.c.b16 %v337, %v329
    %v442 = vpack.c.b16 %v338, %v330
    %v443 = vpack.c.b16 %v339, %v331
    %v444 = vpack.c.b16 %v340, %v332
    %v445 = vpack.c.b16 %v341, %v333
    %v446 = vpack.c.b16 %v342, %v334
    %v447 = vpack.c.b16 %v351, %v343
    %v448 = vpack.c.b16 %v352, %v344
    %v449 = vpack.c.b16 %v353, %v345
    %v450 = vpack.c.b16 %v354, %v346
    %v451 = vpack.c.b16 %v355, %v347
    %v452 = vpack.c.b16 %v356, %v348
    %v453 = vpack.c.b16 %v357, %v349
    %v454 = vpack.c.b16 %v358, %v350
    %v455 = vpack.c.b16 %v367, %v359
    %v456 = vpack.c.b16 %v368, %v360
    %v457 = vpack.c.b16 %v369, %v361
    %v458 = vpack.c.b16 %v370, %v362
    %v459 = vpack.c.b16 %v371, %v363
    %v460 = vpack.c.b16 %v372, %v364
    %v461 = vpack.c.b16 %v373, %v365
    %v462 = vpack.c.b16 %v374, %v366
    %v463 = vpack.c.b16 %v383, %v375
    %v464 = vpack.c.b16 %v384, %v376
    %v465 = vpack.c.b16 %v385, %v377
    %v466 = vpack.c.b16 %v386, %v378
    %v467 = vpack.c.b16 %v387, %v379
    %v468 = vpack.c.b16 %v388, %v380
    %v469 = vpack.c.b16 %v389, %v381
    %v470 = vpack.c.b16 %v390, %v382
    %v471 = vpack.c.b16 %v399, %v391
    %v472 = vpack.c.b16 %v400, %v392
    %v473 = vpack.c.b16 %v401, %v393
    %v474 = vpack.c.b16 %v402, %v394
    %v475 = vpack.c.b16 %v403, %v395
    %v476 = vpack.c.b16 %v404, %v396
    %v477 = vpack.c.b16 %v405, %v397
    %v478 = vpack.c.b16 %v406, %v398
    %v479 = vpack.c.b16 %v415, %v407
    %v480 = vpack.c.b16 %v416, %v408
    %v481 = vpack.c.b16 %v417, %v409
    %v482 = vpack.c.b16 %v418, %v410
    %v483 = vpack.c.b16 %v419, %v411
    %v484 = vpack.c.b16 %v420, %v412
    %v485 = vpack.c.b16 %v421, %v413
    %v486 = vpack.c.b16 %v422, %v414
    %551 = vmatprep.subr.bf16.mxu0 %v424
    %552 = vmatpush1.bf16.msra.mxu0 %v423
    %553 = vmatprep.subr.bf16.mxu0 %v432
    %554 = vmatpush1.bf16.msra.mxu0 %v431
    %555 = vmatprep.subr.bf16.mxu0 %v440
    %556 = vmatpush1.bf16.msra.mxu0 %v439
    %557 = vmatprep.subr.bf16.mxu0 %v448
    %558 = vmatpush1.bf16.msra.mxu0 %v447
    %559 = vmatprep.subr.bf16.mxu0 %v456
    %560 = vmatpush1.bf16.msra.mxu0 %v455
    %561 = vmatprep.subr.bf16.mxu0 %v464
    %562 = vmatpush1.bf16.msra.mxu0 %v463
    %563 = vmatprep.subr.bf16.mxu0 %v472
    %564 = vmatpush1.bf16.msra.mxu0 %v471
    %565 = vmatprep.subr.bf16.mxu0 %v480
    %566 = vmatpush1.bf16.msra.mxu0 %v479
    %567 = vmatprep.subr.bf16.mxu0 0
    %568 = vmatpush1.bf16.msra.mxu0 0
    %569 = vmatprep.subr.bf16.mxu0 0
    %570 = vmatpush1.bf16.msra.mxu0 0
    %571 = vmatprep.subr.bf16.mxu0 0
    %572 = vmatpush1.bf16.msra.mxu0 0
    %573 = vmatprep.subr.bf16.mxu0 0
    %574 = vmatpush1.bf16.msra.mxu0 0
    %575 = vmatprep.subr.bf16.mxu0 0
    %576 = vmatpush1.bf16.msra.mxu0 0
    %577 = vmatprep.subr.bf16.mxu0 0
    %578 = vmatpush1.bf16.msra.mxu0 0
    %579 = vmatprep.subr.bf16.mxu0 0
    %580 = vmatpush1.bf16.msra.mxu0 0
    %581 = vmatprep.subr.bf16.mxu0 0
    %582 = vmatpush1.bf16.msra.mxu0 0
    %583 = vmatprep.mubr.bf16.mxu0 0
    %584 = vmatmul.mubr.bf16.gmra.mrb[0].mxu0 %v134
    %v585 = vpop.f32.mrb[0].mxu0
    %v586 = vadd.f32 %v202, %v585
    %v587 = vpop.f32.mrb[0].mxu0
    %v588 = vadd.f32 %v206, %v587
    %v589 = vpop.f32.mrb[0].mxu0
    %v590 = vpop.f32.mrb[0].mxu0
    %591 = vdwg.mxu0
    %592 = vmatprep.subr.bf16.mxu0 %v426
    %593 = vmatpush1.bf16.msra.mxu0 %v425
    %594 = vmatprep.subr.bf16.mxu0 %v434
    %595 = vmatpush1.bf16.msra.mxu0 %v433
    %596 = vmatprep.subr.bf16.mxu0 %v442
    %597 = vmatpush1.bf16.msra.mxu0 %v441
    %598 = vmatprep.subr.bf16.mxu0 %v450
    %599 = vmatpush1.bf16.msra.mxu0 %v449
    %600 = vmatprep.subr.bf16.mxu0 %v458
    %601 = vmatpush1.bf16.msra.mxu0 %v457
    %602 = vmatprep.subr.bf16.mxu0 %v466
    %603 = vmatpush1.bf16.msra.mxu0 %v465
    %604 = vmatprep.subr.bf16.mxu0 %v474
    %605 = vmatpush1.bf16.msra.mxu0 %v473
    %606 = vmatprep.subr.bf16.mxu0 %v482
    %607 = vmatpush1.bf16.msra.mxu0 %v481
    %608 = vmatprep.subr.bf16.mxu0 0
    %609 = vmatpush1.bf16.msra.mxu0 0
    %610 = vmatprep.subr.bf16.mxu0 0
    %611 = vmatpush1.bf16.msra.mxu0 0
    %612 = vmatprep.subr.bf16.mxu0 0
    %613 = vmatpush1.bf16.msra.mxu0 0
    %614 = vmatprep.subr.bf16.mxu0 0
    %615 = vmatpush1.bf16.msra.mxu0 0
    %616 = vmatprep.subr.bf16.mxu0 0
    %617 = vmatpush1.bf16.msra.mxu0 0
    %618 = vmatprep.subr.bf16.mxu0 0
    %619 = vmatpush1.bf16.msra.mxu0 0
    %620 = vmatprep.subr.bf16.mxu0 0
    %621 = vmatpush1.bf16.msra.mxu0 0
    %622 = vmatprep.subr.bf16.mxu0 0
    %623 = vmatpush1.bf16.msra.mxu0 0
    %624 = vmatprep.mubr.bf16.mxu0 0
    %625 = vmatmul.mubr.bf16.gmra.mrb[0].mxu0 %v134
    %v626 = vpop.f32.mrb[0].mxu0
    %v627 = vadd.f32 %v210, %v626
    %v628 = vpop.f32.mrb[0].mxu0
    %v629 = vadd.f32 %v214, %v628
    %v630 = vpop.f32.mrb[0].mxu0
    %v631 = vpop.f32.mrb[0].mxu0
    %632 = vdwg.mxu0
    %633 = vmatprep.subr.bf16.mxu0 %v428
    %634 = vmatpush1.bf16.msra.mxu0 %v427
    %635 = vmatprep.subr.bf16.mxu0 %v436
    %636 = vmatpush1.bf16.msra.mxu0 %v435
    %637 = vmatprep.subr.bf16.mxu0 %v444
    %638 = vmatpush1.bf16.msra.mxu0 %v443
    %639 = vmatprep.subr.bf16.mxu0 %v452
    %640 = vmatpush1.bf16.msra.mxu0 %v451
    %641 = vmatprep.subr.bf16.mxu0 %v460
    %642 = vmatpush1.bf16.msra.mxu0 %v459
    %643 = vmatprep.subr.bf16.mxu0 %v468
    %644 = vmatpush1.bf16.msra.mxu0 %v467
    %645 = vmatprep.subr.bf16.mxu0 %v476
    %646 = vmatpush1.bf16.msra.mxu0 %v475
    %647 = vmatprep.subr.bf16.mxu0 %v484
    %648 = vmatpush1.bf16.msra.mxu0 %v483
    %649 = vmatprep.subr.bf16.mxu0 0
    %650 = vmatpush1.bf16.msra.mxu0 0
    %651 = vmatprep.subr.bf16.mxu0 0
    %652 = vmatpush1.bf16.msra.mxu0 0
    %653 = vmatprep.subr.bf16.mxu0 0
    %654 = vmatpush1.bf16.msra.mxu0 0
    %655 = vmatprep.subr.bf16.mxu0 0
    %656 = vmatpush1.bf16.msra.mxu0 0
    %657 = vmatprep.subr.bf16.mxu0 0
    %658 = vmatpush1.bf16.msra.mxu0 0
    %659 = vmatprep.subr.bf16.mxu0 0
    %660 = vmatpush1.bf16.msra.mxu0 0
    %661 = vmatprep.subr.bf16.mxu0 0
    %662 = vmatpush1.bf16.msra.mxu0 0
    %663 = vmatprep.subr.bf16.mxu0 0
    %664 = vmatpush1.bf16.msra.mxu0 0
    %665 = vmatprep.mubr.bf16.mxu0 0
    %666 = vmatmul.mubr.bf16.gmra.mrb[0].mxu0 %v134
    %v667 = vpop.f32.mrb[0].mxu0
    %v668 = vadd.f32 %v218, %v667
    %v669 = vpop.f32.mrb[0].mxu0
    %v670 = vadd.f32 %v222, %v669
    %v671 = vpop.f32.mrb[0].mxu0
    %v672 = vpop.f32.mrb[0].mxu0
    %673 = vdwg.mxu0
    %674 = vmatprep.subr.bf16.mxu0 %v430
    %675 = vmatpush1.bf16.msra.mxu0 %v429
    %676 = vmatprep.subr.bf16.mxu0 %v438
    %677 = vmatpush1.bf16.msra.mxu0 %v437
    %678 = vmatprep.subr.bf16.mxu0 %v446
    %679 = vmatpush1.bf16.msra.mxu0 %v445
    %680 = vmatprep.subr.bf16.mxu0 %v454
    %681 = vmatpush1.bf16.msra.mxu0 %v453
    %682 = vmatprep.subr.bf16.mxu0 %v462
    %683 = vmatpush1.bf16.msra.mxu0 %v461
    %684 = vmatprep.subr.bf16.mxu0 %v470
    %685 = vmatpush1.bf16.msra.mxu0 %v469
    %686 = vmatprep.subr.bf16.mxu0 %v478
    %687 = vmatpush1.bf16.msra.mxu0 %v477
    %688 = vmatprep.subr.bf16.mxu0 %v486
    %689 = vmatpush1.bf16.msra.mxu0 %v485
    %690 = vmatprep.subr.bf16.mxu0 0
    %691 = vmatpush1.bf16.msra.mxu0 0
    %692 = vmatprep.subr.bf16.mxu0 0
    %693 = vmatpush1.bf16.msra.mxu0 0
    %694 = vmatprep.subr.bf16.mxu0 0
    %695 = vmatpush1.bf16.msra.mxu0 0
    %696 = vmatprep.subr.bf16.mxu0 0
    %697 = vmatpush1.bf16.msra.mxu0 0
    %698 = vmatprep.subr.bf16.mxu0 0
    %699 = vmatpush1.bf16.msra.mxu0 0
    %700 = vmatprep.subr.bf16.mxu0 0
    %701 = vmatpush1.bf16.msra.mxu0 0
    %702 = vmatprep.subr.bf16.mxu0 0
    %703 = vmatpush1.bf16.msra.mxu0 0
    %704 = vmatprep.subr.bf16.mxu0 0
    %705 = vmatpush1.bf16.msra.mxu0 0
    %706 = vmatprep.mubr.bf16.mxu0 0
    %707 = vmatmul.mubr.bf16.gmra.mrb[0].mxu0 %v134
    %v708 = vpop.f32.mrb[0].mxu0
    %v709 = vadd.f32 %v226, %v708
    %v710 = vpop.f32.mrb[0].mxu0
    %v711 = vadd.f32 %v230, %v710
    %v712 = vpop.f32.mrb[0].mxu0
    %v713 = vpop.f32.mrb[0].mxu0
    %714 = vdwg.mxu0
    %v715 = vmax.f32 %v586, 0.0
    %v716 = vmax.f32 %v588, 0.0
    %v717 = vmax.f32 %v627, 0.0
    %v718 = vmax.f32 %v629, 0.0
    %v719 = vmax.f32 %v668, 0.0
    %v720 = vmax.f32 %v670, 0.0
    %v721 = vmax.f32 %v709, 0.0
    %v722 = vmax.f32 %v711, 0.0
    %v723 = vpack.c.bf16 %v715, %v715
    %v724 = vpack.c.bf16 %v716, %v716
    %v725 = vpack.c.bf16 %v717, %v717
    %v726 = vpack.c.bf16 %v718, %v718
    %v727 = vpack.c.bf16 %v719, %v719
    %v728 = vpack.c.bf16 %v720, %v720
    %v729 = vpack.c.bf16 %v721, %v721
    %v730 = vpack.c.bf16 %v722, %v722
    %v731 = vld [vmem:[#allocation7] sm:$0xff]
    %v732 = vld [vmem:[#allocation7 + $0x8] sm:$0xff]
    %v733 = vld [vmem:[#allocation7 + $0x10] sm:$0xff]
    %v734 = vld [vmem:[#allocation7 + $0x18] sm:$0xff]
    %v735 = vld [vmem:[#allocation7 + $0x20] sm:$0xff]
    %v736 = vld [vmem:[#allocation7 + $0x28] sm:$0xff]
    %v737 = vld [vmem:[#allocation7 + $0x30] sm:$0xff]
    %v738 = vld [vmem:[#allocation7 + $0x38] sm:$0xff]
    %v739 = vld [vmem:[#allocation7 + $0x40] sm:$0xff]
    %v740 = vld [vmem:[#allocation7 + $0x48] sm:$0xff]
    %v741 = vld [vmem:[#allocation7 + $0x50] sm:$0xff]
    %v742 = vld [vmem:[#allocation7 + $0x58] sm:$0xff]
    %v743 = vld [vmem:[#allocation7 + $0x60] sm:$0xff]
    %v744 = vld [vmem:[#allocation7 + $0x68] sm:$0xff]
    %v745 = vld [vmem:[#allocation7 + $0x70] sm:$0xff]
    %v746 = vld [vmem:[#allocation7 + $0x78] sm:$0xff]
    %v747 = vld [vmem:[#allocation7 + $0x80] sm:$0xff]
    %v748 = vld [vmem:[#allocation7 + $0x88] sm:$0xff]
    %v749 = vld [vmem:[#allocation7 + $0x90] sm:$0xff]
    %v750 = vld [vmem:[#allocation7 + $0x98] sm:$0xff]
    %v751 = vld [vmem:[#allocation7 + $0xa0] sm:$0xff]
    %v752 = vld [vmem:[#allocation7 + $0xa8] sm:$0xff]
    %v753 = vld [vmem:[#allocation7 + $0xb0] sm:$0xff]
    %v754 = vld [vmem:[#allocation7 + $0xb8] sm:$0xff]
    %v755 = vld [vmem:[#allocation7 + $0xc0] sm:$0xff]
    %v756 = vld [vmem:[#allocation7 + $0xc8] sm:$0xff]
    %v757 = vld [vmem:[#allocation7 + $0xd0] sm:$0xff]
    %v758 = vld [vmem:[#allocation7 + $0xd8] sm:$0xff]
    %v759 = vld [vmem:[#allocation7 + $0xe0] sm:$0xff]
    %v760 = vld [vmem:[#allocation7 + $0xe8] sm:$0xff]
    %v761 = vld [vmem:[#allocation7 + $0xf0] sm:$0xff]
    %v762 = vld [vmem:[#allocation7 + $0xf8] sm:$0xff]
    %v763 = vld [vmem:[#allocation7 + $0x100] sm:$0xff]
    %v764 = vld [vmem:[#allocation7 + $0x108] sm:$0xff]
    %v765 = vld [vmem:[#allocation7 + $0x110] sm:$0xff]
    %v766 = vld [vmem:[#allocation7 + $0x118] sm:$0xff]
    %v767 = vld [vmem:[#allocation7 + $0x120] sm:$0xff]
    %v768 = vld [vmem:[#allocation7 + $0x128] sm:$0xff]
    %v769 = vld [vmem:[#allocation7 + $0x130] sm:$0xff]
    %v770 = vld [vmem:[#allocation7 + $0x138] sm:$0xff]
    %v771 = vld [vmem:[#allocation7 + $0x140] sm:$0xff]
    %v772 = vld [vmem:[#allocation7 + $0x148] sm:$0xff]
    %v773 = vld [vmem:[#allocation7 + $0x150] sm:$0xff]
    %v774 = vld [vmem:[#allocation7 + $0x158] sm:$0xff]
    %v775 = vld [vmem:[#allocation7 + $0x160] sm:$0xff]
    %v776 = vld [vmem:[#allocation7 + $0x168] sm:$0xff]
    %v777 = vld [vmem:[#allocation7 + $0x170] sm:$0xff]
    %v778 = vld [vmem:[#allocation7 + $0x178] sm:$0xff]
    %v779 = vld [vmem:[#allocation7 + $0x180] sm:$0xff]
    %v780 = vld [vmem:[#allocation7 + $0x188] sm:$0xff]
    %v781 = vld [vmem:[#allocation7 + $0x190] sm:$0xff]
    %v782 = vld [vmem:[#allocation7 + $0x198] sm:$0xff]
    %v783 = vld [vmem:[#allocation7 + $0x1a0] sm:$0xff]
    %v784 = vld [vmem:[#allocation7 + $0x1a8] sm:$0xff]
    %v785 = vld [vmem:[#allocation7 + $0x1b0] sm:$0xff]
    %v786 = vld [vmem:[#allocation7 + $0x1b8] sm:$0xff]
    %v787 = vld [vmem:[#allocation7 + $0x1c0] sm:$0xff]
    %v788 = vld [vmem:[#allocation7 + $0x1c8] sm:$0xff]
    %v789 = vld [vmem:[#allocation7 + $0x1d0] sm:$0xff]
    %v790 = vld [vmem:[#allocation7 + $0x1d8] sm:$0xff]
    %v791 = vld [vmem:[#allocation7 + $0x1e0] sm:$0xff]
    %v792 = vld [vmem:[#allocation7 + $0x1e8] sm:$0xff]
    %v793 = vld [vmem:[#allocation7 + $0x1f0] sm:$0xff]
    %v794 = vld [vmem:[#allocation7 + $0x1f8] sm:$0xff]
    %v795 = vld [vmem:[#allocation7 + $0x200] sm:$0xff]
    %v796 = vld [vmem:[#allocation7 + $0x208] sm:$0xff]
    %v797 = vld [vmem:[#allocation7 + $0x210] sm:$0xff]
    %v798 = vld [vmem:[#allocation7 + $0x218] sm:$0xff]
    %v799 = vld [vmem:[#allocation7 + $0x220] sm:$0xff]
    %v800 = vld [vmem:[#allocation7 + $0x228] sm:$0xff]
    %v801 = vld [vmem:[#allocation7 + $0x230] sm:$0xff]
    %v802 = vld [vmem:[#allocation7 + $0x238] sm:$0xff]
    %v803 = vld [vmem:[#allocation7 + $0x240] sm:$0xff]
    %v804 = vld [vmem:[#allocation7 + $0x248] sm:$0xff]
    %v805 = vld [vmem:[#allocation7 + $0x250] sm:$0xff]
    %v806 = vld [vmem:[#allocation7 + $0x258] sm:$0xff]
    %v807 = vld [vmem:[#allocation7 + $0x260] sm:$0xff]
    %v808 = vld [vmem:[#allocation7 + $0x268] sm:$0xff]
    %v809 = vld [vmem:[#allocation7 + $0x270] sm:$0xff]
    %v810 = vld [vmem:[#allocation7 + $0x278] sm:$0xff]
    %v811 = vld [vmem:[#allocation7 + $0x280] sm:$0xff]
    %v812 = vld [vmem:[#allocation7 + $0x288] sm:$0xff]
    %v813 = vld [vmem:[#allocation7 + $0x290] sm:$0xff]
    %v814 = vld [vmem:[#allocation7 + $0x298] sm:$0xff]
    %v815 = vld [vmem:[#allocation7 + $0x2a0] sm:$0xff]
    %v816 = vld [vmem:[#allocation7 + $0x2a8] sm:$0xff]
    %v817 = vld [vmem:[#allocation7 + $0x2b0] sm:$0xff]
    %v818 = vld [vmem:[#allocation7 + $0x2b8] sm:$0xff]
    %v819 = vld [vmem:[#allocation7 + $0x2c0] sm:$0xff]
    %v820 = vld [vmem:[#allocation7 + $0x2c8] sm:$0xff]
    %v821 = vld [vmem:[#allocation7 + $0x2d0] sm:$0xff]
    %v822 = vld [vmem:[#allocation7 + $0x2d8] sm:$0xff]
    %v823 = vld [vmem:[#allocation7 + $0x2e0] sm:$0xff]
    %v824 = vld [vmem:[#allocation7 + $0x2e8] sm:$0xff]
    %v825 = vld [vmem:[#allocation7 + $0x2f0] sm:$0xff]
    %v826 = vld [vmem:[#allocation7 + $0x2f8] sm:$0xff]
    %v827 = vld [vmem:[#allocation7 + $0x300] sm:$0xff]
    %v828 = vld [vmem:[#allocation7 + $0x308] sm:$0xff]
    %v829 = vld [vmem:[#allocation7 + $0x310] sm:$0xff]
    %v830 = vld [vmem:[#allocation7 + $0x318] sm:$0xff]
    %v831 = vld [vmem:[#allocation7 + $0x320] sm:$0xff]
    %v832 = vld [vmem:[#allocation7 + $0x328] sm:$0xff]
    %v833 = vld [vmem:[#allocation7 + $0x330] sm:$0xff]
    %v834 = vld [vmem:[#allocation7 + $0x338] sm:$0xff]
    %v835 = vld [vmem:[#allocation7 + $0x340] sm:$0xff]
    %v836 = vld [vmem:[#allocation7 + $0x348] sm:$0xff]
    %v837 = vld [vmem:[#allocation7 + $0x350] sm:$0xff]
    %v838 = vld [vmem:[#allocation7 + $0x358] sm:$0xff]
    %v839 = vld [vmem:[#allocation7 + $0x360] sm:$0xff]
    %v840 = vld [vmem:[#allocation7 + $0x368] sm:$0xff]
    %v841 = vld [vmem:[#allocation7 + $0x370] sm:$0xff]
    %v842 = vld [vmem:[#allocation7 + $0x378] sm:$0xff]
    %v843 = vld [vmem:[#allocation7 + $0x380] sm:$0xff]
    %v844 = vld [vmem:[#allocation7 + $0x388] sm:$0xff]
    %v845 = vld [vmem:[#allocation7 + $0x390] sm:$0xff]
    %v846 = vld [vmem:[#allocation7 + $0x398] sm:$0xff]
    %v847 = vld [vmem:[#allocation7 + $0x3a0] sm:$0xff]
    %v848 = vld [vmem:[#allocation7 + $0x3a8] sm:$0xff]
    %v849 = vld [vmem:[#allocation7 + $0x3b0] sm:$0xff]
    %v850 = vld [vmem:[#allocation7 + $0x3b8] sm:$0xff]
    %v851 = vld [vmem:[#allocation7 + $0x3c0] sm:$0xff]
    %v852 = vld [vmem:[#allocation7 + $0x3c8] sm:$0xff]
    %v853 = vld [vmem:[#allocation7 + $0x3d0] sm:$0xff]
    %v854 = vld [vmem:[#allocation7 + $0x3d8] sm:$0xff]
    %v855 = vld [vmem:[#allocation7 + $0x3e0] sm:$0xff]
    %v856 = vld [vmem:[#allocation7 + $0x3e8] sm:$0xff]
    %v857 = vld [vmem:[#allocation7 + $0x3f0] sm:$0xff]
    %v858 = vld [vmem:[#allocation7 + $0x3f8] sm:$0xff]
    %v859 = vld [vmem:[#allocation7 + $0x400] sm:$0xff]
    %v860 = vld [vmem:[#allocation7 + $0x408] sm:$0xff]
    %v861 = vld [vmem:[#allocation7 + $0x410] sm:$0xff]
    %v862 = vld [vmem:[#allocation7 + $0x418] sm:$0xff]
    %v863 = vld [vmem:[#allocation7 + $0x420] sm:$0xff]
    %v864 = vld [vmem:[#allocation7 + $0x428] sm:$0xff]
    %v865 = vld [vmem:[#allocation7 + $0x430] sm:$0xff]
    %v866 = vld [vmem:[#allocation7 + $0x438] sm:$0xff]
    %v867 = vld [vmem:[#allocation7 + $0x440] sm:$0xff]
    %v868 = vld [vmem:[#allocation7 + $0x448] sm:$0xff]
    %v869 = vld [vmem:[#allocation7 + $0x450] sm:$0xff]
    %v870 = vld [vmem:[#allocation7 + $0x458] sm:$0xff]
    %v871 = vld [vmem:[#allocation7 + $0x460] sm:$0xff]
    %v872 = vld [vmem:[#allocation7 + $0x468] sm:$0xff]
    %v873 = vld [vmem:[#allocation7 + $0x470] sm:$0xff]
    %v874 = vld [vmem:[#allocation7 + $0x478] sm:$0xff]
    %v875 = vld [vmem:[#allocation7 + $0x480] sm:$0xff]
    %v876 = vld [vmem:[#allocation7 + $0x488] sm:$0xff]
    %v877 = vld [vmem:[#allocation7 + $0x490] sm:$0xff]
    %v878 = vld [vmem:[#allocation7 + $0x498] sm:$0xff]
    %v879 = vld [vmem:[#allocation7 + $0x4a0] sm:$0xff]
    %v880 = vld [vmem:[#allocation7 + $0x4a8] sm:$0xff]
    %v881 = vld [vmem:[#allocation7 + $0x4b0] sm:$0xff]
    %v882 = vld [vmem:[#allocation7 + $0x4b8] sm:$0xff]
    %v883 = vld [vmem:[#allocation7 + $0x4c0] sm:$0xff]
    %v884 = vld [vmem:[#allocation7 + $0x4c8] sm:$0xff]
    %v885 = vld [vmem:[#allocation7 + $0x4d0] sm:$0xff]
    %v886 = vld [vmem:[#allocation7 + $0x4d8] sm:$0xff]
    %v887 = vld [vmem:[#allocation7 + $0x4e0] sm:$0xff]
    %v888 = vld [vmem:[#allocation7 + $0x4e8] sm:$0xff]
    %v889 = vld [vmem:[#allocation7 + $0x4f0] sm:$0xff]
    %v890 = vld [vmem:[#allocation7 + $0x4f8] sm:$0xff]
    %v891 = vld [vmem:[#allocation7 + $0x500] sm:$0xff]
    %v892 = vld [vmem:[#allocation7 + $0x508] sm:$0xff]
    %v893 = vld [vmem:[#allocation7 + $0x510] sm:$0xff]
    %v894 = vld [vmem:[#allocation7 + $0x518] sm:$0xff]
    %v895 = vld [vmem:[#allocation7 + $0x520] sm:$0xff]
    %v896 = vld [vmem:[#allocation7 + $0x528] sm:$0xff]
    %v897 = vld [vmem:[#allocation7 + $0x530] sm:$0xff]
    %v898 = vld [vmem:[#allocation7 + $0x538] sm:$0xff]
    %v899 = vld [vmem:[#allocation7 + $0x540] sm:$0xff]
    %v900 = vld [vmem:[#allocation7 + $0x548] sm:$0xff]
    %v901 = vld [vmem:[#allocation7 + $0x550] sm:$0xff]
    %v902 = vld [vmem:[#allocation7 + $0x558] sm:$0xff]
    %v903 = vld [vmem:[#allocation7 + $0x560] sm:$0xff]
    %v904 = vld [vmem:[#allocation7 + $0x568] sm:$0xff]
    %v905 = vld [vmem:[#allocation7 + $0x570] sm:$0xff]
    %v906 = vld [vmem:[#allocation7 + $0x578] sm:$0xff]
    %v907 = vld [vmem:[#allocation7 + $0x580] sm:$0xff]
    %v908 = vld [vmem:[#allocation7 + $0x588] sm:$0xff]
    %v909 = vld [vmem:[#allocation7 + $0x590] sm:$0xff]
    %v910 = vld [vmem:[#allocation7 + $0x598] sm:$0xff]
    %v911 = vld [vmem:[#allocation7 + $0x5a0] sm:$0xff]
    %v912 = vld [vmem:[#allocation7 + $0x5a8] sm:$0xff]
    %v913 = vld [vmem:[#allocation7 + $0x5b0] sm:$0xff]
    %v914 = vld [vmem:[#allocation7 + $0x5b8] sm:$0xff]
    %v915 = vld [vmem:[#allocation7 + $0x5c0] sm:$0xff]
    %v916 = vld [vmem:[#allocation7 + $0x5c8] sm:$0xff]
    %v917 = vld [vmem:[#allocation7 + $0x5d0] sm:$0xff]
    %v918 = vld [vmem:[#allocation7 + $0x5d8] sm:$0xff]
    %v919 = vld [vmem:[#allocation7 + $0x5e0] sm:$0xff]
    %v920 = vld [vmem:[#allocation7 + $0x5e8] sm:$0xff]
    %v921 = vld [vmem:[#allocation7 + $0x5f0] sm:$0xff]
    %v922 = vld [vmem:[#allocation7 + $0x5f8] sm:$0xff]
    %v923 = vld [vmem:[#allocation7 + $0x600] sm:$0xff]
    %v924 = vld [vmem:[#allocation7 + $0x608] sm:$0xff]
    %v925 = vld [vmem:[#allocation7 + $0x610] sm:$0xff]
    %v926 = vld [vmem:[#allocation7 + $0x618] sm:$0xff]
    %v927 = vld [vmem:[#allocation7 + $0x620] sm:$0xff]
    %v928 = vld [vmem:[#allocation7 + $0x628] sm:$0xff]
    %v929 = vld [vmem:[#allocation7 + $0x630] sm:$0xff]
    %v930 = vld [vmem:[#allocation7 + $0x638] sm:$0xff]
    %v931 = vld [vmem:[#allocation7 + $0x640] sm:$0xff]
    %v932 = vld [vmem:[#allocation7 + $0x648] sm:$0xff]
    %v933 = vld [vmem:[#allocation7 + $0x650] sm:$0xff]
    %v934 = vld [vmem:[#allocation7 + $0x658] sm:$0xff]
    %v935 = vld [vmem:[#allocation7 + $0x660] sm:$0xff]
    %v936 = vld [vmem:[#allocation7 + $0x668] sm:$0xff]
    %v937 = vld [vmem:[#allocation7 + $0x670] sm:$0xff]
    %v938 = vld [vmem:[#allocation7 + $0x678] sm:$0xff]
    %v939 = vld [vmem:[#allocation7 + $0x680] sm:$0xff]
    %v940 = vld [vmem:[#allocation7 + $0x688] sm:$0xff]
    %v941 = vld [vmem:[#allocation7 + $0x690] sm:$0xff]
    %v942 = vld [vmem:[#allocation7 + $0x698] sm:$0xff]
    %v943 = vld [vmem:[#allocation7 + $0x6a0] sm:$0xff]
    %v944 = vld [vmem:[#allocation7 + $0x6a8] sm:$0xff]
    %v945 = vld [vmem:[#allocation7 + $0x6b0] sm:$0xff]
    %v946 = vld [vmem:[#allocation7 + $0x6b8] sm:$0xff]
    %v947 = vld [vmem:[#allocation7 + $0x6c0] sm:$0xff]
    %v948 = vld [vmem:[#allocation7 + $0x6c8] sm:$0xff]
    %v949 = vld [vmem:[#allocation7 + $0x6d0] sm:$0xff]
    %v950 = vld [vmem:[#allocation7 + $0x6d8] sm:$0xff]
    %v951 = vld [vmem:[#allocation7 + $0x6e0] sm:$0xff]
    %v952 = vld [vmem:[#allocation7 + $0x6e8] sm:$0xff]
    %v953 = vld [vmem:[#allocation7 + $0x6f0] sm:$0xff]
    %v954 = vld [vmem:[#allocation7 + $0x6f8] sm:$0xff]
    %v955 = vld [vmem:[#allocation7 + $0x700] sm:$0xff]
    %v956 = vld [vmem:[#allocation7 + $0x708] sm:$0xff]
    %v957 = vld [vmem:[#allocation7 + $0x710] sm:$0xff]
    %v958 = vld [vmem:[#allocation7 + $0x718] sm:$0xff]
    %v959 = vld [vmem:[#allocation7 + $0x720] sm:$0xff]
    %v960 = vld [vmem:[#allocation7 + $0x728] sm:$0xff]
    %v961 = vld [vmem:[#allocation7 + $0x730] sm:$0xff]
    %v962 = vld [vmem:[#allocation7 + $0x738] sm:$0xff]
    %v963 = vld [vmem:[#allocation7 + $0x740] sm:$0xff]
    %v964 = vld [vmem:[#allocation7 + $0x748] sm:$0xff]
    %v965 = vld [vmem:[#allocation7 + $0x750] sm:$0xff]
    %v966 = vld [vmem:[#allocation7 + $0x758] sm:$0xff]
    %v967 = vld [vmem:[#allocation7 + $0x760] sm:$0xff]
    %v968 = vld [vmem:[#allocation7 + $0x768] sm:$0xff]
    %v969 = vld [vmem:[#allocation7 + $0x770] sm:$0xff]
    %v970 = vld [vmem:[#allocation7 + $0x778] sm:$0xff]
    %v971 = vld [vmem:[#allocation7 + $0x780] sm:$0xff]
    %v972 = vld [vmem:[#allocation7 + $0x788] sm:$0xff]
    %v973 = vld [vmem:[#allocation7 + $0x790] sm:$0xff]
    %v974 = vld [vmem:[#allocation7 + $0x798] sm:$0xff]
    %v975 = vld [vmem:[#allocation7 + $0x7a0] sm:$0xff]
    %v976 = vld [vmem:[#allocation7 + $0x7a8] sm:$0xff]
    %v977 = vld [vmem:[#allocation7 + $0x7b0] sm:$0xff]
    %v978 = vld [vmem:[#allocation7 + $0x7b8] sm:$0xff]
    %v979 = vld [vmem:[#allocation7 + $0x7c0] sm:$0xff]
    %v980 = vld [vmem:[#allocation7 + $0x7c8] sm:$0xff]
    %v981 = vld [vmem:[#allocation7 + $0x7d0] sm:$0xff]
    %v982 = vld [vmem:[#allocation7 + $0x7d8] sm:$0xff]
    %v983 = vld [vmem:[#allocation7 + $0x7e0] sm:$0xff]
    %v984 = vld [vmem:[#allocation7 + $0x7e8] sm:$0xff]
    %v985 = vld [vmem:[#allocation7 + $0x7f0] sm:$0xff]
    %v986 = vld [vmem:[#allocation7 + $0x7f8] sm:$0xff]
    %v987 = vld [vmem:[#allocation7 + $0x800] sm:$0xff]
    %v988 = vld [vmem:[#allocation7 + $0x808] sm:$0xff]
    %v989 = vld [vmem:[#allocation7 + $0x810] sm:$0xff]
    %v990 = vld [vmem:[#allocation7 + $0x818] sm:$0xff]
    %v991 = vld [vmem:[#allocation7 + $0x820] sm:$0xff]
    %v992 = vld [vmem:[#allocation7 + $0x828] sm:$0xff]
    %v993 = vld [vmem:[#allocation7 + $0x830] sm:$0xff]
    %v994 = vld [vmem:[#allocation7 + $0x838] sm:$0xff]
    %v995 = vld [vmem:[#allocation7 + $0x840] sm:$0xff]
    %v996 = vld [vmem:[#allocation7 + $0x848] sm:$0xff]
    %v997 = vld [vmem:[#allocation7 + $0x850] sm:$0xff]
    %v998 = vld [vmem:[#allocation7 + $0x858] sm:$0xff]
    %v999 = vld [vmem:[#allocation7 + $0x860] sm:$0xff]
    %v1000 = vld [vmem:[#allocation7 + $0x868] sm:$0xff]
    %v1001 = vld [vmem:[#allocation7 + $0x870] sm:$0xff]
    %v1002 = vld [vmem:[#allocation7 + $0x878] sm:$0xff]
    %v1003 = vld [vmem:[#allocation7 + $0x880] sm:$0xff]
    %v1004 = vld [vmem:[#allocation7 + $0x888] sm:$0xff]
    %v1005 = vld [vmem:[#allocation7 + $0x890] sm:$0xff]
    %v1006 = vld [vmem:[#allocation7 + $0x898] sm:$0xff]
    %v1007 = vld [vmem:[#allocation7 + $0x8a0] sm:$0xff]
    %v1008 = vld [vmem:[#allocation7 + $0x8a8] sm:$0xff]
    %v1009 = vld [vmem:[#allocation7 + $0x8b0] sm:$0xff]
    %v1010 = vld [vmem:[#allocation7 + $0x8b8] sm:$0xff]
    %v1011 = vld [vmem:[#allocation7 + $0x8c0] sm:$0xff]
    %v1012 = vld [vmem:[#allocation7 + $0x8c8] sm:$0xff]
    %v1013 = vld [vmem:[#allocation7 + $0x8d0] sm:$0xff]
    %v1014 = vld [vmem:[#allocation7 + $0x8d8] sm:$0xff]
    %v1015 = vld [vmem:[#allocation7 + $0x8e0] sm:$0xff]
    %v1016 = vld [vmem:[#allocation7 + $0x8e8] sm:$0xff]
    %v1017 = vld [vmem:[#allocation7 + $0x8f0] sm:$0xff]
    %v1018 = vld [vmem:[#allocation7 + $0x8f8] sm:$0xff]
    %v1019 = vld [vmem:[#allocation7 + $0x900] sm:$0xff]
    %v1020 = vld [vmem:[#allocation7 + $0x908] sm:$0xff]
    %v1021 = vld [vmem:[#allocation7 + $0x910] sm:$0xff]
    %v1022 = vld [vmem:[#allocation7 + $0x918] sm:$0xff]
    %v1023 = vld [vmem:[#allocation7 + $0x920] sm:$0xff]
    %v1024 = vld [vmem:[#allocation7 + $0x928] sm:$0xff]
    %v1025 = vld [vmem:[#allocation7 + $0x930] sm:$0xff]
    %v1026 = vld [vmem:[#allocation7 + $0x938] sm:$0xff]
    %v1027 = vld [vmem:[#allocation7 + $0x940] sm:$0xff]
    %v1028 = vld [vmem:[#allocation7 + $0x948] sm:$0xff]
    %v1029 = vld [vmem:[#allocation7 + $0x950] sm:$0xff]
    %v1030 = vld [vmem:[#allocation7 + $0x958] sm:$0xff]
    %v1031 = vld [vmem:[#allocation7 + $0x960] sm:$0xff]
    %v1032 = vld [vmem:[#allocation7 + $0x968] sm:$0xff]
    %v1033 = vld [vmem:[#allocation7 + $0x970] sm:$0xff]
    %v1034 = vld [vmem:[#allocation7 + $0x978] sm:$0xff]
    %v1035 = vld [vmem:[#allocation7 + $0x980] sm:$0xff]
    %v1036 = vld [vmem:[#allocation7 + $0x988] sm:$0xff]
    %v1037 = vld [vmem:[#allocation7 + $0x990] sm:$0xff]
    %v1038 = vld [vmem:[#allocation7 + $0x998] sm:$0xff]
    %v1039 = vld [vmem:[#allocation7 + $0x9a0] sm:$0xff]
    %v1040 = vld [vmem:[#allocation7 + $0x9a8] sm:$0xff]
    %v1041 = vld [vmem:[#allocation7 + $0x9b0] sm:$0xff]
    %v1042 = vld [vmem:[#allocation7 + $0x9b8] sm:$0xff]
    %v1043 = vld [vmem:[#allocation7 + $0x9c0] sm:$0xff]
    %v1044 = vld [vmem:[#allocation7 + $0x9c8] sm:$0xff]
    %v1045 = vld [vmem:[#allocation7 + $0x9d0] sm:$0xff]
    %v1046 = vld [vmem:[#allocation7 + $0x9d8] sm:$0xff]
    %v1047 = vld [vmem:[#allocation7 + $0x9e0] sm:$0xff]
    %v1048 = vld [vmem:[#allocation7 + $0x9e8] sm:$0xff]
    %v1049 = vld [vmem:[#allocation7 + $0x9f0] sm:$0xff]
    %v1050 = vld [vmem:[#allocation7 + $0x9f8] sm:$0xff]
    %v1051 = vld [vmem:[#allocation7 + $0xa00] sm:$0xff]
    %v1052 = vld [vmem:[#allocation7 + $0xa08] sm:$0xff]
    %v1053 = vld [vmem:[#allocation7 + $0xa10] sm:$0xff]
    %v1054 = vld [vmem:[#allocation7 + $0xa18] sm:$0xff]
    %v1055 = vld [vmem:[#allocation7 + $0xa20] sm:$0xff]
    %v1056 = vld [vmem:[#allocation7 + $0xa28] sm:$0xff]
    %v1057 = vld [vmem:[#allocation7 + $0xa30] sm:$0xff]
    %v1058 = vld [vmem:[#allocation7 + $0xa38] sm:$0xff]
    %v1059 = vld [vmem:[#allocation7 + $0xa40] sm:$0xff]
    %v1060 = vld [vmem:[#allocation7 + $0xa48] sm:$0xff]
    %v1061 = vld [vmem:[#allocation7 + $0xa50] sm:$0xff]
    %v1062 = vld [vmem:[#allocation7 + $0xa58] sm:$0xff]
    %v1063 = vld [vmem:[#allocation7 + $0xa60] sm:$0xff]
    %v1064 = vld [vmem:[#allocation7 + $0xa68] sm:$0xff]
    %v1065 = vld [vmem:[#allocation7 + $0xa70] sm:$0xff]
    %v1066 = vld [vmem:[#allocation7 + $0xa78] sm:$0xff]
    %v1067 = vld [vmem:[#allocation7 + $0xa80] sm:$0xff]
    %v1068 = vld [vmem:[#allocation7 + $0xa88] sm:$0xff]
    %v1069 = vld [vmem:[#allocation7 + $0xa90] sm:$0xff]
    %v1070 = vld [vmem:[#allocation7 + $0xa98] sm:$0xff]
    %v1071 = vld [vmem:[#allocation7 + $0xaa0] sm:$0xff]
    %v1072 = vld [vmem:[#allocation7 + $0xaa8] sm:$0xff]
    %v1073 = vld [vmem:[#allocation7 + $0xab0] sm:$0xff]
    %v1074 = vld [vmem:[#allocation7 + $0xab8] sm:$0xff]
    %v1075 = vld [vmem:[#allocation7 + $0xac0] sm:$0xff]
    %v1076 = vld [vmem:[#allocation7 + $0xac8] sm:$0xff]
    %v1077 = vld [vmem:[#allocation7 + $0xad0] sm:$0xff]
    %v1078 = vld [vmem:[#allocation7 + $0xad8] sm:$0xff]
    %v1079 = vld [vmem:[#allocation7 + $0xae0] sm:$0xff]
    %v1080 = vld [vmem:[#allocation7 + $0xae8] sm:$0xff]
    %v1081 = vld [vmem:[#allocation7 + $0xaf0] sm:$0xff]
    %v1082 = vld [vmem:[#allocation7 + $0xaf8] sm:$0xff]
    %v1083 = vld [vmem:[#allocation7 + $0xb00] sm:$0xff]
    %v1084 = vld [vmem:[#allocation7 + $0xb08] sm:$0xff]
    %v1085 = vld [vmem:[#allocation7 + $0xb10] sm:$0xff]
    %v1086 = vld [vmem:[#allocation7 + $0xb18] sm:$0xff]
    %v1087 = vld [vmem:[#allocation7 + $0xb20] sm:$0xff]
    %v1088 = vld [vmem:[#allocation7 + $0xb28] sm:$0xff]
    %v1089 = vld [vmem:[#allocation7 + $0xb30] sm:$0xff]
    %v1090 = vld [vmem:[#allocation7 + $0xb38] sm:$0xff]
    %v1091 = vld [vmem:[#allocation7 + $0xb40] sm:$0xff]
    %v1092 = vld [vmem:[#allocation7 + $0xb48] sm:$0xff]
    %v1093 = vld [vmem:[#allocation7 + $0xb50] sm:$0xff]
    %v1094 = vld [vmem:[#allocation7 + $0xb58] sm:$0xff]
    %v1095 = vld [vmem:[#allocation7 + $0xb60] sm:$0xff]
    %v1096 = vld [vmem:[#allocation7 + $0xb68] sm:$0xff]
    %v1097 = vld [vmem:[#allocation7 + $0xb70] sm:$0xff]
    %v1098 = vld [vmem:[#allocation7 + $0xb78] sm:$0xff]
    %v1099 = vld [vmem:[#allocation7 + $0xb80] sm:$0xff]
    %v1100 = vld [vmem:[#allocation7 + $0xb88] sm:$0xff]
    %v1101 = vld [vmem:[#allocation7 + $0xb90] sm:$0xff]
    %v1102 = vld [vmem:[#allocation7 + $0xb98] sm:$0xff]
    %v1103 = vld [vmem:[#allocation7 + $0xba0] sm:$0xff]
    %v1104 = vld [vmem:[#allocation7 + $0xba8] sm:$0xff]
    %v1105 = vld [vmem:[#allocation7 + $0xbb0] sm:$0xff]
    %v1106 = vld [vmem:[#allocation7 + $0xbb8] sm:$0xff]
    %v1107 = vld [vmem:[#allocation7 + $0xbc0] sm:$0xff]
    %v1108 = vld [vmem:[#allocation7 + $0xbc8] sm:$0xff]
    %v1109 = vld [vmem:[#allocation7 + $0xbd0] sm:$0xff]
    %v1110 = vld [vmem:[#allocation7 + $0xbd8] sm:$0xff]
    %v1111 = vld [vmem:[#allocation7 + $0xbe0] sm:$0xff]
    %v1112 = vld [vmem:[#allocation7 + $0xbe8] sm:$0xff]
    %v1113 = vld [vmem:[#allocation7 + $0xbf0] sm:$0xff]
    %v1114 = vld [vmem:[#allocation7 + $0xbf8] sm:$0xff]
    %v1115 = vld [vmem:[#allocation7 + $0xc00] sm:$0xff]
    %v1116 = vld [vmem:[#allocation7 + $0xc08] sm:$0xff]
    %v1117 = vld [vmem:[#allocation7 + $0xc10] sm:$0xff]
    %v1118 = vld [vmem:[#allocation7 + $0xc18] sm:$0xff]
    %v1119 = vld [vmem:[#allocation7 + $0xc20] sm:$0xff]
    %v1120 = vld [vmem:[#allocation7 + $0xc28] sm:$0xff]
    %v1121 = vld [vmem:[#allocation7 + $0xc30] sm:$0xff]
    %v1122 = vld [vmem:[#allocation7 + $0xc38] sm:$0xff]
    %v1123 = vld [vmem:[#allocation7 + $0xc40] sm:$0xff]
    %v1124 = vld [vmem:[#allocation7 + $0xc48] sm:$0xff]
    %v1125 = vld [vmem:[#allocation7 + $0xc50] sm:$0xff]
    %v1126 = vld [vmem:[#allocation7 + $0xc58] sm:$0xff]
    %v1127 = vld [vmem:[#allocation7 + $0xc60] sm:$0xff]
    %v1128 = vld [vmem:[#allocation7 + $0xc68] sm:$0xff]
    %v1129 = vld [vmem:[#allocation7 + $0xc70] sm:$0xff]
    %v1130 = vld [vmem:[#allocation7 + $0xc78] sm:$0xff]
    %v1131 = vld [vmem:[#allocation7 + $0xc80] sm:$0xff]
    %v1132 = vld [vmem:[#allocation7 + $0xc88] sm:$0xff]
    %v1133 = vld [vmem:[#allocation7 + $0xc90] sm:$0xff]
    %v1134 = vld [vmem:[#allocation7 + $0xc98] sm:$0xff]
    %v1135 = vld [vmem:[#allocation7 + $0xca0] sm:$0xff]
    %v1136 = vld [vmem:[#allocation7 + $0xca8] sm:$0xff]
    %v1137 = vld [vmem:[#allocation7 + $0xcb0] sm:$0xff]
    %v1138 = vld [vmem:[#allocation7 + $0xcb8] sm:$0xff]
    %v1139 = vld [vmem:[#allocation7 + $0xcc0] sm:$0xff]
    %v1140 = vld [vmem:[#allocation7 + $0xcc8] sm:$0xff]
    %v1141 = vld [vmem:[#allocation7 + $0xcd0] sm:$0xff]
    %v1142 = vld [vmem:[#allocation7 + $0xcd8] sm:$0xff]
    %v1143 = vld [vmem:[#allocation7 + $0xce0] sm:$0xff]
    %v1144 = vld [vmem:[#allocation7 + $0xce8] sm:$0xff]
    %v1145 = vld [vmem:[#allocation7 + $0xcf0] sm:$0xff]
    %v1146 = vld [vmem:[#allocation7 + $0xcf8] sm:$0xff]
    %v1147 = vld [vmem:[#allocation7 + $0xd00] sm:$0xff]
    %v1148 = vld [vmem:[#allocation7 + $0xd08] sm:$0xff]
    %v1149 = vld [vmem:[#allocation7 + $0xd10] sm:$0xff]
    %v1150 = vld [vmem:[#allocation7 + $0xd18] sm:$0xff]
    %v1151 = vld [vmem:[#allocation7 + $0xd20] sm:$0xff]
    %v1152 = vld [vmem:[#allocation7 + $0xd28] sm:$0xff]
    %v1153 = vld [vmem:[#allocation7 + $0xd30] sm:$0xff]
    %v1154 = vld [vmem:[#allocation7 + $0xd38] sm:$0xff]
    %v1155 = vld [vmem:[#allocation7 + $0xd40] sm:$0xff]
    %v1156 = vld [vmem:[#allocation7 + $0xd48] sm:$0xff]
    %v1157 = vld [vmem:[#allocation7 + $0xd50] sm:$0xff]
    %v1158 = vld [vmem:[#allocation7 + $0xd58] sm:$0xff]
    %v1159 = vld [vmem:[#allocation7 + $0xd60] sm:$0xff]
    %v1160 = vld [vmem:[#allocation7 + $0xd68] sm:$0xff]
    %v1161 = vld [vmem:[#allocation7 + $0xd70] sm:$0xff]
    %v1162 = vld [vmem:[#allocation7 + $0xd78] sm:$0xff]
    %v1163 = vld [vmem:[#allocation7 + $0xd80] sm:$0xff]
    %v1164 = vld [vmem:[#allocation7 + $0xd88] sm:$0xff]
    %v1165 = vld [vmem:[#allocation7 + $0xd90] sm:$0xff]
    %v1166 = vld [vmem:[#allocation7 + $0xd98] sm:$0xff]
    %v1167 = vld [vmem:[#allocation7 + $0xda0] sm:$0xff]
    %v1168 = vld [vmem:[#allocation7 + $0xda8] sm:$0xff]
    %v1169 = vld [vmem:[#allocation7 + $0xdb0] sm:$0xff]
    %v1170 = vld [vmem:[#allocation7 + $0xdb8] sm:$0xff]
    %v1171 = vld [vmem:[#allocation7 + $0xdc0] sm:$0xff]
    %v1172 = vld [vmem:[#allocation7 + $0xdc8] sm:$0xff]
    %v1173 = vld [vmem:[#allocation7 + $0xdd0] sm:$0xff]
    %v1174 = vld [vmem:[#allocation7 + $0xdd8] sm:$0xff]
    %v1175 = vld [vmem:[#allocation7 + $0xde0] sm:$0xff]
    %v1176 = vld [vmem:[#allocation7 + $0xde8] sm:$0xff]
    %v1177 = vld [vmem:[#allocation7 + $0xdf0] sm:$0xff]
    %v1178 = vld [vmem:[#allocation7 + $0xdf8] sm:$0xff]
    %v1179 = vld [vmem:[#allocation7 + $0xe00] sm:$0xff]
    %v1180 = vld [vmem:[#allocation7 + $0xe08] sm:$0xff]
    %v1181 = vld [vmem:[#allocation7 + $0xe10] sm:$0xff]
    %v1182 = vld [vmem:[#allocation7 + $0xe18] sm:$0xff]
    %v1183 = vld [vmem:[#allocation7 + $0xe20] sm:$0xff]
    %v1184 = vld [vmem:[#allocation7 + $0xe28] sm:$0xff]
    %v1185 = vld [vmem:[#allocation7 + $0xe30] sm:$0xff]
    %v1186 = vld [vmem:[#allocation7 + $0xe38] sm:$0xff]
    %v1187 = vld [vmem:[#allocation7 + $0xe40] sm:$0xff]
    %v1188 = vld [vmem:[#allocation7 + $0xe48] sm:$0xff]
    %v1189 = vld [vmem:[#allocation7 + $0xe50] sm:$0xff]
    %v1190 = vld [vmem:[#allocation7 + $0xe58] sm:$0xff]
    %v1191 = vld [vmem:[#allocation7 + $0xe60] sm:$0xff]
    %v1192 = vld [vmem:[#allocation7 + $0xe68] sm:$0xff]
    %v1193 = vld [vmem:[#allocation7 + $0xe70] sm:$0xff]
    %v1194 = vld [vmem:[#allocation7 + $0xe78] sm:$0xff]
    %v1195 = vld [vmem:[#allocation7 + $0xe80] sm:$0xff]
    %v1196 = vld [vmem:[#allocation7 + $0xe88] sm:$0xff]
    %v1197 = vld [vmem:[#allocation7 + $0xe90] sm:$0xff]
    %v1198 = vld [vmem:[#allocation7 + $0xe98] sm:$0xff]
    %v1199 = vld [vmem:[#allocation7 + $0xea0] sm:$0xff]
    %v1200 = vld [vmem:[#allocation7 + $0xea8] sm:$0xff]
    %v1201 = vld [vmem:[#allocation7 + $0xeb0] sm:$0xff]
    %v1202 = vld [vmem:[#allocation7 + $0xeb8] sm:$0xff]
    %v1203 = vld [vmem:[#allocation7 + $0xec0] sm:$0xff]
    %v1204 = vld [vmem:[#allocation7 + $0xec8] sm:$0xff]
    %v1205 = vld [vmem:[#allocation7 + $0xed0] sm:$0xff]
    %v1206 = vld [vmem:[#allocation7 + $0xed8] sm:$0xff]
    %v1207 = vld [vmem:[#allocation7 + $0xee0] sm:$0xff]
    %v1208 = vld [vmem:[#allocation7 + $0xee8] sm:$0xff]
    %v1209 = vld [vmem:[#allocation7 + $0xef0] sm:$0xff]
    %v1210 = vld [vmem:[#allocation7 + $0xef8] sm:$0xff]
    %v1211 = vld [vmem:[#allocation7 + $0xf00] sm:$0xff]
    %v1212 = vld [vmem:[#allocation7 + $0xf08] sm:$0xff]
    %v1213 = vld [vmem:[#allocation7 + $0xf10] sm:$0xff]
    %v1214 = vld [vmem:[#allocation7 + $0xf18] sm:$0xff]
    %v1215 = vld [vmem:[#allocation7 + $0xf20] sm:$0xff]
    %v1216 = vld [vmem:[#allocation7 + $0xf28] sm:$0xff]
    %v1217 = vld [vmem:[#allocation7 + $0xf30] sm:$0xff]
    %v1218 = vld [vmem:[#allocation7 + $0xf38] sm:$0xff]
    %v1219 = vld [vmem:[#allocation7 + $0xf40] sm:$0xff]
    %v1220 = vld [vmem:[#allocation7 + $0xf48] sm:$0xff]
    %v1221 = vld [vmem:[#allocation7 + $0xf50] sm:$0xff]
    %v1222 = vld [vmem:[#allocation7 + $0xf58] sm:$0xff]
    %v1223 = vld [vmem:[#allocation7 + $0xf60] sm:$0xff]
    %v1224 = vld [vmem:[#allocation7 + $0xf68] sm:$0xff]
    %v1225 = vld [vmem:[#allocation7 + $0xf70] sm:$0xff]
    %v1226 = vld [vmem:[#allocation7 + $0xf78] sm:$0xff]
    %v1227 = vld [vmem:[#allocation7 + $0xf80] sm:$0xff]
    %v1228 = vld [vmem:[#allocation7 + $0xf88] sm:$0xff]
    %v1229 = vld [vmem:[#allocation7 + $0xf90] sm:$0xff]
    %v1230 = vld [vmem:[#allocation7 + $0xf98] sm:$0xff]
    %v1231 = vld [vmem:[#allocation7 + $0xfa0] sm:$0xff]
    %v1232 = vld [vmem:[#allocation7 + $0xfa8] sm:$0xff]
    %v1233 = vld [vmem:[#allocation7 + $0xfb0] sm:$0xff]
    %v1234 = vld [vmem:[#allocation7 + $0xfb8] sm:$0xff]
    %v1235 = vld [vmem:[#allocation7 + $0xfc0] sm:$0xff]
    %v1236 = vld [vmem:[#allocation7 + $0xfc8] sm:$0xff]
    %v1237 = vld [vmem:[#allocation7 + $0xfd0] sm:$0xff]
    %v1238 = vld [vmem:[#allocation7 + $0xfd8] sm:$0xff]
    %v1239 = vld [vmem:[#allocation7 + $0xfe0] sm:$0xff]
    %v1240 = vld [vmem:[#allocation7 + $0xfe8] sm:$0xff]
    %v1241 = vld [vmem:[#allocation7 + $0xff0] sm:$0xff]
    %v1242 = vld [vmem:[#allocation7 + $0xff8] sm:$0xff]
    %v1243 = vlaneseq
    %v1244 = vshrl.u32 %v1243, 7
    %v1245 = vsub.s32 1, %v1244
    %v1246 = vrot.slane %v125, %v1245
    %v1247 = vlaneseq
    %v1248 = vshrl.u32 %v1247, 7
    %v1249 = vsub.s32 1, %v1248
    %v1250 = vrot.slane %v126, %v1249
    %v1251 = vlaneseq
    %v1252 = vshrl.u32 %v1251, 7
    %v1253 = vsub.s32 1, %v1252
    %v1254 = vrot.slane %v127, %v1253
    %v1255 = vlaneseq
    %v1256 = vshrl.u32 %v1255, 7
    %v1257 = vsub.s32 1, %v1256
    %v1258 = vrot.slane %v128, %v1257
    %v1259 = vlaneseq
    %v1260 = vshrl.u32 %v1259, 7
    %v1261 = vsub.s32 1, %v1260
    %v1262 = vrot.slane %v129, %v1261
    %v1263 = vlaneseq
    %v1264 = vshrl.u32 %v1263, 7
    %v1265 = vsub.s32 1, %v1264
    %v1266 = vrot.slane %v130, %v1265
    %v1267 = vlaneseq
    %v1268 = vshrl.u32 %v1267, 7
    %v1269 = vsub.s32 1, %v1268
    %v1270 = vrot.slane %v131, %v1269
    %v1271 = vlaneseq
    %v1272 = vshrl.u32 %v1271, 7
    %v1273 = vsub.s32 1, %v1272
    %v1274 = vrot.slane %v132, %v1273
    %v1787 = vunpack.c.l.b16 %v731
    %v1788 = vunpack.c.h.b16 %v731
    %v1789 = vunpack.c.l.b16 %v732
    %v1790 = vunpack.c.h.b16 %v732
    %v1791 = vunpack.c.l.b16 %v733
    %v1792 = vunpack.c.h.b16 %v733
    %v1793 = vunpack.c.l.b16 %v734
    %v1794 = vunpack.c.h.b16 %v734
    %v1795 = vunpack.c.l.b16 %v735
    %v1796 = vunpack.c.h.b16 %v735
    %v1797 = vunpack.c.l.b16 %v736
    %v1798 = vunpack.c.h.b16 %v736
    %v1799 = vunpack.c.l.b16 %v737
    %v1800 = vunpack.c.h.b16 %v737
    %v1801 = vunpack.c.l.b16 %v738
    %v1802 = vunpack.c.h.b16 %v738
    %v1803 = vunpack.c.l.b16 %v739
    %v1804 = vunpack.c.h.b16 %v739
    %v1805 = vunpack.c.l.b16 %v740
    %v1806 = vunpack.c.h.b16 %v740
    %v1807 = vunpack.c.l.b16 %v741
    %v1808 = vunpack.c.h.b16 %v741
    %v1809 = vunpack.c.l.b16 %v742
    %v1810 = vunpack.c.h.b16 %v742
    %v1811 = vunpack.c.l.b16 %v743
    %v1812 = vunpack.c.h.b16 %v743
    %v1813 = vunpack.c.l.b16 %v744
    %v1814 = vunpack.c.h.b16 %v744
    %v1815 = vunpack.c.l.b16 %v745
    %v1816 = vunpack.c.h.b16 %v745
    %v1817 = vunpack.c.l.b16 %v746
    %v1818 = vunpack.c.h.b16 %v746
    %v1819 = vunpack.c.l.b16 %v747
    %v1820 = vunpack.c.h.b16 %v747
    %v1821 = vunpack.c.l.b16 %v748
    %v1822 = vunpack.c.h.b16 %v748
    %v1823 = vunpack.c.l.b16 %v749
    %v1824 = vunpack.c.h.b16 %v749
    %v1825 = vunpack.c.l.b16 %v750
    %v1826 = vunpack.c.h.b16 %v750
    %v1827 = vunpack.c.l.b16 %v751
    %v1828 = vunpack.c.h.b16 %v751
    %v1829 = vunpack.c.l.b16 %v752
    %v1830 = vunpack.c.h.b16 %v752
    %v1831 = vunpack.c.l.b16 %v753
    %v1832 = vunpack.c.h.b16 %v753
    %v1833 = vunpack.c.l.b16 %v754
    %v1834 = vunpack.c.h.b16 %v754
    %v1835 = vunpack.c.l.b16 %v755
    %v1836 = vunpack.c.h.b16 %v755
    %v1837 = vunpack.c.l.b16 %v756
    %v1838 = vunpack.c.h.b16 %v756
    %v1839 = vunpack.c.l.b16 %v757
    %v1840 = vunpack.c.h.b16 %v757
    %v1841 = vunpack.c.l.b16 %v758
    %v1842 = vunpack.c.h.b16 %v758
    %v1843 = vunpack.c.l.b16 %v759
    %v1844 = vunpack.c.h.b16 %v759
    %v1845 = vunpack.c.l.b16 %v760
    %v1846 = vunpack.c.h.b16 %v760
    %v1847 = vunpack.c.l.b16 %v761
    %v1848 = vunpack.c.h.b16 %v761
    %v1849 = vunpack.c.l.b16 %v762
    %v1850 = vunpack.c.h.b16 %v762
    %v1851 = vunpack.c.l.b16 %v763
    %v1852 = vunpack.c.h.b16 %v763
    %v1853 = vunpack.c.l.b16 %v764
    %v1854 = vunpack.c.h.b16 %v764
    %v1855 = vunpack.c.l.b16 %v765
    %v1856 = vunpack.c.h.b16 %v765
    %v1857 = vunpack.c.l.b16 %v766
    %v1858 = vunpack.c.h.b16 %v766
    %v1859 = vunpack.c.l.b16 %v767
    %v1860 = vunpack.c.h.b16 %v767
    %v1861 = vunpack.c.l.b16 %v768
    %v1862 = vunpack.c.h.b16 %v768
    %v1863 = vunpack.c.l.b16 %v769
    %v1864 = vunpack.c.h.b16 %v769
    %v1865 = vunpack.c.l.b16 %v770
    %v1866 = vunpack.c.h.b16 %v770
    %v1867 = vunpack.c.l.b16 %v771
    %v1868 = vunpack.c.h.b16 %v771
    %v1869 = vunpack.c.l.b16 %v772
    %v1870 = vunpack.c.h.b16 %v772
    %v1871 = vunpack.c.l.b16 %v773
    %v1872 = vunpack.c.h.b16 %v773
    %v1873 = vunpack.c.l.b16 %v774
    %v1874 = vunpack.c.h.b16 %v774
    %v1875 = vunpack.c.l.b16 %v775
    %v1876 = vunpack.c.h.b16 %v775
    %v1877 = vunpack.c.l.b16 %v776
    %v1878 = vunpack.c.h.b16 %v776
    %v1879 = vunpack.c.l.b16 %v777
    %v1880 = vunpack.c.h.b16 %v777
    %v1881 = vunpack.c.l.b16 %v778
    %v1882 = vunpack.c.h.b16 %v778
    %v1883 = vunpack.c.l.b16 %v779
    %v1884 = vunpack.c.h.b16 %v779
    %v1885 = vunpack.c.l.b16 %v780
    %v1886 = vunpack.c.h.b16 %v780
    %v1887 = vunpack.c.l.b16 %v781
    %v1888 = vunpack.c.h.b16 %v781
    %v1889 = vunpack.c.l.b16 %v782
    %v1890 = vunpack.c.h.b16 %v782
    %v1891 = vunpack.c.l.b16 %v783
    %v1892 = vunpack.c.h.b16 %v783
    %v1893 = vunpack.c.l.b16 %v784
    %v1894 = vunpack.c.h.b16 %v784
    %v1895 = vunpack.c.l.b16 %v785
    %v1896 = vunpack.c.h.b16 %v785
    %v1897 = vunpack.c.l.b16 %v786
    %v1898 = vunpack.c.h.b16 %v786
    %v1899 = vunpack.c.l.b16 %v787
    %v1900 = vunpack.c.h.b16 %v787
    %v1901 = vunpack.c.l.b16 %v788
    %v1902 = vunpack.c.h.b16 %v788
    %v1903 = vunpack.c.l.b16 %v789
    %v1904 = vunpack.c.h.b16 %v789
    %v1905 = vunpack.c.l.b16 %v790
    %v1906 = vunpack.c.h.b16 %v790
    %v1907 = vunpack.c.l.b16 %v791
    %v1908 = vunpack.c.h.b16 %v791
    %v1909 = vunpack.c.l.b16 %v792
    %v1910 = vunpack.c.h.b16 %v792
    %v1911 = vunpack.c.l.b16 %v793
    %v1912 = vunpack.c.h.b16 %v793
    %v1913 = vunpack.c.l.b16 %v794
    %v1914 = vunpack.c.h.b16 %v794
    %v1915 = vunpack.c.l.b16 %v795
    %v1916 = vunpack.c.h.b16 %v795
    %v1917 = vunpack.c.l.b16 %v796
    %v1918 = vunpack.c.h.b16 %v796
    %v1919 = vunpack.c.l.b16 %v797
    %v1920 = vunpack.c.h.b16 %v797
    %v1921 = vunpack.c.l.b16 %v798
    %v1922 = vunpack.c.h.b16 %v798
    %v1923 = vunpack.c.l.b16 %v799
    %v1924 = vunpack.c.h.b16 %v799
    %v1925 = vunpack.c.l.b16 %v800
    %v1926 = vunpack.c.h.b16 %v800
    %v1927 = vunpack.c.l.b16 %v801
    %v1928 = vunpack.c.h.b16 %v801
    %v1929 = vunpack.c.l.b16 %v802
    %v1930 = vunpack.c.h.b16 %v802
    %v1931 = vunpack.c.l.b16 %v803
    %v1932 = vunpack.c.h.b16 %v803
    %v1933 = vunpack.c.l.b16 %v804
    %v1934 = vunpack.c.h.b16 %v804
    %v1935 = vunpack.c.l.b16 %v805
    %v1936 = vunpack.c.h.b16 %v805
    %v1937 = vunpack.c.l.b16 %v806
    %v1938 = vunpack.c.h.b16 %v806
    %v1939 = vunpack.c.l.b16 %v807
    %v1940 = vunpack.c.h.b16 %v807
    %v1941 = vunpack.c.l.b16 %v808
    %v1942 = vunpack.c.h.b16 %v808
    %v1943 = vunpack.c.l.b16 %v809
    %v1944 = vunpack.c.h.b16 %v809
    %v1945 = vunpack.c.l.b16 %v810
    %v1946 = vunpack.c.h.b16 %v810
    %v1947 = vunpack.c.l.b16 %v811
    %v1948 = vunpack.c.h.b16 %v811
    %v1949 = vunpack.c.l.b16 %v812
    %v1950 = vunpack.c.h.b16 %v812
    %v1951 = vunpack.c.l.b16 %v813
    %v1952 = vunpack.c.h.b16 %v813
    %v1953 = vunpack.c.l.b16 %v814
    %v1954 = vunpack.c.h.b16 %v814
    %v1955 = vunpack.c.l.b16 %v815
    %v1956 = vunpack.c.h.b16 %v815
    %v1957 = vunpack.c.l.b16 %v816
    %v1958 = vunpack.c.h.b16 %v816
    %v1959 = vunpack.c.l.b16 %v817
    %v1960 = vunpack.c.h.b16 %v817
    %v1961 = vunpack.c.l.b16 %v818
    %v1962 = vunpack.c.h.b16 %v818
    %v1963 = vunpack.c.l.b16 %v819
    %v1964 = vunpack.c.h.b16 %v819
    %v1965 = vunpack.c.l.b16 %v820
    %v1966 = vunpack.c.h.b16 %v820
    %v1967 = vunpack.c.l.b16 %v821
    %v1968 = vunpack.c.h.b16 %v821
    %v1969 = vunpack.c.l.b16 %v822
    %v1970 = vunpack.c.h.b16 %v822
    %v1971 = vunpack.c.l.b16 %v823
    %v1972 = vunpack.c.h.b16 %v823
    %v1973 = vunpack.c.l.b16 %v824
    %v1974 = vunpack.c.h.b16 %v824
    %v1975 = vunpack.c.l.b16 %v825
    %v1976 = vunpack.c.h.b16 %v825
    %v1977 = vunpack.c.l.b16 %v826
    %v1978 = vunpack.c.h.b16 %v826
    %v1979 = vunpack.c.l.b16 %v827
    %v1980 = vunpack.c.h.b16 %v827
    %v1981 = vunpack.c.l.b16 %v828
    %v1982 = vunpack.c.h.b16 %v828
    %v1983 = vunpack.c.l.b16 %v829
    %v1984 = vunpack.c.h.b16 %v829
    %v1985 = vunpack.c.l.b16 %v830
    %v1986 = vunpack.c.h.b16 %v830
    %v1987 = vunpack.c.l.b16 %v831
    %v1988 = vunpack.c.h.b16 %v831
    %v1989 = vunpack.c.l.b16 %v832
    %v1990 = vunpack.c.h.b16 %v832
    %v1991 = vunpack.c.l.b16 %v833
    %v1992 = vunpack.c.h.b16 %v833
    %v1993 = vunpack.c.l.b16 %v834
    %v1994 = vunpack.c.h.b16 %v834
    %v1995 = vunpack.c.l.b16 %v835
    %v1996 = vunpack.c.h.b16 %v835
    %v1997 = vunpack.c.l.b16 %v836
    %v1998 = vunpack.c.h.b16 %v836
    %v1999 = vunpack.c.l.b16 %v837
    %v2000 = vunpack.c.h.b16 %v837
    %v2001 = vunpack.c.l.b16 %v838
    %v2002 = vunpack.c.h.b16 %v838
    %v2003 = vunpack.c.l.b16 %v839
    %v2004 = vunpack.c.h.b16 %v839
    %v2005 = vunpack.c.l.b16 %v840
    %v2006 = vunpack.c.h.b16 %v840
    %v2007 = vunpack.c.l.b16 %v841
    %v2008 = vunpack.c.h.b16 %v841
    %v2009 = vunpack.c.l.b16 %v842
    %v2010 = vunpack.c.h.b16 %v842
    %v2011 = vunpack.c.l.b16 %v843
    %v2012 = vunpack.c.h.b16 %v843
    %v2013 = vunpack.c.l.b16 %v844
    %v2014 = vunpack.c.h.b16 %v844
    %v2015 = vunpack.c.l.b16 %v845
    %v2016 = vunpack.c.h.b16 %v845
    %v2017 = vunpack.c.l.b16 %v846
    %v2018 = vunpack.c.h.b16 %v846
    %v2019 = vunpack.c.l.b16 %v847
    %v2020 = vunpack.c.h.b16 %v847
    %v2021 = vunpack.c.l.b16 %v848
    %v2022 = vunpack.c.h.b16 %v848
    %v2023 = vunpack.c.l.b16 %v849
    %v2024 = vunpack.c.h.b16 %v849
    %v2025 = vunpack.c.l.b16 %v850
    %v2026 = vunpack.c.h.b16 %v850
    %v2027 = vunpack.c.l.b16 %v851
    %v2028 = vunpack.c.h.b16 %v851
    %v2029 = vunpack.c.l.b16 %v852
    %v2030 = vunpack.c.h.b16 %v852
    %v2031 = vunpack.c.l.b16 %v853
    %v2032 = vunpack.c.h.b16 %v853
    %v2033 = vunpack.c.l.b16 %v854
    %v2034 = vunpack.c.h.b16 %v854
    %v2035 = vunpack.c.l.b16 %v855
    %v2036 = vunpack.c.h.b16 %v855
    %v2037 = vunpack.c.l.b16 %v856
    %v2038 = vunpack.c.h.b16 %v856
    %v2039 = vunpack.c.l.b16 %v857
    %v2040 = vunpack.c.h.b16 %v857
    %v2041 = vunpack.c.l.b16 %v858
    %v2042 = vunpack.c.h.b16 %v858
    %v2043 = vunpack.c.l.b16 %v859
    %v2044 = vunpack.c.h.b16 %v859
    %v2045 = vunpack.c.l.b16 %v860
    %v2046 = vunpack.c.h.b16 %v860
    %v2047 = vunpack.c.l.b16 %v861
    %v2048 = vunpack.c.h.b16 %v861
    %v2049 = vunpack.c.l.b16 %v862
    %v2050 = vunpack.c.h.b16 %v862
    %v2051 = vunpack.c.l.b16 %v863
    %v2052 = vunpack.c.h.b16 %v863
    %v2053 = vunpack.c.l.b16 %v864
    %v2054 = vunpack.c.h.b16 %v864
    %v2055 = vunpack.c.l.b16 %v865
    %v2056 = vunpack.c.h.b16 %v865
    %v2057 = vunpack.c.l.b16 %v866
    %v2058 = vunpack.c.h.b16 %v866
    %v2059 = vunpack.c.l.b16 %v867
    %v2060 = vunpack.c.h.b16 %v867
    %v2061 = vunpack.c.l.b16 %v868
    %v2062 = vunpack.c.h.b16 %v868
    %v2063 = vunpack.c.l.b16 %v869
    %v2064 = vunpack.c.h.b16 %v869
    %v2065 = vunpack.c.l.b16 %v870
    %v2066 = vunpack.c.h.b16 %v870
    %v2067 = vunpack.c.l.b16 %v871
    %v2068 = vunpack.c.h.b16 %v871
    %v2069 = vunpack.c.l.b16 %v872
    %v2070 = vunpack.c.h.b16 %v872
    %v2071 = vunpack.c.l.b16 %v873
    %v2072 = vunpack.c.h.b16 %v873
    %v2073 = vunpack.c.l.b16 %v874
    %v2074 = vunpack.c.h.b16 %v874
    %v2075 = vunpack.c.l.b16 %v875
    %v2076 = vunpack.c.h.b16 %v875
    %v2077 = vunpack.c.l.b16 %v876
    %v2078 = vunpack.c.h.b16 %v876
    %v2079 = vunpack.c.l.b16 %v877
    %v2080 = vunpack.c.h.b16 %v877
    %v2081 = vunpack.c.l.b16 %v878
    %v2082 = vunpack.c.h.b16 %v878
    %v2083 = vunpack.c.l.b16 %v879
    %v2084 = vunpack.c.h.b16 %v879
    %v2085 = vunpack.c.l.b16 %v880
    %v2086 = vunpack.c.h.b16 %v880
    %v2087 = vunpack.c.l.b16 %v881
    %v2088 = vunpack.c.h.b16 %v881
    %v2089 = vunpack.c.l.b16 %v882
    %v2090 = vunpack.c.h.b16 %v882
    %v2091 = vunpack.c.l.b16 %v883
    %v2092 = vunpack.c.h.b16 %v883
    %v2093 = vunpack.c.l.b16 %v884
    %v2094 = vunpack.c.h.b16 %v884
    %v2095 = vunpack.c.l.b16 %v885
    %v2096 = vunpack.c.h.b16 %v885
    %v2097 = vunpack.c.l.b16 %v886
    %v2098 = vunpack.c.h.b16 %v886
    %v2099 = vunpack.c.l.b16 %v887
    %v2100 = vunpack.c.h.b16 %v887
    %v2101 = vunpack.c.l.b16 %v888
    %v2102 = vunpack.c.h.b16 %v888
    %v2103 = vunpack.c.l.b16 %v889
    %v2104 = vunpack.c.h.b16 %v889
    %v2105 = vunpack.c.l.b16 %v890
    %v2106 = vunpack.c.h.b16 %v890
    %v2107 = vunpack.c.l.b16 %v891
    %v2108 = vunpack.c.h.b16 %v891
    %v2109 = vunpack.c.l.b16 %v892
    %v2110 = vunpack.c.h.b16 %v892
    %v2111 = vunpack.c.l.b16 %v893
    %v2112 = vunpack.c.h.b16 %v893
    %v2113 = vunpack.c.l.b16 %v894
    %v2114 = vunpack.c.h.b16 %v894
    %v2115 = vunpack.c.l.b16 %v895
    %v2116 = vunpack.c.h.b16 %v895
    %v2117 = vunpack.c.l.b16 %v896
    %v2118 = vunpack.c.h.b16 %v896
    %v2119 = vunpack.c.l.b16 %v897
    %v2120 = vunpack.c.h.b16 %v897
    %v2121 = vunpack.c.l.b16 %v898
    %v2122 = vunpack.c.h.b16 %v898
    %v2123 = vunpack.c.l.b16 %v899
    %v2124 = vunpack.c.h.b16 %v899
    %v2125 = vunpack.c.l.b16 %v900
    %v2126 = vunpack.c.h.b16 %v900
    %v2127 = vunpack.c.l.b16 %v901
    %v2128 = vunpack.c.h.b16 %v901
    %v2129 = vunpack.c.l.b16 %v902
    %v2130 = vunpack.c.h.b16 %v902
    %v2131 = vunpack.c.l.b16 %v903
    %v2132 = vunpack.c.h.b16 %v903
    %v2133 = vunpack.c.l.b16 %v904
    %v2134 = vunpack.c.h.b16 %v904
    %v2135 = vunpack.c.l.b16 %v905
    %v2136 = vunpack.c.h.b16 %v905
    %v2137 = vunpack.c.l.b16 %v906
    %v2138 = vunpack.c.h.b16 %v906
    %v2139 = vunpack.c.l.b16 %v907
    %v2140 = vunpack.c.h.b16 %v907
    %v2141 = vunpack.c.l.b16 %v908
    %v2142 = vunpack.c.h.b16 %v908
    %v2143 = vunpack.c.l.b16 %v909
    %v2144 = vunpack.c.h.b16 %v909
    %v2145 = vunpack.c.l.b16 %v910
    %v2146 = vunpack.c.h.b16 %v910
    %v2147 = vunpack.c.l.b16 %v911
    %v2148 = vunpack.c.h.b16 %v911
    %v2149 = vunpack.c.l.b16 %v912
    %v2150 = vunpack.c.h.b16 %v912
    %v2151 = vunpack.c.l.b16 %v913
    %v2152 = vunpack.c.h.b16 %v913
    %v2153 = vunpack.c.l.b16 %v914
    %v2154 = vunpack.c.h.b16 %v914
    %v2155 = vunpack.c.l.b16 %v915
    %v2156 = vunpack.c.h.b16 %v915
    %v2157 = vunpack.c.l.b16 %v916
    %v2158 = vunpack.c.h.b16 %v916
    %v2159 = vunpack.c.l.b16 %v917
    %v2160 = vunpack.c.h.b16 %v917
    %v2161 = vunpack.c.l.b16 %v918
    %v2162 = vunpack.c.h.b16 %v918
    %v2163 = vunpack.c.l.b16 %v919
    %v2164 = vunpack.c.h.b16 %v919
    %v2165 = vunpack.c.l.b16 %v920
    %v2166 = vunpack.c.h.b16 %v920
    %v2167 = vunpack.c.l.b16 %v921
    %v2168 = vunpack.c.h.b16 %v921
    %v2169 = vunpack.c.l.b16 %v922
    %v2170 = vunpack.c.h.b16 %v922
    %v2171 = vunpack.c.l.b16 %v923
    %v2172 = vunpack.c.h.b16 %v923
    %v2173 = vunpack.c.l.b16 %v924
    %v2174 = vunpack.c.h.b16 %v924
    %v2175 = vunpack.c.l.b16 %v925
    %v2176 = vunpack.c.h.b16 %v925
    %v2177 = vunpack.c.l.b16 %v926
    %v2178 = vunpack.c.h.b16 %v926
    %v2179 = vunpack.c.l.b16 %v927
    %v2180 = vunpack.c.h.b16 %v927
    %v2181 = vunpack.c.l.b16 %v928
    %v2182 = vunpack.c.h.b16 %v928
    %v2183 = vunpack.c.l.b16 %v929
    %v2184 = vunpack.c.h.b16 %v929
    %v2185 = vunpack.c.l.b16 %v930
    %v2186 = vunpack.c.h.b16 %v930
    %v2187 = vunpack.c.l.b16 %v931
    %v2188 = vunpack.c.h.b16 %v931
    %v2189 = vunpack.c.l.b16 %v932
    %v2190 = vunpack.c.h.b16 %v932
    %v2191 = vunpack.c.l.b16 %v933
    %v2192 = vunpack.c.h.b16 %v933
    %v2193 = vunpack.c.l.b16 %v934
    %v2194 = vunpack.c.h.b16 %v934
    %v2195 = vunpack.c.l.b16 %v935
    %v2196 = vunpack.c.h.b16 %v935
    %v2197 = vunpack.c.l.b16 %v936
    %v2198 = vunpack.c.h.b16 %v936
    %v2199 = vunpack.c.l.b16 %v937
    %v2200 = vunpack.c.h.b16 %v937
    %v2201 = vunpack.c.l.b16 %v938
    %v2202 = vunpack.c.h.b16 %v938
    %v2203 = vunpack.c.l.b16 %v939
    %v2204 = vunpack.c.h.b16 %v939
    %v2205 = vunpack.c.l.b16 %v940
    %v2206 = vunpack.c.h.b16 %v940
    %v2207 = vunpack.c.l.b16 %v941
    %v2208 = vunpack.c.h.b16 %v941
    %v2209 = vunpack.c.l.b16 %v942
    %v2210 = vunpack.c.h.b16 %v942
    %v2211 = vunpack.c.l.b16 %v943
    %v2212 = vunpack.c.h.b16 %v943
    %v2213 = vunpack.c.l.b16 %v944
    %v2214 = vunpack.c.h.b16 %v944
    %v2215 = vunpack.c.l.b16 %v945
    %v2216 = vunpack.c.h.b16 %v945
    %v2217 = vunpack.c.l.b16 %v946
    %v2218 = vunpack.c.h.b16 %v946
    %v2219 = vunpack.c.l.b16 %v947
    %v2220 = vunpack.c.h.b16 %v947
    %v2221 = vunpack.c.l.b16 %v948
    %v2222 = vunpack.c.h.b16 %v948
    %v2223 = vunpack.c.l.b16 %v949
    %v2224 = vunpack.c.h.b16 %v949
    %v2225 = vunpack.c.l.b16 %v950
    %v2226 = vunpack.c.h.b16 %v950
    %v2227 = vunpack.c.l.b16 %v951
    %v2228 = vunpack.c.h.b16 %v951
    %v2229 = vunpack.c.l.b16 %v952
    %v2230 = vunpack.c.h.b16 %v952
    %v2231 = vunpack.c.l.b16 %v953
    %v2232 = vunpack.c.h.b16 %v953
    %v2233 = vunpack.c.l.b16 %v954
    %v2234 = vunpack.c.h.b16 %v954
    %v2235 = vunpack.c.l.b16 %v955
    %v2236 = vunpack.c.h.b16 %v955
    %v2237 = vunpack.c.l.b16 %v956
    %v2238 = vunpack.c.h.b16 %v956
    %v2239 = vunpack.c.l.b16 %v957
    %v2240 = vunpack.c.h.b16 %v957
    %v2241 = vunpack.c.l.b16 %v958
    %v2242 = vunpack.c.h.b16 %v958
    %v2243 = vunpack.c.l.b16 %v959
    %v2244 = vunpack.c.h.b16 %v959
    %v2245 = vunpack.c.l.b16 %v960
    %v2246 = vunpack.c.h.b16 %v960
    %v2247 = vunpack.c.l.b16 %v961
    %v2248 = vunpack.c.h.b16 %v961
    %v2249 = vunpack.c.l.b16 %v962
    %v2250 = vunpack.c.h.b16 %v962
    %v2251 = vunpack.c.l.b16 %v963
    %v2252 = vunpack.c.h.b16 %v963
    %v2253 = vunpack.c.l.b16 %v964
    %v2254 = vunpack.c.h.b16 %v964
    %v2255 = vunpack.c.l.b16 %v965
    %v2256 = vunpack.c.h.b16 %v965
    %v2257 = vunpack.c.l.b16 %v966
    %v2258 = vunpack.c.h.b16 %v966
    %v2259 = vunpack.c.l.b16 %v967
    %v2260 = vunpack.c.h.b16 %v967
    %v2261 = vunpack.c.l.b16 %v968
    %v2262 = vunpack.c.h.b16 %v968
    %v2263 = vunpack.c.l.b16 %v969
    %v2264 = vunpack.c.h.b16 %v969
    %v2265 = vunpack.c.l.b16 %v970
    %v2266 = vunpack.c.h.b16 %v970
    %v2267 = vunpack.c.l.b16 %v971
    %v2268 = vunpack.c.h.b16 %v971
    %v2269 = vunpack.c.l.b16 %v972
    %v2270 = vunpack.c.h.b16 %v972
    %v2271 = vunpack.c.l.b16 %v973
    %v2272 = vunpack.c.h.b16 %v973
    %v2273 = vunpack.c.l.b16 %v974
    %v2274 = vunpack.c.h.b16 %v974
    %v2275 = vunpack.c.l.b16 %v975
    %v2276 = vunpack.c.h.b16 %v975
    %v2277 = vunpack.c.l.b16 %v976
    %v2278 = vunpack.c.h.b16 %v976
    %v2279 = vunpack.c.l.b16 %v977
    %v2280 = vunpack.c.h.b16 %v977
    %v2281 = vunpack.c.l.b16 %v978
    %v2282 = vunpack.c.h.b16 %v978
    %v2283 = vunpack.c.l.b16 %v979
    %v2284 = vunpack.c.h.b16 %v979
    %v2285 = vunpack.c.l.b16 %v980
    %v2286 = vunpack.c.h.b16 %v980
    %v2287 = vunpack.c.l.b16 %v981
    %v2288 = vunpack.c.h.b16 %v981
    %v2289 = vunpack.c.l.b16 %v982
    %v2290 = vunpack.c.h.b16 %v982
    %v2291 = vunpack.c.l.b16 %v983
    %v2292 = vunpack.c.h.b16 %v983
    %v2293 = vunpack.c.l.b16 %v984
    %v2294 = vunpack.c.h.b16 %v984
    %v2295 = vunpack.c.l.b16 %v985
    %v2296 = vunpack.c.h.b16 %v985
    %v2297 = vunpack.c.l.b16 %v986
    %v2298 = vunpack.c.h.b16 %v986
    %v2299 = vunpack.c.l.b16 %v987
    %v2300 = vunpack.c.h.b16 %v987
    %v2301 = vunpack.c.l.b16 %v988
    %v2302 = vunpack.c.h.b16 %v988
    %v2303 = vunpack.c.l.b16 %v989
    %v2304 = vunpack.c.h.b16 %v989
    %v2305 = vunpack.c.l.b16 %v990
    %v2306 = vunpack.c.h.b16 %v990
    %v2307 = vunpack.c.l.b16 %v991
    %v2308 = vunpack.c.h.b16 %v991
    %v2309 = vunpack.c.l.b16 %v992
    %v2310 = vunpack.c.h.b16 %v992
    %v2311 = vunpack.c.l.b16 %v993
    %v2312 = vunpack.c.h.b16 %v993
    %v2313 = vunpack.c.l.b16 %v994
    %v2314 = vunpack.c.h.b16 %v994
    %v2315 = vunpack.c.l.b16 %v995
    %v2316 = vunpack.c.h.b16 %v995
    %v2317 = vunpack.c.l.b16 %v996
    %v2318 = vunpack.c.h.b16 %v996
    %v2319 = vunpack.c.l.b16 %v997
    %v2320 = vunpack.c.h.b16 %v997
    %v2321 = vunpack.c.l.b16 %v998
    %v2322 = vunpack.c.h.b16 %v998
    %v2323 = vunpack.c.l.b16 %v999
    %v2324 = vunpack.c.h.b16 %v999
    %v2325 = vunpack.c.l.b16 %v1000
    %v2326 = vunpack.c.h.b16 %v1000
    %v2327 = vunpack.c.l.b16 %v1001
    %v2328 = vunpack.c.h.b16 %v1001
    %v2329 = vunpack.c.l.b16 %v1002
    %v2330 = vunpack.c.h.b16 %v1002
    %v2331 = vunpack.c.l.b16 %v1003
    %v2332 = vunpack.c.h.b16 %v1003
    %v2333 = vunpack.c.l.b16 %v1004
    %v2334 = vunpack.c.h.b16 %v1004
    %v2335 = vunpack.c.l.b16 %v1005
    %v2336 = vunpack.c.h.b16 %v1005
    %v2337 = vunpack.c.l.b16 %v1006
    %v2338 = vunpack.c.h.b16 %v1006
    %v2339 = vunpack.c.l.b16 %v1007
    %v2340 = vunpack.c.h.b16 %v1007
    %v2341 = vunpack.c.l.b16 %v1008
    %v2342 = vunpack.c.h.b16 %v1008
    %v2343 = vunpack.c.l.b16 %v1009
    %v2344 = vunpack.c.h.b16 %v1009
    %v2345 = vunpack.c.l.b16 %v1010
    %v2346 = vunpack.c.h.b16 %v1010
    %v2347 = vunpack.c.l.b16 %v1011
    %v2348 = vunpack.c.h.b16 %v1011
    %v2349 = vunpack.c.l.b16 %v1012
    %v2350 = vunpack.c.h.b16 %v1012
    %v2351 = vunpack.c.l.b16 %v1013
    %v2352 = vunpack.c.h.b16 %v1013
    %v2353 = vunpack.c.l.b16 %v1014
    %v2354 = vunpack.c.h.b16 %v1014
    %v2355 = vunpack.c.l.b16 %v1015
    %v2356 = vunpack.c.h.b16 %v1015
    %v2357 = vunpack.c.l.b16 %v1016
    %v2358 = vunpack.c.h.b16 %v1016
    %v2359 = vunpack.c.l.b16 %v1017
    %v2360 = vunpack.c.h.b16 %v1017
    %v2361 = vunpack.c.l.b16 %v1018
    %v2362 = vunpack.c.h.b16 %v1018
    %v2363 = vunpack.c.l.b16 %v1019
    %v2364 = vunpack.c.h.b16 %v1019
    %v2365 = vunpack.c.l.b16 %v1020
    %v2366 = vunpack.c.h.b16 %v1020
    %v2367 = vunpack.c.l.b16 %v1021
    %v2368 = vunpack.c.h.b16 %v1021
    %v2369 = vunpack.c.l.b16 %v1022
    %v2370 = vunpack.c.h.b16 %v1022
    %v2371 = vunpack.c.l.b16 %v1023
    %v2372 = vunpack.c.h.b16 %v1023
    %v2373 = vunpack.c.l.b16 %v1024
    %v2374 = vunpack.c.h.b16 %v1024
    %v2375 = vunpack.c.l.b16 %v1025
    %v2376 = vunpack.c.h.b16 %v1025
    %v2377 = vunpack.c.l.b16 %v1026
    %v2378 = vunpack.c.h.b16 %v1026
    %v2379 = vunpack.c.l.b16 %v1027
    %v2380 = vunpack.c.h.b16 %v1027
    %v2381 = vunpack.c.l.b16 %v1028
    %v2382 = vunpack.c.h.b16 %v1028
    %v2383 = vunpack.c.l.b16 %v1029
    %v2384 = vunpack.c.h.b16 %v1029
    %v2385 = vunpack.c.l.b16 %v1030
    %v2386 = vunpack.c.h.b16 %v1030
    %v2387 = vunpack.c.l.b16 %v1031
    %v2388 = vunpack.c.h.b16 %v1031
    %v2389 = vunpack.c.l.b16 %v1032
    %v2390 = vunpack.c.h.b16 %v1032
    %v2391 = vunpack.c.l.b16 %v1033
    %v2392 = vunpack.c.h.b16 %v1033
    %v2393 = vunpack.c.l.b16 %v1034
    %v2394 = vunpack.c.h.b16 %v1034
    %v2395 = vunpack.c.l.b16 %v1035
    %v2396 = vunpack.c.h.b16 %v1035
    %v2397 = vunpack.c.l.b16 %v1036
    %v2398 = vunpack.c.h.b16 %v1036
    %v2399 = vunpack.c.l.b16 %v1037
    %v2400 = vunpack.c.h.b16 %v1037
    %v2401 = vunpack.c.l.b16 %v1038
    %v2402 = vunpack.c.h.b16 %v1038
    %v2403 = vunpack.c.l.b16 %v1039
    %v2404 = vunpack.c.h.b16 %v1039
    %v2405 = vunpack.c.l.b16 %v1040
    %v2406 = vunpack.c.h.b16 %v1040
    %v2407 = vunpack.c.l.b16 %v1041
    %v2408 = vunpack.c.h.b16 %v1041
    %v2409 = vunpack.c.l.b16 %v1042
    %v2410 = vunpack.c.h.b16 %v1042
    %v2411 = vunpack.c.l.b16 %v1043
    %v2412 = vunpack.c.h.b16 %v1043
    %v2413 = vunpack.c.l.b16 %v1044
    %v2414 = vunpack.c.h.b16 %v1044
    %v2415 = vunpack.c.l.b16 %v1045
    %v2416 = vunpack.c.h.b16 %v1045
    %v2417 = vunpack.c.l.b16 %v1046
    %v2418 = vunpack.c.h.b16 %v1046
    %v2419 = vunpack.c.l.b16 %v1047
    %v2420 = vunpack.c.h.b16 %v1047
    %v2421 = vunpack.c.l.b16 %v1048
    %v2422 = vunpack.c.h.b16 %v1048
    %v2423 = vunpack.c.l.b16 %v1049
    %v2424 = vunpack.c.h.b16 %v1049
    %v2425 = vunpack.c.l.b16 %v1050
    %v2426 = vunpack.c.h.b16 %v1050
    %v2427 = vunpack.c.l.b16 %v1051
    %v2428 = vunpack.c.h.b16 %v1051
    %v2429 = vunpack.c.l.b16 %v1052
    %v2430 = vunpack.c.h.b16 %v1052
    %v2431 = vunpack.c.l.b16 %v1053
    %v2432 = vunpack.c.h.b16 %v1053
    %v2433 = vunpack.c.l.b16 %v1054
    %v2434 = vunpack.c.h.b16 %v1054
    %v2435 = vunpack.c.l.b16 %v1055
    %v2436 = vunpack.c.h.b16 %v1055
    %v2437 = vunpack.c.l.b16 %v1056
    %v2438 = vunpack.c.h.b16 %v1056
    %v2439 = vunpack.c.l.b16 %v1057
    %v2440 = vunpack.c.h.b16 %v1057
    %v2441 = vunpack.c.l.b16 %v1058
    %v2442 = vunpack.c.h.b16 %v1058
    %v2443 = vunpack.c.l.b16 %v1059
    %v2444 = vunpack.c.h.b16 %v1059
    %v2445 = vunpack.c.l.b16 %v1060
    %v2446 = vunpack.c.h.b16 %v1060
    %v2447 = vunpack.c.l.b16 %v1061
    %v2448 = vunpack.c.h.b16 %v1061
    %v2449 = vunpack.c.l.b16 %v1062
    %v2450 = vunpack.c.h.b16 %v1062
    %v2451 = vunpack.c.l.b16 %v1063
    %v2452 = vunpack.c.h.b16 %v1063
    %v2453 = vunpack.c.l.b16 %v1064
    %v2454 = vunpack.c.h.b16 %v1064
    %v2455 = vunpack.c.l.b16 %v1065
    %v2456 = vunpack.c.h.b16 %v1065
    %v2457 = vunpack.c.l.b16 %v1066
    %v2458 = vunpack.c.h.b16 %v1066
    %v2459 = vunpack.c.l.b16 %v1067
    %v2460 = vunpack.c.h.b16 %v1067
    %v2461 = vunpack.c.l.b16 %v1068
    %v2462 = vunpack.c.h.b16 %v1068
    %v2463 = vunpack.c.l.b16 %v1069
    %v2464 = vunpack.c.h.b16 %v1069
    %v2465 = vunpack.c.l.b16 %v1070
    %v2466 = vunpack.c.h.b16 %v1070
    %v2467 = vunpack.c.l.b16 %v1071
    %v2468 = vunpack.c.h.b16 %v1071
    %v2469 = vunpack.c.l.b16 %v1072
    %v2470 = vunpack.c.h.b16 %v1072
    %v2471 = vunpack.c.l.b16 %v1073
    %v2472 = vunpack.c.h.b16 %v1073
    %v2473 = vunpack.c.l.b16 %v1074
    %v2474 = vunpack.c.h.b16 %v1074
    %v2475 = vunpack.c.l.b16 %v1075
    %v2476 = vunpack.c.h.b16 %v1075
    %v2477 = vunpack.c.l.b16 %v1076
    %v2478 = vunpack.c.h.b16 %v1076
    %v2479 = vunpack.c.l.b16 %v1077
    %v2480 = vunpack.c.h.b16 %v1077
    %v2481 = vunpack.c.l.b16 %v1078
    %v2482 = vunpack.c.h.b16 %v1078
    %v2483 = vunpack.c.l.b16 %v1079
    %v2484 = vunpack.c.h.b16 %v1079
    %v2485 = vunpack.c.l.b16 %v1080
    %v2486 = vunpack.c.h.b16 %v1080
    %v2487 = vunpack.c.l.b16 %v1081
    %v2488 = vunpack.c.h.b16 %v1081
    %v2489 = vunpack.c.l.b16 %v1082
    %v2490 = vunpack.c.h.b16 %v1082
    %v2491 = vunpack.c.l.b16 %v1083
    %v2492 = vunpack.c.h.b16 %v1083
    %v2493 = vunpack.c.l.b16 %v1084
    %v2494 = vunpack.c.h.b16 %v1084
    %v2495 = vunpack.c.l.b16 %v1085
    %v2496 = vunpack.c.h.b16 %v1085
    %v2497 = vunpack.c.l.b16 %v1086
    %v2498 = vunpack.c.h.b16 %v1086
    %v2499 = vunpack.c.l.b16 %v1087
    %v2500 = vunpack.c.h.b16 %v1087
    %v2501 = vunpack.c.l.b16 %v1088
    %v2502 = vunpack.c.h.b16 %v1088
    %v2503 = vunpack.c.l.b16 %v1089
    %v2504 = vunpack.c.h.b16 %v1089
    %v2505 = vunpack.c.l.b16 %v1090
    %v2506 = vunpack.c.h.b16 %v1090
    %v2507 = vunpack.c.l.b16 %v1091
    %v2508 = vunpack.c.h.b16 %v1091
    %v2509 = vunpack.c.l.b16 %v1092
    %v2510 = vunpack.c.h.b16 %v1092
    %v2511 = vunpack.c.l.b16 %v1093
    %v2512 = vunpack.c.h.b16 %v1093
    %v2513 = vunpack.c.l.b16 %v1094
    %v2514 = vunpack.c.h.b16 %v1094
    %v2515 = vunpack.c.l.b16 %v1095
    %v2516 = vunpack.c.h.b16 %v1095
    %v2517 = vunpack.c.l.b16 %v1096
    %v2518 = vunpack.c.h.b16 %v1096
    %v2519 = vunpack.c.l.b16 %v1097
    %v2520 = vunpack.c.h.b16 %v1097
    %v2521 = vunpack.c.l.b16 %v1098
    %v2522 = vunpack.c.h.b16 %v1098
    %v2523 = vunpack.c.l.b16 %v1099
    %v2524 = vunpack.c.h.b16 %v1099
    %v2525 = vunpack.c.l.b16 %v1100
    %v2526 = vunpack.c.h.b16 %v1100
    %v2527 = vunpack.c.l.b16 %v1101
    %v2528 = vunpack.c.h.b16 %v1101
    %v2529 = vunpack.c.l.b16 %v1102
    %v2530 = vunpack.c.h.b16 %v1102
    %v2531 = vunpack.c.l.b16 %v1103
    %v2532 = vunpack.c.h.b16 %v1103
    %v2533 = vunpack.c.l.b16 %v1104
    %v2534 = vunpack.c.h.b16 %v1104
    %v2535 = vunpack.c.l.b16 %v1105
    %v2536 = vunpack.c.h.b16 %v1105
    %v2537 = vunpack.c.l.b16 %v1106
    %v2538 = vunpack.c.h.b16 %v1106
    %v2539 = vunpack.c.l.b16 %v1107
    %v2540 = vunpack.c.h.b16 %v1107
    %v2541 = vunpack.c.l.b16 %v1108
    %v2542 = vunpack.c.h.b16 %v1108
    %v2543 = vunpack.c.l.b16 %v1109
    %v2544 = vunpack.c.h.b16 %v1109
    %v2545 = vunpack.c.l.b16 %v1110
    %v2546 = vunpack.c.h.b16 %v1110
    %v2547 = vunpack.c.l.b16 %v1111
    %v2548 = vunpack.c.h.b16 %v1111
    %v2549 = vunpack.c.l.b16 %v1112
    %v2550 = vunpack.c.h.b16 %v1112
    %v2551 = vunpack.c.l.b16 %v1113
    %v2552 = vunpack.c.h.b16 %v1113
    %v2553 = vunpack.c.l.b16 %v1114
    %v2554 = vunpack.c.h.b16 %v1114
    %v2555 = vunpack.c.l.b16 %v1115
    %v2556 = vunpack.c.h.b16 %v1115
    %v2557 = vunpack.c.l.b16 %v1116
    %v2558 = vunpack.c.h.b16 %v1116
    %v2559 = vunpack.c.l.b16 %v1117
    %v2560 = vunpack.c.h.b16 %v1117
    %v2561 = vunpack.c.l.b16 %v1118
    %v2562 = vunpack.c.h.b16 %v1118
    %v2563 = vunpack.c.l.b16 %v1119
    %v2564 = vunpack.c.h.b16 %v1119
    %v2565 = vunpack.c.l.b16 %v1120
    %v2566 = vunpack.c.h.b16 %v1120
    %v2567 = vunpack.c.l.b16 %v1121
    %v2568 = vunpack.c.h.b16 %v1121
    %v2569 = vunpack.c.l.b16 %v1122
    %v2570 = vunpack.c.h.b16 %v1122
    %v2571 = vunpack.c.l.b16 %v1123
    %v2572 = vunpack.c.h.b16 %v1123
    %v2573 = vunpack.c.l.b16 %v1124
    %v2574 = vunpack.c.h.b16 %v1124
    %v2575 = vunpack.c.l.b16 %v1125
    %v2576 = vunpack.c.h.b16 %v1125
    %v2577 = vunpack.c.l.b16 %v1126
    %v2578 = vunpack.c.h.b16 %v1126
    %v2579 = vunpack.c.l.b16 %v1127
    %v2580 = vunpack.c.h.b16 %v1127
    %v2581 = vunpack.c.l.b16 %v1128
    %v2582 = vunpack.c.h.b16 %v1128
    %v2583 = vunpack.c.l.b16 %v1129
    %v2584 = vunpack.c.h.b16 %v1129
    %v2585 = vunpack.c.l.b16 %v1130
    %v2586 = vunpack.c.h.b16 %v1130
    %v2587 = vunpack.c.l.b16 %v1131
    %v2588 = vunpack.c.h.b16 %v1131
    %v2589 = vunpack.c.l.b16 %v1132
    %v2590 = vunpack.c.h.b16 %v1132
    %v2591 = vunpack.c.l.b16 %v1133
    %v2592 = vunpack.c.h.b16 %v1133
    %v2593 = vunpack.c.l.b16 %v1134
    %v2594 = vunpack.c.h.b16 %v1134
    %v2595 = vunpack.c.l.b16 %v1135
    %v2596 = vunpack.c.h.b16 %v1135
    %v2597 = vunpack.c.l.b16 %v1136
    %v2598 = vunpack.c.h.b16 %v1136
    %v2599 = vunpack.c.l.b16 %v1137
    %v2600 = vunpack.c.h.b16 %v1137
    %v2601 = vunpack.c.l.b16 %v1138
    %v2602 = vunpack.c.h.b16 %v1138
    %v2603 = vunpack.c.l.b16 %v1139
    %v2604 = vunpack.c.h.b16 %v1139
    %v2605 = vunpack.c.l.b16 %v1140
    %v2606 = vunpack.c.h.b16 %v1140
    %v2607 = vunpack.c.l.b16 %v1141
    %v2608 = vunpack.c.h.b16 %v1141
    %v2609 = vunpack.c.l.b16 %v1142
    %v2610 = vunpack.c.h.b16 %v1142
    %v2611 = vunpack.c.l.b16 %v1143
    %v2612 = vunpack.c.h.b16 %v1143
    %v2613 = vunpack.c.l.b16 %v1144
    %v2614 = vunpack.c.h.b16 %v1144
    %v2615 = vunpack.c.l.b16 %v1145
    %v2616 = vunpack.c.h.b16 %v1145
    %v2617 = vunpack.c.l.b16 %v1146
    %v2618 = vunpack.c.h.b16 %v1146
    %v2619 = vunpack.c.l.b16 %v1147
    %v2620 = vunpack.c.h.b16 %v1147
    %v2621 = vunpack.c.l.b16 %v1148
    %v2622 = vunpack.c.h.b16 %v1148
    %v2623 = vunpack.c.l.b16 %v1149
    %v2624 = vunpack.c.h.b16 %v1149
    %v2625 = vunpack.c.l.b16 %v1150
    %v2626 = vunpack.c.h.b16 %v1150
    %v2627 = vunpack.c.l.b16 %v1151
    %v2628 = vunpack.c.h.b16 %v1151
    %v2629 = vunpack.c.l.b16 %v1152
    %v2630 = vunpack.c.h.b16 %v1152
    %v2631 = vunpack.c.l.b16 %v1153
    %v2632 = vunpack.c.h.b16 %v1153
    %v2633 = vunpack.c.l.b16 %v1154
    %v2634 = vunpack.c.h.b16 %v1154
    %v2635 = vunpack.c.l.b16 %v1155
    %v2636 = vunpack.c.h.b16 %v1155
    %v2637 = vunpack.c.l.b16 %v1156
    %v2638 = vunpack.c.h.b16 %v1156
    %v2639 = vunpack.c.l.b16 %v1157
    %v2640 = vunpack.c.h.b16 %v1157
    %v2641 = vunpack.c.l.b16 %v1158
    %v2642 = vunpack.c.h.b16 %v1158
    %v2643 = vunpack.c.l.b16 %v1159
    %v2644 = vunpack.c.h.b16 %v1159
    %v2645 = vunpack.c.l.b16 %v1160
    %v2646 = vunpack.c.h.b16 %v1160
    %v2647 = vunpack.c.l.b16 %v1161
    %v2648 = vunpack.c.h.b16 %v1161
    %v2649 = vunpack.c.l.b16 %v1162
    %v2650 = vunpack.c.h.b16 %v1162
    %v2651 = vunpack.c.l.b16 %v1163
    %v2652 = vunpack.c.h.b16 %v1163
    %v2653 = vunpack.c.l.b16 %v1164
    %v2654 = vunpack.c.h.b16 %v1164
    %v2655 = vunpack.c.l.b16 %v1165
    %v2656 = vunpack.c.h.b16 %v1165
    %v2657 = vunpack.c.l.b16 %v1166
    %v2658 = vunpack.c.h.b16 %v1166
    %v2659 = vunpack.c.l.b16 %v1167
    %v2660 = vunpack.c.h.b16 %v1167
    %v2661 = vunpack.c.l.b16 %v1168
    %v2662 = vunpack.c.h.b16 %v1168
    %v2663 = vunpack.c.l.b16 %v1169
    %v2664 = vunpack.c.h.b16 %v1169
    %v2665 = vunpack.c.l.b16 %v1170
    %v2666 = vunpack.c.h.b16 %v1170
    %v2667 = vunpack.c.l.b16 %v1171
    %v2668 = vunpack.c.h.b16 %v1171
    %v2669 = vunpack.c.l.b16 %v1172
    %v2670 = vunpack.c.h.b16 %v1172
    %v2671 = vunpack.c.l.b16 %v1173
    %v2672 = vunpack.c.h.b16 %v1173
    %v2673 = vunpack.c.l.b16 %v1174
    %v2674 = vunpack.c.h.b16 %v1174
    %v2675 = vunpack.c.l.b16 %v1175
    %v2676 = vunpack.c.h.b16 %v1175
    %v2677 = vunpack.c.l.b16 %v1176
    %v2678 = vunpack.c.h.b16 %v1176
    %v2679 = vunpack.c.l.b16 %v1177
    %v2680 = vunpack.c.h.b16 %v1177
    %v2681 = vunpack.c.l.b16 %v1178
    %v2682 = vunpack.c.h.b16 %v1178
    %v2683 = vunpack.c.l.b16 %v1179
    %v2684 = vunpack.c.h.b16 %v1179
    %v2685 = vunpack.c.l.b16 %v1180
    %v2686 = vunpack.c.h.b16 %v1180
    %v2687 = vunpack.c.l.b16 %v1181
    %v2688 = vunpack.c.h.b16 %v1181
    %v2689 = vunpack.c.l.b16 %v1182
    %v2690 = vunpack.c.h.b16 %v1182
    %v2691 = vunpack.c.l.b16 %v1183
    %v2692 = vunpack.c.h.b16 %v1183
    %v2693 = vunpack.c.l.b16 %v1184
    %v2694 = vunpack.c.h.b16 %v1184
    %v2695 = vunpack.c.l.b16 %v1185
    %v2696 = vunpack.c.h.b16 %v1185
    %v2697 = vunpack.c.l.b16 %v1186
    %v2698 = vunpack.c.h.b16 %v1186
    %v2699 = vunpack.c.l.b16 %v1187
    %v2700 = vunpack.c.h.b16 %v1187
    %v2701 = vunpack.c.l.b16 %v1188
    %v2702 = vunpack.c.h.b16 %v1188
    %v2703 = vunpack.c.l.b16 %v1189
    %v2704 = vunpack.c.h.b16 %v1189
    %v2705 = vunpack.c.l.b16 %v1190
    %v2706 = vunpack.c.h.b16 %v1190
    %v2707 = vunpack.c.l.b16 %v1191
    %v2708 = vunpack.c.h.b16 %v1191
    %v2709 = vunpack.c.l.b16 %v1192
    %v2710 = vunpack.c.h.b16 %v1192
    %v2711 = vunpack.c.l.b16 %v1193
    %v2712 = vunpack.c.h.b16 %v1193
    %v2713 = vunpack.c.l.b16 %v1194
    %v2714 = vunpack.c.h.b16 %v1194
    %v2715 = vunpack.c.l.b16 %v1195
    %v2716 = vunpack.c.h.b16 %v1195
    %v2717 = vunpack.c.l.b16 %v1196
    %v2718 = vunpack.c.h.b16 %v1196
    %v2719 = vunpack.c.l.b16 %v1197
    %v2720 = vunpack.c.h.b16 %v1197
    %v2721 = vunpack.c.l.b16 %v1198
    %v2722 = vunpack.c.h.b16 %v1198
    %v2723 = vunpack.c.l.b16 %v1199
    %v2724 = vunpack.c.h.b16 %v1199
    %v2725 = vunpack.c.l.b16 %v1200
    %v2726 = vunpack.c.h.b16 %v1200
    %v2727 = vunpack.c.l.b16 %v1201
    %v2728 = vunpack.c.h.b16 %v1201
    %v2729 = vunpack.c.l.b16 %v1202
    %v2730 = vunpack.c.h.b16 %v1202
    %v2731 = vunpack.c.l.b16 %v1203
    %v2732 = vunpack.c.h.b16 %v1203
    %v2733 = vunpack.c.l.b16 %v1204
    %v2734 = vunpack.c.h.b16 %v1204
    %v2735 = vunpack.c.l.b16 %v1205
    %v2736 = vunpack.c.h.b16 %v1205
    %v2737 = vunpack.c.l.b16 %v1206
    %v2738 = vunpack.c.h.b16 %v1206
    %v2739 = vunpack.c.l.b16 %v1207
    %v2740 = vunpack.c.h.b16 %v1207
    %v2741 = vunpack.c.l.b16 %v1208
    %v2742 = vunpack.c.h.b16 %v1208
    %v2743 = vunpack.c.l.b16 %v1209
    %v2744 = vunpack.c.h.b16 %v1209
    %v2745 = vunpack.c.l.b16 %v1210
    %v2746 = vunpack.c.h.b16 %v1210
    %v2747 = vunpack.c.l.b16 %v1211
    %v2748 = vunpack.c.h.b16 %v1211
    %v2749 = vunpack.c.l.b16 %v1212
    %v2750 = vunpack.c.h.b16 %v1212
    %v2751 = vunpack.c.l.b16 %v1213
    %v2752 = vunpack.c.h.b16 %v1213
    %v2753 = vunpack.c.l.b16 %v1214
    %v2754 = vunpack.c.h.b16 %v1214
    %v2755 = vunpack.c.l.b16 %v1215
    %v2756 = vunpack.c.h.b16 %v1215
    %v2757 = vunpack.c.l.b16 %v1216
    %v2758 = vunpack.c.h.b16 %v1216
    %v2759 = vunpack.c.l.b16 %v1217
    %v2760 = vunpack.c.h.b16 %v1217
    %v2761 = vunpack.c.l.b16 %v1218
    %v2762 = vunpack.c.h.b16 %v1218
    %v2763 = vunpack.c.l.b16 %v1219
    %v2764 = vunpack.c.h.b16 %v1219
    %v2765 = vunpack.c.l.b16 %v1220
    %v2766 = vunpack.c.h.b16 %v1220
    %v2767 = vunpack.c.l.b16 %v1221
    %v2768 = vunpack.c.h.b16 %v1221
    %v2769 = vunpack.c.l.b16 %v1222
    %v2770 = vunpack.c.h.b16 %v1222
    %v2771 = vunpack.c.l.b16 %v1223
    %v2772 = vunpack.c.h.b16 %v1223
    %v2773 = vunpack.c.l.b16 %v1224
    %v2774 = vunpack.c.h.b16 %v1224
    %v2775 = vunpack.c.l.b16 %v1225
    %v2776 = vunpack.c.h.b16 %v1225
    %v2777 = vunpack.c.l.b16 %v1226
    %v2778 = vunpack.c.h.b16 %v1226
    %v2779 = vunpack.c.l.b16 %v1227
    %v2780 = vunpack.c.h.b16 %v1227
    %v2781 = vunpack.c.l.b16 %v1228
    %v2782 = vunpack.c.h.b16 %v1228
    %v2783 = vunpack.c.l.b16 %v1229
    %v2784 = vunpack.c.h.b16 %v1229
    %v2785 = vunpack.c.l.b16 %v1230
    %v2786 = vunpack.c.h.b16 %v1230
    %v2787 = vunpack.c.l.b16 %v1231
    %v2788 = vunpack.c.h.b16 %v1231
    %v2789 = vunpack.c.l.b16 %v1232
    %v2790 = vunpack.c.h.b16 %v1232
    %v2791 = vunpack.c.l.b16 %v1233
    %v2792 = vunpack.c.h.b16 %v1233
    %v2793 = vunpack.c.l.b16 %v1234
    %v2794 = vunpack.c.h.b16 %v1234
    %v2795 = vunpack.c.l.b16 %v1235
    %v2796 = vunpack.c.h.b16 %v1235
    %v2797 = vunpack.c.l.b16 %v1236
    %v2798 = vunpack.c.h.b16 %v1236
    %v2799 = vunpack.c.l.b16 %v1237
    %v2800 = vunpack.c.h.b16 %v1237
    %v2801 = vunpack.c.l.b16 %v1238
    %v2802 = vunpack.c.h.b16 %v1238
    %v2803 = vunpack.c.l.b16 %v1239
    %v2804 = vunpack.c.h.b16 %v1239
    %v2805 = vunpack.c.l.b16 %v1240
    %v2806 = vunpack.c.h.b16 %v1240
    %v2807 = vunpack.c.l.b16 %v1241
    %v2808 = vunpack.c.h.b16 %v1241
    %v2809 = vunpack.c.l.b16 %v1242
    %v2810 = vunpack.c.h.b16 %v1242
    %v2811 = vpack.c.b16 %v1795, %v1787
    %v2812 = vpack.c.b16 %v1796, %v1788
    %v2813 = vpack.c.b16 %v1797, %v1789
    %v2814 = vpack.c.b16 %v1798, %v1790
    %v2815 = vpack.c.b16 %v1799, %v1791
    %v2816 = vpack.c.b16 %v1800, %v1792
    %v2817 = vpack.c.b16 %v1801, %v1793
    %v2818 = vpack.c.b16 %v1802, %v1794
    %v2819 = vpack.c.b16 %v1811, %v1803
    %v2820 = vpack.c.b16 %v1812, %v1804
    %v2821 = vpack.c.b16 %v1813, %v1805
    %v2822 = vpack.c.b16 %v1814, %v1806
    %v2823 = vpack.c.b16 %v1815, %v1807
    %v2824 = vpack.c.b16 %v1816, %v1808
    %v2825 = vpack.c.b16 %v1817, %v1809
    %v2826 = vpack.c.b16 %v1818, %v1810
    %v2827 = vpack.c.b16 %v1827, %v1819
    %v2828 = vpack.c.b16 %v1828, %v1820
    %v2829 = vpack.c.b16 %v1829, %v1821
    %v2830 = vpack.c.b16 %v1830, %v1822
    %v2831 = vpack.c.b16 %v1831, %v1823
    %v2832 = vpack.c.b16 %v1832, %v1824
    %v2833 = vpack.c.b16 %v1833, %v1825
    %v2834 = vpack.c.b16 %v1834, %v1826
    %v2835 = vpack.c.b16 %v1843, %v1835
    %v2836 = vpack.c.b16 %v1844, %v1836
    %v2837 = vpack.c.b16 %v1845, %v1837
    %v2838 = vpack.c.b16 %v1846, %v1838
    %v2839 = vpack.c.b16 %v1847, %v1839
    %v2840 = vpack.c.b16 %v1848, %v1840
    %v2841 = vpack.c.b16 %v1849, %v1841
    %v2842 = vpack.c.b16 %v1850, %v1842
    %v2843 = vpack.c.b16 %v1859, %v1851
    %v2844 = vpack.c.b16 %v1860, %v1852
    %v2845 = vpack.c.b16 %v1861, %v1853
    %v2846 = vpack.c.b16 %v1862, %v1854
    %v2847 = vpack.c.b16 %v1863, %v1855
    %v2848 = vpack.c.b16 %v1864, %v1856
    %v2849 = vpack.c.b16 %v1865, %v1857
    %v2850 = vpack.c.b16 %v1866, %v1858
    %v2851 = vpack.c.b16 %v1875, %v1867
    %v2852 = vpack.c.b16 %v1876, %v1868
    %v2853 = vpack.c.b16 %v1877, %v1869
    %v2854 = vpack.c.b16 %v1878, %v1870
    %v2855 = vpack.c.b16 %v1879, %v1871
    %v2856 = vpack.c.b16 %v1880, %v1872
    %v2857 = vpack.c.b16 %v1881, %v1873
    %v2858 = vpack.c.b16 %v1882, %v1874
    %v2859 = vpack.c.b16 %v1891, %v1883
    %v2860 = vpack.c.b16 %v1892, %v1884
    %v2861 = vpack.c.b16 %v1893, %v1885
    %v2862 = vpack.c.b16 %v1894, %v1886
    %v2863 = vpack.c.b16 %v1895, %v1887
    %v2864 = vpack.c.b16 %v1896, %v1888
    %v2865 = vpack.c.b16 %v1897, %v1889
    %v2866 = vpack.c.b16 %v1898, %v1890
    %v2867 = vpack.c.b16 %v1907, %v1899
    %v2868 = vpack.c.b16 %v1908, %v1900
    %v2869 = vpack.c.b16 %v1909, %v1901
    %v2870 = vpack.c.b16 %v1910, %v1902
    %v2871 = vpack.c.b16 %v1911, %v1903
    %v2872 = vpack.c.b16 %v1912, %v1904
    %v2873 = vpack.c.b16 %v1913, %v1905
    %v2874 = vpack.c.b16 %v1914, %v1906
    %v2875 = vpack.c.b16 %v1923, %v1915
    %v2876 = vpack.c.b16 %v1924, %v1916
    %v2877 = vpack.c.b16 %v1925, %v1917
    %v2878 = vpack.c.b16 %v1926, %v1918
    %v2879 = vpack.c.b16 %v1927, %v1919
    %v2880 = vpack.c.b16 %v1928, %v1920
    %v2881 = vpack.c.b16 %v1929, %v1921
    %v2882 = vpack.c.b16 %v1930, %v1922
    %v2883 = vpack.c.b16 %v1939, %v1931
    %v2884 = vpack.c.b16 %v1940, %v1932
    %v2885 = vpack.c.b16 %v1941, %v1933
    %v2886 = vpack.c.b16 %v1942, %v1934
    %v2887 = vpack.c.b16 %v1943, %v1935
    %v2888 = vpack.c.b16 %v1944, %v1936
    %v2889 = vpack.c.b16 %v1945, %v1937
    %v2890 = vpack.c.b16 %v1946, %v1938
    %v2891 = vpack.c.b16 %v1955, %v1947
    %v2892 = vpack.c.b16 %v1956, %v1948
    %v2893 = vpack.c.b16 %v1957, %v1949
    %v2894 = vpack.c.b16 %v1958, %v1950
    %v2895 = vpack.c.b16 %v1959, %v1951
    %v2896 = vpack.c.b16 %v1960, %v1952
    %v2897 = vpack.c.b16 %v1961, %v1953
    %v2898 = vpack.c.b16 %v1962, %v1954
    %v2899 = vpack.c.b16 %v1971, %v1963
    %v2900 = vpack.c.b16 %v1972, %v1964
    %v2901 = vpack.c.b16 %v1973, %v1965
    %v2902 = vpack.c.b16 %v1974, %v1966
    %v2903 = vpack.c.b16 %v1975, %v1967
    %v2904 = vpack.c.b16 %v1976, %v1968
    %v2905 = vpack.c.b16 %v1977, %v1969
    %v2906 = vpack.c.b16 %v1978, %v1970
    %v2907 = vpack.c.b16 %v1987, %v1979
    %v2908 = vpack.c.b16 %v1988, %v1980
    %v2909 = vpack.c.b16 %v1989, %v1981
    %v2910 = vpack.c.b16 %v1990, %v1982
    %v2911 = vpack.c.b16 %v1991, %v1983
    %v2912 = vpack.c.b16 %v1992, %v1984
    %v2913 = vpack.c.b16 %v1993, %v1985
    %v2914 = vpack.c.b16 %v1994, %v1986
    %v2915 = vpack.c.b16 %v2003, %v1995
    %v2916 = vpack.c.b16 %v2004, %v1996
    %v2917 = vpack.c.b16 %v2005, %v1997
    %v2918 = vpack.c.b16 %v2006, %v1998
    %v2919 = vpack.c.b16 %v2007, %v1999
    %v2920 = vpack.c.b16 %v2008, %v2000
    %v2921 = vpack.c.b16 %v2009, %v2001
    %v2922 = vpack.c.b16 %v2010, %v2002
    %v2923 = vpack.c.b16 %v2019, %v2011
    %v2924 = vpack.c.b16 %v2020, %v2012
    %v2925 = vpack.c.b16 %v2021, %v2013
    %v2926 = vpack.c.b16 %v2022, %v2014
    %v2927 = vpack.c.b16 %v2023, %v2015
    %v2928 = vpack.c.b16 %v2024, %v2016
    %v2929 = vpack.c.b16 %v2025, %v2017
    %v2930 = vpack.c.b16 %v2026, %v2018
    %v2931 = vpack.c.b16 %v2035, %v2027
    %v2932 = vpack.c.b16 %v2036, %v2028
    %v2933 = vpack.c.b16 %v2037, %v2029
    %v2934 = vpack.c.b16 %v2038, %v2030
    %v2935 = vpack.c.b16 %v2039, %v2031
    %v2936 = vpack.c.b16 %v2040, %v2032
    %v2937 = vpack.c.b16 %v2041, %v2033
    %v2938 = vpack.c.b16 %v2042, %v2034
    %v2939 = vpack.c.b16 %v2051, %v2043
    %v2940 = vpack.c.b16 %v2052, %v2044
    %v2941 = vpack.c.b16 %v2053, %v2045
    %v2942 = vpack.c.b16 %v2054, %v2046
    %v2943 = vpack.c.b16 %v2055, %v2047
    %v2944 = vpack.c.b16 %v2056, %v2048
    %v2945 = vpack.c.b16 %v2057, %v2049
    %v2946 = vpack.c.b16 %v2058, %v2050
    %v2947 = vpack.c.b16 %v2067, %v2059
    %v2948 = vpack.c.b16 %v2068, %v2060
    %v2949 = vpack.c.b16 %v2069, %v2061
    %v2950 = vpack.c.b16 %v2070, %v2062
    %v2951 = vpack.c.b16 %v2071, %v2063
    %v2952 = vpack.c.b16 %v2072, %v2064
    %v2953 = vpack.c.b16 %v2073, %v2065
    %v2954 = vpack.c.b16 %v2074, %v2066
    %v2955 = vpack.c.b16 %v2083, %v2075
    %v2956 = vpack.c.b16 %v2084, %v2076
    %v2957 = vpack.c.b16 %v2085, %v2077
    %v2958 = vpack.c.b16 %v2086, %v2078
    %v2959 = vpack.c.b16 %v2087, %v2079
    %v2960 = vpack.c.b16 %v2088, %v2080
    %v2961 = vpack.c.b16 %v2089, %v2081
    %v2962 = vpack.c.b16 %v2090, %v2082
    %v2963 = vpack.c.b16 %v2099, %v2091
    %v2964 = vpack.c.b16 %v2100, %v2092
    %v2965 = vpack.c.b16 %v2101, %v2093
    %v2966 = vpack.c.b16 %v2102, %v2094
    %v2967 = vpack.c.b16 %v2103, %v2095
    %v2968 = vpack.c.b16 %v2104, %v2096
    %v2969 = vpack.c.b16 %v2105, %v2097
    %v2970 = vpack.c.b16 %v2106, %v2098
    %v2971 = vpack.c.b16 %v2115, %v2107
    %v2972 = vpack.c.b16 %v2116, %v2108
    %v2973 = vpack.c.b16 %v2117, %v2109
    %v2974 = vpack.c.b16 %v2118, %v2110
    %v2975 = vpack.c.b16 %v2119, %v2111
    %v2976 = vpack.c.b16 %v2120, %v2112
    %v2977 = vpack.c.b16 %v2121, %v2113
    %v2978 = vpack.c.b16 %v2122, %v2114
    %v2979 = vpack.c.b16 %v2131, %v2123
    %v2980 = vpack.c.b16 %v2132, %v2124
    %v2981 = vpack.c.b16 %v2133, %v2125
    %v2982 = vpack.c.b16 %v2134, %v2126
    %v2983 = vpack.c.b16 %v2135, %v2127
    %v2984 = vpack.c.b16 %v2136, %v2128
    %v2985 = vpack.c.b16 %v2137, %v2129
    %v2986 = vpack.c.b16 %v2138, %v2130
    %v2987 = vpack.c.b16 %v2147, %v2139
    %v2988 = vpack.c.b16 %v2148, %v2140
    %v2989 = vpack.c.b16 %v2149, %v2141
    %v2990 = vpack.c.b16 %v2150, %v2142
    %v2991 = vpack.c.b16 %v2151, %v2143
    %v2992 = vpack.c.b16 %v2152, %v2144
    %v2993 = vpack.c.b16 %v2153, %v2145
    %v2994 = vpack.c.b16 %v2154, %v2146
    %v2995 = vpack.c.b16 %v2163, %v2155
    %v2996 = vpack.c.b16 %v2164, %v2156
    %v2997 = vpack.c.b16 %v2165, %v2157
    %v2998 = vpack.c.b16 %v2166, %v2158
    %v2999 = vpack.c.b16 %v2167, %v2159
    %v3000 = vpack.c.b16 %v2168, %v2160
    %v3001 = vpack.c.b16 %v2169, %v2161
    %v3002 = vpack.c.b16 %v2170, %v2162
    %v3003 = vpack.c.b16 %v2179, %v2171
    %v3004 = vpack.c.b16 %v2180, %v2172
    %v3005 = vpack.c.b16 %v2181, %v2173
    %v3006 = vpack.c.b16 %v2182, %v2174
    %v3007 = vpack.c.b16 %v2183, %v2175
    %v3008 = vpack.c.b16 %v2184, %v2176
    %v3009 = vpack.c.b16 %v2185, %v2177
    %v3010 = vpack.c.b16 %v2186, %v2178
    %v3011 = vpack.c.b16 %v2195, %v2187
    %v3012 = vpack.c.b16 %v2196, %v2188
    %v3013 = vpack.c.b16 %v2197, %v2189
    %v3014 = vpack.c.b16 %v2198, %v2190
    %v3015 = vpack.c.b16 %v2199, %v2191
    %v3016 = vpack.c.b16 %v2200, %v2192
    %v3017 = vpack.c.b16 %v2201, %v2193
    %v3018 = vpack.c.b16 %v2202, %v2194
    %v3019 = vpack.c.b16 %v2211, %v2203
    %v3020 = vpack.c.b16 %v2212, %v2204
    %v3021 = vpack.c.b16 %v2213, %v2205
    %v3022 = vpack.c.b16 %v2214, %v2206
    %v3023 = vpack.c.b16 %v2215, %v2207
    %v3024 = vpack.c.b16 %v2216, %v2208
    %v3025 = vpack.c.b16 %v2217, %v2209
    %v3026 = vpack.c.b16 %v2218, %v2210
    %v3027 = vpack.c.b16 %v2227, %v2219
    %v3028 = vpack.c.b16 %v2228, %v2220
    %v3029 = vpack.c.b16 %v2229, %v2221
    %v3030 = vpack.c.b16 %v2230, %v2222
    %v3031 = vpack.c.b16 %v2231, %v2223
    %v3032 = vpack.c.b16 %v2232, %v2224
    %v3033 = vpack.c.b16 %v2233, %v2225
    %v3034 = vpack.c.b16 %v2234, %v2226
    %v3035 = vpack.c.b16 %v2243, %v2235
    %v3036 = vpack.c.b16 %v2244, %v2236
    %v3037 = vpack.c.b16 %v2245, %v2237
    %v3038 = vpack.c.b16 %v2246, %v2238
    %v3039 = vpack.c.b16 %v2247, %v2239
    %v3040 = vpack.c.b16 %v2248, %v2240
    %v3041 = vpack.c.b16 %v2249, %v2241
    %v3042 = vpack.c.b16 %v2250, %v2242
    %v3043 = vpack.c.b16 %v2259, %v2251
    %v3044 = vpack.c.b16 %v2260, %v2252
    %v3045 = vpack.c.b16 %v2261, %v2253
    %v3046 = vpack.c.b16 %v2262, %v2254
    %v3047 = vpack.c.b16 %v2263, %v2255
    %v3048 = vpack.c.b16 %v2264, %v2256
    %v3049 = vpack.c.b16 %v2265, %v2257
    %v3050 = vpack.c.b16 %v2266, %v2258
    %v3051 = vpack.c.b16 %v2275, %v2267
    %v3052 = vpack.c.b16 %v2276, %v2268
    %v3053 = vpack.c.b16 %v2277, %v2269
    %v3054 = vpack.c.b16 %v2278, %v2270
    %v3055 = vpack.c.b16 %v2279, %v2271
    %v3056 = vpack.c.b16 %v2280, %v2272
    %v3057 = vpack.c.b16 %v2281, %v2273
    %v3058 = vpack.c.b16 %v2282, %v2274
    %v3059 = vpack.c.b16 %v2291, %v2283
    %v3060 = vpack.c.b16 %v2292, %v2284
    %v3061 = vpack.c.b16 %v2293, %v2285
    %v3062 = vpack.c.b16 %v2294, %v2286
    %v3063 = vpack.c.b16 %v2295, %v2287
    %v3064 = vpack.c.b16 %v2296, %v2288
    %v3065 = vpack.c.b16 %v2297, %v2289
    %v3066 = vpack.c.b16 %v2298, %v2290
    %v3067 = vpack.c.b16 %v2307, %v2299
    %v3068 = vpack.c.b16 %v2308, %v2300
    %v3069 = vpack.c.b16 %v2309, %v2301
    %v3070 = vpack.c.b16 %v2310, %v2302
    %v3071 = vpack.c.b16 %v2311, %v2303
    %v3072 = vpack.c.b16 %v2312, %v2304
    %v3073 = vpack.c.b16 %v2313, %v2305
    %v3074 = vpack.c.b16 %v2314, %v2306
    %v3075 = vpack.c.b16 %v2323, %v2315
    %v3076 = vpack.c.b16 %v2324, %v2316
    %v3077 = vpack.c.b16 %v2325, %v2317
    %v3078 = vpack.c.b16 %v2326, %v2318
    %v3079 = vpack.c.b16 %v2327, %v2319
    %v3080 = vpack.c.b16 %v2328, %v2320
    %v3081 = vpack.c.b16 %v2329, %v2321
    %v3082 = vpack.c.b16 %v2330, %v2322
    %v3083 = vpack.c.b16 %v2339, %v2331
    %v3084 = vpack.c.b16 %v2340, %v2332
    %v3085 = vpack.c.b16 %v2341, %v2333
    %v3086 = vpack.c.b16 %v2342, %v2334
    %v3087 = vpack.c.b16 %v2343, %v2335
    %v3088 = vpack.c.b16 %v2344, %v2336
    %v3089 = vpack.c.b16 %v2345, %v2337
    %v3090 = vpack.c.b16 %v2346, %v2338
    %v3091 = vpack.c.b16 %v2355, %v2347
    %v3092 = vpack.c.b16 %v2356, %v2348
    %v3093 = vpack.c.b16 %v2357, %v2349
    %v3094 = vpack.c.b16 %v2358, %v2350
    %v3095 = vpack.c.b16 %v2359, %v2351
    %v3096 = vpack.c.b16 %v2360, %v2352
    %v3097 = vpack.c.b16 %v2361, %v2353
    %v3098 = vpack.c.b16 %v2362, %v2354
    %v3099 = vpack.c.b16 %v2371, %v2363
    %v3100 = vpack.c.b16 %v2372, %v2364
    %v3101 = vpack.c.b16 %v2373, %v2365
    %v3102 = vpack.c.b16 %v2374, %v2366
    %v3103 = vpack.c.b16 %v2375, %v2367
    %v3104 = vpack.c.b16 %v2376, %v2368
    %v3105 = vpack.c.b16 %v2377, %v2369
    %v3106 = vpack.c.b16 %v2378, %v2370
    %v3107 = vpack.c.b16 %v2387, %v2379
    %v3108 = vpack.c.b16 %v2388, %v2380
    %v3109 = vpack.c.b16 %v2389, %v2381
    %v3110 = vpack.c.b16 %v2390, %v2382
    %v3111 = vpack.c.b16 %v2391, %v2383
    %v3112 = vpack.c.b16 %v2392, %v2384
    %v3113 = vpack.c.b16 %v2393, %v2385
    %v3114 = vpack.c.b16 %v2394, %v2386
    %v3115 = vpack.c.b16 %v2403, %v2395
    %v3116 = vpack.c.b16 %v2404, %v2396
    %v3117 = vpack.c.b16 %v2405, %v2397
    %v3118 = vpack.c.b16 %v2406, %v2398
    %v3119 = vpack.c.b16 %v2407, %v2399
    %v3120 = vpack.c.b16 %v2408, %v2400
    %v3121 = vpack.c.b16 %v2409, %v2401
    %v3122 = vpack.c.b16 %v2410, %v2402
    %v3123 = vpack.c.b16 %v2419, %v2411
    %v3124 = vpack.c.b16 %v2420, %v2412
    %v3125 = vpack.c.b16 %v2421, %v2413
    %v3126 = vpack.c.b16 %v2422, %v2414
    %v3127 = vpack.c.b16 %v2423, %v2415
    %v3128 = vpack.c.b16 %v2424, %v2416
    %v3129 = vpack.c.b16 %v2425, %v2417
    %v3130 = vpack.c.b16 %v2426, %v2418
    %v3131 = vpack.c.b16 %v2435, %v2427
    %v3132 = vpack.c.b16 %v2436, %v2428
    %v3133 = vpack.c.b16 %v2437, %v2429
    %v3134 = vpack.c.b16 %v2438, %v2430
    %v3135 = vpack.c.b16 %v2439, %v2431
    %v3136 = vpack.c.b16 %v2440, %v2432
    %v3137 = vpack.c.b16 %v2441, %v2433
    %v3138 = vpack.c.b16 %v2442, %v2434
    %v3139 = vpack.c.b16 %v2451, %v2443
    %v3140 = vpack.c.b16 %v2452, %v2444
    %v3141 = vpack.c.b16 %v2453, %v2445
    %v3142 = vpack.c.b16 %v2454, %v2446
    %v3143 = vpack.c.b16 %v2455, %v2447
    %v3144 = vpack.c.b16 %v2456, %v2448
    %v3145 = vpack.c.b16 %v2457, %v2449
    %v3146 = vpack.c.b16 %v2458, %v2450
    %v3147 = vpack.c.b16 %v2467, %v2459
    %v3148 = vpack.c.b16 %v2468, %v2460
    %v3149 = vpack.c.b16 %v2469, %v2461
    %v3150 = vpack.c.b16 %v2470, %v2462
    %v3151 = vpack.c.b16 %v2471, %v2463
    %v3152 = vpack.c.b16 %v2472, %v2464
    %v3153 = vpack.c.b16 %v2473, %v2465
    %v3154 = vpack.c.b16 %v2474, %v2466
    %v3155 = vpack.c.b16 %v2483, %v2475
    %v3156 = vpack.c.b16 %v2484, %v2476
    %v3157 = vpack.c.b16 %v2485, %v2477
    %v3158 = vpack.c.b16 %v2486, %v2478
    %v3159 = vpack.c.b16 %v2487, %v2479
    %v3160 = vpack.c.b16 %v2488, %v2480
    %v3161 = vpack.c.b16 %v2489, %v2481
    %v3162 = vpack.c.b16 %v2490, %v2482
    %v3163 = vpack.c.b16 %v2499, %v2491
    %v3164 = vpack.c.b16 %v2500, %v2492
    %v3165 = vpack.c.b16 %v2501, %v2493
    %v3166 = vpack.c.b16 %v2502, %v2494
    %v3167 = vpack.c.b16 %v2503, %v2495
    %v3168 = vpack.c.b16 %v2504, %v2496
    %v3169 = vpack.c.b16 %v2505, %v2497
    %v3170 = vpack.c.b16 %v2506, %v2498
    %v3171 = vpack.c.b16 %v2515, %v2507
    %v3172 = vpack.c.b16 %v2516, %v2508
    %v3173 = vpack.c.b16 %v2517, %v2509
    %v3174 = vpack.c.b16 %v2518, %v2510
    %v3175 = vpack.c.b16 %v2519, %v2511
    %v3176 = vpack.c.b16 %v2520, %v2512
    %v3177 = vpack.c.b16 %v2521, %v2513
    %v3178 = vpack.c.b16 %v2522, %v2514
    %v3179 = vpack.c.b16 %v2531, %v2523
    %v3180 = vpack.c.b16 %v2532, %v2524
    %v3181 = vpack.c.b16 %v2533, %v2525
    %v3182 = vpack.c.b16 %v2534, %v2526
    %v3183 = vpack.c.b16 %v2535, %v2527
    %v3184 = vpack.c.b16 %v2536, %v2528
    %v3185 = vpack.c.b16 %v2537, %v2529
    %v3186 = vpack.c.b16 %v2538, %v2530
    %v3187 = vpack.c.b16 %v2547, %v2539
    %v3188 = vpack.c.b16 %v2548, %v2540
    %v3189 = vpack.c.b16 %v2549, %v2541
    %v3190 = vpack.c.b16 %v2550, %v2542
    %v3191 = vpack.c.b16 %v2551, %v2543
    %v3192 = vpack.c.b16 %v2552, %v2544
    %v3193 = vpack.c.b16 %v2553, %v2545
    %v3194 = vpack.c.b16 %v2554, %v2546
    %v3195 = vpack.c.b16 %v2563, %v2555
    %v3196 = vpack.c.b16 %v2564, %v2556
    %v3197 = vpack.c.b16 %v2565, %v2557
    %v3198 = vpack.c.b16 %v2566, %v2558
    %v3199 = vpack.c.b16 %v2567, %v2559
    %v3200 = vpack.c.b16 %v2568, %v2560
    %v3201 = vpack.c.b16 %v2569, %v2561
    %v3202 = vpack.c.b16 %v2570, %v2562
    %v3203 = vpack.c.b16 %v2579, %v2571
    %v3204 = vpack.c.b16 %v2580, %v2572
    %v3205 = vpack.c.b16 %v2581, %v2573
    %v3206 = vpack.c.b16 %v2582, %v2574
    %v3207 = vpack.c.b16 %v2583, %v2575
    %v3208 = vpack.c.b16 %v2584, %v2576
    %v3209 = vpack.c.b16 %v2585, %v2577
    %v3210 = vpack.c.b16 %v2586, %v2578
    %v3211 = vpack.c.b16 %v2595, %v2587
    %v3212 = vpack.c.b16 %v2596, %v2588
    %v3213 = vpack.c.b16 %v2597, %v2589
    %v3214 = vpack.c.b16 %v2598, %v2590
    %v3215 = vpack.c.b16 %v2599, %v2591
    %v3216 = vpack.c.b16 %v2600, %v2592
    %v3217 = vpack.c.b16 %v2601, %v2593
    %v3218 = vpack.c.b16 %v2602, %v2594
    %v3219 = vpack.c.b16 %v2611, %v2603
    %v3220 = vpack.c.b16 %v2612, %v2604
    %v3221 = vpack.c.b16 %v2613, %v2605
    %v3222 = vpack.c.b16 %v2614, %v2606
    %v3223 = vpack.c.b16 %v2615, %v2607
    %v3224 = vpack.c.b16 %v2616, %v2608
    %v3225 = vpack.c.b16 %v2617, %v2609
    %v3226 = vpack.c.b16 %v2618, %v2610
    %v3227 = vpack.c.b16 %v2627, %v2619
    %v3228 = vpack.c.b16 %v2628, %v2620
    %v3229 = vpack.c.b16 %v2629, %v2621
    %v3230 = vpack.c.b16 %v2630, %v2622
    %v3231 = vpack.c.b16 %v2631, %v2623
    %v3232 = vpack.c.b16 %v2632, %v2624
    %v3233 = vpack.c.b16 %v2633, %v2625
    %v3234 = vpack.c.b16 %v2634, %v2626
    %v3235 = vpack.c.b16 %v2643, %v2635
    %v3236 = vpack.c.b16 %v2644, %v2636
    %v3237 = vpack.c.b16 %v2645, %v2637
    %v3238 = vpack.c.b16 %v2646, %v2638
    %v3239 = vpack.c.b16 %v2647, %v2639
    %v3240 = vpack.c.b16 %v2648, %v2640
    %v3241 = vpack.c.b16 %v2649, %v2641
    %v3242 = vpack.c.b16 %v2650, %v2642
    %v3243 = vpack.c.b16 %v2659, %v2651
    %v3244 = vpack.c.b16 %v2660, %v2652
    %v3245 = vpack.c.b16 %v2661, %v2653
    %v3246 = vpack.c.b16 %v2662, %v2654
    %v3247 = vpack.c.b16 %v2663, %v2655
    %v3248 = vpack.c.b16 %v2664, %v2656
    %v3249 = vpack.c.b16 %v2665, %v2657
    %v3250 = vpack.c.b16 %v2666, %v2658
    %v3251 = vpack.c.b16 %v2675, %v2667
    %v3252 = vpack.c.b16 %v2676, %v2668
    %v3253 = vpack.c.b16 %v2677, %v2669
    %v3254 = vpack.c.b16 %v2678, %v2670
    %v3255 = vpack.c.b16 %v2679, %v2671
    %v3256 = vpack.c.b16 %v2680, %v2672
    %v3257 = vpack.c.b16 %v2681, %v2673
    %v3258 = vpack.c.b16 %v2682, %v2674
    %v3259 = vpack.c.b16 %v2691, %v2683
    %v3260 = vpack.c.b16 %v2692, %v2684
    %v3261 = vpack.c.b16 %v2693, %v2685
    %v3262 = vpack.c.b16 %v2694, %v2686
    %v3263 = vpack.c.b16 %v2695, %v2687
    %v3264 = vpack.c.b16 %v2696, %v2688
    %v3265 = vpack.c.b16 %v2697, %v2689
    %v3266 = vpack.c.b16 %v2698, %v2690
    %v3267 = vpack.c.b16 %v2707, %v2699
    %v3268 = vpack.c.b16 %v2708, %v2700
    %v3269 = vpack.c.b16 %v2709, %v2701
    %v3270 = vpack.c.b16 %v2710, %v2702
    %v3271 = vpack.c.b16 %v2711, %v2703
    %v3272 = vpack.c.b16 %v2712, %v2704
    %v3273 = vpack.c.b16 %v2713, %v2705
    %v3274 = vpack.c.b16 %v2714, %v2706
    %v3275 = vpack.c.b16 %v2723, %v2715
    %v3276 = vpack.c.b16 %v2724, %v2716
    %v3277 = vpack.c.b16 %v2725, %v2717
    %v3278 = vpack.c.b16 %v2726, %v2718
    %v3279 = vpack.c.b16 %v2727, %v2719
    %v3280 = vpack.c.b16 %v2728, %v2720
    %v3281 = vpack.c.b16 %v2729, %v2721
    %v3282 = vpack.c.b16 %v2730, %v2722
    %v3283 = vpack.c.b16 %v2739, %v2731
    %v3284 = vpack.c.b16 %v2740, %v2732
    %v3285 = vpack.c.b16 %v2741, %v2733
    %v3286 = vpack.c.b16 %v2742, %v2734
    %v3287 = vpack.c.b16 %v2743, %v2735
    %v3288 = vpack.c.b16 %v2744, %v2736
    %v3289 = vpack.c.b16 %v2745, %v2737
    %v3290 = vpack.c.b16 %v2746, %v2738
    %v3291 = vpack.c.b16 %v2755, %v2747
    %v3292 = vpack.c.b16 %v2756, %v2748
    %v3293 = vpack.c.b16 %v2757, %v2749
    %v3294 = vpack.c.b16 %v2758, %v2750
    %v3295 = vpack.c.b16 %v2759, %v2751
    %v3296 = vpack.c.b16 %v2760, %v2752
    %v3297 = vpack.c.b16 %v2761, %v2753
    %v3298 = vpack.c.b16 %v2762, %v2754
    %v3299 = vpack.c.b16 %v2771, %v2763
    %v3300 = vpack.c.b16 %v2772, %v2764
    %v3301 = vpack.c.b16 %v2773, %v2765
    %v3302 = vpack.c.b16 %v2774, %v2766
    %v3303 = vpack.c.b16 %v2775, %v2767
    %v3304 = vpack.c.b16 %v2776, %v2768
    %v3305 = vpack.c.b16 %v2777, %v2769
    %v3306 = vpack.c.b16 %v2778, %v2770
    %v3307 = vpack.c.b16 %v2787, %v2779
    %v3308 = vpack.c.b16 %v2788, %v2780
    %v3309 = vpack.c.b16 %v2789, %v2781
    %v3310 = vpack.c.b16 %v2790, %v2782
    %v3311 = vpack.c.b16 %v2791, %v2783
    %v3312 = vpack.c.b16 %v2792, %v2784
    %v3313 = vpack.c.b16 %v2793, %v2785
    %v3314 = vpack.c.b16 %v2794, %v2786
    %v3315 = vpack.c.b16 %v2803, %v2795
    %v3316 = vpack.c.b16 %v2804, %v2796
    %v3317 = vpack.c.b16 %v2805, %v2797
    %v3318 = vpack.c.b16 %v2806, %v2798
    %v3319 = vpack.c.b16 %v2807, %v2799
    %v3320 = vpack.c.b16 %v2808, %v2800
    %v3321 = vpack.c.b16 %v2809, %v2801
    %v3322 = vpack.c.b16 %v2810, %v2802
    %3835 = vmatprep.subr.bf16.mxu0 %v2812
    %3836 = vmatpush1.bf16.msra.mxu0 %v2811
    %3837 = vmatprep.subr.bf16.mxu0 %v2820
    %3838 = vmatpush1.bf16.msra.mxu0 %v2819
    %3839 = vmatprep.subr.bf16.mxu0 %v2828
    %3840 = vmatpush1.bf16.msra.mxu0 %v2827
    %3841 = vmatprep.subr.bf16.mxu0 %v2836
    %3842 = vmatpush1.bf16.msra.mxu0 %v2835
    %3843 = vmatprep.subr.bf16.mxu0 %v2844
    %3844 = vmatpush1.bf16.msra.mxu0 %v2843
    %3845 = vmatprep.subr.bf16.mxu0 %v2852
    %3846 = vmatpush1.bf16.msra.mxu0 %v2851
    %3847 = vmatprep.subr.bf16.mxu0 %v2860
    %3848 = vmatpush1.bf16.msra.mxu0 %v2859
    %3849 = vmatprep.subr.bf16.mxu0 %v2868
    %3850 = vmatpush1.bf16.msra.mxu0 %v2867
    %3851 = vmatprep.subr.bf16.mxu0 %v2876
    %3852 = vmatpush1.bf16.msra.mxu0 %v2875
    %3853 = vmatprep.subr.bf16.mxu0 %v2884
    %3854 = vmatpush1.bf16.msra.mxu0 %v2883
    %3855 = vmatprep.subr.bf16.mxu0 %v2892
    %3856 = vmatpush1.bf16.msra.mxu0 %v2891
    %3857 = vmatprep.subr.bf16.mxu0 %v2900
    %3858 = vmatpush1.bf16.msra.mxu0 %v2899
    %3859 = vmatprep.subr.bf16.mxu0 %v2908
    %3860 = vmatpush1.bf16.msra.mxu0 %v2907
    %3861 = vmatprep.subr.bf16.mxu0 %v2916
    %3862 = vmatpush1.bf16.msra.mxu0 %v2915
    %3863 = vmatprep.subr.bf16.mxu0 %v2924
    %3864 = vmatpush1.bf16.msra.mxu0 %v2923
    %3865 = vmatprep.subr.bf16.mxu0 %v2932
    %3866 = vmatpush1.bf16.msra.mxu0 %v2931
    %3867 = vmatprep.mubr.bf16.mxu0 %v724
    %3868 = vmatmul.mubr.bf16.gmra.mrb[0].mxu0 %v723
    %v3869 = vpop.f32.mrb[0].mxu0
    %v3870 = vadd.f32 %v1246, %v3869
    %v3871 = vpop.f32.mrb[0].mxu0
    %v3872 = vadd.f32 %v1250, %v3871
    %v3873 = vpop.f32.mrb[0].mxu0
    %v3874 = vpop.f32.mrb[0].mxu0
    %3875 = vdwg.mxu0
    %3876 = vmatprep.subr.bf16.mxu0 %v2940
    %3877 = vmatpush1.bf16.msra.mxu0 %v2939
    %3878 = vmatprep.subr.bf16.mxu0 %v2948
    %3879 = vmatpush1.bf16.msra.mxu0 %v2947
    %3880 = vmatprep.subr.bf16.mxu0 %v2956
    %3881 = vmatpush1.bf16.msra.mxu0 %v2955
    %3882 = vmatprep.subr.bf16.mxu0 %v2964
    %3883 = vmatpush1.bf16.msra.mxu0 %v2963
    %3884 = vmatprep.subr.bf16.mxu0 %v2972
    %3885 = vmatpush1.bf16.msra.mxu0 %v2971
    %3886 = vmatprep.subr.bf16.mxu0 %v2980
    %3887 = vmatpush1.bf16.msra.mxu0 %v2979
    %3888 = vmatprep.subr.bf16.mxu0 %v2988
    %3889 = vmatpush1.bf16.msra.mxu0 %v2987
    %3890 = vmatprep.subr.bf16.mxu0 %v2996
    %3891 = vmatpush1.bf16.msra.mxu0 %v2995
    %3892 = vmatprep.subr.bf16.mxu0 %v3004
    %3893 = vmatpush1.bf16.msra.mxu0 %v3003
    %3894 = vmatprep.subr.bf16.mxu0 %v3012
    %3895 = vmatpush1.bf16.msra.mxu0 %v3011
    %3896 = vmatprep.subr.bf16.mxu0 %v3020
    %3897 = vmatpush1.bf16.msra.mxu0 %v3019
    %3898 = vmatprep.subr.bf16.mxu0 %v3028
    %3899 = vmatpush1.bf16.msra.mxu0 %v3027
    %3900 = vmatprep.subr.bf16.mxu0 %v3036
    %3901 = vmatpush1.bf16.msra.mxu0 %v3035
    %3902 = vmatprep.subr.bf16.mxu0 %v3044
    %3903 = vmatpush1.bf16.msra.mxu0 %v3043
    %3904 = vmatprep.subr.bf16.mxu0 %v3052
    %3905 = vmatpush1.bf16.msra.mxu0 %v3051
    %3906 = vmatprep.subr.bf16.mxu0 %v3060
    %3907 = vmatpush1.bf16.msra.mxu0 %v3059
    %3908 = vmatprep.mubr.bf16.mxu0 %v726
    %3909 = vmatmul.mubr.bf16.gmra.mrb[0].mxu0 %v725
    %v3910 = vpop.f32.mrb[0].mxu0
    %v3911 = vadd.f32 %v3870, %v3910
    %v3912 = vpop.f32.mrb[0].mxu0
    %v3913 = vadd.f32 %v3872, %v3912
    %v3914 = vpop.f32.mrb[0].mxu0
    %v3915 = vpop.f32.mrb[0].mxu0
    %3916 = vdwg.mxu0
    %3917 = vmatprep.subr.bf16.mxu0 %v3068
    %3918 = vmatpush1.bf16.msra.mxu0 %v3067
    %3919 = vmatprep.subr.bf16.mxu0 %v3076
    %3920 = vmatpush1.bf16.msra.mxu0 %v3075
    %3921 = vmatprep.subr.bf16.mxu0 %v3084
    %3922 = vmatpush1.bf16.msra.mxu0 %v3083
    %3923 = vmatprep.subr.bf16.mxu0 %v3092
    %3924 = vmatpush1.bf16.msra.mxu0 %v3091
    %3925 = vmatprep.subr.bf16.mxu0 %v3100
    %3926 = vmatpush1.bf16.msra.mxu0 %v3099
    %3927 = vmatprep.subr.bf16.mxu0 %v3108
    %3928 = vmatpush1.bf16.msra.mxu0 %v3107
    %3929 = vmatprep.subr.bf16.mxu0 %v3116
    %3930 = vmatpush1.bf16.msra.mxu0 %v3115
    %3931 = vmatprep.subr.bf16.mxu0 %v3124
    %3932 = vmatpush1.bf16.msra.mxu0 %v3123
    %3933 = vmatprep.subr.bf16.mxu0 %v3132
    %3934 = vmatpush1.bf16.msra.mxu0 %v3131
    %3935 = vmatprep.subr.bf16.mxu0 %v3140
    %3936 = vmatpush1.bf16.msra.mxu0 %v3139
    %3937 = vmatprep.subr.bf16.mxu0 %v3148
    %3938 = vmatpush1.bf16.msra.mxu0 %v3147
    %3939 = vmatprep.subr.bf16.mxu0 %v3156
    %3940 = vmatpush1.bf16.msra.mxu0 %v3155
    %3941 = vmatprep.subr.bf16.mxu0 %v3164
    %3942 = vmatpush1.bf16.msra.mxu0 %v3163
    %3943 = vmatprep.subr.bf16.mxu0 %v3172
    %3944 = vmatpush1.bf16.msra.mxu0 %v3171
    %3945 = vmatprep.subr.bf16.mxu0 %v3180
    %3946 = vmatpush1.bf16.msra.mxu0 %v3179
    %3947 = vmatprep.subr.bf16.mxu0 %v3188
    %3948 = vmatpush1.bf16.msra.mxu0 %v3187
    %3949 = vmatprep.mubr.bf16.mxu0 %v728
    %3950 = vmatmul.mubr.bf16.gmra.mrb[0].mxu0 %v727
    %v3951 = vpop.f32.mrb[0].mxu0
    %v3952 = vadd.f32 %v3911, %v3951
    %v3953 = vpop.f32.mrb[0].mxu0
    %v3954 = vadd.f32 %v3913, %v3953
    %v3955 = vpop.f32.mrb[0].mxu0
    %v3956 = vpop.f32.mrb[0].mxu0
    %3957 = vdwg.mxu0
    %3958 = vmatprep.subr.bf16.mxu0 %v3196
    %3959 = vmatpush1.bf16.msra.mxu0 %v3195
    %3960 = vmatprep.subr.bf16.mxu0 %v3204
    %3961 = vmatpush1.bf16.msra.mxu0 %v3203
    %3962 = vmatprep.subr.bf16.mxu0 %v3212
    %3963 = vmatpush1.bf16.msra.mxu0 %v3211
    %3964 = vmatprep.subr.bf16.mxu0 %v3220
    %3965 = vmatpush1.bf16.msra.mxu0 %v3219
    %3966 = vmatprep.subr.bf16.mxu0 %v3228
    %3967 = vmatpush1.bf16.msra.mxu0 %v3227
    %3968 = vmatprep.subr.bf16.mxu0 %v3236
    %3969 = vmatpush1.bf16.msra.mxu0 %v3235
    %3970 = vmatprep.subr.bf16.mxu0 %v3244
    %3971 = vmatpush1.bf16.msra.mxu0 %v3243
    %3972 = vmatprep.subr.bf16.mxu0 %v3252
    %3973 = vmatpush1.bf16.msra.mxu0 %v3251
    %3974 = vmatprep.subr.bf16.mxu0 %v3260
    %3975 = vmatpush1.bf16.msra.mxu0 %v3259
    %3976 = vmatprep.subr.bf16.mxu0 %v3268
    %3977 = vmatpush1.bf16.msra.mxu0 %v3267
    %3978 = vmatprep.subr.bf16.mxu0 %v3276
    %3979 = vmatpush1.bf16.msra.mxu0 %v3275
    %3980 = vmatprep.subr.bf16.mxu0 %v3284
    %3981 = vmatpush1.bf16.msra.mxu0 %v3283
    %3982 = vmatprep.subr.bf16.mxu0 %v3292
    %3983 = vmatpush1.bf16.msra.mxu0 %v3291
    %3984 = vmatprep.subr.bf16.mxu0 %v3300
    %3985 = vmatpush1.bf16.msra.mxu0 %v3299
    %3986 = vmatprep.subr.bf16.mxu0 %v3308
    %3987 = vmatpush1.bf16.msra.mxu0 %v3307
    %3988 = vmatprep.subr.bf16.mxu0 %v3316
    %3989 = vmatpush1.bf16.msra.mxu0 %v3315
    %3990 = vmatprep.mubr.bf16.mxu0 %v730
    %3991 = vmatmul.mubr.bf16.gmra.mrb[0].mxu0 %v729
    %v3992 = vpop.f32.mrb[0].mxu0
    %v3993 = vadd.f32 %v3952, %v3992
    %v3994 = vpop.f32.mrb[0].mxu0
    %v3995 = vadd.f32 %v3954, %v3994
    %v3996 = vpop.f32.mrb[0].mxu0
    %v3997 = vpop.f32.mrb[0].mxu0
    %3998 = vdwg.mxu0
    %3999 = vmatprep.subr.bf16.mxu0 %v2814
    %4000 = vmatpush1.bf16.msra.mxu0 %v2813
    %4001 = vmatprep.subr.bf16.mxu0 %v2822
    %4002 = vmatpush1.bf16.msra.mxu0 %v2821
    %4003 = vmatprep.subr.bf16.mxu0 %v2830
    %4004 = vmatpush1.bf16.msra.mxu0 %v2829
    %4005 = vmatprep.subr.bf16.mxu0 %v2838
    %4006 = vmatpush1.bf16.msra.mxu0 %v2837
    %4007 = vmatprep.subr.bf16.mxu0 %v2846
    %4008 = vmatpush1.bf16.msra.mxu0 %v2845
    %4009 = vmatprep.subr.bf16.mxu0 %v2854
    %4010 = vmatpush1.bf16.msra.mxu0 %v2853
    %4011 = vmatprep.subr.bf16.mxu0 %v2862
    %4012 = vmatpush1.bf16.msra.mxu0 %v2861
    %4013 = vmatprep.subr.bf16.mxu0 %v2870
    %4014 = vmatpush1.bf16.msra.mxu0 %v2869
    %4015 = vmatprep.subr.bf16.mxu0 %v2878
    %4016 = vmatpush1.bf16.msra.mxu0 %v2877
    %4017 = vmatprep.subr.bf16.mxu0 %v2886
    %4018 = vmatpush1.bf16.msra.mxu0 %v2885
    %4019 = vmatprep.subr.bf16.mxu0 %v2894
    %4020 = vmatpush1.bf16.msra.mxu0 %v2893
    %4021 = vmatprep.subr.bf16.mxu0 %v2902
    %4022 = vmatpush1.bf16.msra.mxu0 %v2901
    %4023 = vmatprep.subr.bf16.mxu0 %v2910
    %4024 = vmatpush1.bf16.msra.mxu0 %v2909
    %4025 = vmatprep.subr.bf16.mxu0 %v2918
    %4026 = vmatpush1.bf16.msra.mxu0 %v2917
    %4027 = vmatprep.subr.bf16.mxu0 %v2926
    %4028 = vmatpush1.bf16.msra.mxu0 %v2925
    %4029 = vmatprep.subr.bf16.mxu0 %v2934
    %4030 = vmatpush1.bf16.msra.mxu0 %v2933
    %4031 = vmatprep.mubr.bf16.mxu0 %v724
    %4032 = vmatmul.mubr.bf16.gmra.mrb[0].mxu0 %v723
    %v4033 = vpop.f32.mrb[0].mxu0
    %v4034 = vadd.f32 %v1254, %v4033
    %v4035 = vpop.f32.mrb[0].mxu0
    %v4036 = vadd.f32 %v1258, %v4035
    %v4037 = vpop.f32.mrb[0].mxu0
    %v4038 = vpop.f32.mrb[0].mxu0
    %4039 = vdwg.mxu0
    %4040 = vmatprep.subr.bf16.mxu0 %v2942
    %4041 = vmatpush1.bf16.msra.mxu0 %v2941
    %4042 = vmatprep.subr.bf16.mxu0 %v2950
    %4043 = vmatpush1.bf16.msra.mxu0 %v2949
    %4044 = vmatprep.subr.bf16.mxu0 %v2958
    %4045 = vmatpush1.bf16.msra.mxu0 %v2957
    %4046 = vmatprep.subr.bf16.mxu0 %v2966
    %4047 = vmatpush1.bf16.msra.mxu0 %v2965
    %4048 = vmatprep.subr.bf16.mxu0 %v2974
    %4049 = vmatpush1.bf16.msra.mxu0 %v2973
    %4050 = vmatprep.subr.bf16.mxu0 %v2982
    %4051 = vmatpush1.bf16.msra.mxu0 %v2981
    %4052 = vmatprep.subr.bf16.mxu0 %v2990
    %4053 = vmatpush1.bf16.msra.mxu0 %v2989
    %4054 = vmatprep.subr.bf16.mxu0 %v2998
    %4055 = vmatpush1.bf16.msra.mxu0 %v2997
    %4056 = vmatprep.subr.bf16.mxu0 %v3006
    %4057 = vmatpush1.bf16.msra.mxu0 %v3005
    %4058 = vmatprep.subr.bf16.mxu0 %v3014
    %4059 = vmatpush1.bf16.msra.mxu0 %v3013
    %4060 = vmatprep.subr.bf16.mxu0 %v3022
    %4061 = vmatpush1.bf16.msra.mxu0 %v3021
    %4062 = vmatprep.subr.bf16.mxu0 %v3030
    %4063 = vmatpush1.bf16.msra.mxu0 %v3029
    %4064 = vmatprep.subr.bf16.mxu0 %v3038
    %4065 = vmatpush1.bf16.msra.mxu0 %v3037
    %4066 = vmatprep.subr.bf16.mxu0 %v3046
    %4067 = vmatpush1.bf16.msra.mxu0 %v3045
    %4068 = vmatprep.subr.bf16.mxu0 %v3054
    %4069 = vmatpush1.bf16.msra.mxu0 %v3053
    %4070 = vmatprep.subr.bf16.mxu0 %v3062
    %4071 = vmatpush1.bf16.msra.mxu0 %v3061
    %4072 = vmatprep.mubr.bf16.mxu0 %v726
    %4073 = vmatmul.mubr.bf16.gmra.mrb[0].mxu0 %v725
    %v4074 = vpop.f32.mrb[0].mxu0
    %v4075 = vadd.f32 %v4034, %v4074
    %v4076 = vpop.f32.mrb[0].mxu0
    %v4077 = vadd.f32 %v4036, %v4076
    %v4078 = vpop.f32.mrb[0].mxu0
    %v4079 = vpop.f32.mrb[0].mxu0
    %4080 = vdwg.mxu0
    %4081 = vmatprep.subr.bf16.mxu0 %v3070
    %4082 = vmatpush1.bf16.msra.mxu0 %v3069
    %4083 = vmatprep.subr.bf16.mxu0 %v3078
    %4084 = vmatpush1.bf16.msra.mxu0 %v3077
    %4085 = vmatprep.subr.bf16.mxu0 %v3086
    %4086 = vmatpush1.bf16.msra.mxu0 %v3085
    %4087 = vmatprep.subr.bf16.mxu0 %v3094
    %4088 = vmatpush1.bf16.msra.mxu0 %v3093
    %4089 = vmatprep.subr.bf16.mxu0 %v3102
    %4090 = vmatpush1.bf16.msra.mxu0 %v3101
    %4091 = vmatprep.subr.bf16.mxu0 %v3110
    %4092 = vmatpush1.bf16.msra.mxu0 %v3109
    %4093 = vmatprep.subr.bf16.mxu0 %v3118
    %4094 = vmatpush1.bf16.msra.mxu0 %v3117
    %4095 = vmatprep.subr.bf16.mxu0 %v3126
    %4096 = vmatpush1.bf16.msra.mxu0 %v3125
    %4097 = vmatprep.subr.bf16.mxu0 %v3134
    %4098 = vmatpush1.bf16.msra.mxu0 %v3133
    %4099 = vmatprep.subr.bf16.mxu0 %v3142
    %4100 = vmatpush1.bf16.msra.mxu0 %v3141
    %4101 = vmatprep.subr.bf16.mxu0 %v3150
    %4102 = vmatpush1.bf16.msra.mxu0 %v3149
    %4103 = vmatprep.subr.bf16.mxu0 %v3158
    %4104 = vmatpush1.bf16.msra.mxu0 %v3157
    %4105 = vmatprep.subr.bf16.mxu0 %v3166
    %4106 = vmatpush1.bf16.msra.mxu0 %v3165
    %4107 = vmatprep.subr.bf16.mxu0 %v3174
    %4108 = vmatpush1.bf16.msra.mxu0 %v3173
    %4109 = vmatprep.subr.bf16.mxu0 %v3182
    %4110 = vmatpush1.bf16.msra.mxu0 %v3181
    %4111 = vmatprep.subr.bf16.mxu0 %v3190
    %4112 = vmatpush1.bf16.msra.mxu0 %v3189
    %4113 = vmatprep.mubr.bf16.mxu0 %v728
    %4114 = vmatmul.mubr.bf16.gmra.mrb[0].mxu0 %v727
    %v4115 = vpop.f32.mrb[0].mxu0
    %v4116 = vadd.f32 %v4075, %v4115
    %v4117 = vpop.f32.mrb[0].mxu0
    %v4118 = vadd.f32 %v4077, %v4117
    %v4119 = vpop.f32.mrb[0].mxu0
    %v4120 = vpop.f32.mrb[0].mxu0
    %4121 = vdwg.mxu0
    %4122 = vmatprep.subr.bf16.mxu0 %v3198
    %4123 = vmatpush1.bf16.msra.mxu0 %v3197
    %4124 = vmatprep.subr.bf16.mxu0 %v3206
    %4125 = vmatpush1.bf16.msra.mxu0 %v3205
    %4126 = vmatprep.subr.bf16.mxu0 %v3214
    %4127 = vmatpush1.bf16.msra.mxu0 %v3213
    %4128 = vmatprep.subr.bf16.mxu0 %v3222
    %4129 = vmatpush1.bf16.msra.mxu0 %v3221
    %4130 = vmatprep.subr.bf16.mxu0 %v3230
    %4131 = vmatpush1.bf16.msra.mxu0 %v3229
    %4132 = vmatprep.subr.bf16.mxu0 %v3238
    %4133 = vmatpush1.bf16.msra.mxu0 %v3237
    %4134 = vmatprep.subr.bf16.mxu0 %v3246
    %4135 = vmatpush1.bf16.msra.mxu0 %v3245
    %4136 = vmatprep.subr.bf16.mxu0 %v3254
    %4137 = vmatpush1.bf16.msra.mxu0 %v3253
    %4138 = vmatprep.subr.bf16.mxu0 %v3262
    %4139 = vmatpush1.bf16.msra.mxu0 %v3261
    %4140 = vmatprep.subr.bf16.mxu0 %v3270
    %4141 = vmatpush1.bf16.msra.mxu0 %v3269
    %4142 = vmatprep.subr.bf16.mxu0 %v3278
    %4143 = vmatpush1.bf16.msra.mxu0 %v3277
    %4144 = vmatprep.subr.bf16.mxu0 %v3286
    %4145 = vmatpush1.bf16.msra.mxu0 %v3285
    %4146 = vmatprep.subr.bf16.mxu0 %v3294
    %4147 = vmatpush1.bf16.msra.mxu0 %v3293
    %4148 = vmatprep.subr.bf16.mxu0 %v3302
    %4149 = vmatpush1.bf16.msra.mxu0 %v3301
    %4150 = vmatprep.subr.bf16.mxu0 %v3310
    %4151 = vmatpush1.bf16.msra.mxu0 %v3309
    %4152 = vmatprep.subr.bf16.mxu0 %v3318
    %4153 = vmatpush1.bf16.msra.mxu0 %v3317
    %4154 = vmatprep.mubr.bf16.mxu0 %v730
    %4155 = vmatmul.mubr.bf16.gmra.mrb[0].mxu0 %v729
    %v4156 = vpop.f32.mrb[0].mxu0
    %v4157 = vadd.f32 %v4116, %v4156
    %v4158 = vpop.f32.mrb[0].mxu0
    %v4159 = vadd.f32 %v4118, %v4158
    %v4160 = vpop.f32.mrb[0].mxu0
    %v4161 = vpop.f32.mrb[0].mxu0
    %4162 = vdwg.mxu0
    %4163 = vmatprep.subr.bf16.mxu0 %v2816
    %4164 = vmatpush1.bf16.msra.mxu0 %v2815
    %4165 = vmatprep.subr.bf16.mxu0 %v2824
    %4166 = vmatpush1.bf16.msra.mxu0 %v2823
    %4167 = vmatprep.subr.bf16.mxu0 %v2832
    %4168 = vmatpush1.bf16.msra.mxu0 %v2831
    %4169 = vmatprep.subr.bf16.mxu0 %v2840
    %4170 = vmatpush1.bf16.msra.mxu0 %v2839
    %4171 = vmatprep.subr.bf16.mxu0 %v2848
    %4172 = vmatpush1.bf16.msra.mxu0 %v2847
    %4173 = vmatprep.subr.bf16.mxu0 %v2856
    %4174 = vmatpush1.bf16.msra.mxu0 %v2855
    %4175 = vmatprep.subr.bf16.mxu0 %v2864
    %4176 = vmatpush1.bf16.msra.mxu0 %v2863
    %4177 = vmatprep.subr.bf16.mxu0 %v2872
    %4178 = vmatpush1.bf16.msra.mxu0 %v2871
    %4179 = vmatprep.subr.bf16.mxu0 %v2880
    %4180 = vmatpush1.bf16.msra.mxu0 %v2879
    %4181 = vmatprep.subr.bf16.mxu0 %v2888
    %4182 = vmatpush1.bf16.msra.mxu0 %v2887
    %4183 = vmatprep.subr.bf16.mxu0 %v2896
    %4184 = vmatpush1.bf16.msra.mxu0 %v2895
    %4185 = vmatprep.subr.bf16.mxu0 %v2904
    %4186 = vmatpush1.bf16.msra.mxu0 %v2903
    %4187 = vmatprep.subr.bf16.mxu0 %v2912
    %4188 = vmatpush1.bf16.msra.mxu0 %v2911
    %4189 = vmatprep.subr.bf16.mxu0 %v2920
    %4190 = vmatpush1.bf16.msra.mxu0 %v2919
    %4191 = vmatprep.subr.bf16.mxu0 %v2928
    %4192 = vmatpush1.bf16.msra.mxu0 %v2927
    %4193 = vmatprep.subr.bf16.mxu0 %v2936
    %4194 = vmatpush1.bf16.msra.mxu0 %v2935
    %4195 = vmatprep.mubr.bf16.mxu0 %v724
    %4196 = vmatmul.mubr.bf16.gmra.mrb[0].mxu0 %v723
    %v4197 = vpop.f32.mrb[0].mxu0
    %v4198 = vadd.f32 %v1262, %v4197
    %v4199 = vpop.f32.mrb[0].mxu0
    %v4200 = vadd.f32 %v1266, %v4199
    %v4201 = vpop.f32.mrb[0].mxu0
    %v4202 = vpop.f32.mrb[0].mxu0
    %4203 = vdwg.mxu0
    %4204 = vmatprep.subr.bf16.mxu0 %v2944
    %4205 = vmatpush1.bf16.msra.mxu0 %v2943
    %4206 = vmatprep.subr.bf16.mxu0 %v2952
    %4207 = vmatpush1.bf16.msra.mxu0 %v2951
    %4208 = vmatprep.subr.bf16.mxu0 %v2960
    %4209 = vmatpush1.bf16.msra.mxu0 %v2959
    %4210 = vmatprep.subr.bf16.mxu0 %v2968
    %4211 = vmatpush1.bf16.msra.mxu0 %v2967
    %4212 = vmatprep.subr.bf16.mxu0 %v2976
    %4213 = vmatpush1.bf16.msra.mxu0 %v2975
    %4214 = vmatprep.subr.bf16.mxu0 %v2984
    %4215 = vmatpush1.bf16.msra.mxu0 %v2983
    %4216 = vmatprep.subr.bf16.mxu0 %v2992
    %4217 = vmatpush1.bf16.msra.mxu0 %v2991
    %4218 = vmatprep.subr.bf16.mxu0 %v3000
    %4219 = vmatpush1.bf16.msra.mxu0 %v2999
    %4220 = vmatprep.subr.bf16.mxu0 %v3008
    %4221 = vmatpush1.bf16.msra.mxu0 %v3007
    %4222 = vmatprep.subr.bf16.mxu0 %v3016
    %4223 = vmatpush1.bf16.msra.mxu0 %v3015
    %4224 = vmatprep.subr.bf16.mxu0 %v3024
    %4225 = vmatpush1.bf16.msra.mxu0 %v3023
    %4226 = vmatprep.subr.bf16.mxu0 %v3032
    %4227 = vmatpush1.bf16.msra.mxu0 %v3031
    %4228 = vmatprep.subr.bf16.mxu0 %v3040
    %4229 = vmatpush1.bf16.msra.mxu0 %v3039
    %4230 = vmatprep.subr.bf16.mxu0 %v3048
    %4231 = vmatpush1.bf16.msra.mxu0 %v3047
    %4232 = vmatprep.subr.bf16.mxu0 %v3056
    %4233 = vmatpush1.bf16.msra.mxu0 %v3055
    %4234 = vmatprep.subr.bf16.mxu0 %v3064
    %4235 = vmatpush1.bf16.msra.mxu0 %v3063
    %4236 = vmatprep.mubr.bf16.mxu0 %v726
    %4237 = vmatmul.mubr.bf16.gmra.mrb[0].mxu0 %v725
    %v4238 = vpop.f32.mrb[0].mxu0
    %v4239 = vadd.f32 %v4198, %v4238
    %v4240 = vpop.f32.mrb[0].mxu0
    %v4241 = vadd.f32 %v4200, %v4240
    %v4242 = vpop.f32.mrb[0].mxu0
    %v4243 = vpop.f32.mrb[0].mxu0
    %4244 = vdwg.mxu0
    %4245 = vmatprep.subr.bf16.mxu0 %v3072
    %4246 = vmatpush1.bf16.msra.mxu0 %v3071
    %4247 = vmatprep.subr.bf16.mxu0 %v3080
    %4248 = vmatpush1.bf16.msra.mxu0 %v3079
    %4249 = vmatprep.subr.bf16.mxu0 %v3088
    %4250 = vmatpush1.bf16.msra.mxu0 %v3087
    %4251 = vmatprep.subr.bf16.mxu0 %v3096
    %4252 = vmatpush1.bf16.msra.mxu0 %v3095
    %4253 = vmatprep.subr.bf16.mxu0 %v3104
    %4254 = vmatpush1.bf16.msra.mxu0 %v3103
    %4255 = vmatprep.subr.bf16.mxu0 %v3112
    %4256 = vmatpush1.bf16.msra.mxu0 %v3111
    %4257 = vmatprep.subr.bf16.mxu0 %v3120
    %4258 = vmatpush1.bf16.msra.mxu0 %v3119
    %4259 = vmatprep.subr.bf16.mxu0 %v3128
    %4260 = vmatpush1.bf16.msra.mxu0 %v3127
    %4261 = vmatprep.subr.bf16.mxu0 %v3136
    %4262 = vmatpush1.bf16.msra.mxu0 %v3135
    %4263 = vmatprep.subr.bf16.mxu0 %v3144
    %4264 = vmatpush1.bf16.msra.mxu0 %v3143
    %4265 = vmatprep.subr.bf16.mxu0 %v3152
    %4266 = vmatpush1.bf16.msra.mxu0 %v3151
    %4267 = vmatprep.subr.bf16.mxu0 %v3160
    %4268 = vmatpush1.bf16.msra.mxu0 %v3159
    %4269 = vmatprep.subr.bf16.mxu0 %v3168
    %4270 = vmatpush1.bf16.msra.mxu0 %v3167
    %4271 = vmatprep.subr.bf16.mxu0 %v3176
    %4272 = vmatpush1.bf16.msra.mxu0 %v3175
    %4273 = vmatprep.subr.bf16.mxu0 %v3184
    %4274 = vmatpush1.bf16.msra.mxu0 %v3183
    %4275 = vmatprep.subr.bf16.mxu0 %v3192
    %4276 = vmatpush1.bf16.msra.mxu0 %v3191
    %4277 = vmatprep.mubr.bf16.mxu0 %v728
    %4278 = vmatmul.mubr.bf16.gmra.mrb[0].mxu0 %v727
    %v4279 = vpop.f32.mrb[0].mxu0
    %v4280 = vadd.f32 %v4239, %v4279
    %v4281 = vpop.f32.mrb[0].mxu0
    %v4282 = vadd.f32 %v4241, %v4281
    %v4283 = vpop.f32.mrb[0].mxu0
    %v4284 = vpop.f32.mrb[0].mxu0
    %4285 = vdwg.mxu0
    %4286 = vmatprep.subr.bf16.mxu0 %v3200
    %4287 = vmatpush1.bf16.msra.mxu0 %v3199
    %4288 = vmatprep.subr.bf16.mxu0 %v3208
    %4289 = vmatpush1.bf16.msra.mxu0 %v3207
    %4290 = vmatprep.subr.bf16.mxu0 %v3216
    %4291 = vmatpush1.bf16.msra.mxu0 %v3215
    %4292 = vmatprep.subr.bf16.mxu0 %v3224
    %4293 = vmatpush1.bf16.msra.mxu0 %v3223
    %4294 = vmatprep.subr.bf16.mxu0 %v3232
    %4295 = vmatpush1.bf16.msra.mxu0 %v3231
    %4296 = vmatprep.subr.bf16.mxu0 %v3240
    %4297 = vmatpush1.bf16.msra.mxu0 %v3239
    %4298 = vmatprep.subr.bf16.mxu0 %v3248
    %4299 = vmatpush1.bf16.msra.mxu0 %v3247
    %4300 = vmatprep.subr.bf16.mxu0 %v3256
    %4301 = vmatpush1.bf16.msra.mxu0 %v3255
    %4302 = vmatprep.subr.bf16.mxu0 %v3264
    %4303 = vmatpush1.bf16.msra.mxu0 %v3263
    %4304 = vmatprep.subr.bf16.mxu0 %v3272
    %4305 = vmatpush1.bf16.msra.mxu0 %v3271
    %4306 = vmatprep.subr.bf16.mxu0 %v3280
    %4307 = vmatpush1.bf16.msra.mxu0 %v3279
    %4308 = vmatprep.subr.bf16.mxu0 %v3288
    %4309 = vmatpush1.bf16.msra.mxu0 %v3287
    %4310 = vmatprep.subr.bf16.mxu0 %v3296
    %4311 = vmatpush1.bf16.msra.mxu0 %v3295
    %4312 = vmatprep.subr.bf16.mxu0 %v3304
    %4313 = vmatpush1.bf16.msra.mxu0 %v3303
    %4314 = vmatprep.subr.bf16.mxu0 %v3312
    %4315 = vmatpush1.bf16.msra.mxu0 %v3311
    %4316 = vmatprep.subr.bf16.mxu0 %v3320
    %4317 = vmatpush1.bf16.msra.mxu0 %v3319
    %4318 = vmatprep.mubr.bf16.mxu0 %v730
    %4319 = vmatmul.mubr.bf16.gmra.mrb[0].mxu0 %v729
    %v4320 = vpop.f32.mrb[0].mxu0
    %v4321 = vadd.f32 %v4280, %v4320
    %v4322 = vpop.f32.mrb[0].mxu0
    %v4323 = vadd.f32 %v4282, %v4322
    %v4324 = vpop.f32.mrb[0].mxu0
    %v4325 = vpop.f32.mrb[0].mxu0
    %4326 = vdwg.mxu0
    %4327 = vmatprep.subr.bf16.mxu0 %v2818
    %4328 = vmatpush1.bf16.msra.mxu0 %v2817
    %4329 = vmatprep.subr.bf16.mxu0 %v2826
    %4330 = vmatpush1.bf16.msra.mxu0 %v2825
    %4331 = vmatprep.subr.bf16.mxu0 %v2834
    %4332 = vmatpush1.bf16.msra.mxu0 %v2833
    %4333 = vmatprep.subr.bf16.mxu0 %v2842
    %4334 = vmatpush1.bf16.msra.mxu0 %v2841
    %4335 = vmatprep.subr.bf16.mxu0 %v2850
    %4336 = vmatpush1.bf16.msra.mxu0 %v2849
    %4337 = vmatprep.subr.bf16.mxu0 %v2858
    %4338 = vmatpush1.bf16.msra.mxu0 %v2857
    %4339 = vmatprep.subr.bf16.mxu0 %v2866
    %4340 = vmatpush1.bf16.msra.mxu0 %v2865
    %4341 = vmatprep.subr.bf16.mxu0 %v2874
    %4342 = vmatpush1.bf16.msra.mxu0 %v2873
    %4343 = vmatprep.subr.bf16.mxu0 %v2882
    %4344 = vmatpush1.bf16.msra.mxu0 %v2881
    %4345 = vmatprep.subr.bf16.mxu0 %v2890
    %4346 = vmatpush1.bf16.msra.mxu0 %v2889
    %4347 = vmatprep.subr.bf16.mxu0 %v2898
    %4348 = vmatpush1.bf16.msra.mxu0 %v2897
    %4349 = vmatprep.subr.bf16.mxu0 %v2906
    %4350 = vmatpush1.bf16.msra.mxu0 %v2905
    %4351 = vmatprep.subr.bf16.mxu0 %v2914
    %4352 = vmatpush1.bf16.msra.mxu0 %v2913
    %4353 = vmatprep.subr.bf16.mxu0 %v2922
    %4354 = vmatpush1.bf16.msra.mxu0 %v2921
    %4355 = vmatprep.subr.bf16.mxu0 %v2930
    %4356 = vmatpush1.bf16.msra.mxu0 %v2929
    %4357 = vmatprep.subr.bf16.mxu0 %v2938
    %4358 = vmatpush1.bf16.msra.mxu0 %v2937
    %4359 = vmatprep.mubr.bf16.mxu0 %v724
    %4360 = vmatmul.mubr.bf16.gmra.mrb[0].mxu0 %v723
    %v4361 = vpop.f32.mrb[0].mxu0
    %v4362 = vadd.f32 %v1270, %v4361
    %v4363 = vpop.f32.mrb[0].mxu0
    %v4364 = vadd.f32 %v1274, %v4363
    %v4365 = vpop.f32.mrb[0].mxu0
    %v4366 = vpop.f32.mrb[0].mxu0
    %4367 = vdwg.mxu0
    %4368 = vmatprep.subr.bf16.mxu0 %v2946
    %4369 = vmatpush1.bf16.msra.mxu0 %v2945
    %4370 = vmatprep.subr.bf16.mxu0 %v2954
    %4371 = vmatpush1.bf16.msra.mxu0 %v2953
    %4372 = vmatprep.subr.bf16.mxu0 %v2962
    %4373 = vmatpush1.bf16.msra.mxu0 %v2961
    %4374 = vmatprep.subr.bf16.mxu0 %v2970
    %4375 = vmatpush1.bf16.msra.mxu0 %v2969
    %4376 = vmatprep.subr.bf16.mxu0 %v2978
    %4377 = vmatpush1.bf16.msra.mxu0 %v2977
    %4378 = vmatprep.subr.bf16.mxu0 %v2986
    %4379 = vmatpush1.bf16.msra.mxu0 %v2985
    %4380 = vmatprep.subr.bf16.mxu0 %v2994
    %4381 = vmatpush1.bf16.msra.mxu0 %v2993
    %4382 = vmatprep.subr.bf16.mxu0 %v3002
    %4383 = vmatpush1.bf16.msra.mxu0 %v3001
    %4384 = vmatprep.subr.bf16.mxu0 %v3010
    %4385 = vmatpush1.bf16.msra.mxu0 %v3009
    %4386 = vmatprep.subr.bf16.mxu0 %v3018
    %4387 = vmatpush1.bf16.msra.mxu0 %v3017
    %4388 = vmatprep.subr.bf16.mxu0 %v3026
    %4389 = vmatpush1.bf16.msra.mxu0 %v3025
    %4390 = vmatprep.subr.bf16.mxu0 %v3034
    %4391 = vmatpush1.bf16.msra.mxu0 %v3033
    %4392 = vmatprep.subr.bf16.mxu0 %v3042
    %4393 = vmatpush1.bf16.msra.mxu0 %v3041
    %4394 = vmatprep.subr.bf16.mxu0 %v3050
    %4395 = vmatpush1.bf16.msra.mxu0 %v3049
    %4396 = vmatprep.subr.bf16.mxu0 %v3058
    %4397 = vmatpush1.bf16.msra.mxu0 %v3057
    %4398 = vmatprep.subr.bf16.mxu0 %v3066
    %4399 = vmatpush1.bf16.msra.mxu0 %v3065
    %4400 = vmatprep.mubr.bf16.mxu0 %v726
    %4401 = vmatmul.mubr.bf16.gmra.mrb[0].mxu0 %v725
    %v4402 = vpop.f32.mrb[0].mxu0
    %v4403 = vadd.f32 %v4362, %v4402
    %v4404 = vpop.f32.mrb[0].mxu0
    %v4405 = vadd.f32 %v4364, %v4404
    %v4406 = vpop.f32.mrb[0].mxu0
    %v4407 = vpop.f32.mrb[0].mxu0
    %4408 = vdwg.mxu0
    %4409 = vmatprep.subr.bf16.mxu0 %v3074
    %4410 = vmatpush1.bf16.msra.mxu0 %v3073
    %4411 = vmatprep.subr.bf16.mxu0 %v3082
    %4412 = vmatpush1.bf16.msra.mxu0 %v3081
    %4413 = vmatprep.subr.bf16.mxu0 %v3090
    %4414 = vmatpush1.bf16.msra.mxu0 %v3089
    %4415 = vmatprep.subr.bf16.mxu0 %v3098
    %4416 = vmatpush1.bf16.msra.mxu0 %v3097
    %4417 = vmatprep.subr.bf16.mxu0 %v3106
    %4418 = vmatpush1.bf16.msra.mxu0 %v3105
    %4419 = vmatprep.subr.bf16.mxu0 %v3114
    %4420 = vmatpush1.bf16.msra.mxu0 %v3113
    %4421 = vmatprep.subr.bf16.mxu0 %v3122
    %4422 = vmatpush1.bf16.msra.mxu0 %v3121
    %4423 = vmatprep.subr.bf16.mxu0 %v3130
    %4424 = vmatpush1.bf16.msra.mxu0 %v3129
    %4425 = vmatprep.subr.bf16.mxu0 %v3138
    %4426 = vmatpush1.bf16.msra.mxu0 %v3137
    %4427 = vmatprep.subr.bf16.mxu0 %v3146
    %4428 = vmatpush1.bf16.msra.mxu0 %v3145
    %4429 = vmatprep.subr.bf16.mxu0 %v3154
    %4430 = vmatpush1.bf16.msra.mxu0 %v3153
    %4431 = vmatprep.subr.bf16.mxu0 %v3162
    %4432 = vmatpush1.bf16.msra.mxu0 %v3161
    %4433 = vmatprep.subr.bf16.mxu0 %v3170
    %4434 = vmatpush1.bf16.msra.mxu0 %v3169
    %4435 = vmatprep.subr.bf16.mxu0 %v3178
    %4436 = vmatpush1.bf16.msra.mxu0 %v3177
    %4437 = vmatprep.subr.bf16.mxu0 %v3186
    %4438 = vmatpush1.bf16.msra.mxu0 %v3185
    %4439 = vmatprep.subr.bf16.mxu0 %v3194
    %4440 = vmatpush1.bf16.msra.mxu0 %v3193
    %4441 = vmatprep.mubr.bf16.mxu0 %v728
    %4442 = vmatmul.mubr.bf16.gmra.mrb[0].mxu0 %v727
    %v4443 = vpop.f32.mrb[0].mxu0
    %v4444 = vadd.f32 %v4403, %v4443
    %v4445 = vpop.f32.mrb[0].mxu0
    %v4446 = vadd.f32 %v4405, %v4445
    %v4447 = vpop.f32.mrb[0].mxu0
    %v4448 = vpop.f32.mrb[0].mxu0
    %4449 = vdwg.mxu0
    %4450 = vmatprep.subr.bf16.mxu0 %v3202
    %4451 = vmatpush1.bf16.msra.mxu0 %v3201
    %4452 = vmatprep.subr.bf16.mxu0 %v3210
    %4453 = vmatpush1.bf16.msra.mxu0 %v3209
    %4454 = vmatprep.subr.bf16.mxu0 %v3218
    %4455 = vmatpush1.bf16.msra.mxu0 %v3217
    %4456 = vmatprep.subr.bf16.mxu0 %v3226
    %4457 = vmatpush1.bf16.msra.mxu0 %v3225
    %4458 = vmatprep.subr.bf16.mxu0 %v3234
    %4459 = vmatpush1.bf16.msra.mxu0 %v3233
    %4460 = vmatprep.subr.bf16.mxu0 %v3242
    %4461 = vmatpush1.bf16.msra.mxu0 %v3241
    %4462 = vmatprep.subr.bf16.mxu0 %v3250
    %4463 = vmatpush1.bf16.msra.mxu0 %v3249
    %4464 = vmatprep.subr.bf16.mxu0 %v3258
    %4465 = vmatpush1.bf16.msra.mxu0 %v3257
    %4466 = vmatprep.subr.bf16.mxu0 %v3266
    %4467 = vmatpush1.bf16.msra.mxu0 %v3265
    %4468 = vmatprep.subr.bf16.mxu0 %v3274
    %4469 = vmatpush1.bf16.msra.mxu0 %v3273
    %4470 = vmatprep.subr.bf16.mxu0 %v3282
    %4471 = vmatpush1.bf16.msra.mxu0 %v3281
    %4472 = vmatprep.subr.bf16.mxu0 %v3290
    %4473 = vmatpush1.bf16.msra.mxu0 %v3289
    %4474 = vmatprep.subr.bf16.mxu0 %v3298
    %4475 = vmatpush1.bf16.msra.mxu0 %v3297
    %4476 = vmatprep.subr.bf16.mxu0 %v3306
    %4477 = vmatpush1.bf16.msra.mxu0 %v3305
    %4478 = vmatprep.subr.bf16.mxu0 %v3314
    %4479 = vmatpush1.bf16.msra.mxu0 %v3313
    %4480 = vmatprep.subr.bf16.mxu0 %v3322
    %4481 = vmatpush1.bf16.msra.mxu0 %v3321
    %4482 = vmatprep.mubr.bf16.mxu0 %v730
    %4483 = vmatmul.mubr.bf16.gmra.mrb[0].mxu0 %v729
    %v4484 = vpop.f32.mrb[0].mxu0
    %v4485 = vadd.f32 %v4444, %v4484
    %v4486 = vpop.f32.mrb[0].mxu0
    %v4487 = vadd.f32 %v4446, %v4486
    %v4488 = vpop.f32.mrb[0].mxu0
    %v4489 = vpop.f32.mrb[0].mxu0
    %4490 = vdwg.mxu0
    %v4491 = vmax.f32 %v3993, 0.0
    %v4492 = vmax.f32 %v3995, 0.0
    %v4493 = vmax.f32 %v4157, 0.0
    %v4494 = vmax.f32 %v4159, 0.0
    %v4495 = vmax.f32 %v4321, 0.0
    %v4496 = vmax.f32 %v4323, 0.0
    %v4497 = vmax.f32 %v4485, 0.0
    %v4498 = vmax.f32 %v4487, 0.0
    %v4499 = vpack.c.bf16 %v4491, %v4491
    %v4500 = vpack.c.bf16 %v4492, %v4492
    %v4501 = vpack.c.bf16 %v4493, %v4493
    %v4502 = vpack.c.bf16 %v4494, %v4494
    %v4503 = vpack.c.bf16 %v4495, %v4495
    %v4504 = vpack.c.bf16 %v4496, %v4496
    %v4505 = vpack.c.bf16 %v4497, %v4497
    %v4506 = vpack.c.bf16 %v4498, %v4498
    %v4507 = vld [vmem:[#allocation8] sm:$0xff]
    %v4508 = vld [vmem:[#allocation8 + $0x8] sm:$0xff]
    %v4509 = vld [vmem:[#allocation8 + $0x10] sm:$0xff]
    %v4510 = vld [vmem:[#allocation8 + $0x18] sm:$0xff]
    %v4511 = vld [vmem:[#allocation8 + $0x20] sm:$0xff]
    %v4512 = vld [vmem:[#allocation8 + $0x28] sm:$0xff]
    %v4513 = vld [vmem:[#allocation8 + $0x30] sm:$0xff]
    %v4514 = vld [vmem:[#allocation8 + $0x38] sm:$0xff]
    %v4515 = vld [vmem:[#allocation8 + $0x40] sm:$0xff]
    %v4516 = vld [vmem:[#allocation8 + $0x48] sm:$0xff]
    %v4517 = vld [vmem:[#allocation8 + $0x50] sm:$0xff]
    %v4518 = vld [vmem:[#allocation8 + $0x58] sm:$0xff]
    %v4519 = vld [vmem:[#allocation8 + $0x60] sm:$0xff]
    %v4520 = vld [vmem:[#allocation8 + $0x68] sm:$0xff]
    %v4521 = vld [vmem:[#allocation8 + $0x70] sm:$0xff]
    %v4522 = vld [vmem:[#allocation8 + $0x78] sm:$0xff]
    %v4523 = vld [vmem:[#allocation8 + $0x80] sm:$0xff]
    %v4524 = vld [vmem:[#allocation8 + $0x88] sm:$0xff]
    %v4525 = vld [vmem:[#allocation8 + $0x90] sm:$0xff]
    %v4526 = vld [vmem:[#allocation8 + $0x98] sm:$0xff]
    %v4527 = vld [vmem:[#allocation8 + $0xa0] sm:$0xff]
    %v4528 = vld [vmem:[#allocation8 + $0xa8] sm:$0xff]
    %v4529 = vld [vmem:[#allocation8 + $0xb0] sm:$0xff]
    %v4530 = vld [vmem:[#allocation8 + $0xb8] sm:$0xff]
    %v4531 = vld [vmem:[#allocation8 + $0xc0] sm:$0xff]
    %v4532 = vld [vmem:[#allocation8 + $0xc8] sm:$0xff]
    %v4533 = vld [vmem:[#allocation8 + $0xd0] sm:$0xff]
    %v4534 = vld [vmem:[#allocation8 + $0xd8] sm:$0xff]
    %v4535 = vld [vmem:[#allocation8 + $0xe0] sm:$0xff]
    %v4536 = vld [vmem:[#allocation8 + $0xe8] sm:$0xff]
    %v4537 = vld [vmem:[#allocation8 + $0xf0] sm:$0xff]
    %v4538 = vld [vmem:[#allocation8 + $0xf8] sm:$0xff]
    %v4539 = vld [vmem:[#allocation8 + $0x100] sm:$0xff]
    %v4540 = vld [vmem:[#allocation8 + $0x108] sm:$0xff]
    %v4541 = vld [vmem:[#allocation8 + $0x110] sm:$0xff]
    %v4542 = vld [vmem:[#allocation8 + $0x118] sm:$0xff]
    %v4543 = vld [vmem:[#allocation8 + $0x120] sm:$0xff]
    %v4544 = vld [vmem:[#allocation8 + $0x128] sm:$0xff]
    %v4545 = vld [vmem:[#allocation8 + $0x130] sm:$0xff]
    %v4546 = vld [vmem:[#allocation8 + $0x138] sm:$0xff]
    %v4547 = vld [vmem:[#allocation8 + $0x140] sm:$0xff]
    %v4548 = vld [vmem:[#allocation8 + $0x148] sm:$0xff]
    %v4549 = vld [vmem:[#allocation8 + $0x150] sm:$0xff]
    %v4550 = vld [vmem:[#allocation8 + $0x158] sm:$0xff]
    %v4551 = vld [vmem:[#allocation8 + $0x160] sm:$0xff]
    %v4552 = vld [vmem:[#allocation8 + $0x168] sm:$0xff]
    %v4553 = vld [vmem:[#allocation8 + $0x170] sm:$0xff]
    %v4554 = vld [vmem:[#allocation8 + $0x178] sm:$0xff]
    %v4555 = vld [vmem:[#allocation8 + $0x180] sm:$0xff]
    %v4556 = vld [vmem:[#allocation8 + $0x188] sm:$0xff]
    %v4557 = vld [vmem:[#allocation8 + $0x190] sm:$0xff]
    %v4558 = vld [vmem:[#allocation8 + $0x198] sm:$0xff]
    %v4559 = vld [vmem:[#allocation8 + $0x1a0] sm:$0xff]
    %v4560 = vld [vmem:[#allocation8 + $0x1a8] sm:$0xff]
    %v4561 = vld [vmem:[#allocation8 + $0x1b0] sm:$0xff]
    %v4562 = vld [vmem:[#allocation8 + $0x1b8] sm:$0xff]
    %v4563 = vld [vmem:[#allocation8 + $0x1c0] sm:$0xff]
    %v4564 = vld [vmem:[#allocation8 + $0x1c8] sm:$0xff]
    %v4565 = vld [vmem:[#allocation8 + $0x1d0] sm:$0xff]
    %v4566 = vld [vmem:[#allocation8 + $0x1d8] sm:$0xff]
    %v4567 = vld [vmem:[#allocation8 + $0x1e0] sm:$0xff]
    %v4568 = vld [vmem:[#allocation8 + $0x1e8] sm:$0xff]
    %v4569 = vld [vmem:[#allocation8 + $0x1f0] sm:$0xff]
    %v4570 = vld [vmem:[#allocation8 + $0x1f8] sm:$0xff]
    %v4571 = vld [vmem:[#allocation8 + $0x200] sm:$0xff]
    %v4572 = vld [vmem:[#allocation8 + $0x208] sm:$0xff]
    %v4573 = vld [vmem:[#allocation8 + $0x210] sm:$0xff]
    %v4574 = vld [vmem:[#allocation8 + $0x218] sm:$0xff]
    %v4575 = vld [vmem:[#allocation8 + $0x220] sm:$0xff]
    %v4576 = vld [vmem:[#allocation8 + $0x228] sm:$0xff]
    %v4577 = vld [vmem:[#allocation8 + $0x230] sm:$0xff]
    %v4578 = vld [vmem:[#allocation8 + $0x238] sm:$0xff]
    %v4579 = vld [vmem:[#allocation8 + $0x240] sm:$0xff]
    %v4580 = vld [vmem:[#allocation8 + $0x248] sm:$0xff]
    %v4581 = vld [vmem:[#allocation8 + $0x250] sm:$0xff]
    %v4582 = vld [vmem:[#allocation8 + $0x258] sm:$0xff]
    %v4583 = vld [vmem:[#allocation8 + $0x260] sm:$0xff]
    %v4584 = vld [vmem:[#allocation8 + $0x268] sm:$0xff]
    %v4585 = vld [vmem:[#allocation8 + $0x270] sm:$0xff]
    %v4586 = vld [vmem:[#allocation8 + $0x278] sm:$0xff]
    %v4587 = vld [vmem:[#allocation8 + $0x280] sm:$0xff]
    %v4588 = vld [vmem:[#allocation8 + $0x288] sm:$0xff]
    %v4589 = vld [vmem:[#allocation8 + $0x290] sm:$0xff]
    %v4590 = vld [vmem:[#allocation8 + $0x298] sm:$0xff]
    %v4591 = vld [vmem:[#allocation8 + $0x2a0] sm:$0xff]
    %v4592 = vld [vmem:[#allocation8 + $0x2a8] sm:$0xff]
    %v4593 = vld [vmem:[#allocation8 + $0x2b0] sm:$0xff]
    %v4594 = vld [vmem:[#allocation8 + $0x2b8] sm:$0xff]
    %v4595 = vld [vmem:[#allocation8 + $0x2c0] sm:$0xff]
    %v4596 = vld [vmem:[#allocation8 + $0x2c8] sm:$0xff]
    %v4597 = vld [vmem:[#allocation8 + $0x2d0] sm:$0xff]
    %v4598 = vld [vmem:[#allocation8 + $0x2d8] sm:$0xff]
    %v4599 = vld [vmem:[#allocation8 + $0x2e0] sm:$0xff]
    %v4600 = vld [vmem:[#allocation8 + $0x2e8] sm:$0xff]
    %v4601 = vld [vmem:[#allocation8 + $0x2f0] sm:$0xff]
    %v4602 = vld [vmem:[#allocation8 + $0x2f8] sm:$0xff]
    %v4603 = vld [vmem:[#allocation8 + $0x300] sm:$0xff]
    %v4604 = vld [vmem:[#allocation8 + $0x308] sm:$0xff]
    %v4605 = vld [vmem:[#allocation8 + $0x310] sm:$0xff]
    %v4606 = vld [vmem:[#allocation8 + $0x318] sm:$0xff]
    %v4607 = vld [vmem:[#allocation8 + $0x320] sm:$0xff]
    %v4608 = vld [vmem:[#allocation8 + $0x328] sm:$0xff]
    %v4609 = vld [vmem:[#allocation8 + $0x330] sm:$0xff]
    %v4610 = vld [vmem:[#allocation8 + $0x338] sm:$0xff]
    %v4611 = vld [vmem:[#allocation8 + $0x340] sm:$0xff]
    %v4612 = vld [vmem:[#allocation8 + $0x348] sm:$0xff]
    %v4613 = vld [vmem:[#allocation8 + $0x350] sm:$0xff]
    %v4614 = vld [vmem:[#allocation8 + $0x358] sm:$0xff]
    %v4615 = vld [vmem:[#allocation8 + $0x360] sm:$0xff]
    %v4616 = vld [vmem:[#allocation8 + $0x368] sm:$0xff]
    %v4617 = vld [vmem:[#allocation8 + $0x370] sm:$0xff]
    %v4618 = vld [vmem:[#allocation8 + $0x378] sm:$0xff]
    %v4619 = vld [vmem:[#allocation8 + $0x380] sm:$0xff]
    %v4620 = vld [vmem:[#allocation8 + $0x388] sm:$0xff]
    %v4621 = vld [vmem:[#allocation8 + $0x390] sm:$0xff]
    %v4622 = vld [vmem:[#allocation8 + $0x398] sm:$0xff]
    %v4623 = vld [vmem:[#allocation8 + $0x3a0] sm:$0xff]
    %v4624 = vld [vmem:[#allocation8 + $0x3a8] sm:$0xff]
    %v4625 = vld [vmem:[#allocation8 + $0x3b0] sm:$0xff]
    %v4626 = vld [vmem:[#allocation8 + $0x3b8] sm:$0xff]
    %v4627 = vld [vmem:[#allocation8 + $0x3c0] sm:$0xff]
    %v4628 = vld [vmem:[#allocation8 + $0x3c8] sm:$0xff]
    %v4629 = vld [vmem:[#allocation8 + $0x3d0] sm:$0xff]
    %v4630 = vld [vmem:[#allocation8 + $0x3d8] sm:$0xff]
    %v4631 = vld [vmem:[#allocation8 + $0x3e0] sm:$0xff]
    %v4632 = vld [vmem:[#allocation8 + $0x3e8] sm:$0xff]
    %v4633 = vld [vmem:[#allocation8 + $0x3f0] sm:$0xff]
    %v4634 = vld [vmem:[#allocation8 + $0x3f8] sm:$0xff]
    %v4635 = vld [vmem:[#allocation8 + $0x400] sm:$0xff]
    %v4636 = vld [vmem:[#allocation8 + $0x408] sm:$0xff]
    %v4637 = vld [vmem:[#allocation8 + $0x410] sm:$0xff]
    %v4638 = vld [vmem:[#allocation8 + $0x418] sm:$0xff]
    %v4639 = vld [vmem:[#allocation8 + $0x420] sm:$0xff]
    %v4640 = vld [vmem:[#allocation8 + $0x428] sm:$0xff]
    %v4641 = vld [vmem:[#allocation8 + $0x430] sm:$0xff]
    %v4642 = vld [vmem:[#allocation8 + $0x438] sm:$0xff]
    %v4643 = vld [vmem:[#allocation8 + $0x440] sm:$0xff]
    %v4644 = vld [vmem:[#allocation8 + $0x448] sm:$0xff]
    %v4645 = vld [vmem:[#allocation8 + $0x450] sm:$0xff]
    %v4646 = vld [vmem:[#allocation8 + $0x458] sm:$0xff]
    %v4647 = vld [vmem:[#allocation8 + $0x460] sm:$0xff]
    %v4648 = vld [vmem:[#allocation8 + $0x468] sm:$0xff]
    %v4649 = vld [vmem:[#allocation8 + $0x470] sm:$0xff]
    %v4650 = vld [vmem:[#allocation8 + $0x478] sm:$0xff]
    %v4651 = vld [vmem:[#allocation8 + $0x480] sm:$0xff]
    %v4652 = vld [vmem:[#allocation8 + $0x488] sm:$0xff]
    %v4653 = vld [vmem:[#allocation8 + $0x490] sm:$0xff]
    %v4654 = vld [vmem:[#allocation8 + $0x498] sm:$0xff]
    %v4655 = vld [vmem:[#allocation8 + $0x4a0] sm:$0xff]
    %v4656 = vld [vmem:[#allocation8 + $0x4a8] sm:$0xff]
    %v4657 = vld [vmem:[#allocation8 + $0x4b0] sm:$0xff]
    %v4658 = vld [vmem:[#allocation8 + $0x4b8] sm:$0xff]
    %v4659 = vld [vmem:[#allocation8 + $0x4c0] sm:$0xff]
    %v4660 = vld [vmem:[#allocation8 + $0x4c8] sm:$0xff]
    %v4661 = vld [vmem:[#allocation8 + $0x4d0] sm:$0xff]
    %v4662 = vld [vmem:[#allocation8 + $0x4d8] sm:$0xff]
    %v4663 = vld [vmem:[#allocation8 + $0x4e0] sm:$0xff]
    %v4664 = vld [vmem:[#allocation8 + $0x4e8] sm:$0xff]
    %v4665 = vld [vmem:[#allocation8 + $0x4f0] sm:$0xff]
    %v4666 = vld [vmem:[#allocation8 + $0x4f8] sm:$0xff]
    %v4667 = vld [vmem:[#allocation8 + $0x500] sm:$0xff]
    %v4668 = vld [vmem:[#allocation8 + $0x508] sm:$0xff]
    %v4669 = vld [vmem:[#allocation8 + $0x510] sm:$0xff]
    %v4670 = vld [vmem:[#allocation8 + $0x518] sm:$0xff]
    %v4671 = vld [vmem:[#allocation8 + $0x520] sm:$0xff]
    %v4672 = vld [vmem:[#allocation8 + $0x528] sm:$0xff]
    %v4673 = vld [vmem:[#allocation8 + $0x530] sm:$0xff]
    %v4674 = vld [vmem:[#allocation8 + $0x538] sm:$0xff]
    %v4675 = vld [vmem:[#allocation8 + $0x540] sm:$0xff]
    %v4676 = vld [vmem:[#allocation8 + $0x548] sm:$0xff]
    %v4677 = vld [vmem:[#allocation8 + $0x550] sm:$0xff]
    %v4678 = vld [vmem:[#allocation8 + $0x558] sm:$0xff]
    %v4679 = vld [vmem:[#allocation8 + $0x560] sm:$0xff]
    %v4680 = vld [vmem:[#allocation8 + $0x568] sm:$0xff]
    %v4681 = vld [vmem:[#allocation8 + $0x570] sm:$0xff]
    %v4682 = vld [vmem:[#allocation8 + $0x578] sm:$0xff]
    %v4683 = vld [vmem:[#allocation8 + $0x580] sm:$0xff]
    %v4684 = vld [vmem:[#allocation8 + $0x588] sm:$0xff]
    %v4685 = vld [vmem:[#allocation8 + $0x590] sm:$0xff]
    %v4686 = vld [vmem:[#allocation8 + $0x598] sm:$0xff]
    %v4687 = vld [vmem:[#allocation8 + $0x5a0] sm:$0xff]
    %v4688 = vld [vmem:[#allocation8 + $0x5a8] sm:$0xff]
    %v4689 = vld [vmem:[#allocation8 + $0x5b0] sm:$0xff]
    %v4690 = vld [vmem:[#allocation8 + $0x5b8] sm:$0xff]
    %v4691 = vld [vmem:[#allocation8 + $0x5c0] sm:$0xff]
    %v4692 = vld [vmem:[#allocation8 + $0x5c8] sm:$0xff]
    %v4693 = vld [vmem:[#allocation8 + $0x5d0] sm:$0xff]
    %v4694 = vld [vmem:[#allocation8 + $0x5d8] sm:$0xff]
    %v4695 = vld [vmem:[#allocation8 + $0x5e0] sm:$0xff]
    %v4696 = vld [vmem:[#allocation8 + $0x5e8] sm:$0xff]
    %v4697 = vld [vmem:[#allocation8 + $0x5f0] sm:$0xff]
    %v4698 = vld [vmem:[#allocation8 + $0x5f8] sm:$0xff]
    %v4699 = vld [vmem:[#allocation8 + $0x600] sm:$0xff]
    %v4700 = vld [vmem:[#allocation8 + $0x608] sm:$0xff]
    %v4701 = vld [vmem:[#allocation8 + $0x610] sm:$0xff]
    %v4702 = vld [vmem:[#allocation8 + $0x618] sm:$0xff]
    %v4703 = vld [vmem:[#allocation8 + $0x620] sm:$0xff]
    %v4704 = vld [vmem:[#allocation8 + $0x628] sm:$0xff]
    %v4705 = vld [vmem:[#allocation8 + $0x630] sm:$0xff]
    %v4706 = vld [vmem:[#allocation8 + $0x638] sm:$0xff]
    %v4707 = vld [vmem:[#allocation8 + $0x640] sm:$0xff]
    %v4708 = vld [vmem:[#allocation8 + $0x648] sm:$0xff]
    %v4709 = vld [vmem:[#allocation8 + $0x650] sm:$0xff]
    %v4710 = vld [vmem:[#allocation8 + $0x658] sm:$0xff]
    %v4711 = vld [vmem:[#allocation8 + $0x660] sm:$0xff]
    %v4712 = vld [vmem:[#allocation8 + $0x668] sm:$0xff]
    %v4713 = vld [vmem:[#allocation8 + $0x670] sm:$0xff]
    %v4714 = vld [vmem:[#allocation8 + $0x678] sm:$0xff]
    %v4715 = vld [vmem:[#allocation8 + $0x680] sm:$0xff]
    %v4716 = vld [vmem:[#allocation8 + $0x688] sm:$0xff]
    %v4717 = vld [vmem:[#allocation8 + $0x690] sm:$0xff]
    %v4718 = vld [vmem:[#allocation8 + $0x698] sm:$0xff]
    %v4719 = vld [vmem:[#allocation8 + $0x6a0] sm:$0xff]
    %v4720 = vld [vmem:[#allocation8 + $0x6a8] sm:$0xff]
    %v4721 = vld [vmem:[#allocation8 + $0x6b0] sm:$0xff]
    %v4722 = vld [vmem:[#allocation8 + $0x6b8] sm:$0xff]
    %v4723 = vld [vmem:[#allocation8 + $0x6c0] sm:$0xff]
    %v4724 = vld [vmem:[#allocation8 + $0x6c8] sm:$0xff]
    %v4725 = vld [vmem:[#allocation8 + $0x6d0] sm:$0xff]
    %v4726 = vld [vmem:[#allocation8 + $0x6d8] sm:$0xff]
    %v4727 = vld [vmem:[#allocation8 + $0x6e0] sm:$0xff]
    %v4728 = vld [vmem:[#allocation8 + $0x6e8] sm:$0xff]
    %v4729 = vld [vmem:[#allocation8 + $0x6f0] sm:$0xff]
    %v4730 = vld [vmem:[#allocation8 + $0x6f8] sm:$0xff]
    %v4731 = vld [vmem:[#allocation8 + $0x700] sm:$0xff]
    %v4732 = vld [vmem:[#allocation8 + $0x708] sm:$0xff]
    %v4733 = vld [vmem:[#allocation8 + $0x710] sm:$0xff]
    %v4734 = vld [vmem:[#allocation8 + $0x718] sm:$0xff]
    %v4735 = vld [vmem:[#allocation8 + $0x720] sm:$0xff]
    %v4736 = vld [vmem:[#allocation8 + $0x728] sm:$0xff]
    %v4737 = vld [vmem:[#allocation8 + $0x730] sm:$0xff]
    %v4738 = vld [vmem:[#allocation8 + $0x738] sm:$0xff]
    %v4739 = vld [vmem:[#allocation8 + $0x740] sm:$0xff]
    %v4740 = vld [vmem:[#allocation8 + $0x748] sm:$0xff]
    %v4741 = vld [vmem:[#allocation8 + $0x750] sm:$0xff]
    %v4742 = vld [vmem:[#allocation8 + $0x758] sm:$0xff]
    %v4743 = vld [vmem:[#allocation8 + $0x760] sm:$0xff]
    %v4744 = vld [vmem:[#allocation8 + $0x768] sm:$0xff]
    %v4745 = vld [vmem:[#allocation8 + $0x770] sm:$0xff]
    %v4746 = vld [vmem:[#allocation8 + $0x778] sm:$0xff]
    %v4747 = vld [vmem:[#allocation8 + $0x780] sm:$0xff]
    %v4748 = vld [vmem:[#allocation8 + $0x788] sm:$0xff]
    %v4749 = vld [vmem:[#allocation8 + $0x790] sm:$0xff]
    %v4750 = vld [vmem:[#allocation8 + $0x798] sm:$0xff]
    %v4751 = vld [vmem:[#allocation8 + $0x7a0] sm:$0xff]
    %v4752 = vld [vmem:[#allocation8 + $0x7a8] sm:$0xff]
    %v4753 = vld [vmem:[#allocation8 + $0x7b0] sm:$0xff]
    %v4754 = vld [vmem:[#allocation8 + $0x7b8] sm:$0xff]
    %v4755 = vld [vmem:[#allocation8 + $0x7c0] sm:$0xff]
    %v4756 = vld [vmem:[#allocation8 + $0x7c8] sm:$0xff]
    %v4757 = vld [vmem:[#allocation8 + $0x7d0] sm:$0xff]
    %v4758 = vld [vmem:[#allocation8 + $0x7d8] sm:$0xff]
    %v4759 = vld [vmem:[#allocation8 + $0x7e0] sm:$0xff]
    %v4760 = vld [vmem:[#allocation8 + $0x7e8] sm:$0xff]
    %v4761 = vld [vmem:[#allocation8 + $0x7f0] sm:$0xff]
    %v4762 = vld [vmem:[#allocation8 + $0x7f8] sm:$0xff]
    %v4763 = vld [vmem:[#allocation8 + $0x800] sm:$0xff]
    %v4764 = vld [vmem:[#allocation8 + $0x808] sm:$0xff]
    %v4765 = vld [vmem:[#allocation8 + $0x810] sm:$0xff]
    %v4766 = vld [vmem:[#allocation8 + $0x818] sm:$0xff]
    %v4767 = vld [vmem:[#allocation8 + $0x820] sm:$0xff]
    %v4768 = vld [vmem:[#allocation8 + $0x828] sm:$0xff]
    %v4769 = vld [vmem:[#allocation8 + $0x830] sm:$0xff]
    %v4770 = vld [vmem:[#allocation8 + $0x838] sm:$0xff]
    %v4771 = vld [vmem:[#allocation8 + $0x840] sm:$0xff]
    %v4772 = vld [vmem:[#allocation8 + $0x848] sm:$0xff]
    %v4773 = vld [vmem:[#allocation8 + $0x850] sm:$0xff]
    %v4774 = vld [vmem:[#allocation8 + $0x858] sm:$0xff]
    %v4775 = vld [vmem:[#allocation8 + $0x860] sm:$0xff]
    %v4776 = vld [vmem:[#allocation8 + $0x868] sm:$0xff]
    %v4777 = vld [vmem:[#allocation8 + $0x870] sm:$0xff]
    %v4778 = vld [vmem:[#allocation8 + $0x878] sm:$0xff]
    %v4779 = vld [vmem:[#allocation8 + $0x880] sm:$0xff]
    %v4780 = vld [vmem:[#allocation8 + $0x888] sm:$0xff]
    %v4781 = vld [vmem:[#allocation8 + $0x890] sm:$0xff]
    %v4782 = vld [vmem:[#allocation8 + $0x898] sm:$0xff]
    %v4783 = vld [vmem:[#allocation8 + $0x8a0] sm:$0xff]
    %v4784 = vld [vmem:[#allocation8 + $0x8a8] sm:$0xff]
    %v4785 = vld [vmem:[#allocation8 + $0x8b0] sm:$0xff]
    %v4786 = vld [vmem:[#allocation8 + $0x8b8] sm:$0xff]
    %v4787 = vld [vmem:[#allocation8 + $0x8c0] sm:$0xff]
    %v4788 = vld [vmem:[#allocation8 + $0x8c8] sm:$0xff]
    %v4789 = vld [vmem:[#allocation8 + $0x8d0] sm:$0xff]
    %v4790 = vld [vmem:[#allocation8 + $0x8d8] sm:$0xff]
    %v4791 = vld [vmem:[#allocation8 + $0x8e0] sm:$0xff]
    %v4792 = vld [vmem:[#allocation8 + $0x8e8] sm:$0xff]
    %v4793 = vld [vmem:[#allocation8 + $0x8f0] sm:$0xff]
    %v4794 = vld [vmem:[#allocation8 + $0x8f8] sm:$0xff]
    %v4795 = vld [vmem:[#allocation8 + $0x900] sm:$0xff]
    %v4796 = vld [vmem:[#allocation8 + $0x908] sm:$0xff]
    %v4797 = vld [vmem:[#allocation8 + $0x910] sm:$0xff]
    %v4798 = vld [vmem:[#allocation8 + $0x918] sm:$0xff]
    %v4799 = vld [vmem:[#allocation8 + $0x920] sm:$0xff]
    %v4800 = vld [vmem:[#allocation8 + $0x928] sm:$0xff]
    %v4801 = vld [vmem:[#allocation8 + $0x930] sm:$0xff]
    %v4802 = vld [vmem:[#allocation8 + $0x938] sm:$0xff]
    %v4803 = vld [vmem:[#allocation8 + $0x940] sm:$0xff]
    %v4804 = vld [vmem:[#allocation8 + $0x948] sm:$0xff]
    %v4805 = vld [vmem:[#allocation8 + $0x950] sm:$0xff]
    %v4806 = vld [vmem:[#allocation8 + $0x958] sm:$0xff]
    %v4807 = vld [vmem:[#allocation8 + $0x960] sm:$0xff]
    %v4808 = vld [vmem:[#allocation8 + $0x968] sm:$0xff]
    %v4809 = vld [vmem:[#allocation8 + $0x970] sm:$0xff]
    %v4810 = vld [vmem:[#allocation8 + $0x978] sm:$0xff]
    %v4811 = vld [vmem:[#allocation8 + $0x980] sm:$0xff]
    %v4812 = vld [vmem:[#allocation8 + $0x988] sm:$0xff]
    %v4813 = vld [vmem:[#allocation8 + $0x990] sm:$0xff]
    %v4814 = vld [vmem:[#allocation8 + $0x998] sm:$0xff]
    %v4815 = vld [vmem:[#allocation8 + $0x9a0] sm:$0xff]
    %v4816 = vld [vmem:[#allocation8 + $0x9a8] sm:$0xff]
    %v4817 = vld [vmem:[#allocation8 + $0x9b0] sm:$0xff]
    %v4818 = vld [vmem:[#allocation8 + $0x9b8] sm:$0xff]
    %v4819 = vld [vmem:[#allocation8 + $0x9c0] sm:$0xff]
    %v4820 = vld [vmem:[#allocation8 + $0x9c8] sm:$0xff]
    %v4821 = vld [vmem:[#allocation8 + $0x9d0] sm:$0xff]
    %v4822 = vld [vmem:[#allocation8 + $0x9d8] sm:$0xff]
    %v4823 = vld [vmem:[#allocation8 + $0x9e0] sm:$0xff]
    %v4824 = vld [vmem:[#allocation8 + $0x9e8] sm:$0xff]
    %v4825 = vld [vmem:[#allocation8 + $0x9f0] sm:$0xff]
    %v4826 = vld [vmem:[#allocation8 + $0x9f8] sm:$0xff]
    %v4827 = vld [vmem:[#allocation8 + $0xa00] sm:$0xff]
    %v4828 = vld [vmem:[#allocation8 + $0xa08] sm:$0xff]
    %v4829 = vld [vmem:[#allocation8 + $0xa10] sm:$0xff]
    %v4830 = vld [vmem:[#allocation8 + $0xa18] sm:$0xff]
    %v4831 = vld [vmem:[#allocation8 + $0xa20] sm:$0xff]
    %v4832 = vld [vmem:[#allocation8 + $0xa28] sm:$0xff]
    %v4833 = vld [vmem:[#allocation8 + $0xa30] sm:$0xff]
    %v4834 = vld [vmem:[#allocation8 + $0xa38] sm:$0xff]
    %v4835 = vld [vmem:[#allocation8 + $0xa40] sm:$0xff]
    %v4836 = vld [vmem:[#allocation8 + $0xa48] sm:$0xff]
    %v4837 = vld [vmem:[#allocation8 + $0xa50] sm:$0xff]
    %v4838 = vld [vmem:[#allocation8 + $0xa58] sm:$0xff]
    %v4839 = vld [vmem:[#allocation8 + $0xa60] sm:$0xff]
    %v4840 = vld [vmem:[#allocation8 + $0xa68] sm:$0xff]
    %v4841 = vld [vmem:[#allocation8 + $0xa70] sm:$0xff]
    %v4842 = vld [vmem:[#allocation8 + $0xa78] sm:$0xff]
    %v4843 = vld [vmem:[#allocation8 + $0xa80] sm:$0xff]
    %v4844 = vld [vmem:[#allocation8 + $0xa88] sm:$0xff]
    %v4845 = vld [vmem:[#allocation8 + $0xa90] sm:$0xff]
    %v4846 = vld [vmem:[#allocation8 + $0xa98] sm:$0xff]
    %v4847 = vld [vmem:[#allocation8 + $0xaa0] sm:$0xff]
    %v4848 = vld [vmem:[#allocation8 + $0xaa8] sm:$0xff]
    %v4849 = vld [vmem:[#allocation8 + $0xab0] sm:$0xff]
    %v4850 = vld [vmem:[#allocation8 + $0xab8] sm:$0xff]
    %v4851 = vld [vmem:[#allocation8 + $0xac0] sm:$0xff]
    %v4852 = vld [vmem:[#allocation8 + $0xac8] sm:$0xff]
    %v4853 = vld [vmem:[#allocation8 + $0xad0] sm:$0xff]
    %v4854 = vld [vmem:[#allocation8 + $0xad8] sm:$0xff]
    %v4855 = vld [vmem:[#allocation8 + $0xae0] sm:$0xff]
    %v4856 = vld [vmem:[#allocation8 + $0xae8] sm:$0xff]
    %v4857 = vld [vmem:[#allocation8 + $0xaf0] sm:$0xff]
    %v4858 = vld [vmem:[#allocation8 + $0xaf8] sm:$0xff]
    %v4859 = vld [vmem:[#allocation8 + $0xb00] sm:$0xff]
    %v4860 = vld [vmem:[#allocation8 + $0xb08] sm:$0xff]
    %v4861 = vld [vmem:[#allocation8 + $0xb10] sm:$0xff]
    %v4862 = vld [vmem:[#allocation8 + $0xb18] sm:$0xff]
    %v4863 = vld [vmem:[#allocation8 + $0xb20] sm:$0xff]
    %v4864 = vld [vmem:[#allocation8 + $0xb28] sm:$0xff]
    %v4865 = vld [vmem:[#allocation8 + $0xb30] sm:$0xff]
    %v4866 = vld [vmem:[#allocation8 + $0xb38] sm:$0xff]
    %v4867 = vld [vmem:[#allocation8 + $0xb40] sm:$0xff]
    %v4868 = vld [vmem:[#allocation8 + $0xb48] sm:$0xff]
    %v4869 = vld [vmem:[#allocation8 + $0xb50] sm:$0xff]
    %v4870 = vld [vmem:[#allocation8 + $0xb58] sm:$0xff]
    %v4871 = vld [vmem:[#allocation8 + $0xb60] sm:$0xff]
    %v4872 = vld [vmem:[#allocation8 + $0xb68] sm:$0xff]
    %v4873 = vld [vmem:[#allocation8 + $0xb70] sm:$0xff]
    %v4874 = vld [vmem:[#allocation8 + $0xb78] sm:$0xff]
    %v4875 = vld [vmem:[#allocation8 + $0xb80] sm:$0xff]
    %v4876 = vld [vmem:[#allocation8 + $0xb88] sm:$0xff]
    %v4877 = vld [vmem:[#allocation8 + $0xb90] sm:$0xff]
    %v4878 = vld [vmem:[#allocation8 + $0xb98] sm:$0xff]
    %v4879 = vld [vmem:[#allocation8 + $0xba0] sm:$0xff]
    %v4880 = vld [vmem:[#allocation8 + $0xba8] sm:$0xff]
    %v4881 = vld [vmem:[#allocation8 + $0xbb0] sm:$0xff]
    %v4882 = vld [vmem:[#allocation8 + $0xbb8] sm:$0xff]
    %v4883 = vld [vmem:[#allocation8 + $0xbc0] sm:$0xff]
    %v4884 = vld [vmem:[#allocation8 + $0xbc8] sm:$0xff]
    %v4885 = vld [vmem:[#allocation8 + $0xbd0] sm:$0xff]
    %v4886 = vld [vmem:[#allocation8 + $0xbd8] sm:$0xff]
    %v4887 = vld [vmem:[#allocation8 + $0xbe0] sm:$0xff]
    %v4888 = vld [vmem:[#allocation8 + $0xbe8] sm:$0xff]
    %v4889 = vld [vmem:[#allocation8 + $0xbf0] sm:$0xff]
    %v4890 = vld [vmem:[#allocation8 + $0xbf8] sm:$0xff]
    %v4891 = vld [vmem:[#allocation8 + $0xc00] sm:$0xff]
    %v4892 = vld [vmem:[#allocation8 + $0xc08] sm:$0xff]
    %v4893 = vld [vmem:[#allocation8 + $0xc10] sm:$0xff]
    %v4894 = vld [vmem:[#allocation8 + $0xc18] sm:$0xff]
    %v4895 = vld [vmem:[#allocation8 + $0xc20] sm:$0xff]
    %v4896 = vld [vmem:[#allocation8 + $0xc28] sm:$0xff]
    %v4897 = vld [vmem:[#allocation8 + $0xc30] sm:$0xff]
    %v4898 = vld [vmem:[#allocation8 + $0xc38] sm:$0xff]
    %v4899 = vld [vmem:[#allocation8 + $0xc40] sm:$0xff]
    %v4900 = vld [vmem:[#allocation8 + $0xc48] sm:$0xff]
    %v4901 = vld [vmem:[#allocation8 + $0xc50] sm:$0xff]
    %v4902 = vld [vmem:[#allocation8 + $0xc58] sm:$0xff]
    %v4903 = vld [vmem:[#allocation8 + $0xc60] sm:$0xff]
    %v4904 = vld [vmem:[#allocation8 + $0xc68] sm:$0xff]
    %v4905 = vld [vmem:[#allocation8 + $0xc70] sm:$0xff]
    %v4906 = vld [vmem:[#allocation8 + $0xc78] sm:$0xff]
    %v4907 = vld [vmem:[#allocation8 + $0xc80] sm:$0xff]
    %v4908 = vld [vmem:[#allocation8 + $0xc88] sm:$0xff]
    %v4909 = vld [vmem:[#allocation8 + $0xc90] sm:$0xff]
    %v4910 = vld [vmem:[#allocation8 + $0xc98] sm:$0xff]
    %v4911 = vld [vmem:[#allocation8 + $0xca0] sm:$0xff]
    %v4912 = vld [vmem:[#allocation8 + $0xca8] sm:$0xff]
    %v4913 = vld [vmem:[#allocation8 + $0xcb0] sm:$0xff]
    %v4914 = vld [vmem:[#allocation8 + $0xcb8] sm:$0xff]
    %v4915 = vld [vmem:[#allocation8 + $0xcc0] sm:$0xff]
    %v4916 = vld [vmem:[#allocation8 + $0xcc8] sm:$0xff]
    %v4917 = vld [vmem:[#allocation8 + $0xcd0] sm:$0xff]
    %v4918 = vld [vmem:[#allocation8 + $0xcd8] sm:$0xff]
    %v4919 = vld [vmem:[#allocation8 + $0xce0] sm:$0xff]
    %v4920 = vld [vmem:[#allocation8 + $0xce8] sm:$0xff]
    %v4921 = vld [vmem:[#allocation8 + $0xcf0] sm:$0xff]
    %v4922 = vld [vmem:[#allocation8 + $0xcf8] sm:$0xff]
    %v4923 = vld [vmem:[#allocation8 + $0xd00] sm:$0xff]
    %v4924 = vld [vmem:[#allocation8 + $0xd08] sm:$0xff]
    %v4925 = vld [vmem:[#allocation8 + $0xd10] sm:$0xff]
    %v4926 = vld [vmem:[#allocation8 + $0xd18] sm:$0xff]
    %v4927 = vld [vmem:[#allocation8 + $0xd20] sm:$0xff]
    %v4928 = vld [vmem:[#allocation8 + $0xd28] sm:$0xff]
    %v4929 = vld [vmem:[#allocation8 + $0xd30] sm:$0xff]
    %v4930 = vld [vmem:[#allocation8 + $0xd38] sm:$0xff]
    %v4931 = vld [vmem:[#allocation8 + $0xd40] sm:$0xff]
    %v4932 = vld [vmem:[#allocation8 + $0xd48] sm:$0xff]
    %v4933 = vld [vmem:[#allocation8 + $0xd50] sm:$0xff]
    %v4934 = vld [vmem:[#allocation8 + $0xd58] sm:$0xff]
    %v4935 = vld [vmem:[#allocation8 + $0xd60] sm:$0xff]
    %v4936 = vld [vmem:[#allocation8 + $0xd68] sm:$0xff]
    %v4937 = vld [vmem:[#allocation8 + $0xd70] sm:$0xff]
    %v4938 = vld [vmem:[#allocation8 + $0xd78] sm:$0xff]
    %v4939 = vld [vmem:[#allocation8 + $0xd80] sm:$0xff]
    %v4940 = vld [vmem:[#allocation8 + $0xd88] sm:$0xff]
    %v4941 = vld [vmem:[#allocation8 + $0xd90] sm:$0xff]
    %v4942 = vld [vmem:[#allocation8 + $0xd98] sm:$0xff]
    %v4943 = vld [vmem:[#allocation8 + $0xda0] sm:$0xff]
    %v4944 = vld [vmem:[#allocation8 + $0xda8] sm:$0xff]
    %v4945 = vld [vmem:[#allocation8 + $0xdb0] sm:$0xff]
    %v4946 = vld [vmem:[#allocation8 + $0xdb8] sm:$0xff]
    %v4947 = vld [vmem:[#allocation8 + $0xdc0] sm:$0xff]
    %v4948 = vld [vmem:[#allocation8 + $0xdc8] sm:$0xff]
    %v4949 = vld [vmem:[#allocation8 + $0xdd0] sm:$0xff]
    %v4950 = vld [vmem:[#allocation8 + $0xdd8] sm:$0xff]
    %v4951 = vld [vmem:[#allocation8 + $0xde0] sm:$0xff]
    %v4952 = vld [vmem:[#allocation8 + $0xde8] sm:$0xff]
    %v4953 = vld [vmem:[#allocation8 + $0xdf0] sm:$0xff]
    %v4954 = vld [vmem:[#allocation8 + $0xdf8] sm:$0xff]
    %v4955 = vld [vmem:[#allocation8 + $0xe00] sm:$0xff]
    %v4956 = vld [vmem:[#allocation8 + $0xe08] sm:$0xff]
    %v4957 = vld [vmem:[#allocation8 + $0xe10] sm:$0xff]
    %v4958 = vld [vmem:[#allocation8 + $0xe18] sm:$0xff]
    %v4959 = vld [vmem:[#allocation8 + $0xe20] sm:$0xff]
    %v4960 = vld [vmem:[#allocation8 + $0xe28] sm:$0xff]
    %v4961 = vld [vmem:[#allocation8 + $0xe30] sm:$0xff]
    %v4962 = vld [vmem:[#allocation8 + $0xe38] sm:$0xff]
    %v4963 = vld [vmem:[#allocation8 + $0xe40] sm:$0xff]
    %v4964 = vld [vmem:[#allocation8 + $0xe48] sm:$0xff]
    %v4965 = vld [vmem:[#allocation8 + $0xe50] sm:$0xff]
    %v4966 = vld [vmem:[#allocation8 + $0xe58] sm:$0xff]
    %v4967 = vld [vmem:[#allocation8 + $0xe60] sm:$0xff]
    %v4968 = vld [vmem:[#allocation8 + $0xe68] sm:$0xff]
    %v4969 = vld [vmem:[#allocation8 + $0xe70] sm:$0xff]
    %v4970 = vld [vmem:[#allocation8 + $0xe78] sm:$0xff]
    %v4971 = vld [vmem:[#allocation8 + $0xe80] sm:$0xff]
    %v4972 = vld [vmem:[#allocation8 + $0xe88] sm:$0xff]
    %v4973 = vld [vmem:[#allocation8 + $0xe90] sm:$0xff]
    %v4974 = vld [vmem:[#allocation8 + $0xe98] sm:$0xff]
    %v4975 = vld [vmem:[#allocation8 + $0xea0] sm:$0xff]
    %v4976 = vld [vmem:[#allocation8 + $0xea8] sm:$0xff]
    %v4977 = vld [vmem:[#allocation8 + $0xeb0] sm:$0xff]
    %v4978 = vld [vmem:[#allocation8 + $0xeb8] sm:$0xff]
    %v4979 = vld [vmem:[#allocation8 + $0xec0] sm:$0xff]
    %v4980 = vld [vmem:[#allocation8 + $0xec8] sm:$0xff]
    %v4981 = vld [vmem:[#allocation8 + $0xed0] sm:$0xff]
    %v4982 = vld [vmem:[#allocation8 + $0xed8] sm:$0xff]
    %v4983 = vld [vmem:[#allocation8 + $0xee0] sm:$0xff]
    %v4984 = vld [vmem:[#allocation8 + $0xee8] sm:$0xff]
    %v4985 = vld [vmem:[#allocation8 + $0xef0] sm:$0xff]
    %v4986 = vld [vmem:[#allocation8 + $0xef8] sm:$0xff]
    %v4987 = vld [vmem:[#allocation8 + $0xf00] sm:$0xff]
    %v4988 = vld [vmem:[#allocation8 + $0xf08] sm:$0xff]
    %v4989 = vld [vmem:[#allocation8 + $0xf10] sm:$0xff]
    %v4990 = vld [vmem:[#allocation8 + $0xf18] sm:$0xff]
    %v4991 = vld [vmem:[#allocation8 + $0xf20] sm:$0xff]
    %v4992 = vld [vmem:[#allocation8 + $0xf28] sm:$0xff]
    %v4993 = vld [vmem:[#allocation8 + $0xf30] sm:$0xff]
    %v4994 = vld [vmem:[#allocation8 + $0xf38] sm:$0xff]
    %v4995 = vld [vmem:[#allocation8 + $0xf40] sm:$0xff]
    %v4996 = vld [vmem:[#allocation8 + $0xf48] sm:$0xff]
    %v4997 = vld [vmem:[#allocation8 + $0xf50] sm:$0xff]
    %v4998 = vld [vmem:[#allocation8 + $0xf58] sm:$0xff]
    %v4999 = vld [vmem:[#allocation8 + $0xf60] sm:$0xff]
    %v5000 = vld [vmem:[#allocation8 + $0xf68] sm:$0xff]
    %v5001 = vld [vmem:[#allocation8 + $0xf70] sm:$0xff]
    %v5002 = vld [vmem:[#allocation8 + $0xf78] sm:$0xff]
    %v5003 = vld [vmem:[#allocation8 + $0xf80] sm:$0xff]
    %v5004 = vld [vmem:[#allocation8 + $0xf88] sm:$0xff]
    %v5005 = vld [vmem:[#allocation8 + $0xf90] sm:$0xff]
    %v5006 = vld [vmem:[#allocation8 + $0xf98] sm:$0xff]
    %v5007 = vld [vmem:[#allocation8 + $0xfa0] sm:$0xff]
    %v5008 = vld [vmem:[#allocation8 + $0xfa8] sm:$0xff]
    %v5009 = vld [vmem:[#allocation8 + $0xfb0] sm:$0xff]
    %v5010 = vld [vmem:[#allocation8 + $0xfb8] sm:$0xff]
    %v5011 = vld [vmem:[#allocation8 + $0xfc0] sm:$0xff]
    %v5012 = vld [vmem:[#allocation8 + $0xfc8] sm:$0xff]
    %v5013 = vld [vmem:[#allocation8 + $0xfd0] sm:$0xff]
    %v5014 = vld [vmem:[#allocation8 + $0xfd8] sm:$0xff]
    %v5015 = vld [vmem:[#allocation8 + $0xfe0] sm:$0xff]
    %v5016 = vld [vmem:[#allocation8 + $0xfe8] sm:$0xff]
    %v5017 = vld [vmem:[#allocation8 + $0xff0] sm:$0xff]
    %v5018 = vld [vmem:[#allocation8 + $0xff8] sm:$0xff]
    %v5019 = vlaneseq
    %v5020 = vshrl.u32 %v5019, 7
    %v5021 = vsub.s32 2, %v5020
    %v5022 = vrot.slane %v125, %v5021
    %v5023 = vlaneseq
    %v5024 = vshrl.u32 %v5023, 7
    %v5025 = vsub.s32 2, %v5024
    %v5026 = vrot.slane %v126, %v5025
    %v5027 = vlaneseq
    %v5028 = vshrl.u32 %v5027, 7
    %v5029 = vsub.s32 2, %v5028
    %v5030 = vrot.slane %v127, %v5029
    %v5031 = vlaneseq
    %v5032 = vshrl.u32 %v5031, 7
    %v5033 = vsub.s32 2, %v5032
    %v5034 = vrot.slane %v128, %v5033
    %v5035 = vlaneseq
    %v5036 = vshrl.u32 %v5035, 7
    %v5037 = vsub.s32 2, %v5036
    %v5038 = vrot.slane %v129, %v5037
    %v5039 = vlaneseq
    %v5040 = vshrl.u32 %v5039, 7
    %v5041 = vsub.s32 2, %v5040
    %v5042 = vrot.slane %v130, %v5041
    %v5043 = vlaneseq
    %v5044 = vshrl.u32 %v5043, 7
    %v5045 = vsub.s32 2, %v5044
    %v5046 = vrot.slane %v131, %v5045
    %v5047 = vlaneseq
    %v5048 = vshrl.u32 %v5047, 7
    %v5049 = vsub.s32 2, %v5048
    %v5050 = vrot.slane %v132, %v5049
    %v5563 = vunpack.c.l.b16 %v4507
    %v5564 = vunpack.c.h.b16 %v4507
    %v5565 = vunpack.c.l.b16 %v4508
    %v5566 = vunpack.c.h.b16 %v4508
    %v5567 = vunpack.c.l.b16 %v4509
    %v5568 = vunpack.c.h.b16 %v4509
    %v5569 = vunpack.c.l.b16 %v4510
    %v5570 = vunpack.c.h.b16 %v4510
    %v5571 = vunpack.c.l.b16 %v4511
    %v5572 = vunpack.c.h.b16 %v4511
    %v5573 = vunpack.c.l.b16 %v4512
    %v5574 = vunpack.c.h.b16 %v4512
    %v5575 = vunpack.c.l.b16 %v4513
    %v5576 = vunpack.c.h.b16 %v4513
    %v5577 = vunpack.c.l.b16 %v4514
    %v5578 = vunpack.c.h.b16 %v4514
    %v5579 = vunpack.c.l.b16 %v4515
    %v5580 = vunpack.c.h.b16 %v4515
    %v5581 = vunpack.c.l.b16 %v4516
    %v5582 = vunpack.c.h.b16 %v4516
    %v5583 = vunpack.c.l.b16 %v4517
    %v5584 = vunpack.c.h.b16 %v4517
    %v5585 = vunpack.c.l.b16 %v4518
    %v5586 = vunpack.c.h.b16 %v4518
    %v5587 = vunpack.c.l.b16 %v4519
    %v5588 = vunpack.c.h.b16 %v4519
    %v5589 = vunpack.c.l.b16 %v4520
    %v5590 = vunpack.c.h.b16 %v4520
    %v5591 = vunpack.c.l.b16 %v4521
    %v5592 = vunpack.c.h.b16 %v4521
    %v5593 = vunpack.c.l.b16 %v4522
    %v5594 = vunpack.c.h.b16 %v4522
    %v5595 = vunpack.c.l.b16 %v4523
    %v5596 = vunpack.c.h.b16 %v4523
    %v5597 = vunpack.c.l.b16 %v4524
    %v5598 = vunpack.c.h.b16 %v4524
    %v5599 = vunpack.c.l.b16 %v4525
    %v5600 = vunpack.c.h.b16 %v4525
    %v5601 = vunpack.c.l.b16 %v4526
    %v5602 = vunpack.c.h.b16 %v4526
    %v5603 = vunpack.c.l.b16 %v4527
    %v5604 = vunpack.c.h.b16 %v4527
    %v5605 = vunpack.c.l.b16 %v4528
    %v5606 = vunpack.c.h.b16 %v4528
    %v5607 = vunpack.c.l.b16 %v4529
    %v5608 = vunpack.c.h.b16 %v4529
    %v5609 = vunpack.c.l.b16 %v4530
    %v5610 = vunpack.c.h.b16 %v4530
    %v5611 = vunpack.c.l.b16 %v4531
    %v5612 = vunpack.c.h.b16 %v4531
    %v5613 = vunpack.c.l.b16 %v4532
    %v5614 = vunpack.c.h.b16 %v4532
    %v5615 = vunpack.c.l.b16 %v4533
    %v5616 = vunpack.c.h.b16 %v4533
    %v5617 = vunpack.c.l.b16 %v4534
    %v5618 = vunpack.c.h.b16 %v4534
    %v5619 = vunpack.c.l.b16 %v4535
    %v5620 = vunpack.c.h.b16 %v4535
    %v5621 = vunpack.c.l.b16 %v4536
    %v5622 = vunpack.c.h.b16 %v4536
    %v5623 = vunpack.c.l.b16 %v4537
    %v5624 = vunpack.c.h.b16 %v4537
    %v5625 = vunpack.c.l.b16 %v4538
    %v5626 = vunpack.c.h.b16 %v4538
    %v5627 = vunpack.c.l.b16 %v4539
    %v5628 = vunpack.c.h.b16 %v4539
    %v5629 = vunpack.c.l.b16 %v4540
    %v5630 = vunpack.c.h.b16 %v4540
    %v5631 = vunpack.c.l.b16 %v4541
    %v5632 = vunpack.c.h.b16 %v4541
    %v5633 = vunpack.c.l.b16 %v4542
    %v5634 = vunpack.c.h.b16 %v4542
    %v5635 = vunpack.c.l.b16 %v4543
    %v5636 = vunpack.c.h.b16 %v4543
    %v5637 = vunpack.c.l.b16 %v4544
    %v5638 = vunpack.c.h.b16 %v4544
    %v5639 = vunpack.c.l.b16 %v4545
    %v5640 = vunpack.c.h.b16 %v4545
    %v5641 = vunpack.c.l.b16 %v4546
    %v5642 = vunpack.c.h.b16 %v4546
    %v5643 = vunpack.c.l.b16 %v4547
    %v5644 = vunpack.c.h.b16 %v4547
    %v5645 = vunpack.c.l.b16 %v4548
    %v5646 = vunpack.c.h.b16 %v4548
    %v5647 = vunpack.c.l.b16 %v4549
    %v5648 = vunpack.c.h.b16 %v4549
    %v5649 = vunpack.c.l.b16 %v4550
    %v5650 = vunpack.c.h.b16 %v4550
    %v5651 = vunpack.c.l.b16 %v4551
    %v5652 = vunpack.c.h.b16 %v4551
    %v5653 = vunpack.c.l.b16 %v4552
    %v5654 = vunpack.c.h.b16 %v4552
    %v5655 = vunpack.c.l.b16 %v4553
    %v5656 = vunpack.c.h.b16 %v4553
    %v5657 = vunpack.c.l.b16 %v4554
    %v5658 = vunpack.c.h.b16 %v4554
    %v5659 = vunpack.c.l.b16 %v4555
    %v5660 = vunpack.c.h.b16 %v4555
    %v5661 = vunpack.c.l.b16 %v4556
    %v5662 = vunpack.c.h.b16 %v4556
    %v5663 = vunpack.c.l.b16 %v4557
    %v5664 = vunpack.c.h.b16 %v4557
    %v5665 = vunpack.c.l.b16 %v4558
    %v5666 = vunpack.c.h.b16 %v4558
    %v5667 = vunpack.c.l.b16 %v4559
    %v5668 = vunpack.c.h.b16 %v4559
    %v5669 = vunpack.c.l.b16 %v4560
    %v5670 = vunpack.c.h.b16 %v4560
    %v5671 = vunpack.c.l.b16 %v4561
    %v5672 = vunpack.c.h.b16 %v4561
    %v5673 = vunpack.c.l.b16 %v4562
    %v5674 = vunpack.c.h.b16 %v4562
    %v5675 = vunpack.c.l.b16 %v4563
    %v5676 = vunpack.c.h.b16 %v4563
    %v5677 = vunpack.c.l.b16 %v4564
    %v5678 = vunpack.c.h.b16 %v4564
    %v5679 = vunpack.c.l.b16 %v4565
    %v5680 = vunpack.c.h.b16 %v4565
    %v5681 = vunpack.c.l.b16 %v4566
    %v5682 = vunpack.c.h.b16 %v4566
    %v5683 = vunpack.c.l.b16 %v4567
    %v5684 = vunpack.c.h.b16 %v4567
    %v5685 = vunpack.c.l.b16 %v4568
    %v5686 = vunpack.c.h.b16 %v4568
    %v5687 = vunpack.c.l.b16 %v4569
    %v5688 = vunpack.c.h.b16 %v4569
    %v5689 = vunpack.c.l.b16 %v4570
    %v5690 = vunpack.c.h.b16 %v4570
    %v5691 = vunpack.c.l.b16 %v4571
    %v5692 = vunpack.c.h.b16 %v4571
    %v5693 = vunpack.c.l.b16 %v4572
    %v5694 = vunpack.c.h.b16 %v4572
    %v5695 = vunpack.c.l.b16 %v4573
    %v5696 = vunpack.c.h.b16 %v4573
    %v5697 = vunpack.c.l.b16 %v4574
    %v5698 = vunpack.c.h.b16 %v4574
    %v5699 = vunpack.c.l.b16 %v4575
    %v5700 = vunpack.c.h.b16 %v4575
    %v5701 = vunpack.c.l.b16 %v4576
    %v5702 = vunpack.c.h.b16 %v4576
    %v5703 = vunpack.c.l.b16 %v4577
    %v5704 = vunpack.c.h.b16 %v4577
    %v5705 = vunpack.c.l.b16 %v4578
    %v5706 = vunpack.c.h.b16 %v4578
    %v5707 = vunpack.c.l.b16 %v4579
    %v5708 = vunpack.c.h.b16 %v4579
    %v5709 = vunpack.c.l.b16 %v4580
    %v5710 = vunpack.c.h.b16 %v4580
    %v5711 = vunpack.c.l.b16 %v4581
    %v5712 = vunpack.c.h.b16 %v4581
    %v5713 = vunpack.c.l.b16 %v4582
    %v5714 = vunpack.c.h.b16 %v4582
    %v5715 = vunpack.c.l.b16 %v4583
    %v5716 = vunpack.c.h.b16 %v4583
    %v5717 = vunpack.c.l.b16 %v4584
    %v5718 = vunpack.c.h.b16 %v4584
    %v5719 = vunpack.c.l.b16 %v4585
    %v5720 = vunpack.c.h.b16 %v4585
    %v5721 = vunpack.c.l.b16 %v4586
    %v5722 = vunpack.c.h.b16 %v4586
    %v5723 = vunpack.c.l.b16 %v4587
    %v5724 = vunpack.c.h.b16 %v4587
    %v5725 = vunpack.c.l.b16 %v4588
    %v5726 = vunpack.c.h.b16 %v4588
    %v5727 = vunpack.c.l.b16 %v4589
    %v5728 = vunpack.c.h.b16 %v4589
    %v5729 = vunpack.c.l.b16 %v4590
    %v5730 = vunpack.c.h.b16 %v4590
    %v5731 = vunpack.c.l.b16 %v4591
    %v5732 = vunpack.c.h.b16 %v4591
    %v5733 = vunpack.c.l.b16 %v4592
    %v5734 = vunpack.c.h.b16 %v4592
    %v5735 = vunpack.c.l.b16 %v4593
    %v5736 = vunpack.c.h.b16 %v4593
    %v5737 = vunpack.c.l.b16 %v4594
    %v5738 = vunpack.c.h.b16 %v4594
    %v5739 = vunpack.c.l.b16 %v4595
    %v5740 = vunpack.c.h.b16 %v4595
    %v5741 = vunpack.c.l.b16 %v4596
    %v5742 = vunpack.c.h.b16 %v4596
    %v5743 = vunpack.c.l.b16 %v4597
    %v5744 = vunpack.c.h.b16 %v4597
    %v5745 = vunpack.c.l.b16 %v4598
    %v5746 = vunpack.c.h.b16 %v4598
    %v5747 = vunpack.c.l.b16 %v4599
    %v5748 = vunpack.c.h.b16 %v4599
    %v5749 = vunpack.c.l.b16 %v4600
    %v5750 = vunpack.c.h.b16 %v4600
    %v5751 = vunpack.c.l.b16 %v4601
    %v5752 = vunpack.c.h.b16 %v4601
    %v5753 = vunpack.c.l.b16 %v4602
    %v5754 = vunpack.c.h.b16 %v4602
    %v5755 = vunpack.c.l.b16 %v4603
    %v5756 = vunpack.c.h.b16 %v4603
    %v5757 = vunpack.c.l.b16 %v4604
    %v5758 = vunpack.c.h.b16 %v4604
    %v5759 = vunpack.c.l.b16 %v4605
    %v5760 = vunpack.c.h.b16 %v4605
    %v5761 = vunpack.c.l.b16 %v4606
    %v5762 = vunpack.c.h.b16 %v4606
    %v5763 = vunpack.c.l.b16 %v4607
    %v5764 = vunpack.c.h.b16 %v4607
    %v5765 = vunpack.c.l.b16 %v4608
    %v5766 = vunpack.c.h.b16 %v4608
    %v5767 = vunpack.c.l.b16 %v4609
    %v5768 = vunpack.c.h.b16 %v4609
    %v5769 = vunpack.c.l.b16 %v4610
    %v5770 = vunpack.c.h.b16 %v4610
    %v5771 = vunpack.c.l.b16 %v4611
    %v5772 = vunpack.c.h.b16 %v4611
    %v5773 = vunpack.c.l.b16 %v4612
    %v5774 = vunpack.c.h.b16 %v4612
    %v5775 = vunpack.c.l.b16 %v4613
    %v5776 = vunpack.c.h.b16 %v4613
    %v5777 = vunpack.c.l.b16 %v4614
    %v5778 = vunpack.c.h.b16 %v4614
    %v5779 = vunpack.c.l.b16 %v4615
    %v5780 = vunpack.c.h.b16 %v4615
    %v5781 = vunpack.c.l.b16 %v4616
    %v5782 = vunpack.c.h.b16 %v4616
    %v5783 = vunpack.c.l.b16 %v4617
    %v5784 = vunpack.c.h.b16 %v4617
    %v5785 = vunpack.c.l.b16 %v4618
    %v5786 = vunpack.c.h.b16 %v4618
    %v5787 = vunpack.c.l.b16 %v4619
    %v5788 = vunpack.c.h.b16 %v4619
    %v5789 = vunpack.c.l.b16 %v4620
    %v5790 = vunpack.c.h.b16 %v4620
    %v5791 = vunpack.c.l.b16 %v4621
    %v5792 = vunpack.c.h.b16 %v4621
    %v5793 = vunpack.c.l.b16 %v4622
    %v5794 = vunpack.c.h.b16 %v4622
    %v5795 = vunpack.c.l.b16 %v4623
    %v5796 = vunpack.c.h.b16 %v4623
    %v5797 = vunpack.c.l.b16 %v4624
    %v5798 = vunpack.c.h.b16 %v4624
    %v5799 = vunpack.c.l.b16 %v4625
    %v5800 = vunpack.c.h.b16 %v4625
    %v5801 = vunpack.c.l.b16 %v4626
    %v5802 = vunpack.c.h.b16 %v4626
    %v5803 = vunpack.c.l.b16 %v4627
    %v5804 = vunpack.c.h.b16 %v4627
    %v5805 = vunpack.c.l.b16 %v4628
    %v5806 = vunpack.c.h.b16 %v4628
    %v5807 = vunpack.c.l.b16 %v4629
    %v5808 = vunpack.c.h.b16 %v4629
    %v5809 = vunpack.c.l.b16 %v4630
    %v5810 = vunpack.c.h.b16 %v4630
    %v5811 = vunpack.c.l.b16 %v4631
    %v5812 = vunpack.c.h.b16 %v4631
    %v5813 = vunpack.c.l.b16 %v4632
    %v5814 = vunpack.c.h.b16 %v4632
    %v5815 = vunpack.c.l.b16 %v4633
    %v5816 = vunpack.c.h.b16 %v4633
    %v5817 = vunpack.c.l.b16 %v4634
    %v5818 = vunpack.c.h.b16 %v4634
    %v5819 = vunpack.c.l.b16 %v4635
    %v5820 = vunpack.c.h.b16 %v4635
    %v5821 = vunpack.c.l.b16 %v4636
    %v5822 = vunpack.c.h.b16 %v4636
    %v5823 = vunpack.c.l.b16 %v4637
    %v5824 = vunpack.c.h.b16 %v4637
    %v5825 = vunpack.c.l.b16 %v4638
    %v5826 = vunpack.c.h.b16 %v4638
    %v5827 = vunpack.c.l.b16 %v4639
    %v5828 = vunpack.c.h.b16 %v4639
    %v5829 = vunpack.c.l.b16 %v4640
    %v5830 = vunpack.c.h.b16 %v4640
    %v5831 = vunpack.c.l.b16 %v4641
    %v5832 = vunpack.c.h.b16 %v4641
    %v5833 = vunpack.c.l.b16 %v4642
    %v5834 = vunpack.c.h.b16 %v4642
    %v5835 = vunpack.c.l.b16 %v4643
    %v5836 = vunpack.c.h.b16 %v4643
    %v5837 = vunpack.c.l.b16 %v4644
    %v5838 = vunpack.c.h.b16 %v4644
    %v5839 = vunpack.c.l.b16 %v4645
    %v5840 = vunpack.c.h.b16 %v4645
    %v5841 = vunpack.c.l.b16 %v4646
    %v5842 = vunpack.c.h.b16 %v4646
    %v5843 = vunpack.c.l.b16 %v4647
    %v5844 = vunpack.c.h.b16 %v4647
    %v5845 = vunpack.c.l.b16 %v4648
    %v5846 = vunpack.c.h.b16 %v4648
    %v5847 = vunpack.c.l.b16 %v4649
    %v5848 = vunpack.c.h.b16 %v4649
    %v5849 = vunpack.c.l.b16 %v4650
    %v5850 = vunpack.c.h.b16 %v4650
    %v5851 = vunpack.c.l.b16 %v4651
    %v5852 = vunpack.c.h.b16 %v4651
    %v5853 = vunpack.c.l.b16 %v4652
    %v5854 = vunpack.c.h.b16 %v4652
    %v5855 = vunpack.c.l.b16 %v4653
    %v5856 = vunpack.c.h.b16 %v4653
    %v5857 = vunpack.c.l.b16 %v4654
    %v5858 = vunpack.c.h.b16 %v4654
    %v5859 = vunpack.c.l.b16 %v4655
    %v5860 = vunpack.c.h.b16 %v4655
    %v5861 = vunpack.c.l.b16 %v4656
    %v5862 = vunpack.c.h.b16 %v4656
    %v5863 = vunpack.c.l.b16 %v4657
    %v5864 = vunpack.c.h.b16 %v4657
    %v5865 = vunpack.c.l.b16 %v4658
    %v5866 = vunpack.c.h.b16 %v4658
    %v5867 = vunpack.c.l.b16 %v4659
    %v5868 = vunpack.c.h.b16 %v4659
    %v5869 = vunpack.c.l.b16 %v4660
    %v5870 = vunpack.c.h.b16 %v4660
    %v5871 = vunpack.c.l.b16 %v4661
    %v5872 = vunpack.c.h.b16 %v4661
    %v5873 = vunpack.c.l.b16 %v4662
    %v5874 = vunpack.c.h.b16 %v4662
    %v5875 = vunpack.c.l.b16 %v4663
    %v5876 = vunpack.c.h.b16 %v4663
    %v5877 = vunpack.c.l.b16 %v4664
    %v5878 = vunpack.c.h.b16 %v4664
    %v5879 = vunpack.c.l.b16 %v4665
    %v5880 = vunpack.c.h.b16 %v4665
    %v5881 = vunpack.c.l.b16 %v4666
    %v5882 = vunpack.c.h.b16 %v4666
    %v5883 = vunpack.c.l.b16 %v4667
    %v5884 = vunpack.c.h.b16 %v4667
    %v5885 = vunpack.c.l.b16 %v4668
    %v5886 = vunpack.c.h.b16 %v4668
    %v5887 = vunpack.c.l.b16 %v4669
    %v5888 = vunpack.c.h.b16 %v4669
    %v5889 = vunpack.c.l.b16 %v4670
    %v5890 = vunpack.c.h.b16 %v4670
    %v5891 = vunpack.c.l.b16 %v4671
    %v5892 = vunpack.c.h.b16 %v4671
    %v5893 = vunpack.c.l.b16 %v4672
    %v5894 = vunpack.c.h.b16 %v4672
    %v5895 = vunpack.c.l.b16 %v4673
    %v5896 = vunpack.c.h.b16 %v4673
    %v5897 = vunpack.c.l.b16 %v4674
    %v5898 = vunpack.c.h.b16 %v4674
    %v5899 = vunpack.c.l.b16 %v4675
    %v5900 = vunpack.c.h.b16 %v4675
    %v5901 = vunpack.c.l.b16 %v4676
    %v5902 = vunpack.c.h.b16 %v4676
    %v5903 = vunpack.c.l.b16 %v4677
    %v5904 = vunpack.c.h.b16 %v4677
    %v5905 = vunpack.c.l.b16 %v4678
    %v5906 = vunpack.c.h.b16 %v4678
    %v5907 = vunpack.c.l.b16 %v4679
    %v5908 = vunpack.c.h.b16 %v4679
    %v5909 = vunpack.c.l.b16 %v4680
    %v5910 = vunpack.c.h.b16 %v4680
    %v5911 = vunpack.c.l.b16 %v4681
    %v5912 = vunpack.c.h.b16 %v4681
    %v5913 = vunpack.c.l.b16 %v4682
    %v5914 = vunpack.c.h.b16 %v4682
    %v5915 = vunpack.c.l.b16 %v4683
    %v5916 = vunpack.c.h.b16 %v4683
    %v5917 = vunpack.c.l.b16 %v4684
    %v5918 = vunpack.c.h.b16 %v4684
    %v5919 = vunpack.c.l.b16 %v4685
    %v5920 = vunpack.c.h.b16 %v4685
    %v5921 = vunpack.c.l.b16 %v4686
    %v5922 = vunpack.c.h.b16 %v4686
    %v5923 = vunpack.c.l.b16 %v4687
    %v5924 = vunpack.c.h.b16 %v4687
    %v5925 = vunpack.c.l.b16 %v4688
    %v5926 = vunpack.c.h.b16 %v4688
    %v5927 = vunpack.c.l.b16 %v4689
    %v5928 = vunpack.c.h.b16 %v4689
    %v5929 = vunpack.c.l.b16 %v4690
    %v5930 = vunpack.c.h.b16 %v4690
    %v5931 = vunpack.c.l.b16 %v4691
    %v5932 = vunpack.c.h.b16 %v4691
    %v5933 = vunpack.c.l.b16 %v4692
    %v5934 = vunpack.c.h.b16 %v4692
    %v5935 = vunpack.c.l.b16 %v4693
    %v5936 = vunpack.c.h.b16 %v4693
    %v5937 = vunpack.c.l.b16 %v4694
    %v5938 = vunpack.c.h.b16 %v4694
    %v5939 = vunpack.c.l.b16 %v4695
    %v5940 = vunpack.c.h.b16 %v4695
    %v5941 = vunpack.c.l.b16 %v4696
    %v5942 = vunpack.c.h.b16 %v4696
    %v5943 = vunpack.c.l.b16 %v4697
    %v5944 = vunpack.c.h.b16 %v4697
    %v5945 = vunpack.c.l.b16 %v4698
    %v5946 = vunpack.c.h.b16 %v4698
    %v5947 = vunpack.c.l.b16 %v4699
    %v5948 = vunpack.c.h.b16 %v4699
    %v5949 = vunpack.c.l.b16 %v4700
    %v5950 = vunpack.c.h.b16 %v4700
    %v5951 = vunpack.c.l.b16 %v4701
    %v5952 = vunpack.c.h.b16 %v4701
    %v5953 = vunpack.c.l.b16 %v4702
    %v5954 = vunpack.c.h.b16 %v4702
    %v5955 = vunpack.c.l.b16 %v4703
    %v5956 = vunpack.c.h.b16 %v4703
    %v5957 = vunpack.c.l.b16 %v4704
    %v5958 = vunpack.c.h.b16 %v4704
    %v5959 = vunpack.c.l.b16 %v4705
    %v5960 = vunpack.c.h.b16 %v4705
    %v5961 = vunpack.c.l.b16 %v4706
    %v5962 = vunpack.c.h.b16 %v4706
    %v5963 = vunpack.c.l.b16 %v4707
    %v5964 = vunpack.c.h.b16 %v4707
    %v5965 = vunpack.c.l.b16 %v4708
    %v5966 = vunpack.c.h.b16 %v4708
    %v5967 = vunpack.c.l.b16 %v4709
    %v5968 = vunpack.c.h.b16 %v4709
    %v5969 = vunpack.c.l.b16 %v4710
    %v5970 = vunpack.c.h.b16 %v4710
    %v5971 = vunpack.c.l.b16 %v4711
    %v5972 = vunpack.c.h.b16 %v4711
    %v5973 = vunpack.c.l.b16 %v4712
    %v5974 = vunpack.c.h.b16 %v4712
    %v5975 = vunpack.c.l.b16 %v4713
    %v5976 = vunpack.c.h.b16 %v4713
    %v5977 = vunpack.c.l.b16 %v4714
    %v5978 = vunpack.c.h.b16 %v4714
    %v5979 = vunpack.c.l.b16 %v4715
    %v5980 = vunpack.c.h.b16 %v4715
    %v5981 = vunpack.c.l.b16 %v4716
    %v5982 = vunpack.c.h.b16 %v4716
    %v5983 = vunpack.c.l.b16 %v4717
    %v5984 = vunpack.c.h.b16 %v4717
    %v5985 = vunpack.c.l.b16 %v4718
    %v5986 = vunpack.c.h.b16 %v4718
    %v5987 = vunpack.c.l.b16 %v4719
    %v5988 = vunpack.c.h.b16 %v4719
    %v5989 = vunpack.c.l.b16 %v4720
    %v5990 = vunpack.c.h.b16 %v4720
    %v5991 = vunpack.c.l.b16 %v4721
    %v5992 = vunpack.c.h.b16 %v4721
    %v5993 = vunpack.c.l.b16 %v4722
    %v5994 = vunpack.c.h.b16 %v4722
    %v5995 = vunpack.c.l.b16 %v4723
    %v5996 = vunpack.c.h.b16 %v4723
    %v5997 = vunpack.c.l.b16 %v4724
    %v5998 = vunpack.c.h.b16 %v4724
    %v5999 = vunpack.c.l.b16 %v4725
    %v6000 = vunpack.c.h.b16 %v4725
    %v6001 = vunpack.c.l.b16 %v4726
    %v6002 = vunpack.c.h.b16 %v4726
    %v6003 = vunpack.c.l.b16 %v4727
    %v6004 = vunpack.c.h.b16 %v4727
    %v6005 = vunpack.c.l.b16 %v4728
    %v6006 = vunpack.c.h.b16 %v4728
    %v6007 = vunpack.c.l.b16 %v4729
    %v6008 = vunpack.c.h.b16 %v4729
    %v6009 = vunpack.c.l.b16 %v4730
    %v6010 = vunpack.c.h.b16 %v4730
    %v6011 = vunpack.c.l.b16 %v4731
    %v6012 = vunpack.c.h.b16 %v4731
    %v6013 = vunpack.c.l.b16 %v4732
    %v6014 = vunpack.c.h.b16 %v4732
    %v6015 = vunpack.c.l.b16 %v4733
    %v6016 = vunpack.c.h.b16 %v4733
    %v6017 = vunpack.c.l.b16 %v4734
    %v6018 = vunpack.c.h.b16 %v4734
    %v6019 = vunpack.c.l.b16 %v4735
    %v6020 = vunpack.c.h.b16 %v4735
    %v6021 = vunpack.c.l.b16 %v4736
    %v6022 = vunpack.c.h.b16 %v4736
    %v6023 = vunpack.c.l.b16 %v4737
    %v6024 = vunpack.c.h.b16 %v4737
    %v6025 = vunpack.c.l.b16 %v4738
    %v6026 = vunpack.c.h.b16 %v4738
    %v6027 = vunpack.c.l.b16 %v4739
    %v6028 = vunpack.c.h.b16 %v4739
    %v6029 = vunpack.c.l.b16 %v4740
    %v6030 = vunpack.c.h.b16 %v4740
    %v6031 = vunpack.c.l.b16 %v4741
    %v6032 = vunpack.c.h.b16 %v4741
    %v6033 = vunpack.c.l.b16 %v4742
    %v6034 = vunpack.c.h.b16 %v4742
    %v6035 = vunpack.c.l.b16 %v4743
    %v6036 = vunpack.c.h.b16 %v4743
    %v6037 = vunpack.c.l.b16 %v4744
    %v6038 = vunpack.c.h.b16 %v4744
    %v6039 = vunpack.c.l.b16 %v4745
    %v6040 = vunpack.c.h.b16 %v4745
    %v6041 = vunpack.c.l.b16 %v4746
    %v6042 = vunpack.c.h.b16 %v4746
    %v6043 = vunpack.c.l.b16 %v4747
    %v6044 = vunpack.c.h.b16 %v4747
    %v6045 = vunpack.c.l.b16 %v4748
    %v6046 = vunpack.c.h.b16 %v4748
    %v6047 = vunpack.c.l.b16 %v4749
    %v6048 = vunpack.c.h.b16 %v4749
    %v6049 = vunpack.c.l.b16 %v4750
    %v6050 = vunpack.c.h.b16 %v4750
    %v6051 = vunpack.c.l.b16 %v4751
    %v6052 = vunpack.c.h.b16 %v4751
    %v6053 = vunpack.c.l.b16 %v4752
    %v6054 = vunpack.c.h.b16 %v4752
    %v6055 = vunpack.c.l.b16 %v4753
    %v6056 = vunpack.c.h.b16 %v4753
    %v6057 = vunpack.c.l.b16 %v4754
    %v6058 = vunpack.c.h.b16 %v4754
    %v6059 = vunpack.c.l.b16 %v4755
    %v6060 = vunpack.c.h.b16 %v4755
    %v6061 = vunpack.c.l.b16 %v4756
    %v6062 = vunpack.c.h.b16 %v4756
    %v6063 = vunpack.c.l.b16 %v4757
    %v6064 = vunpack.c.h.b16 %v4757
    %v6065 = vunpack.c.l.b16 %v4758
    %v6066 = vunpack.c.h.b16 %v4758
    %v6067 = vunpack.c.l.b16 %v4759
    %v6068 = vunpack.c.h.b16 %v4759
    %v6069 = vunpack.c.l.b16 %v4760
    %v6070 = vunpack.c.h.b16 %v4760
    %v6071 = vunpack.c.l.b16 %v4761
    %v6072 = vunpack.c.h.b16 %v4761
    %v6073 = vunpack.c.l.b16 %v4762
    %v6074 = vunpack.c.h.b16 %v4762
    %v6075 = vunpack.c.l.b16 %v4763
    %v6076 = vunpack.c.h.b16 %v4763
    %v6077 = vunpack.c.l.b16 %v4764
    %v6078 = vunpack.c.h.b16 %v4764
    %v6079 = vunpack.c.l.b16 %v4765
    %v6080 = vunpack.c.h.b16 %v4765
    %v6081 = vunpack.c.l.b16 %v4766
    %v6082 = vunpack.c.h.b16 %v4766
    %v6083 = vunpack.c.l.b16 %v4767
    %v6084 = vunpack.c.h.b16 %v4767
    %v6085 = vunpack.c.l.b16 %v4768
    %v6086 = vunpack.c.h.b16 %v4768
    %v6087 = vunpack.c.l.b16 %v4769
    %v6088 = vunpack.c.h.b16 %v4769
    %v6089 = vunpack.c.l.b16 %v4770
    %v6090 = vunpack.c.h.b16 %v4770
    %v6091 = vunpack.c.l.b16 %v4771
    %v6092 = vunpack.c.h.b16 %v4771
    %v6093 = vunpack.c.l.b16 %v4772
    %v6094 = vunpack.c.h.b16 %v4772
    %v6095 = vunpack.c.l.b16 %v4773
    %v6096 = vunpack.c.h.b16 %v4773
    %v6097 = vunpack.c.l.b16 %v4774
    %v6098 = vunpack.c.h.b16 %v4774
    %v6099 = vunpack.c.l.b16 %v4775
    %v6100 = vunpack.c.h.b16 %v4775
    %v6101 = vunpack.c.l.b16 %v4776
    %v6102 = vunpack.c.h.b16 %v4776
    %v6103 = vunpack.c.l.b16 %v4777
    %v6104 = vunpack.c.h.b16 %v4777
    %v6105 = vunpack.c.l.b16 %v4778
    %v6106 = vunpack.c.h.b16 %v4778
    %v6107 = vunpack.c.l.b16 %v4779
    %v6108 = vunpack.c.h.b16 %v4779
    %v6109 = vunpack.c.l.b16 %v4780
    %v6110 = vunpack.c.h.b16 %v4780
    %v6111 = vunpack.c.l.b16 %v4781
    %v6112 = vunpack.c.h.b16 %v4781
    %v6113 = vunpack.c.l.b16 %v4782
    %v6114 = vunpack.c.h.b16 %v4782
    %v6115 = vunpack.c.l.b16 %v4783
    %v6116 = vunpack.c.h.b16 %v4783
    %v6117 = vunpack.c.l.b16 %v4784
    %v6118 = vunpack.c.h.b16 %v4784
    %v6119 = vunpack.c.l.b16 %v4785
    %v6120 = vunpack.c.h.b16 %v4785
    %v6121 = vunpack.c.l.b16 %v4786
    %v6122 = vunpack.c.h.b16 %v4786
    %v6123 = vunpack.c.l.b16 %v4787
    %v6124 = vunpack.c.h.b16 %v4787
    %v6125 = vunpack.c.l.b16 %v4788
    %v6126 = vunpack.c.h.b16 %v4788
    %v6127 = vunpack.c.l.b16 %v4789
    %v6128 = vunpack.c.h.b16 %v4789
    %v6129 = vunpack.c.l.b16 %v4790
    %v6130 = vunpack.c.h.b16 %v4790
    %v6131 = vunpack.c.l.b16 %v4791
    %v6132 = vunpack.c.h.b16 %v4791
    %v6133 = vunpack.c.l.b16 %v4792
    %v6134 = vunpack.c.h.b16 %v4792
    %v6135 = vunpack.c.l.b16 %v4793
    %v6136 = vunpack.c.h.b16 %v4793
    %v6137 = vunpack.c.l.b16 %v4794
    %v6138 = vunpack.c.h.b16 %v4794
    %v6139 = vunpack.c.l.b16 %v4795
    %v6140 = vunpack.c.h.b16 %v4795
    %v6141 = vunpack.c.l.b16 %v4796
    %v6142 = vunpack.c.h.b16 %v4796
    %v6143 = vunpack.c.l.b16 %v4797
    %v6144 = vunpack.c.h.b16 %v4797
    %v6145 = vunpack.c.l.b16 %v4798
    %v6146 = vunpack.c.h.b16 %v4798
    %v6147 = vunpack.c.l.b16 %v4799
    %v6148 = vunpack.c.h.b16 %v4799
    %v6149 = vunpack.c.l.b16 %v4800
    %v6150 = vunpack.c.h.b16 %v4800
    %v6151 = vunpack.c.l.b16 %v4801
    %v6152 = vunpack.c.h.b16 %v4801
    %v6153 = vunpack.c.l.b16 %v4802
    %v6154 = vunpack.c.h.b16 %v4802
    %v6155 = vunpack.c.l.b16 %v4803
    %v6156 = vunpack.c.h.b16 %v4803
    %v6157 = vunpack.c.l.b16 %v4804
    %v6158 = vunpack.c.h.b16 %v4804
    %v6159 = vunpack.c.l.b16 %v4805
    %v6160 = vunpack.c.h.b16 %v4805
    %v6161 = vunpack.c.l.b16 %v4806
    %v6162 = vunpack.c.h.b16 %v4806
    %v6163 = vunpack.c.l.b16 %v4807
    %v6164 = vunpack.c.h.b16 %v4807
    %v6165 = vunpack.c.l.b16 %v4808
    %v6166 = vunpack.c.h.b16 %v4808
    %v6167 = vunpack.c.l.b16 %v4809
    %v6168 = vunpack.c.h.b16 %v4809
    %v6169 = vunpack.c.l.b16 %v4810
    %v6170 = vunpack.c.h.b16 %v4810
    %v6171 = vunpack.c.l.b16 %v4811
    %v6172 = vunpack.c.h.b16 %v4811
    %v6173 = vunpack.c.l.b16 %v4812
    %v6174 = vunpack.c.h.b16 %v4812
    %v6175 = vunpack.c.l.b16 %v4813
    %v6176 = vunpack.c.h.b16 %v4813
    %v6177 = vunpack.c.l.b16 %v4814
    %v6178 = vunpack.c.h.b16 %v4814
    %v6179 = vunpack.c.l.b16 %v4815
    %v6180 = vunpack.c.h.b16 %v4815
    %v6181 = vunpack.c.l.b16 %v4816
    %v6182 = vunpack.c.h.b16 %v4816
    %v6183 = vunpack.c.l.b16 %v4817
    %v6184 = vunpack.c.h.b16 %v4817
    %v6185 = vunpack.c.l.b16 %v4818
    %v6186 = vunpack.c.h.b16 %v4818
    %v6187 = vunpack.c.l.b16 %v4819
    %v6188 = vunpack.c.h.b16 %v4819
    %v6189 = vunpack.c.l.b16 %v4820
    %v6190 = vunpack.c.h.b16 %v4820
    %v6191 = vunpack.c.l.b16 %v4821
    %v6192 = vunpack.c.h.b16 %v4821
    %v6193 = vunpack.c.l.b16 %v4822
    %v6194 = vunpack.c.h.b16 %v4822
    %v6195 = vunpack.c.l.b16 %v4823
    %v6196 = vunpack.c.h.b16 %v4823
    %v6197 = vunpack.c.l.b16 %v4824
    %v6198 = vunpack.c.h.b16 %v4824
    %v6199 = vunpack.c.l.b16 %v4825
    %v6200 = vunpack.c.h.b16 %v4825
    %v6201 = vunpack.c.l.b16 %v4826
    %v6202 = vunpack.c.h.b16 %v4826
    %v6203 = vunpack.c.l.b16 %v4827
    %v6204 = vunpack.c.h.b16 %v4827
    %v6205 = vunpack.c.l.b16 %v4828
    %v6206 = vunpack.c.h.b16 %v4828
    %v6207 = vunpack.c.l.b16 %v4829
    %v6208 = vunpack.c.h.b16 %v4829
    %v6209 = vunpack.c.l.b16 %v4830
    %v6210 = vunpack.c.h.b16 %v4830
    %v6211 = vunpack.c.l.b16 %v4831
    %v6212 = vunpack.c.h.b16 %v4831
    %v6213 = vunpack.c.l.b16 %v4832
    %v6214 = vunpack.c.h.b16 %v4832
    %v6215 = vunpack.c.l.b16 %v4833
    %v6216 = vunpack.c.h.b16 %v4833
    %v6217 = vunpack.c.l.b16 %v4834
    %v6218 = vunpack.c.h.b16 %v4834
    %v6219 = vunpack.c.l.b16 %v4835
    %v6220 = vunpack.c.h.b16 %v4835
    %v6221 = vunpack.c.l.b16 %v4836
    %v6222 = vunpack.c.h.b16 %v4836
    %v6223 = vunpack.c.l.b16 %v4837
    %v6224 = vunpack.c.h.b16 %v4837
    %v6225 = vunpack.c.l.b16 %v4838
    %v6226 = vunpack.c.h.b16 %v4838
    %v6227 = vunpack.c.l.b16 %v4839
    %v6228 = vunpack.c.h.b16 %v4839
    %v6229 = vunpack.c.l.b16 %v4840
    %v6230 = vunpack.c.h.b16 %v4840
    %v6231 = vunpack.c.l.b16 %v4841
    %v6232 = vunpack.c.h.b16 %v4841
    %v6233 = vunpack.c.l.b16 %v4842
    %v6234 = vunpack.c.h.b16 %v4842
    %v6235 = vunpack.c.l.b16 %v4843
    %v6236 = vunpack.c.h.b16 %v4843
    %v6237 = vunpack.c.l.b16 %v4844
    %v6238 = vunpack.c.h.b16 %v4844
    %v6239 = vunpack.c.l.b16 %v4845
    %v6240 = vunpack.c.h.b16 %v4845
    %v6241 = vunpack.c.l.b16 %v4846
    %v6242 = vunpack.c.h.b16 %v4846
    %v6243 = vunpack.c.l.b16 %v4847
    %v6244 = vunpack.c.h.b16 %v4847
    %v6245 = vunpack.c.l.b16 %v4848
    %v6246 = vunpack.c.h.b16 %v4848
    %v6247 = vunpack.c.l.b16 %v4849
    %v6248 = vunpack.c.h.b16 %v4849
    %v6249 = vunpack.c.l.b16 %v4850
    %v6250 = vunpack.c.h.b16 %v4850
    %v6251 = vunpack.c.l.b16 %v4851
    %v6252 = vunpack.c.h.b16 %v4851
    %v6253 = vunpack.c.l.b16 %v4852
    %v6254 = vunpack.c.h.b16 %v4852
    %v6255 = vunpack.c.l.b16 %v4853
    %v6256 = vunpack.c.h.b16 %v4853
    %v6257 = vunpack.c.l.b16 %v4854
    %v6258 = vunpack.c.h.b16 %v4854
    %v6259 = vunpack.c.l.b16 %v4855
    %v6260 = vunpack.c.h.b16 %v4855
    %v6261 = vunpack.c.l.b16 %v4856
    %v6262 = vunpack.c.h.b16 %v4856
    %v6263 = vunpack.c.l.b16 %v4857
    %v6264 = vunpack.c.h.b16 %v4857
    %v6265 = vunpack.c.l.b16 %v4858
    %v6266 = vunpack.c.h.b16 %v4858
    %v6267 = vunpack.c.l.b16 %v4859
    %v6268 = vunpack.c.h.b16 %v4859
    %v6269 = vunpack.c.l.b16 %v4860
    %v6270 = vunpack.c.h.b16 %v4860
    %v6271 = vunpack.c.l.b16 %v4861
    %v6272 = vunpack.c.h.b16 %v4861
    %v6273 = vunpack.c.l.b16 %v4862
    %v6274 = vunpack.c.h.b16 %v4862
    %v6275 = vunpack.c.l.b16 %v4863
    %v6276 = vunpack.c.h.b16 %v4863
    %v6277 = vunpack.c.l.b16 %v4864
    %v6278 = vunpack.c.h.b16 %v4864
    %v6279 = vunpack.c.l.b16 %v4865
    %v6280 = vunpack.c.h.b16 %v4865
    %v6281 = vunpack.c.l.b16 %v4866
    %v6282 = vunpack.c.h.b16 %v4866
    %v6283 = vunpack.c.l.b16 %v4867
    %v6284 = vunpack.c.h.b16 %v4867
    %v6285 = vunpack.c.l.b16 %v4868
    %v6286 = vunpack.c.h.b16 %v4868
    %v6287 = vunpack.c.l.b16 %v4869
    %v6288 = vunpack.c.h.b16 %v4869
    %v6289 = vunpack.c.l.b16 %v4870
    %v6290 = vunpack.c.h.b16 %v4870
    %v6291 = vunpack.c.l.b16 %v4871
    %v6292 = vunpack.c.h.b16 %v4871
    %v6293 = vunpack.c.l.b16 %v4872
    %v6294 = vunpack.c.h.b16 %v4872
    %v6295 = vunpack.c.l.b16 %v4873
    %v6296 = vunpack.c.h.b16 %v4873
    %v6297 = vunpack.c.l.b16 %v4874
    %v6298 = vunpack.c.h.b16 %v4874
    %v6299 = vunpack.c.l.b16 %v4875
    %v6300 = vunpack.c.h.b16 %v4875
    %v6301 = vunpack.c.l.b16 %v4876
    %v6302 = vunpack.c.h.b16 %v4876
    %v6303 = vunpack.c.l.b16 %v4877
    %v6304 = vunpack.c.h.b16 %v4877
    %v6305 = vunpack.c.l.b16 %v4878
    %v6306 = vunpack.c.h.b16 %v4878
    %v6307 = vunpack.c.l.b16 %v4879
    %v6308 = vunpack.c.h.b16 %v4879
    %v6309 = vunpack.c.l.b16 %v4880
    %v6310 = vunpack.c.h.b16 %v4880
    %v6311 = vunpack.c.l.b16 %v4881
    %v6312 = vunpack.c.h.b16 %v4881
    %v6313 = vunpack.c.l.b16 %v4882
    %v6314 = vunpack.c.h.b16 %v4882
    %v6315 = vunpack.c.l.b16 %v4883
    %v6316 = vunpack.c.h.b16 %v4883
    %v6317 = vunpack.c.l.b16 %v4884
    %v6318 = vunpack.c.h.b16 %v4884
    %v6319 = vunpack.c.l.b16 %v4885
    %v6320 = vunpack.c.h.b16 %v4885
    %v6321 = vunpack.c.l.b16 %v4886
    %v6322 = vunpack.c.h.b16 %v4886
    %v6323 = vunpack.c.l.b16 %v4887
    %v6324 = vunpack.c.h.b16 %v4887
    %v6325 = vunpack.c.l.b16 %v4888
    %v6326 = vunpack.c.h.b16 %v4888
    %v6327 = vunpack.c.l.b16 %v4889
    %v6328 = vunpack.c.h.b16 %v4889
    %v6329 = vunpack.c.l.b16 %v4890
    %v6330 = vunpack.c.h.b16 %v4890
    %v6331 = vunpack.c.l.b16 %v4891
    %v6332 = vunpack.c.h.b16 %v4891
    %v6333 = vunpack.c.l.b16 %v4892
    %v6334 = vunpack.c.h.b16 %v4892
    %v6335 = vunpack.c.l.b16 %v4893
    %v6336 = vunpack.c.h.b16 %v4893
    %v6337 = vunpack.c.l.b16 %v4894
    %v6338 = vunpack.c.h.b16 %v4894
    %v6339 = vunpack.c.l.b16 %v4895
    %v6340 = vunpack.c.h.b16 %v4895
    %v6341 = vunpack.c.l.b16 %v4896
    %v6342 = vunpack.c.h.b16 %v4896
    %v6343 = vunpack.c.l.b16 %v4897
    %v6344 = vunpack.c.h.b16 %v4897
    %v6345 = vunpack.c.l.b16 %v4898
    %v6346 = vunpack.c.h.b16 %v4898
    %v6347 = vunpack.c.l.b16 %v4899
    %v6348 = vunpack.c.h.b16 %v4899
    %v6349 = vunpack.c.l.b16 %v4900
    %v6350 = vunpack.c.h.b16 %v4900
    %v6351 = vunpack.c.l.b16 %v4901
    %v6352 = vunpack.c.h.b16 %v4901
    %v6353 = vunpack.c.l.b16 %v4902
    %v6354 = vunpack.c.h.b16 %v4902
    %v6355 = vunpack.c.l.b16 %v4903
    %v6356 = vunpack.c.h.b16 %v4903
    %v6357 = vunpack.c.l.b16 %v4904
    %v6358 = vunpack.c.h.b16 %v4904
    %v6359 = vunpack.c.l.b16 %v4905
    %v6360 = vunpack.c.h.b16 %v4905
    %v6361 = vunpack.c.l.b16 %v4906
    %v6362 = vunpack.c.h.b16 %v4906
    %v6363 = vunpack.c.l.b16 %v4907
    %v6364 = vunpack.c.h.b16 %v4907
    %v6365 = vunpack.c.l.b16 %v4908
    %v6366 = vunpack.c.h.b16 %v4908
    %v6367 = vunpack.c.l.b16 %v4909
    %v6368 = vunpack.c.h.b16 %v4909
    %v6369 = vunpack.c.l.b16 %v4910
    %v6370 = vunpack.c.h.b16 %v4910
    %v6371 = vunpack.c.l.b16 %v4911
    %v6372 = vunpack.c.h.b16 %v4911
    %v6373 = vunpack.c.l.b16 %v4912
    %v6374 = vunpack.c.h.b16 %v4912
    %v6375 = vunpack.c.l.b16 %v4913
    %v6376 = vunpack.c.h.b16 %v4913
    %v6377 = vunpack.c.l.b16 %v4914
    %v6378 = vunpack.c.h.b16 %v4914
    %v6379 = vunpack.c.l.b16 %v4915
    %v6380 = vunpack.c.h.b16 %v4915
    %v6381 = vunpack.c.l.b16 %v4916
    %v6382 = vunpack.c.h.b16 %v4916
    %v6383 = vunpack.c.l.b16 %v4917
    %v6384 = vunpack.c.h.b16 %v4917
    %v6385 = vunpack.c.l.b16 %v4918
    %v6386 = vunpack.c.h.b16 %v4918
    %v6387 = vunpack.c.l.b16 %v4919
    %v6388 = vunpack.c.h.b16 %v4919
    %v6389 = vunpack.c.l.b16 %v4920
    %v6390 = vunpack.c.h.b16 %v4920
    %v6391 = vunpack.c.l.b16 %v4921
    %v6392 = vunpack.c.h.b16 %v4921
    %v6393 = vunpack.c.l.b16 %v4922
    %v6394 = vunpack.c.h.b16 %v4922
    %v6395 = vunpack.c.l.b16 %v4923
    %v6396 = vunpack.c.h.b16 %v4923
    %v6397 = vunpack.c.l.b16 %v4924
    %v6398 = vunpack.c.h.b16 %v4924
    %v6399 = vunpack.c.l.b16 %v4925
    %v6400 = vunpack.c.h.b16 %v4925
    %v6401 = vunpack.c.l.b16 %v4926
    %v6402 = vunpack.c.h.b16 %v4926
    %v6403 = vunpack.c.l.b16 %v4927
    %v6404 = vunpack.c.h.b16 %v4927
    %v6405 = vunpack.c.l.b16 %v4928
    %v6406 = vunpack.c.h.b16 %v4928
    %v6407 = vunpack.c.l.b16 %v4929
    %v6408 = vunpack.c.h.b16 %v4929
    %v6409 = vunpack.c.l.b16 %v4930
    %v6410 = vunpack.c.h.b16 %v4930
    %v6411 = vunpack.c.l.b16 %v4931
    %v6412 = vunpack.c.h.b16 %v4931
    %v6413 = vunpack.c.l.b16 %v4932
    %v6414 = vunpack.c.h.b16 %v4932
    %v6415 = vunpack.c.l.b16 %v4933
    %v6416 = vunpack.c.h.b16 %v4933
    %v6417 = vunpack.c.l.b16 %v4934
    %v6418 = vunpack.c.h.b16 %v4934
    %v6419 = vunpack.c.l.b16 %v4935
    %v6420 = vunpack.c.h.b16 %v4935
    %v6421 = vunpack.c.l.b16 %v4936
    %v6422 = vunpack.c.h.b16 %v4936
    %v6423 = vunpack.c.l.b16 %v4937
    %v6424 = vunpack.c.h.b16 %v4937
    %v6425 = vunpack.c.l.b16 %v4938
    %v6426 = vunpack.c.h.b16 %v4938
    %v6427 = vunpack.c.l.b16 %v4939
    %v6428 = vunpack.c.h.b16 %v4939
    %v6429 = vunpack.c.l.b16 %v4940
    %v6430 = vunpack.c.h.b16 %v4940
    %v6431 = vunpack.c.l.b16 %v4941
    %v6432 = vunpack.c.h.b16 %v4941
    %v6433 = vunpack.c.l.b16 %v4942
    %v6434 = vunpack.c.h.b16 %v4942
    %v6435 = vunpack.c.l.b16 %v4943
    %v6436 = vunpack.c.h.b16 %v4943
    %v6437 = vunpack.c.l.b16 %v4944
    %v6438 = vunpack.c.h.b16 %v4944
    %v6439 = vunpack.c.l.b16 %v4945
    %v6440 = vunpack.c.h.b16 %v4945
    %v6441 = vunpack.c.l.b16 %v4946
    %v6442 = vunpack.c.h.b16 %v4946
    %v6443 = vunpack.c.l.b16 %v4947
    %v6444 = vunpack.c.h.b16 %v4947
    %v6445 = vunpack.c.l.b16 %v4948
    %v6446 = vunpack.c.h.b16 %v4948
    %v6447 = vunpack.c.l.b16 %v4949
    %v6448 = vunpack.c.h.b16 %v4949
    %v6449 = vunpack.c.l.b16 %v4950
    %v6450 = vunpack.c.h.b16 %v4950
    %v6451 = vunpack.c.l.b16 %v4951
    %v6452 = vunpack.c.h.b16 %v4951
    %v6453 = vunpack.c.l.b16 %v4952
    %v6454 = vunpack.c.h.b16 %v4952
    %v6455 = vunpack.c.l.b16 %v4953
    %v6456 = vunpack.c.h.b16 %v4953
    %v6457 = vunpack.c.l.b16 %v4954
    %v6458 = vunpack.c.h.b16 %v4954
    %v6459 = vunpack.c.l.b16 %v4955
    %v6460 = vunpack.c.h.b16 %v4955
    %v6461 = vunpack.c.l.b16 %v4956
    %v6462 = vunpack.c.h.b16 %v4956
    %v6463 = vunpack.c.l.b16 %v4957
    %v6464 = vunpack.c.h.b16 %v4957
    %v6465 = vunpack.c.l.b16 %v4958
    %v6466 = vunpack.c.h.b16 %v4958
    %v6467 = vunpack.c.l.b16 %v4959
    %v6468 = vunpack.c.h.b16 %v4959
    %v6469 = vunpack.c.l.b16 %v4960
    %v6470 = vunpack.c.h.b16 %v4960
    %v6471 = vunpack.c.l.b16 %v4961
    %v6472 = vunpack.c.h.b16 %v4961
    %v6473 = vunpack.c.l.b16 %v4962
    %v6474 = vunpack.c.h.b16 %v4962
    %v6475 = vunpack.c.l.b16 %v4963
    %v6476 = vunpack.c.h.b16 %v4963
    %v6477 = vunpack.c.l.b16 %v4964
    %v6478 = vunpack.c.h.b16 %v4964
    %v6479 = vunpack.c.l.b16 %v4965
    %v6480 = vunpack.c.h.b16 %v4965
    %v6481 = vunpack.c.l.b16 %v4966
    %v6482 = vunpack.c.h.b16 %v4966
    %v6483 = vunpack.c.l.b16 %v4967
    %v6484 = vunpack.c.h.b16 %v4967
    %v6485 = vunpack.c.l.b16 %v4968
    %v6486 = vunpack.c.h.b16 %v4968
    %v6487 = vunpack.c.l.b16 %v4969
    %v6488 = vunpack.c.h.b16 %v4969
    %v6489 = vunpack.c.l.b16 %v4970
    %v6490 = vunpack.c.h.b16 %v4970
    %v6491 = vunpack.c.l.b16 %v4971
    %v6492 = vunpack.c.h.b16 %v4971
    %v6493 = vunpack.c.l.b16 %v4972
    %v6494 = vunpack.c.h.b16 %v4972
    %v6495 = vunpack.c.l.b16 %v4973
    %v6496 = vunpack.c.h.b16 %v4973
    %v6497 = vunpack.c.l.b16 %v4974
    %v6498 = vunpack.c.h.b16 %v4974
    %v6499 = vunpack.c.l.b16 %v4975
    %v6500 = vunpack.c.h.b16 %v4975
    %v6501 = vunpack.c.l.b16 %v4976
    %v6502 = vunpack.c.h.b16 %v4976
    %v6503 = vunpack.c.l.b16 %v4977
    %v6504 = vunpack.c.h.b16 %v4977
    %v6505 = vunpack.c.l.b16 %v4978
    %v6506 = vunpack.c.h.b16 %v4978
    %v6507 = vunpack.c.l.b16 %v4979
    %v6508 = vunpack.c.h.b16 %v4979
    %v6509 = vunpack.c.l.b16 %v4980
    %v6510 = vunpack.c.h.b16 %v4980
    %v6511 = vunpack.c.l.b16 %v4981
    %v6512 = vunpack.c.h.b16 %v4981
    %v6513 = vunpack.c.l.b16 %v4982
    %v6514 = vunpack.c.h.b16 %v4982
    %v6515 = vunpack.c.l.b16 %v4983
    %v6516 = vunpack.c.h.b16 %v4983
    %v6517 = vunpack.c.l.b16 %v4984
    %v6518 = vunpack.c.h.b16 %v4984
    %v6519 = vunpack.c.l.b16 %v4985
    %v6520 = vunpack.c.h.b16 %v4985
    %v6521 = vunpack.c.l.b16 %v4986
    %v6522 = vunpack.c.h.b16 %v4986
    %v6523 = vunpack.c.l.b16 %v4987
    %v6524 = vunpack.c.h.b16 %v4987
    %v6525 = vunpack.c.l.b16 %v4988
    %v6526 = vunpack.c.h.b16 %v4988
    %v6527 = vunpack.c.l.b16 %v4989
    %v6528 = vunpack.c.h.b16 %v4989
    %v6529 = vunpack.c.l.b16 %v4990
    %v6530 = vunpack.c.h.b16 %v4990
    %v6531 = vunpack.c.l.b16 %v4991
    %v6532 = vunpack.c.h.b16 %v4991
    %v6533 = vunpack.c.l.b16 %v4992
    %v6534 = vunpack.c.h.b16 %v4992
    %v6535 = vunpack.c.l.b16 %v4993
    %v6536 = vunpack.c.h.b16 %v4993
    %v6537 = vunpack.c.l.b16 %v4994
    %v6538 = vunpack.c.h.b16 %v4994
    %v6539 = vunpack.c.l.b16 %v4995
    %v6540 = vunpack.c.h.b16 %v4995
    %v6541 = vunpack.c.l.b16 %v4996
    %v6542 = vunpack.c.h.b16 %v4996
    %v6543 = vunpack.c.l.b16 %v4997
    %v6544 = vunpack.c.h.b16 %v4997
    %v6545 = vunpack.c.l.b16 %v4998
    %v6546 = vunpack.c.h.b16 %v4998
    %v6547 = vunpack.c.l.b16 %v4999
    %v6548 = vunpack.c.h.b16 %v4999
    %v6549 = vunpack.c.l.b16 %v5000
    %v6550 = vunpack.c.h.b16 %v5000
    %v6551 = vunpack.c.l.b16 %v5001
    %v6552 = vunpack.c.h.b16 %v5001
    %v6553 = vunpack.c.l.b16 %v5002
    %v6554 = vunpack.c.h.b16 %v5002
    %v6555 = vunpack.c.l.b16 %v5003
    %v6556 = vunpack.c.h.b16 %v5003
    %v6557 = vunpack.c.l.b16 %v5004
    %v6558 = vunpack.c.h.b16 %v5004
    %v6559 = vunpack.c.l.b16 %v5005
    %v6560 = vunpack.c.h.b16 %v5005
    %v6561 = vunpack.c.l.b16 %v5006
    %v6562 = vunpack.c.h.b16 %v5006
    %v6563 = vunpack.c.l.b16 %v5007
    %v6564 = vunpack.c.h.b16 %v5007
    %v6565 = vunpack.c.l.b16 %v5008
    %v6566 = vunpack.c.h.b16 %v5008
    %v6567 = vunpack.c.l.b16 %v5009
    %v6568 = vunpack.c.h.b16 %v5009
    %v6569 = vunpack.c.l.b16 %v5010
    %v6570 = vunpack.c.h.b16 %v5010
    %v6571 = vunpack.c.l.b16 %v5011
    %v6572 = vunpack.c.h.b16 %v5011
    %v6573 = vunpack.c.l.b16 %v5012
    %v6574 = vunpack.c.h.b16 %v5012
    %v6575 = vunpack.c.l.b16 %v5013
    %v6576 = vunpack.c.h.b16 %v5013
    %v6577 = vunpack.c.l.b16 %v5014
    %v6578 = vunpack.c.h.b16 %v5014
    %v6579 = vunpack.c.l.b16 %v5015
    %v6580 = vunpack.c.h.b16 %v5015
    %v6581 = vunpack.c.l.b16 %v5016
    %v6582 = vunpack.c.h.b16 %v5016
    %v6583 = vunpack.c.l.b16 %v5017
    %v6584 = vunpack.c.h.b16 %v5017
    %v6585 = vunpack.c.l.b16 %v5018
    %v6586 = vunpack.c.h.b16 %v5018
    %v6587 = vpack.c.b16 %v5571, %v5563
    %v6588 = vpack.c.b16 %v5572, %v5564
    %v6589 = vpack.c.b16 %v5573, %v5565
    %v6590 = vpack.c.b16 %v5574, %v5566
    %v6591 = vpack.c.b16 %v5575, %v5567
    %v6592 = vpack.c.b16 %v5576, %v5568
    %v6593 = vpack.c.b16 %v5577, %v5569
    %v6594 = vpack.c.b16 %v5578, %v5570
    %v6595 = vpack.c.b16 %v5587, %v5579
    %v6596 = vpack.c.b16 %v5588, %v5580
    %v6597 = vpack.c.b16 %v5589, %v5581
    %v6598 = vpack.c.b16 %v5590, %v5582
    %v6599 = vpack.c.b16 %v5591, %v5583
    %v6600 = vpack.c.b16 %v5592, %v5584
    %v6601 = vpack.c.b16 %v5593, %v5585
    %v6602 = vpack.c.b16 %v5594, %v5586
    %v6603 = vpack.c.b16 %v5603, %v5595
    %v6604 = vpack.c.b16 %v5604, %v5596
    %v6605 = vpack.c.b16 %v5605, %v5597
    %v6606 = vpack.c.b16 %v5606, %v5598
    %v6607 = vpack.c.b16 %v5607, %v5599
    %v6608 = vpack.c.b16 %v5608, %v5600
    %v6609 = vpack.c.b16 %v5609, %v5601
    %v6610 = vpack.c.b16 %v5610, %v5602
    %v6611 = vpack.c.b16 %v5619, %v5611
    %v6612 = vpack.c.b16 %v5620, %v5612
    %v6613 = vpack.c.b16 %v5621, %v5613
    %v6614 = vpack.c.b16 %v5622, %v5614
    %v6615 = vpack.c.b16 %v5623, %v5615
    %v6616 = vpack.c.b16 %v5624, %v5616
    %v6617 = vpack.c.b16 %v5625, %v5617
    %v6618 = vpack.c.b16 %v5626, %v5618
    %v6619 = vpack.c.b16 %v5635, %v5627
    %v6620 = vpack.c.b16 %v5636, %v5628
    %v6621 = vpack.c.b16 %v5637, %v5629
    %v6622 = vpack.c.b16 %v5638, %v5630
    %v6623 = vpack.c.b16 %v5639, %v5631
    %v6624 = vpack.c.b16 %v5640, %v5632
    %v6625 = vpack.c.b16 %v5641, %v5633
    %v6626 = vpack.c.b16 %v5642, %v5634
    %v6627 = vpack.c.b16 %v5651, %v5643
    %v6628 = vpack.c.b16 %v5652, %v5644
    %v6629 = vpack.c.b16 %v5653, %v5645
    %v6630 = vpack.c.b16 %v5654, %v5646
    %v6631 = vpack.c.b16 %v5655, %v5647
    %v6632 = vpack.c.b16 %v5656, %v5648
    %v6633 = vpack.c.b16 %v5657, %v5649
    %v6634 = vpack.c.b16 %v5658, %v5650
    %v6635 = vpack.c.b16 %v5667, %v5659
    %v6636 = vpack.c.b16 %v5668, %v5660
    %v6637 = vpack.c.b16 %v5669, %v5661
    %v6638 = vpack.c.b16 %v5670, %v5662
    %v6639 = vpack.c.b16 %v5671, %v5663
    %v6640 = vpack.c.b16 %v5672, %v5664
    %v6641 = vpack.c.b16 %v5673, %v5665
    %v6642 = vpack.c.b16 %v5674, %v5666
    %v6643 = vpack.c.b16 %v5683, %v5675
    %v6644 = vpack.c.b16 %v5684, %v5676
    %v6645 = vpack.c.b16 %v5685, %v5677
    %v6646 = vpack.c.b16 %v5686, %v5678
    %v6647 = vpack.c.b16 %v5687, %v5679
    %v6648 = vpack.c.b16 %v5688, %v5680
    %v6649 = vpack.c.b16 %v5689, %v5681
    %v6650 = vpack.c.b16 %v5690, %v5682
    %v6651 = vpack.c.b16 %v5699, %v5691
    %v6652 = vpack.c.b16 %v5700, %v5692
    %v6653 = vpack.c.b16 %v5701, %v5693
    %v6654 = vpack.c.b16 %v5702, %v5694
    %v6655 = vpack.c.b16 %v5703, %v5695
    %v6656 = vpack.c.b16 %v5704, %v5696
    %v6657 = vpack.c.b16 %v5705, %v5697
    %v6658 = vpack.c.b16 %v5706, %v5698
    %v6659 = vpack.c.b16 %v5715, %v5707
    %v6660 = vpack.c.b16 %v5716, %v5708
    %v6661 = vpack.c.b16 %v5717, %v5709
    %v6662 = vpack.c.b16 %v5718, %v5710
    %v6663 = vpack.c.b16 %v5719, %v5711
    %v6664 = vpack.c.b16 %v5720, %v5712
    %v6665 = vpack.c.b16 %v5721, %v5713
    %v6666 = vpack.c.b16 %v5722, %v5714
    %v6667 = vpack.c.b16 %v5731, %v5723
    %v6668 = vpack.c.b16 %v5732, %v5724
    %v6669 = vpack.c.b16 %v5733, %v5725
    %v6670 = vpack.c.b16 %v5734, %v5726
    %v6671 = vpack.c.b16 %v5735, %v5727
    %v6672 = vpack.c.b16 %v5736, %v5728
    %v6673 = vpack.c.b16 %v5737, %v5729
    %v6674 = vpack.c.b16 %v5738, %v5730
    %v6675 = vpack.c.b16 %v5747, %v5739
    %v6676 = vpack.c.b16 %v5748, %v5740
    %v6677 = vpack.c.b16 %v5749, %v5741
    %v6678 = vpack.c.b16 %v5750, %v5742
    %v6679 = vpack.c.b16 %v5751, %v5743
    %v6680 = vpack.c.b16 %v5752, %v5744
    %v6681 = vpack.c.b16 %v5753, %v5745
    %v6682 = vpack.c.b16 %v5754, %v5746
    %v6683 = vpack.c.b16 %v5763, %v5755
    %v6684 = vpack.c.b16 %v5764, %v5756
    %v6685 = vpack.c.b16 %v5765, %v5757
    %v6686 = vpack.c.b16 %v5766, %v5758
    %v6687 = vpack.c.b16 %v5767, %v5759
    %v6688 = vpack.c.b16 %v5768, %v5760
    %v6689 = vpack.c.b16 %v5769, %v5761
    %v6690 = vpack.c.b16 %v5770, %v5762
    %v6691 = vpack.c.b16 %v5779, %v5771
    %v6692 = vpack.c.b16 %v5780, %v5772
    %v6693 = vpack.c.b16 %v5781, %v5773
    %v6694 = vpack.c.b16 %v5782, %v5774
    %v6695 = vpack.c.b16 %v5783, %v5775
    %v6696 = vpack.c.b16 %v5784, %v5776
    %v6697 = vpack.c.b16 %v5785, %v5777
    %v6698 = vpack.c.b16 %v5786, %v5778
    %v6699 = vpack.c.b16 %v5795, %v5787
    %v6700 = vpack.c.b16 %v5796, %v5788
    %v6701 = vpack.c.b16 %v5797, %v5789
    %v6702 = vpack.c.b16 %v5798, %v5790
    %v6703 = vpack.c.b16 %v5799, %v5791
    %v6704 = vpack.c.b16 %v5800, %v5792
    %v6705 = vpack.c.b16 %v5801, %v5793
    %v6706 = vpack.c.b16 %v5802, %v5794
    %v6707 = vpack.c.b16 %v5811, %v5803
    %v6708 = vpack.c.b16 %v5812, %v5804
    %v6709 = vpack.c.b16 %v5813, %v5805
    %v6710 = vpack.c.b16 %v5814, %v5806
    %v6711 = vpack.c.b16 %v5815, %v5807
    %v6712 = vpack.c.b16 %v5816, %v5808
    %v6713 = vpack.c.b16 %v5817, %v5809
    %v6714 = vpack.c.b16 %v5818, %v5810
    %v6715 = vpack.c.b16 %v5827, %v5819
    %v6716 = vpack.c.b16 %v5828, %v5820
    %v6717 = vpack.c.b16 %v5829, %v5821
    %v6718 = vpack.c.b16 %v5830, %v5822
    %v6719 = vpack.c.b16 %v5831, %v5823
    %v6720 = vpack.c.b16 %v5832, %v5824
    %v6721 = vpack.c.b16 %v5833, %v5825
    %v6722 = vpack.c.b16 %v5834, %v5826
    %v6723 = vpack.c.b16 %v5843, %v5835
    %v6724 = vpack.c.b16 %v5844, %v5836
    %v6725 = vpack.c.b16 %v5845, %v5837
    %v6726 = vpack.c.b16 %v5846, %v5838
    %v6727 = vpack.c.b16 %v5847, %v5839
    %v6728 = vpack.c.b16 %v5848, %v5840
    %v6729 = vpack.c.b16 %v5849, %v5841
    %v6730 = vpack.c.b16 %v5850, %v5842
    %v6731 = vpack.c.b16 %v5859, %v5851
    %v6732 = vpack.c.b16 %v5860, %v5852
    %v6733 = vpack.c.b16 %v5861, %v5853
    %v6734 = vpack.c.b16 %v5862, %v5854
    %v6735 = vpack.c.b16 %v5863, %v5855
    %v6736 = vpack.c.b16 %v5864, %v5856
    %v6737 = vpack.c.b16 %v5865, %v5857
    %v6738 = vpack.c.b16 %v5866, %v5858
    %v6739 = vpack.c.b16 %v5875, %v5867
    %v6740 = vpack.c.b16 %v5876, %v5868
    %v6741 = vpack.c.b16 %v5877, %v5869
    %v6742 = vpack.c.b16 %v5878, %v5870
    %v6743 = vpack.c.b16 %v5879, %v5871
    %v6744 = vpack.c.b16 %v5880, %v5872
    %v6745 = vpack.c.b16 %v5881, %v5873
    %v6746 = vpack.c.b16 %v5882, %v5874
    %v6747 = vpack.c.b16 %v5891, %v5883
    %v6748 = vpack.c.b16 %v5892, %v5884
    %v6749 = vpack.c.b16 %v5893, %v5885
    %v6750 = vpack.c.b16 %v5894, %v5886
    %v6751 = vpack.c.b16 %v5895, %v5887
    %v6752 = vpack.c.b16 %v5896, %v5888
    %v6753 = vpack.c.b16 %v5897, %v5889
    %v6754 = vpack.c.b16 %v5898, %v5890
    %v6755 = vpack.c.b16 %v5907, %v5899
    %v6756 = vpack.c.b16 %v5908, %v5900
    %v6757 = vpack.c.b16 %v5909, %v5901
    %v6758 = vpack.c.b16 %v5910, %v5902
    %v6759 = vpack.c.b16 %v5911, %v5903
    %v6760 = vpack.c.b16 %v5912, %v5904
    %v6761 = vpack.c.b16 %v5913, %v5905
    %v6762 = vpack.c.b16 %v5914, %v5906
    %v6763 = vpack.c.b16 %v5923, %v5915
    %v6764 = vpack.c.b16 %v5924, %v5916
    %v6765 = vpack.c.b16 %v5925, %v5917
    %v6766 = vpack.c.b16 %v5926, %v5918
    %v6767 = vpack.c.b16 %v5927, %v5919
    %v6768 = vpack.c.b16 %v5928, %v5920
    %v6769 = vpack.c.b16 %v5929, %v5921
    %v6770 = vpack.c.b16 %v5930, %v5922
    %v6771 = vpack.c.b16 %v5939, %v5931
    %v6772 = vpack.c.b16 %v5940, %v5932
    %v6773 = vpack.c.b16 %v5941, %v5933
    %v6774 = vpack.c.b16 %v5942, %v5934
    %v6775 = vpack.c.b16 %v5943, %v5935
    %v6776 = vpack.c.b16 %v5944, %v5936
    %v6777 = vpack.c.b16 %v5945, %v5937
    %v6778 = vpack.c.b16 %v5946, %v5938
    %v6779 = vpack.c.b16 %v5955, %v5947
    %v6780 = vpack.c.b16 %v5956, %v5948
    %v6781 = vpack.c.b16 %v5957, %v5949
    %v6782 = vpack.c.b16 %v5958, %v5950
    %v6783 = vpack.c.b16 %v5959, %v5951
    %v6784 = vpack.c.b16 %v5960, %v5952
    %v6785 = vpack.c.b16 %v5961, %v5953
    %v6786 = vpack.c.b16 %v5962, %v5954
    %v6787 = vpack.c.b16 %v5971, %v5963
    %v6788 = vpack.c.b16 %v5972, %v5964
    %v6789 = vpack.c.b16 %v5973, %v5965
    %v6790 = vpack.c.b16 %v5974, %v5966
    %v6791 = vpack.c.b16 %v5975, %v5967
    %v6792 = vpack.c.b16 %v5976, %v5968
    %v6793 = vpack.c.b16 %v5977, %v5969
    %v6794 = vpack.c.b16 %v5978, %v5970
    %v6795 = vpack.c.b16 %v5987, %v5979
    %v6796 = vpack.c.b16 %v5988, %v5980
    %v6797 = vpack.c.b16 %v5989, %v5981
    %v6798 = vpack.c.b16 %v5990, %v5982
    %v6799 = vpack.c.b16 %v5991, %v5983
    %v6800 = vpack.c.b16 %v5992, %v5984
    %v6801 = vpack.c.b16 %v5993, %v5985
    %v6802 = vpack.c.b16 %v5994, %v5986
    %v6803 = vpack.c.b16 %v6003, %v5995
    %v6804 = vpack.c.b16 %v6004, %v5996
    %v6805 = vpack.c.b16 %v6005, %v5997
    %v6806 = vpack.c.b16 %v6006, %v5998
    %v6807 = vpack.c.b16 %v6007, %v5999
    %v6808 = vpack.c.b16 %v6008, %v6000
    %v6809 = vpack.c.b16 %v6009, %v6001
    %v6810 = vpack.c.b16 %v6010, %v6002
    %v6811 = vpack.c.b16 %v6019, %v6011
    %v6812 = vpack.c.b16 %v6020, %v6012
    %v6813 = vpack.c.b16 %v6021, %v6013
    %v6814 = vpack.c.b16 %v6022, %v6014
    %v6815 = vpack.c.b16 %v6023, %v6015
    %v6816 = vpack.c.b16 %v6024, %v6016
    %v6817 = vpack.c.b16 %v6025, %v6017
    %v6818 = vpack.c.b16 %v6026, %v6018
    %v6819 = vpack.c.b16 %v6035, %v6027
    %v6820 = vpack.c.b16 %v6036, %v6028
    %v6821 = vpack.c.b16 %v6037, %v6029
    %v6822 = vpack.c.b16 %v6038, %v6030
    %v6823 = vpack.c.b16 %v6039, %v6031
    %v6824 = vpack.c.b16 %v6040, %v6032
    %v6825 = vpack.c.b16 %v6041, %v6033
    %v6826 = vpack.c.b16 %v6042, %v6034
    %v6827 = vpack.c.b16 %v6051, %v6043
    %v6828 = vpack.c.b16 %v6052, %v6044
    %v6829 = vpack.c.b16 %v6053, %v6045
    %v6830 = vpack.c.b16 %v6054, %v6046
    %v6831 = vpack.c.b16 %v6055, %v6047
    %v6832 = vpack.c.b16 %v6056, %v6048
    %v6833 = vpack.c.b16 %v6057, %v6049
    %v6834 = vpack.c.b16 %v6058, %v6050
    %v6835 = vpack.c.b16 %v6067, %v6059
    %v6836 = vpack.c.b16 %v6068, %v6060
    %v6837 = vpack.c.b16 %v6069, %v6061
    %v6838 = vpack.c.b16 %v6070, %v6062
    %v6839 = vpack.c.b16 %v6071, %v6063
    %v6840 = vpack.c.b16 %v6072, %v6064
    %v6841 = vpack.c.b16 %v6073, %v6065
    %v6842 = vpack.c.b16 %v6074, %v6066
    %v6843 = vpack.c.b16 %v6083, %v6075
    %v6844 = vpack.c.b16 %v6084, %v6076
    %v6845 = vpack.c.b16 %v6085, %v6077
    %v6846 = vpack.c.b16 %v6086, %v6078
    %v6847 = vpack.c.b16 %v6087, %v6079
    %v6848 = vpack.c.b16 %v6088, %v6080
    %v6849 = vpack.c.b16 %v6089, %v6081
    %v6850 = vpack.c.b16 %v6090, %v6082
    %v6851 = vpack.c.b16 %v6099, %v6091
    %v6852 = vpack.c.b16 %v6100, %v6092
    %v6853 = vpack.c.b16 %v6101, %v6093
    %v6854 = vpack.c.b16 %v6102, %v6094
    %v6855 = vpack.c.b16 %v6103, %v6095
    %v6856 = vpack.c.b16 %v6104, %v6096
    %v6857 = vpack.c.b16 %v6105, %v6097
    %v6858 = vpack.c.b16 %v6106, %v6098
    %v6859 = vpack.c.b16 %v6115, %v6107
    %v6860 = vpack.c.b16 %v6116, %v6108
    %v6861 = vpack.c.b16 %v6117, %v6109
    %v6862 = vpack.c.b16 %v6118, %v6110
    %v6863 = vpack.c.b16 %v6119, %v6111
    %v6864 = vpack.c.b16 %v6120, %v6112
    %v6865 = vpack.c.b16 %v6121, %v6113
    %v6866 = vpack.c.b16 %v6122, %v6114
    %v6867 = vpack.c.b16 %v6131, %v6123
    %v6868 = vpack.c.b16 %v6132, %v6124
    %v6869 = vpack.c.b16 %v6133, %v6125
    %v6870 = vpack.c.b16 %v6134, %v6126
    %v6871 = vpack.c.b16 %v6135, %v6127
    %v6872 = vpack.c.b16 %v6136, %v6128
    %v6873 = vpack.c.b16 %v6137, %v6129
    %v6874 = vpack.c.b16 %v6138, %v6130
    %v6875 = vpack.c.b16 %v6147, %v6139
    %v6876 = vpack.c.b16 %v6148, %v6140
    %v6877 = vpack.c.b16 %v6149, %v6141
    %v6878 = vpack.c.b16 %v6150, %v6142
    %v6879 = vpack.c.b16 %v6151, %v6143
    %v6880 = vpack.c.b16 %v6152, %v6144
    %v6881 = vpack.c.b16 %v6153, %v6145
    %v6882 = vpack.c.b16 %v6154, %v6146
    %v6883 = vpack.c.b16 %v6163, %v6155
    %v6884 = vpack.c.b16 %v6164, %v6156
    %v6885 = vpack.c.b16 %v6165, %v6157
    %v6886 = vpack.c.b16 %v6166, %v6158
    %v6887 = vpack.c.b16 %v6167, %v6159
    %v6888 = vpack.c.b16 %v6168, %v6160
    %v6889 = vpack.c.b16 %v6169, %v6161
    %v6890 = vpack.c.b16 %v6170, %v6162
    %v6891 = vpack.c.b16 %v6179, %v6171
    %v6892 = vpack.c.b16 %v6180, %v6172
    %v6893 = vpack.c.b16 %v6181, %v6173
    %v6894 = vpack.c.b16 %v6182, %v6174
    %v6895 = vpack.c.b16 %v6183, %v6175
    %v6896 = vpack.c.b16 %v6184, %v6176
    %v6897 = vpack.c.b16 %v6185, %v6177
    %v6898 = vpack.c.b16 %v6186, %v6178
    %v6899 = vpack.c.b16 %v6195, %v6187
    %v6900 = vpack.c.b16 %v6196, %v6188
    %v6901 = vpack.c.b16 %v6197, %v6189
    %v6902 = vpack.c.b16 %v6198, %v6190
    %v6903 = vpack.c.b16 %v6199, %v6191
    %v6904 = vpack.c.b16 %v6200, %v6192
    %v6905 = vpack.c.b16 %v6201, %v6193
    %v6906 = vpack.c.b16 %v6202, %v6194
    %v6907 = vpack.c.b16 %v6211, %v6203
    %v6908 = vpack.c.b16 %v6212, %v6204
    %v6909 = vpack.c.b16 %v6213, %v6205
    %v6910 = vpack.c.b16 %v6214, %v6206
    %v6911 = vpack.c.b16 %v6215, %v6207
    %v6912 = vpack.c.b16 %v6216, %v6208
    %v6913 = vpack.c.b16 %v6217, %v6209
    %v6914 = vpack.c.b16 %v6218, %v6210
    %v6915 = vpack.c.b16 %v6227, %v6219
    %v6916 = vpack.c.b16 %v6228, %v6220
    %v6917 = vpack.c.b16 %v6229, %v6221
    %v6918 = vpack.c.b16 %v6230, %v6222
    %v6919 = vpack.c.b16 %v6231, %v6223
    %v6920 = vpack.c.b16 %v6232, %v6224
    %v6921 = vpack.c.b16 %v6233, %v6225
    %v6922 = vpack.c.b16 %v6234, %v6226
    %v6923 = vpack.c.b16 %v6243, %v6235
    %v6924 = vpack.c.b16 %v6244, %v6236
    %v6925 = vpack.c.b16 %v6245, %v6237
    %v6926 = vpack.c.b16 %v6246, %v6238
    %v6927 = vpack.c.b16 %v6247, %v6239
    %v6928 = vpack.c.b16 %v6248, %v6240
    %v6929 = vpack.c.b16 %v6249, %v6241
    %v6930 = vpack.c.b16 %v6250, %v6242
    %v6931 = vpack.c.b16 %v6259, %v6251
    %v6932 = vpack.c.b16 %v6260, %v6252
    %v6933 = vpack.c.b16 %v6261, %v6253
    %v6934 = vpack.c.b16 %v6262, %v6254
    %v6935 = vpack.c.b16 %v6263, %v6255
    %v6936 = vpack.c.b16 %v6264, %v6256
    %v6937 = vpack.c.b16 %v6265, %v6257
    %v6938 = vpack.c.b16 %v6266, %v6258
    %v6939 = vpack.c.b16 %v6275, %v6267
    %v6940 = vpack.c.b16 %v6276, %v6268
    %v6941 = vpack.c.b16 %v6277, %v6269
    %v6942 = vpack.c.b16 %v6278, %v6270
    %v6943 = vpack.c.b16 %v6279, %v6271
    %v6944 = vpack.c.b16 %v6280, %v6272
    %v6945 = vpack.c.b16 %v6281, %v6273
    %v6946 = vpack.c.b16 %v6282, %v6274
    %v6947 = vpack.c.b16 %v6291, %v6283
    %v6948 = vpack.c.b16 %v6292, %v6284
    %v6949 = vpack.c.b16 %v6293, %v6285
    %v6950 = vpack.c.b16 %v6294, %v6286
    %v6951 = vpack.c.b16 %v6295, %v6287
    %v6952 = vpack.c.b16 %v6296, %v6288
    %v6953 = vpack.c.b16 %v6297, %v6289
    %v6954 = vpack.c.b16 %v6298, %v6290
    %v6955 = vpack.c.b16 %v6307, %v6299
    %v6956 = vpack.c.b16 %v6308, %v6300
    %v6957 = vpack.c.b16 %v6309, %v6301
    %v6958 = vpack.c.b16 %v6310, %v6302
    %v6959 = vpack.c.b16 %v6311, %v6303
    %v6960 = vpack.c.b16 %v6312, %v6304
    %v6961 = vpack.c.b16 %v6313, %v6305
    %v6962 = vpack.c.b16 %v6314, %v6306
    %v6963 = vpack.c.b16 %v6323, %v6315
    %v6964 = vpack.c.b16 %v6324, %v6316
    %v6965 = vpack.c.b16 %v6325, %v6317
    %v6966 = vpack.c.b16 %v6326, %v6318
    %v6967 = vpack.c.b16 %v6327, %v6319
    %v6968 = vpack.c.b16 %v6328, %v6320
    %v6969 = vpack.c.b16 %v6329, %v6321
    %v6970 = vpack.c.b16 %v6330, %v6322
    %v6971 = vpack.c.b16 %v6339, %v6331
    %v6972 = vpack.c.b16 %v6340, %v6332
    %v6973 = vpack.c.b16 %v6341, %v6333
    %v6974 = vpack.c.b16 %v6342, %v6334
    %v6975 = vpack.c.b16 %v6343, %v6335
    %v6976 = vpack.c.b16 %v6344, %v6336
    %v6977 = vpack.c.b16 %v6345, %v6337
    %v6978 = vpack.c.b16 %v6346, %v6338
    %v6979 = vpack.c.b16 %v6355, %v6347
    %v6980 = vpack.c.b16 %v6356, %v6348
    %v6981 = vpack.c.b16 %v6357, %v6349
    %v6982 = vpack.c.b16 %v6358, %v6350
    %v6983 = vpack.c.b16 %v6359, %v6351
    %v6984 = vpack.c.b16 %v6360, %v6352
    %v6985 = vpack.c.b16 %v6361, %v6353
    %v6986 = vpack.c.b16 %v6362, %v6354
    %v6987 = vpack.c.b16 %v6371, %v6363
    %v6988 = vpack.c.b16 %v6372, %v6364
    %v6989 = vpack.c.b16 %v6373, %v6365
    %v6990 = vpack.c.b16 %v6374, %v6366
    %v6991 = vpack.c.b16 %v6375, %v6367
    %v6992 = vpack.c.b16 %v6376, %v6368
    %v6993 = vpack.c.b16 %v6377, %v6369
    %v6994 = vpack.c.b16 %v6378, %v6370
    %v6995 = vpack.c.b16 %v6387, %v6379
    %v6996 = vpack.c.b16 %v6388, %v6380
    %v6997 = vpack.c.b16 %v6389, %v6381
    %v6998 = vpack.c.b16 %v6390, %v6382
    %v6999 = vpack.c.b16 %v6391, %v6383
    %v7000 = vpack.c.b16 %v6392, %v6384
    %v7001 = vpack.c.b16 %v6393, %v6385
    %v7002 = vpack.c.b16 %v6394, %v6386
    %v7003 = vpack.c.b16 %v6403, %v6395
    %v7004 = vpack.c.b16 %v6404, %v6396
    %v7005 = vpack.c.b16 %v6405, %v6397
    %v7006 = vpack.c.b16 %v6406, %v6398
    %v7007 = vpack.c.b16 %v6407, %v6399
    %v7008 = vpack.c.b16 %v6408, %v6400
    %v7009 = vpack.c.b16 %v6409, %v6401
    %v7010 = vpack.c.b16 %v6410, %v6402
    %v7011 = vpack.c.b16 %v6419, %v6411
    %v7012 = vpack.c.b16 %v6420, %v6412
    %v7013 = vpack.c.b16 %v6421, %v6413
    %v7014 = vpack.c.b16 %v6422, %v6414
    %v7015 = vpack.c.b16 %v6423, %v6415
    %v7016 = vpack.c.b16 %v6424, %v6416
    %v7017 = vpack.c.b16 %v6425, %v6417
    %v7018 = vpack.c.b16 %v6426, %v6418
    %v7019 = vpack.c.b16 %v6435, %v6427
    %v7020 = vpack.c.b16 %v6436, %v6428
    %v7021 = vpack.c.b16 %v6437, %v6429
    %v7022 = vpack.c.b16 %v6438, %v6430
    %v7023 = vpack.c.b16 %v6439, %v6431
    %v7024 = vpack.c.b16 %v6440, %v6432
    %v7025 = vpack.c.b16 %v6441, %v6433
    %v7026 = vpack.c.b16 %v6442, %v6434
    %v7027 = vpack.c.b16 %v6451, %v6443
    %v7028 = vpack.c.b16 %v6452, %v6444
    %v7029 = vpack.c.b16 %v6453, %v6445
    %v7030 = vpack.c.b16 %v6454, %v6446
    %v7031 = vpack.c.b16 %v6455, %v6447
    %v7032 = vpack.c.b16 %v6456, %v6448
    %v7033 = vpack.c.b16 %v6457, %v6449
    %v7034 = vpack.c.b16 %v6458, %v6450
    %v7035 = vpack.c.b16 %v6467, %v6459
    %v7036 = vpack.c.b16 %v6468, %v6460
    %v7037 = vpack.c.b16 %v6469, %v6461
    %v7038 = vpack.c.b16 %v6470, %v6462
    %v7039 = vpack.c.b16 %v6471, %v6463
    %v7040 = vpack.c.b16 %v6472, %v6464
    %v7041 = vpack.c.b16 %v6473, %v6465
    %v7042 = vpack.c.b16 %v6474, %v6466
    %v7043 = vpack.c.b16 %v6483, %v6475
    %v7044 = vpack.c.b16 %v6484, %v6476
    %v7045 = vpack.c.b16 %v6485, %v6477
    %v7046 = vpack.c.b16 %v6486, %v6478
    %v7047 = vpack.c.b16 %v6487, %v6479
    %v7048 = vpack.c.b16 %v6488, %v6480
    %v7049 = vpack.c.b16 %v6489, %v6481
    %v7050 = vpack.c.b16 %v6490, %v6482
    %v7051 = vpack.c.b16 %v6499, %v6491
    %v7052 = vpack.c.b16 %v6500, %v6492
    %v7053 = vpack.c.b16 %v6501, %v6493
    %v7054 = vpack.c.b16 %v6502, %v6494
    %v7055 = vpack.c.b16 %v6503, %v6495
    %v7056 = vpack.c.b16 %v6504, %v6496
    %v7057 = vpack.c.b16 %v6505, %v6497
    %v7058 = vpack.c.b16 %v6506, %v6498
    %v7059 = vpack.c.b16 %v6515, %v6507
    %v7060 = vpack.c.b16 %v6516, %v6508
    %v7061 = vpack.c.b16 %v6517, %v6509
    %v7062 = vpack.c.b16 %v6518, %v6510
    %v7063 = vpack.c.b16 %v6519, %v6511
    %v7064 = vpack.c.b16 %v6520, %v6512
    %v7065 = vpack.c.b16 %v6521, %v6513
    %v7066 = vpack.c.b16 %v6522, %v6514
    %v7067 = vpack.c.b16 %v6531, %v6523
    %v7068 = vpack.c.b16 %v6532, %v6524
    %v7069 = vpack.c.b16 %v6533, %v6525
    %v7070 = vpack.c.b16 %v6534, %v6526
    %v7071 = vpack.c.b16 %v6535, %v6527
    %v7072 = vpack.c.b16 %v6536, %v6528
    %v7073 = vpack.c.b16 %v6537, %v6529
    %v7074 = vpack.c.b16 %v6538, %v6530
    %v7075 = vpack.c.b16 %v6547, %v6539
    %v7076 = vpack.c.b16 %v6548, %v6540
    %v7077 = vpack.c.b16 %v6549, %v6541
    %v7078 = vpack.c.b16 %v6550, %v6542
    %v7079 = vpack.c.b16 %v6551, %v6543
    %v7080 = vpack.c.b16 %v6552, %v6544
    %v7081 = vpack.c.b16 %v6553, %v6545
    %v7082 = vpack.c.b16 %v6554, %v6546
    %v7083 = vpack.c.b16 %v6563, %v6555
    %v7084 = vpack.c.b16 %v6564, %v6556
    %v7085 = vpack.c.b16 %v6565, %v6557
    %v7086 = vpack.c.b16 %v6566, %v6558
    %v7087 = vpack.c.b16 %v6567, %v6559
    %v7088 = vpack.c.b16 %v6568, %v6560
    %v7089 = vpack.c.b16 %v6569, %v6561
    %v7090 = vpack.c.b16 %v6570, %v6562
    %v7091 = vpack.c.b16 %v6579, %v6571
    %v7092 = vpack.c.b16 %v6580, %v6572
    %v7093 = vpack.c.b16 %v6581, %v6573
    %v7094 = vpack.c.b16 %v6582, %v6574
    %v7095 = vpack.c.b16 %v6583, %v6575
    %v7096 = vpack.c.b16 %v6584, %v6576
    %v7097 = vpack.c.b16 %v6585, %v6577
    %v7098 = vpack.c.b16 %v6586, %v6578
    %7611 = vmatprep.subr.bf16.mxu0 %v6588
    %7612 = vmatpush1.bf16.msra.mxu0 %v6587
    %7613 = vmatprep.subr.bf16.mxu0 %v6596
    %7614 = vmatpush1.bf16.msra.mxu0 %v6595
    %7615 = vmatprep.subr.bf16.mxu0 %v6604
    %7616 = vmatpush1.bf16.msra.mxu0 %v6603
    %7617 = vmatprep.subr.bf16.mxu0 %v6612
    %7618 = vmatpush1.bf16.msra.mxu0 %v6611
    %7619 = vmatprep.subr.bf16.mxu0 %v6620
    %7620 = vmatpush1.bf16.msra.mxu0 %v6619
    %7621 = vmatprep.subr.bf16.mxu0 %v6628
    %7622 = vmatpush1.bf16.msra.mxu0 %v6627
    %7623 = vmatprep.subr.bf16.mxu0 %v6636
    %7624 = vmatpush1.bf16.msra.mxu0 %v6635
    %7625 = vmatprep.subr.bf16.mxu0 %v6644
    %7626 = vmatpush1.bf16.msra.mxu0 %v6643
    %7627 = vmatprep.subr.bf16.mxu0 %v6652
    %7628 = vmatpush1.bf16.msra.mxu0 %v6651
    %7629 = vmatprep.subr.bf16.mxu0 %v6660
    %7630 = vmatpush1.bf16.msra.mxu0 %v6659
    %7631 = vmatprep.subr.bf16.mxu0 %v6668
    %7632 = vmatpush1.bf16.msra.mxu0 %v6667
    %7633 = vmatprep.subr.bf16.mxu0 %v6676
    %7634 = vmatpush1.bf16.msra.mxu0 %v6675
    %7635 = vmatprep.subr.bf16.mxu0 %v6684
    %7636 = vmatpush1.bf16.msra.mxu0 %v6683
    %7637 = vmatprep.subr.bf16.mxu0 %v6692
    %7638 = vmatpush1.bf16.msra.mxu0 %v6691
    %7639 = vmatprep.subr.bf16.mxu0 %v6700
    %7640 = vmatpush1.bf16.msra.mxu0 %v6699
    %7641 = vmatprep.subr.bf16.mxu0 %v6708
    %7642 = vmatpush1.bf16.msra.mxu0 %v6707
    %7643 = vmatprep.mubr.bf16.mxu0 %v4500
    %7644 = vmatmul.mubr.bf16.gmra.mrb[0].mxu0 %v4499
    %v7645 = vpop.f32.mrb[0].mxu0
    %v7646 = vadd.f32 %v5022, %v7645
    %v7647 = vpop.f32.mrb[0].mxu0
    %v7648 = vadd.f32 %v5026, %v7647
    %v7649 = vpop.f32.mrb[0].mxu0
    %v7650 = vpop.f32.mrb[0].mxu0
    %7651 = vdwg.mxu0
    %7652 = vmatprep.subr.bf16.mxu0 %v6716
    %7653 = vmatpush1.bf16.msra.mxu0 %v6715
    %7654 = vmatprep.subr.bf16.mxu0 %v6724
    %7655 = vmatpush1.bf16.msra.mxu0 %v6723
    %7656 = vmatprep.subr.bf16.mxu0 %v6732
    %7657 = vmatpush1.bf16.msra.mxu0 %v6731
    %7658 = vmatprep.subr.bf16.mxu0 %v6740
    %7659 = vmatpush1.bf16.msra.mxu0 %v6739
    %7660 = vmatprep.subr.bf16.mxu0 %v6748
    %7661 = vmatpush1.bf16.msra.mxu0 %v6747
    %7662 = vmatprep.subr.bf16.mxu0 %v6756
    %7663 = vmatpush1.bf16.msra.mxu0 %v6755
    %7664 = vmatprep.subr.bf16.mxu0 %v6764
    %7665 = vmatpush1.bf16.msra.mxu0 %v6763
    %7666 = vmatprep.subr.bf16.mxu0 %v6772
    %7667 = vmatpush1.bf16.msra.mxu0 %v6771
    %7668 = vmatprep.subr.bf16.mxu0 %v6780
    %7669 = vmatpush1.bf16.msra.mxu0 %v6779
    %7670 = vmatprep.subr.bf16.mxu0 %v6788
    %7671 = vmatpush1.bf16.msra.mxu0 %v6787
    %7672 = vmatprep.subr.bf16.mxu0 %v6796
    %7673 = vmatpush1.bf16.msra.mxu0 %v6795
    %7674 = vmatprep.subr.bf16.mxu0 %v6804
    %7675 = vmatpush1.bf16.msra.mxu0 %v6803
    %7676 = vmatprep.subr.bf16.mxu0 %v6812
    %7677 = vmatpush1.bf16.msra.mxu0 %v6811
    %7678 = vmatprep.subr.bf16.mxu0 %v6820
    %7679 = vmatpush1.bf16.msra.mxu0 %v6819
    %7680 = vmatprep.subr.bf16.mxu0 %v6828
    %7681 = vmatpush1.bf16.msra.mxu0 %v6827
    %7682 = vmatprep.subr.bf16.mxu0 %v6836
    %7683 = vmatpush1.bf16.msra.mxu0 %v6835
    %7684 = vmatprep.mubr.bf16.mxu0 %v4502
    %7685 = vmatmul.mubr.bf16.gmra.mrb[0].mxu0 %v4501
    %v7686 = vpop.f32.mrb[0].mxu0
    %v7687 = vadd.f32 %v7646, %v7686
    %v7688 = vpop.f32.mrb[0].mxu0
    %v7689 = vadd.f32 %v7648, %v7688
    %v7690 = vpop.f32.mrb[0].mxu0
    %v7691 = vpop.f32.mrb[0].mxu0
    %7692 = vdwg.mxu0
    %7693 = vmatprep.subr.bf16.mxu0 %v6844
    %7694 = vmatpush1.bf16.msra.mxu0 %v6843
    %7695 = vmatprep.subr.bf16.mxu0 %v6852
    %7696 = vmatpush1.bf16.msra.mxu0 %v6851
    %7697 = vmatprep.subr.bf16.mxu0 %v6860
    %7698 = vmatpush1.bf16.msra.mxu0 %v6859
    %7699 = vmatprep.subr.bf16.mxu0 %v6868
    %7700 = vmatpush1.bf16.msra.mxu0 %v6867
    %7701 = vmatprep.subr.bf16.mxu0 %v6876
    %7702 = vmatpush1.bf16.msra.mxu0 %v6875
    %7703 = vmatprep.subr.bf16.mxu0 %v6884
    %7704 = vmatpush1.bf16.msra.mxu0 %v6883
    %7705 = vmatprep.subr.bf16.mxu0 %v6892
    %7706 = vmatpush1.bf16.msra.mxu0 %v6891
    %7707 = vmatprep.subr.bf16.mxu0 %v6900
    %7708 = vmatpush1.bf16.msra.mxu0 %v6899
    %7709 = vmatprep.subr.bf16.mxu0 %v6908
    %7710 = vmatpush1.bf16.msra.mxu0 %v6907
    %7711 = vmatprep.subr.bf16.mxu0 %v6916
    %7712 = vmatpush1.bf16.msra.mxu0 %v6915
    %7713 = vmatprep.subr.bf16.mxu0 %v6924
    %7714 = vmatpush1.bf16.msra.mxu0 %v6923
    %7715 = vmatprep.subr.bf16.mxu0 %v6932
    %7716 = vmatpush1.bf16.msra.mxu0 %v6931
    %7717 = vmatprep.subr.bf16.mxu0 %v6940
    %7718 = vmatpush1.bf16.msra.mxu0 %v6939
    %7719 = vmatprep.subr.bf16.mxu0 %v6948
    %7720 = vmatpush1.bf16.msra.mxu0 %v6947
    %7721 = vmatprep.subr.bf16.mxu0 %v6956
    %7722 = vmatpush1.bf16.msra.mxu0 %v6955
    %7723 = vmatprep.subr.bf16.mxu0 %v6964
    %7724 = vmatpush1.bf16.msra.mxu0 %v6963
    %7725 = vmatprep.mubr.bf16.mxu0 %v4504
    %7726 = vmatmul.mubr.bf16.gmra.mrb[0].mxu0 %v4503
    %v7727 = vpop.f32.mrb[0].mxu0
    %v7728 = vadd.f32 %v7687, %v7727
    %v7729 = vpop.f32.mrb[0].mxu0
    %v7730 = vadd.f32 %v7689, %v7729
    %v7731 = vpop.f32.mrb[0].mxu0
    %v7732 = vpop.f32.mrb[0].mxu0
    %7733 = vdwg.mxu0
    %7734 = vmatprep.subr.bf16.mxu0 %v6972
    %7735 = vmatpush1.bf16.msra.mxu0 %v6971
    %7736 = vmatprep.subr.bf16.mxu0 %v6980
    %7737 = vmatpush1.bf16.msra.mxu0 %v6979
    %7738 = vmatprep.subr.bf16.mxu0 %v6988
    %7739 = vmatpush1.bf16.msra.mxu0 %v6987
    %7740 = vmatprep.subr.bf16.mxu0 %v6996
    %7741 = vmatpush1.bf16.msra.mxu0 %v6995
    %7742 = vmatprep.subr.bf16.mxu0 %v7004
    %7743 = vmatpush1.bf16.msra.mxu0 %v7003
    %7744 = vmatprep.subr.bf16.mxu0 %v7012
    %7745 = vmatpush1.bf16.msra.mxu0 %v7011
    %7746 = vmatprep.subr.bf16.mxu0 %v7020
    %7747 = vmatpush1.bf16.msra.mxu0 %v7019
    %7748 = vmatprep.subr.bf16.mxu0 %v7028
    %7749 = vmatpush1.bf16.msra.mxu0 %v7027
    %7750 = vmatprep.subr.bf16.mxu0 %v7036
    %7751 = vmatpush1.bf16.msra.mxu0 %v7035
    %7752 = vmatprep.subr.bf16.mxu0 %v7044
    %7753 = vmatpush1.bf16.msra.mxu0 %v7043
    %7754 = vmatprep.subr.bf16.mxu0 %v7052
    %7755 = vmatpush1.bf16.msra.mxu0 %v7051
    %7756 = vmatprep.subr.bf16.mxu0 %v7060
    %7757 = vmatpush1.bf16.msra.mxu0 %v7059
    %7758 = vmatprep.subr.bf16.mxu0 %v7068
    %7759 = vmatpush1.bf16.msra.mxu0 %v7067
    %7760 = vmatprep.subr.bf16.mxu0 %v7076
    %7761 = vmatpush1.bf16.msra.mxu0 %v7075
    %7762 = vmatprep.subr.bf16.mxu0 %v7084
    %7763 = vmatpush1.bf16.msra.mxu0 %v7083
    %7764 = vmatprep.subr.bf16.mxu0 %v7092
    %7765 = vmatpush1.bf16.msra.mxu0 %v7091
    %7766 = vmatprep.mubr.bf16.mxu0 %v4506
    %7767 = vmatmul.mubr.bf16.gmra.mrb[0].mxu0 %v4505
    %v7768 = vpop.f32.mrb[0].mxu0
    %v7769 = vadd.f32 %v7728, %v7768
    %v7770 = vpop.f32.mrb[0].mxu0
    %v7771 = vadd.f32 %v7730, %v7770
    %v7772 = vpop.f32.mrb[0].mxu0
    %v7773 = vpop.f32.mrb[0].mxu0
    %7774 = vdwg.mxu0
    %7775 = vmatprep.subr.bf16.mxu0 %v6590
    %7776 = vmatpush1.bf16.msra.mxu0 %v6589
    %7777 = vmatprep.subr.bf16.mxu0 %v6598
    %7778 = vmatpush1.bf16.msra.mxu0 %v6597
    %7779 = vmatprep.subr.bf16.mxu0 %v6606
    %7780 = vmatpush1.bf16.msra.mxu0 %v6605
    %7781 = vmatprep.subr.bf16.mxu0 %v6614
    %7782 = vmatpush1.bf16.msra.mxu0 %v6613
    %7783 = vmatprep.subr.bf16.mxu0 %v6622
    %7784 = vmatpush1.bf16.msra.mxu0 %v6621
    %7785 = vmatprep.subr.bf16.mxu0 %v6630
    %7786 = vmatpush1.bf16.msra.mxu0 %v6629
    %7787 = vmatprep.subr.bf16.mxu0 %v6638
    %7788 = vmatpush1.bf16.msra.mxu0 %v6637
    %7789 = vmatprep.subr.bf16.mxu0 %v6646
    %7790 = vmatpush1.bf16.msra.mxu0 %v6645
    %7791 = vmatprep.subr.bf16.mxu0 %v6654
    %7792 = vmatpush1.bf16.msra.mxu0 %v6653
    %7793 = vmatprep.subr.bf16.mxu0 %v6662
    %7794 = vmatpush1.bf16.msra.mxu0 %v6661
    %7795 = vmatprep.subr.bf16.mxu0 %v6670
    %7796 = vmatpush1.bf16.msra.mxu0 %v6669
    %7797 = vmatprep.subr.bf16.mxu0 %v6678
    %7798 = vmatpush1.bf16.msra.mxu0 %v6677
    %7799 = vmatprep.subr.bf16.mxu0 %v6686
    %7800 = vmatpush1.bf16.msra.mxu0 %v6685
    %7801 = vmatprep.subr.bf16.mxu0 %v6694
    %7802 = vmatpush1.bf16.msra.mxu0 %v6693
    %7803 = vmatprep.subr.bf16.mxu0 %v6702
    %7804 = vmatpush1.bf16.msra.mxu0 %v6701
    %7805 = vmatprep.subr.bf16.mxu0 %v6710
    %7806 = vmatpush1.bf16.msra.mxu0 %v6709
    %7807 = vmatprep.mubr.bf16.mxu0 %v4500
    %7808 = vmatmul.mubr.bf16.gmra.mrb[0].mxu0 %v4499
    %v7809 = vpop.f32.mrb[0].mxu0
    %v7810 = vadd.f32 %v5030, %v7809
    %v7811 = vpop.f32.mrb[0].mxu0
    %v7812 = vadd.f32 %v5034, %v7811
    %v7813 = vpop.f32.mrb[0].mxu0
    %v7814 = vpop.f32.mrb[0].mxu0
    %7815 = vdwg.mxu0
    %7816 = vmatprep.subr.bf16.mxu0 %v6718
    %7817 = vmatpush1.bf16.msra.mxu0 %v6717
    %7818 = vmatprep.subr.bf16.mxu0 %v6726
    %7819 = vmatpush1.bf16.msra.mxu0 %v6725
    %7820 = vmatprep.subr.bf16.mxu0 %v6734
    %7821 = vmatpush1.bf16.msra.mxu0 %v6733
    %7822 = vmatprep.subr.bf16.mxu0 %v6742
    %7823 = vmatpush1.bf16.msra.mxu0 %v6741
    %7824 = vmatprep.subr.bf16.mxu0 %v6750
    %7825 = vmatpush1.bf16.msra.mxu0 %v6749
    %7826 = vmatprep.subr.bf16.mxu0 %v6758
    %7827 = vmatpush1.bf16.msra.mxu0 %v6757
    %7828 = vmatprep.subr.bf16.mxu0 %v6766
    %7829 = vmatpush1.bf16.msra.mxu0 %v6765
    %7830 = vmatprep.subr.bf16.mxu0 %v6774
    %7831 = vmatpush1.bf16.msra.mxu0 %v6773
    %7832 = vmatprep.subr.bf16.mxu0 %v6782
    %7833 = vmatpush1.bf16.msra.mxu0 %v6781
    %7834 = vmatprep.subr.bf16.mxu0 %v6790
    %7835 = vmatpush1.bf16.msra.mxu0 %v6789
    %7836 = vmatprep.subr.bf16.mxu0 %v6798
    %7837 = vmatpush1.bf16.msra.mxu0 %v6797
    %7838 = vmatprep.subr.bf16.mxu0 %v6806
    %7839 = vmatpush1.bf16.msra.mxu0 %v6805
    %7840 = vmatprep.subr.bf16.mxu0 %v6814
    %7841 = vmatpush1.bf16.msra.mxu0 %v6813
    %7842 = vmatprep.subr.bf16.mxu0 %v6822
    %7843 = vmatpush1.bf16.msra.mxu0 %v6821
    %7844 = vmatprep.subr.bf16.mxu0 %v6830
    %7845 = vmatpush1.bf16.msra.mxu0 %v6829
    %7846 = vmatprep.subr.bf16.mxu0 %v6838
    %7847 = vmatpush1.bf16.msra.mxu0 %v6837
    %7848 = vmatprep.mubr.bf16.mxu0 %v4502
    %7849 = vmatmul.mubr.bf16.gmra.mrb[0].mxu0 %v4501
    %v7850 = vpop.f32.mrb[0].mxu0
    %v7851 = vadd.f32 %v7810, %v7850
    %v7852 = vpop.f32.mrb[0].mxu0
    %v7853 = vadd.f32 %v7812, %v7852
    %v7854 = vpop.f32.mrb[0].mxu0
    %v7855 = vpop.f32.mrb[0].mxu0
    %7856 = vdwg.mxu0
    %7857 = vmatprep.subr.bf16.mxu0 %v6846
    %7858 = vmatpush1.bf16.msra.mxu0 %v6845
    %7859 = vmatprep.subr.bf16.mxu0 %v6854
    %7860 = vmatpush1.bf16.msra.mxu0 %v6853
    %7861 = vmatprep.subr.bf16.mxu0 %v6862
    %7862 = vmatpush1.bf16.msra.mxu0 %v6861
    %7863 = vmatprep.subr.bf16.mxu0 %v6870
    %7864 = vmatpush1.bf16.msra.mxu0 %v6869
    %7865 = vmatprep.subr.bf16.mxu0 %v6878
    %7866 = vmatpush1.bf16.msra.mxu0 %v6877
    %7867 = vmatprep.subr.bf16.mxu0 %v6886
    %7868 = vmatpush1.bf16.msra.mxu0 %v6885
    %7869 = vmatprep.subr.bf16.mxu0 %v6894
    %7870 = vmatpush1.bf16.msra.mxu0 %v6893
    %7871 = vmatprep.subr.bf16.mxu0 %v6902
    %7872 = vmatpush1.bf16.msra.mxu0 %v6901
    %7873 = vmatprep.subr.bf16.mxu0 %v6910
    %7874 = vmatpush1.bf16.msra.mxu0 %v6909
    %7875 = vmatprep.subr.bf16.mxu0 %v6918
    %7876 = vmatpush1.bf16.msra.mxu0 %v6917
    %7877 = vmatprep.subr.bf16.mxu0 %v6926
    %7878 = vmatpush1.bf16.msra.mxu0 %v6925
    %7879 = vmatprep.subr.bf16.mxu0 %v6934
    %7880 = vmatpush1.bf16.msra.mxu0 %v6933
    %7881 = vmatprep.subr.bf16.mxu0 %v6942
    %7882 = vmatpush1.bf16.msra.mxu0 %v6941
    %7883 = vmatprep.subr.bf16.mxu0 %v6950
    %7884 = vmatpush1.bf16.msra.mxu0 %v6949
    %7885 = vmatprep.subr.bf16.mxu0 %v6958
    %7886 = vmatpush1.bf16.msra.mxu0 %v6957
    %7887 = vmatprep.subr.bf16.mxu0 %v6966
    %7888 = vmatpush1.bf16.msra.mxu0 %v6965
    %7889 = vmatprep.mubr.bf16.mxu0 %v4504
    %7890 = vmatmul.mubr.bf16.gmra.mrb[0].mxu0 %v4503
    %v7891 = vpop.f32.mrb[0].mxu0
    %v7892 = vadd.f32 %v7851, %v7891
    %v7893 = vpop.f32.mrb[0].mxu0
    %v7894 = vadd.f32 %v7853, %v7893
    %v7895 = vpop.f32.mrb[0].mxu0
    %v7896 = vpop.f32.mrb[0].mxu0
    %7897 = vdwg.mxu0
    %7898 = vmatprep.subr.bf16.mxu0 %v6974
    %7899 = vmatpush1.bf16.msra.mxu0 %v6973
    %7900 = vmatprep.subr.bf16.mxu0 %v6982
    %7901 = vmatpush1.bf16.msra.mxu0 %v6981
    %7902 = vmatprep.subr.bf16.mxu0 %v6990
    %7903 = vmatpush1.bf16.msra.mxu0 %v6989
    %7904 = vmatprep.subr.bf16.mxu0 %v6998
    %7905 = vmatpush1.bf16.msra.mxu0 %v6997
    %7906 = vmatprep.subr.bf16.mxu0 %v7006
    %7907 = vmatpush1.bf16.msra.mxu0 %v7005
    %7908 = vmatprep.subr.bf16.mxu0 %v7014
    %7909 = vmatpush1.bf16.msra.mxu0 %v7013
    %7910 = vmatprep.subr.bf16.mxu0 %v7022
    %7911 = vmatpush1.bf16.msra.mxu0 %v7021
    %7912 = vmatprep.subr.bf16.mxu0 %v7030
    %7913 = vmatpush1.bf16.msra.mxu0 %v7029
    %7914 = vmatprep.subr.bf16.mxu0 %v7038
    %7915 = vmatpush1.bf16.msra.mxu0 %v7037
    %7916 = vmatprep.subr.bf16.mxu0 %v7046
    %7917 = vmatpush1.bf16.msra.mxu0 %v7045
    %7918 = vmatprep.subr.bf16.mxu0 %v7054
    %7919 = vmatpush1.bf16.msra.mxu0 %v7053
    %7920 = vmatprep.subr.bf16.mxu0 %v7062
    %7921 = vmatpush1.bf16.msra.mxu0 %v7061
    %7922 = vmatprep.subr.bf16.mxu0 %v7070
    %7923 = vmatpush1.bf16.msra.mxu0 %v7069
    %7924 = vmatprep.subr.bf16.mxu0 %v7078
    %7925 = vmatpush1.bf16.msra.mxu0 %v7077
    %7926 = vmatprep.subr.bf16.mxu0 %v7086
    %7927 = vmatpush1.bf16.msra.mxu0 %v7085
    %7928 = vmatprep.subr.bf16.mxu0 %v7094
    %7929 = vmatpush1.bf16.msra.mxu0 %v7093
    %7930 = vmatprep.mubr.bf16.mxu0 %v4506
    %7931 = vmatmul.mubr.bf16.gmra.mrb[0].mxu0 %v4505
    %v7932 = vpop.f32.mrb[0].mxu0
    %v7933 = vadd.f32 %v7892, %v7932
    %v7934 = vpop.f32.mrb[0].mxu0
    %v7935 = vadd.f32 %v7894, %v7934
    %v7936 = vpop.f32.mrb[0].mxu0
    %v7937 = vpop.f32.mrb[0].mxu0
    %7938 = vdwg.mxu0
    %7939 = vmatprep.subr.bf16.mxu0 %v6592
    %7940 = vmatpush1.bf16.msra.mxu0 %v6591
    %7941 = vmatprep.subr.bf16.mxu0 %v6600
    %7942 = vmatpush1.bf16.msra.mxu0 %v6599
    %7943 = vmatprep.subr.bf16.mxu0 %v6608
    %7944 = vmatpush1.bf16.msra.mxu0 %v6607
    %7945 = vmatprep.subr.bf16.mxu0 %v6616
    %7946 = vmatpush1.bf16.msra.mxu0 %v6615
    %7947 = vmatprep.subr.bf16.mxu0 %v6624
    %7948 = vmatpush1.bf16.msra.mxu0 %v6623
    %7949 = vmatprep.subr.bf16.mxu0 %v6632
    %7950 = vmatpush1.bf16.msra.mxu0 %v6631
    %7951 = vmatprep.subr.bf16.mxu0 %v6640
    %7952 = vmatpush1.bf16.msra.mxu0 %v6639
    %7953 = vmatprep.subr.bf16.mxu0 %v6648
    %7954 = vmatpush1.bf16.msra.mxu0 %v6647
    %7955 = vmatprep.subr.bf16.mxu0 %v6656
    %7956 = vmatpush1.bf16.msra.mxu0 %v6655
    %7957 = vmatprep.subr.bf16.mxu0 %v6664
    %7958 = vmatpush1.bf16.msra.mxu0 %v6663
    %7959 = vmatprep.subr.bf16.mxu0 %v6672
    %7960 = vmatpush1.bf16.msra.mxu0 %v6671
    %7961 = vmatprep.subr.bf16.mxu0 %v6680
    %7962 = vmatpush1.bf16.msra.mxu0 %v6679
    %7963 = vmatprep.subr.bf16.mxu0 %v6688
    %7964 = vmatpush1.bf16.msra.mxu0 %v6687
    %7965 = vmatprep.subr.bf16.mxu0 %v6696
    %7966 = vmatpush1.bf16.msra.mxu0 %v6695
    %7967 = vmatprep.subr.bf16.mxu0 %v6704
    %7968 = vmatpush1.bf16.msra.mxu0 %v6703
    %7969 = vmatprep.subr.bf16.mxu0 %v6712
    %7970 = vmatpush1.bf16.msra.mxu0 %v6711
    %7971 = vmatprep.mubr.bf16.mxu0 %v4500
    %7972 = vmatmul.mubr.bf16.gmra.mrb[0].mxu0 %v4499
    %v7973 = vpop.f32.mrb[0].mxu0
    %v7974 = vadd.f32 %v5038, %v7973
    %v7975 = vpop.f32.mrb[0].mxu0
    %v7976 = vadd.f32 %v5042, %v7975
    %v7977 = vpop.f32.mrb[0].mxu0
    %v7978 = vpop.f32.mrb[0].mxu0
    %7979 = vdwg.mxu0
    %7980 = vmatprep.subr.bf16.mxu0 %v6720
    %7981 = vmatpush1.bf16.msra.mxu0 %v6719
    %7982 = vmatprep.subr.bf16.mxu0 %v6728
    %7983 = vmatpush1.bf16.msra.mxu0 %v6727
    %7984 = vmatprep.subr.bf16.mxu0 %v6736
    %7985 = vmatpush1.bf16.msra.mxu0 %v6735
    %7986 = vmatprep.subr.bf16.mxu0 %v6744
    %7987 = vmatpush1.bf16.msra.mxu0 %v6743
    %7988 = vmatprep.subr.bf16.mxu0 %v6752
    %7989 = vmatpush1.bf16.msra.mxu0 %v6751
    %7990 = vmatprep.subr.bf16.mxu0 %v6760
    %7991 = vmatpush1.bf16.msra.mxu0 %v6759
    %7992 = vmatprep.subr.bf16.mxu0 %v6768
    %7993 = vmatpush1.bf16.msra.mxu0 %v6767
    %7994 = vmatprep.subr.bf16.mxu0 %v6776
    %7995 = vmatpush1.bf16.msra.mxu0 %v6775
    %7996 = vmatprep.subr.bf16.mxu0 %v6784
    %7997 = vmatpush1.bf16.msra.mxu0 %v6783
    %7998 = vmatprep.subr.bf16.mxu0 %v6792
    %7999 = vmatpush1.bf16.msra.mxu0 %v6791
    %8000 = vmatprep.subr.bf16.mxu0 %v6800
    %8001 = vmatpush1.bf16.msra.mxu0 %v6799
    %8002 = vmatprep.subr.bf16.mxu0 %v6808
    %8003 = vmatpush1.bf16.msra.mxu0 %v6807
    %8004 = vmatprep.subr.bf16.mxu0 %v6816
    %8005 = vmatpush1.bf16.msra.mxu0 %v6815
    %8006 = vmatprep.subr.bf16.mxu0 %v6824
    %8007 = vmatpush1.bf16.msra.mxu0 %v6823
    %8008 = vmatprep.subr.bf16.mxu0 %v6832
    %8009 = vmatpush1.bf16.msra.mxu0 %v6831
    %8010 = vmatprep.subr.bf16.mxu0 %v6840
    %8011 = vmatpush1.bf16.msra.mxu0 %v6839
    %8012 = vmatprep.mubr.bf16.mxu0 %v4502
    %8013 = vmatmul.mubr.bf16.gmra.mrb[0].mxu0 %v4501
    %v8014 = vpop.f32.mrb[0].mxu0
    %v8015 = vadd.f32 %v7974, %v8014
    %v8016 = vpop.f32.mrb[0].mxu0
    %v8017 = vadd.f32 %v7976, %v8016
    %v8018 = vpop.f32.mrb[0].mxu0
    %v8019 = vpop.f32.mrb[0].mxu0
    %8020 = vdwg.mxu0
    %8021 = vmatprep.subr.bf16.mxu0 %v6848
    %8022 = vmatpush1.bf16.msra.mxu0 %v6847
    %8023 = vmatprep.subr.bf16.mxu0 %v6856
    %8024 = vmatpush1.bf16.msra.mxu0 %v6855
    %8025 = vmatprep.subr.bf16.mxu0 %v6864
    %8026 = vmatpush1.bf16.msra.mxu0 %v6863
    %8027 = vmatprep.subr.bf16.mxu0 %v6872
    %8028 = vmatpush1.bf16.msra.mxu0 %v6871
    %8029 = vmatprep.subr.bf16.mxu0 %v6880
    %8030 = vmatpush1.bf16.msra.mxu0 %v6879
    %8031 = vmatprep.subr.bf16.mxu0 %v6888
    %8032 = vmatpush1.bf16.msra.mxu0 %v6887
    %8033 = vmatprep.subr.bf16.mxu0 %v6896
    %8034 = vmatpush1.bf16.msra.mxu0 %v6895
    %8035 = vmatprep.subr.bf16.mxu0 %v6904
    %8036 = vmatpush1.bf16.msra.mxu0 %v6903
    %8037 = vmatprep.subr.bf16.mxu0 %v6912
    %8038 = vmatpush1.bf16.msra.mxu0 %v6911
    %8039 = vmatprep.subr.bf16.mxu0 %v6920
    %8040 = vmatpush1.bf16.msra.mxu0 %v6919
    %8041 = vmatprep.subr.bf16.mxu0 %v6928
    %8042 = vmatpush1.bf16.msra.mxu0 %v6927
    %8043 = vmatprep.subr.bf16.mxu0 %v6936
    %8044 = vmatpush1.bf16.msra.mxu0 %v6935
    %8045 = vmatprep.subr.bf16.mxu0 %v6944
    %8046 = vmatpush1.bf16.msra.mxu0 %v6943
    %8047 = vmatprep.subr.bf16.mxu0 %v6952
    %8048 = vmatpush1.bf16.msra.mxu0 %v6951
    %8049 = vmatprep.subr.bf16.mxu0 %v6960
    %8050 = vmatpush1.bf16.msra.mxu0 %v6959
    %8051 = vmatprep.subr.bf16.mxu0 %v6968
    %8052 = vmatpush1.bf16.msra.mxu0 %v6967
    %8053 = vmatprep.mubr.bf16.mxu0 %v4504
    %8054 = vmatmul.mubr.bf16.gmra.mrb[0].mxu0 %v4503
    %v8055 = vpop.f32.mrb[0].mxu0
    %v8056 = vadd.f32 %v8015, %v8055
    %v8057 = vpop.f32.mrb[0].mxu0
    %v8058 = vadd.f32 %v8017, %v8057
    %v8059 = vpop.f32.mrb[0].mxu0
    %v8060 = vpop.f32.mrb[0].mxu0
    %8061 = vdwg.mxu0
    %8062 = vmatprep.subr.bf16.mxu0 %v6976
    %8063 = vmatpush1.bf16.msra.mxu0 %v6975
    %8064 = vmatprep.subr.bf16.mxu0 %v6984
    %8065 = vmatpush1.bf16.msra.mxu0 %v6983
    %8066 = vmatprep.subr.bf16.mxu0 %v6992
    %8067 = vmatpush1.bf16.msra.mxu0 %v6991
    %8068 = vmatprep.subr.bf16.mxu0 %v7000
    %8069 = vmatpush1.bf16.msra.mxu0 %v6999
    %8070 = vmatprep.subr.bf16.mxu0 %v7008
    %8071 = vmatpush1.bf16.msra.mxu0 %v7007
    %8072 = vmatprep.subr.bf16.mxu0 %v7016
    %8073 = vmatpush1.bf16.msra.mxu0 %v7015
    %8074 = vmatprep.subr.bf16.mxu0 %v7024
    %8075 = vmatpush1.bf16.msra.mxu0 %v7023
    %8076 = vmatprep.subr.bf16.mxu0 %v7032
    %8077 = vmatpush1.bf16.msra.mxu0 %v7031
    %8078 = vmatprep.subr.bf16.mxu0 %v7040
    %8079 = vmatpush1.bf16.msra.mxu0 %v7039
    %8080 = vmatprep.subr.bf16.mxu0 %v7048
    %8081 = vmatpush1.bf16.msra.mxu0 %v7047
    %8082 = vmatprep.subr.bf16.mxu0 %v7056
    %8083 = vmatpush1.bf16.msra.mxu0 %v7055
    %8084 = vmatprep.subr.bf16.mxu0 %v7064
    %8085 = vmatpush1.bf16.msra.mxu0 %v7063
    %8086 = vmatprep.subr.bf16.mxu0 %v7072
    %8087 = vmatpush1.bf16.msra.mxu0 %v7071
    %8088 = vmatprep.subr.bf16.mxu0 %v7080
    %8089 = vmatpush1.bf16.msra.mxu0 %v7079
    %8090 = vmatprep.subr.bf16.mxu0 %v7088
    %8091 = vmatpush1.bf16.msra.mxu0 %v7087
    %8092 = vmatprep.subr.bf16.mxu0 %v7096
    %8093 = vmatpush1.bf16.msra.mxu0 %v7095
    %8094 = vmatprep.mubr.bf16.mxu0 %v4506
    %8095 = vmatmul.mubr.bf16.gmra.mrb[0].mxu0 %v4505
    %v8096 = vpop.f32.mrb[0].mxu0
    %v8097 = vadd.f32 %v8056, %v8096
    %v8098 = vpop.f32.mrb[0].mxu0
    %v8099 = vadd.f32 %v8058, %v8098
    %v8100 = vpop.f32.mrb[0].mxu0
    %v8101 = vpop.f32.mrb[0].mxu0
    %8102 = vdwg.mxu0
    %8103 = vmatprep.subr.bf16.mxu0 %v6594
    %8104 = vmatpush1.bf16.msra.mxu0 %v6593
    %8105 = vmatprep.subr.bf16.mxu0 %v6602
    %8106 = vmatpush1.bf16.msra.mxu0 %v6601
    %8107 = vmatprep.subr.bf16.mxu0 %v6610
    %8108 = vmatpush1.bf16.msra.mxu0 %v6609
    %8109 = vmatprep.subr.bf16.mxu0 %v6618
    %8110 = vmatpush1.bf16.msra.mxu0 %v6617
    %8111 = vmatprep.subr.bf16.mxu0 %v6626
    %8112 = vmatpush1.bf16.msra.mxu0 %v6625
    %8113 = vmatprep.subr.bf16.mxu0 %v6634
    %8114 = vmatpush1.bf16.msra.mxu0 %v6633
    %8115 = vmatprep.subr.bf16.mxu0 %v6642
    %8116 = vmatpush1.bf16.msra.mxu0 %v6641
    %8117 = vmatprep.subr.bf16.mxu0 %v6650
    %8118 = vmatpush1.bf16.msra.mxu0 %v6649
    %8119 = vmatprep.subr.bf16.mxu0 %v6658
    %8120 = vmatpush1.bf16.msra.mxu0 %v6657
    %8121 = vmatprep.subr.bf16.mxu0 %v6666
    %8122 = vmatpush1.bf16.msra.mxu0 %v6665
    %8123 = vmatprep.subr.bf16.mxu0 %v6674
    %8124 = vmatpush1.bf16.msra.mxu0 %v6673
    %8125 = vmatprep.subr.bf16.mxu0 %v6682
    %8126 = vmatpush1.bf16.msra.mxu0 %v6681
    %8127 = vmatprep.subr.bf16.mxu0 %v6690
    %8128 = vmatpush1.bf16.msra.mxu0 %v6689
    %8129 = vmatprep.subr.bf16.mxu0 %v6698
    %8130 = vmatpush1.bf16.msra.mxu0 %v6697
    %8131 = vmatprep.subr.bf16.mxu0 %v6706
    %8132 = vmatpush1.bf16.msra.mxu0 %v6705
    %8133 = vmatprep.subr.bf16.mxu0 %v6714
    %8134 = vmatpush1.bf16.msra.mxu0 %v6713
    %8135 = vmatprep.mubr.bf16.mxu0 %v4500
    %8136 = vmatmul.mubr.bf16.gmra.mrb[0].mxu0 %v4499
    %v8137 = vpop.f32.mrb[0].mxu0
    %v8138 = vadd.f32 %v5046, %v8137
    %v8139 = vpop.f32.mrb[0].mxu0
    %v8140 = vadd.f32 %v5050, %v8139
    %v8141 = vpop.f32.mrb[0].mxu0
    %v8142 = vpop.f32.mrb[0].mxu0
    %8143 = vdwg.mxu0
    %8144 = vmatprep.subr.bf16.mxu0 %v6722
    %8145 = vmatpush1.bf16.msra.mxu0 %v6721
    %8146 = vmatprep.subr.bf16.mxu0 %v6730
    %8147 = vmatpush1.bf16.msra.mxu0 %v6729
    %8148 = vmatprep.subr.bf16.mxu0 %v6738
    %8149 = vmatpush1.bf16.msra.mxu0 %v6737
    %8150 = vmatprep.subr.bf16.mxu0 %v6746
    %8151 = vmatpush1.bf16.msra.mxu0 %v6745
    %8152 = vmatprep.subr.bf16.mxu0 %v6754
    %8153 = vmatpush1.bf16.msra.mxu0 %v6753
    %8154 = vmatprep.subr.bf16.mxu0 %v6762
    %8155 = vmatpush1.bf16.msra.mxu0 %v6761
    %8156 = vmatprep.subr.bf16.mxu0 %v6770
    %8157 = vmatpush1.bf16.msra.mxu0 %v6769
    %8158 = vmatprep.subr.bf16.mxu0 %v6778
    %8159 = vmatpush1.bf16.msra.mxu0 %v6777
    %8160 = vmatprep.subr.bf16.mxu0 %v6786
    %8161 = vmatpush1.bf16.msra.mxu0 %v6785
    %8162 = vmatprep.subr.bf16.mxu0 %v6794
    %8163 = vmatpush1.bf16.msra.mxu0 %v6793
    %8164 = vmatprep.subr.bf16.mxu0 %v6802
    %8165 = vmatpush1.bf16.msra.mxu0 %v6801
    %8166 = vmatprep.subr.bf16.mxu0 %v6810
    %8167 = vmatpush1.bf16.msra.mxu0 %v6809
    %8168 = vmatprep.subr.bf16.mxu0 %v6818
    %8169 = vmatpush1.bf16.msra.mxu0 %v6817
    %8170 = vmatprep.subr.bf16.mxu0 %v6826
    %8171 = vmatpush1.bf16.msra.mxu0 %v6825
    %8172 = vmatprep.subr.bf16.mxu0 %v6834
    %8173 = vmatpush1.bf16.msra.mxu0 %v6833
    %8174 = vmatprep.subr.bf16.mxu0 %v6842
    %8175 = vmatpush1.bf16.msra.mxu0 %v6841
    %8176 = vmatprep.mubr.bf16.mxu0 %v4502
    %8177 = vmatmul.mubr.bf16.gmra.mrb[0].mxu0 %v4501
    %v8178 = vpop.f32.mrb[0].mxu0
    %v8179 = vadd.f32 %v8138, %v8178
    %v8180 = vpop.f32.mrb[0].mxu0
    %v8181 = vadd.f32 %v8140, %v8180
    %v8182 = vpop.f32.mrb[0].mxu0
    %v8183 = vpop.f32.mrb[0].mxu0
    %8184 = vdwg.mxu0
    %8185 = vmatprep.subr.bf16.mxu0 %v6850
    %8186 = vmatpush1.bf16.msra.mxu0 %v6849
    %8187 = vmatprep.subr.bf16.mxu0 %v6858
    %8188 = vmatpush1.bf16.msra.mxu0 %v6857
    %8189 = vmatprep.subr.bf16.mxu0 %v6866
    %8190 = vmatpush1.bf16.msra.mxu0 %v6865
    %8191 = vmatprep.subr.bf16.mxu0 %v6874
    %8192 = vmatpush1.bf16.msra.mxu0 %v6873
    %8193 = vmatprep.subr.bf16.mxu0 %v6882
    %8194 = vmatpush1.bf16.msra.mxu0 %v6881
    %8195 = vmatprep.subr.bf16.mxu0 %v6890
    %8196 = vmatpush1.bf16.msra.mxu0 %v6889
    %8197 = vmatprep.subr.bf16.mxu0 %v6898
    %8198 = vmatpush1.bf16.msra.mxu0 %v6897
    %8199 = vmatprep.subr.bf16.mxu0 %v6906
    %8200 = vmatpush1.bf16.msra.mxu0 %v6905
    %8201 = vmatprep.subr.bf16.mxu0 %v6914
    %8202 = vmatpush1.bf16.msra.mxu0 %v6913
    %8203 = vmatprep.subr.bf16.mxu0 %v6922
    %8204 = vmatpush1.bf16.msra.mxu0 %v6921
    %8205 = vmatprep.subr.bf16.mxu0 %v6930
    %8206 = vmatpush1.bf16.msra.mxu0 %v6929
    %8207 = vmatprep.subr.bf16.mxu0 %v6938
    %8208 = vmatpush1.bf16.msra.mxu0 %v6937
    %8209 = vmatprep.subr.bf16.mxu0 %v6946
    %8210 = vmatpush1.bf16.msra.mxu0 %v6945
    %8211 = vmatprep.subr.bf16.mxu0 %v6954
    %8212 = vmatpush1.bf16.msra.mxu0 %v6953
    %8213 = vmatprep.subr.bf16.mxu0 %v6962
    %8214 = vmatpush1.bf16.msra.mxu0 %v6961
    %8215 = vmatprep.subr.bf16.mxu0 %v6970
    %8216 = vmatpush1.bf16.msra.mxu0 %v6969
    %8217 = vmatprep.mubr.bf16.mxu0 %v4504
    %8218 = vmatmul.mubr.bf16.gmra.mrb[0].mxu0 %v4503
    %v8219 = vpop.f32.mrb[0].mxu0
    %v8220 = vadd.f32 %v8179, %v8219
    %v8221 = vpop.f32.mrb[0].mxu0
    %v8222 = vadd.f32 %v8181, %v8221
    %v8223 = vpop.f32.mrb[0].mxu0
    %v8224 = vpop.f32.mrb[0].mxu0
    %8225 = vdwg.mxu0
    %8226 = vmatprep.subr.bf16.mxu0 %v6978
    %8227 = vmatpush1.bf16.msra.mxu0 %v6977
    %8228 = vmatprep.subr.bf16.mxu0 %v6986
    %8229 = vmatpush1.bf16.msra.mxu0 %v6985
    %8230 = vmatprep.subr.bf16.mxu0 %v6994
    %8231 = vmatpush1.bf16.msra.mxu0 %v6993
    %8232 = vmatprep.subr.bf16.mxu0 %v7002
    %8233 = vmatpush1.bf16.msra.mxu0 %v7001
    %8234 = vmatprep.subr.bf16.mxu0 %v7010
    %8235 = vmatpush1.bf16.msra.mxu0 %v7009
    %8236 = vmatprep.subr.bf16.mxu0 %v7018
    %8237 = vmatpush1.bf16.msra.mxu0 %v7017
    %8238 = vmatprep.subr.bf16.mxu0 %v7026
    %8239 = vmatpush1.bf16.msra.mxu0 %v7025
    %8240 = vmatprep.subr.bf16.mxu0 %v7034
    %8241 = vmatpush1.bf16.msra.mxu0 %v7033
    %8242 = vmatprep.subr.bf16.mxu0 %v7042
    %8243 = vmatpush1.bf16.msra.mxu0 %v7041
    %8244 = vmatprep.subr.bf16.mxu0 %v7050
    %8245 = vmatpush1.bf16.msra.mxu0 %v7049
    %8246 = vmatprep.subr.bf16.mxu0 %v7058
    %8247 = vmatpush1.bf16.msra.mxu0 %v7057
    %8248 = vmatprep.subr.bf16.mxu0 %v7066
    %8249 = vmatpush1.bf16.msra.mxu0 %v7065
    %8250 = vmatprep.subr.bf16.mxu0 %v7074
    %8251 = vmatpush1.bf16.msra.mxu0 %v7073
    %8252 = vmatprep.subr.bf16.mxu0 %v7082
    %8253 = vmatpush1.bf16.msra.mxu0 %v7081
    %8254 = vmatprep.subr.bf16.mxu0 %v7090
    %8255 = vmatpush1.bf16.msra.mxu0 %v7089
    %8256 = vmatprep.subr.bf16.mxu0 %v7098
    %8257 = vmatpush1.bf16.msra.mxu0 %v7097
    %8258 = vmatprep.mubr.bf16.mxu0 %v4506
    %8259 = vmatmul.mubr.bf16.gmra.mrb[0].mxu0 %v4505
    %v8260 = vpop.f32.mrb[0].mxu0
    %v8261 = vadd.f32 %v8220, %v8260
    %v8262 = vpop.f32.mrb[0].mxu0
    %v8263 = vadd.f32 %v8222, %v8262
    %v8264 = vpop.f32.mrb[0].mxu0
    %v8265 = vpop.f32.mrb[0].mxu0
    %8266 = vdwg.mxu0
    %v8267 = vmax.f32 %v7769, 0.0
    %v8268 = vmax.f32 %v7771, 0.0
    %v8269 = vmax.f32 %v7933, 0.0
    %v8270 = vmax.f32 %v7935, 0.0
    %v8271 = vmax.f32 %v8097, 0.0
    %v8272 = vmax.f32 %v8099, 0.0
    %v8273 = vmax.f32 %v8261, 0.0
    %v8274 = vmax.f32 %v8263, 0.0
    %v8275 = vpack.c.bf16 %v8267, %v8267
    %v8276 = vpack.c.bf16 %v8268, %v8268
    %v8277 = vpack.c.bf16 %v8269, %v8269
    %v8278 = vpack.c.bf16 %v8270, %v8270
    %v8279 = vpack.c.bf16 %v8271, %v8271
    %v8280 = vpack.c.bf16 %v8272, %v8272
    %v8281 = vpack.c.bf16 %v8273, %v8273
    %v8282 = vpack.c.bf16 %v8274, %v8274
    %v8283 = vld [vmem:[#allocation10] sm:$0xff]
    %v8284 = vld [vmem:[#allocation10 + $0x8] sm:$0xff]
    %v8285 = vld [vmem:[#allocation10 + $0x10] sm:$0xff]
    %v8286 = vld [vmem:[#allocation10 + $0x18] sm:$0xff]
    %v8287 = vld [vmem:[#allocation10 + $0x20] sm:$0xff]
    %v8288 = vld [vmem:[#allocation10 + $0x28] sm:$0xff]
    %v8289 = vld [vmem:[#allocation10 + $0x30] sm:$0xff]
    %v8290 = vld [vmem:[#allocation10 + $0x38] sm:$0xff]
    %v8291 = vld [vmem:[#allocation10 + $0x40] sm:$0xff]
    %v8292 = vld [vmem:[#allocation10 + $0x48] sm:$0xff]
    %v8293 = vld [vmem:[#allocation10 + $0x50] sm:$0xff]
    %v8294 = vld [vmem:[#allocation10 + $0x58] sm:$0xff]
    %v8295 = vld [vmem:[#allocation10 + $0x60] sm:$0xff]
    %v8296 = vld [vmem:[#allocation10 + $0x68] sm:$0xff]
    %v8297 = vld [vmem:[#allocation10 + $0x70] sm:$0xff]
    %v8298 = vld [vmem:[#allocation10 + $0x78] sm:$0xff]
    %v8299 = vld [vmem:[#allocation10 + $0x80] sm:$0xff]
    %v8300 = vld [vmem:[#allocation10 + $0x88] sm:$0xff]
    %v8301 = vld [vmem:[#allocation10 + $0x90] sm:$0xff]
    %v8302 = vld [vmem:[#allocation10 + $0x98] sm:$0xff]
    %v8303 = vld [vmem:[#allocation10 + $0xa0] sm:$0xff]
    %v8304 = vld [vmem:[#allocation10 + $0xa8] sm:$0xff]
    %v8305 = vld [vmem:[#allocation10 + $0xb0] sm:$0xff]
    %v8306 = vld [vmem:[#allocation10 + $0xb8] sm:$0xff]
    %v8307 = vld [vmem:[#allocation10 + $0xc0] sm:$0xff]
    %v8308 = vld [vmem:[#allocation10 + $0xc8] sm:$0xff]
    %v8309 = vld [vmem:[#allocation10 + $0xd0] sm:$0xff]
    %v8310 = vld [vmem:[#allocation10 + $0xd8] sm:$0xff]
    %v8311 = vld [vmem:[#allocation10 + $0xe0] sm:$0xff]
    %v8312 = vld [vmem:[#allocation10 + $0xe8] sm:$0xff]
    %v8313 = vld [vmem:[#allocation10 + $0xf0] sm:$0xff]
    %v8314 = vld [vmem:[#allocation10 + $0xf8] sm:$0xff]
    %v8315 = vld [vmem:[#allocation10 + $0x100] sm:$0xff]
    %v8316 = vld [vmem:[#allocation10 + $0x108] sm:$0xff]
    %v8317 = vld [vmem:[#allocation10 + $0x110] sm:$0xff]
    %v8318 = vld [vmem:[#allocation10 + $0x118] sm:$0xff]
    %v8319 = vld [vmem:[#allocation10 + $0x120] sm:$0xff]
    %v8320 = vld [vmem:[#allocation10 + $0x128] sm:$0xff]
    %v8321 = vld [vmem:[#allocation10 + $0x130] sm:$0xff]
    %v8322 = vld [vmem:[#allocation10 + $0x138] sm:$0xff]
    %v8323 = vld [vmem:[#allocation10 + $0x140] sm:$0xff]
    %v8324 = vld [vmem:[#allocation10 + $0x148] sm:$0xff]
    %v8325 = vld [vmem:[#allocation10 + $0x150] sm:$0xff]
    %v8326 = vld [vmem:[#allocation10 + $0x158] sm:$0xff]
    %v8327 = vld [vmem:[#allocation10 + $0x160] sm:$0xff]
    %v8328 = vld [vmem:[#allocation10 + $0x168] sm:$0xff]
    %v8329 = vld [vmem:[#allocation10 + $0x170] sm:$0xff]
    %v8330 = vld [vmem:[#allocation10 + $0x178] sm:$0xff]
    %v8331 = vld [vmem:[#allocation10 + $0x180] sm:$0xff]
    %v8332 = vld [vmem:[#allocation10 + $0x188] sm:$0xff]
    %v8333 = vld [vmem:[#allocation10 + $0x190] sm:$0xff]
    %v8334 = vld [vmem:[#allocation10 + $0x198] sm:$0xff]
    %v8335 = vld [vmem:[#allocation10 + $0x1a0] sm:$0xff]
    %v8336 = vld [vmem:[#allocation10 + $0x1a8] sm:$0xff]
    %v8337 = vld [vmem:[#allocation10 + $0x1b0] sm:$0xff]
    %v8338 = vld [vmem:[#allocation10 + $0x1b8] sm:$0xff]
    %v8339 = vld [vmem:[#allocation10 + $0x1c0] sm:$0xff]
    %v8340 = vld [vmem:[#allocation10 + $0x1c8] sm:$0xff]
    %v8341 = vld [vmem:[#allocation10 + $0x1d0] sm:$0xff]
    %v8342 = vld [vmem:[#allocation10 + $0x1d8] sm:$0xff]
    %v8343 = vld [vmem:[#allocation10 + $0x1e0] sm:$0xff]
    %v8344 = vld [vmem:[#allocation10 + $0x1e8] sm:$0xff]
    %v8345 = vld [vmem:[#allocation10 + $0x1f0] sm:$0xff]
    %v8346 = vld [vmem:[#allocation10 + $0x1f8] sm:$0xff]
    %v8347 = vld [vmem:[#allocation10 + $0x200] sm:$0xff]
    %v8348 = vld [vmem:[#allocation10 + $0x208] sm:$0xff]
    %v8349 = vld [vmem:[#allocation10 + $0x210] sm:$0xff]
    %v8350 = vld [vmem:[#allocation10 + $0x218] sm:$0xff]
    %v8351 = vld [vmem:[#allocation10 + $0x220] sm:$0xff]
    %v8352 = vld [vmem:[#allocation10 + $0x228] sm:$0xff]
    %v8353 = vld [vmem:[#allocation10 + $0x230] sm:$0xff]
    %v8354 = vld [vmem:[#allocation10 + $0x238] sm:$0xff]
    %v8355 = vld [vmem:[#allocation10 + $0x240] sm:$0xff]
    %v8356 = vld [vmem:[#allocation10 + $0x248] sm:$0xff]
    %v8357 = vld [vmem:[#allocation10 + $0x250] sm:$0xff]
    %v8358 = vld [vmem:[#allocation10 + $0x258] sm:$0xff]
    %v8359 = vld [vmem:[#allocation10 + $0x260] sm:$0xff]
    %v8360 = vld [vmem:[#allocation10 + $0x268] sm:$0xff]
    %v8361 = vld [vmem:[#allocation10 + $0x270] sm:$0xff]
    %v8362 = vld [vmem:[#allocation10 + $0x278] sm:$0xff]
    %v8363 = vld [vmem:[#allocation10 + $0x280] sm:$0xff]
    %v8364 = vld [vmem:[#allocation10 + $0x288] sm:$0xff]
    %v8365 = vld [vmem:[#allocation10 + $0x290] sm:$0xff]
    %v8366 = vld [vmem:[#allocation10 + $0x298] sm:$0xff]
    %v8367 = vld [vmem:[#allocation10 + $0x2a0] sm:$0xff]
    %v8368 = vld [vmem:[#allocation10 + $0x2a8] sm:$0xff]
    %v8369 = vld [vmem:[#allocation10 + $0x2b0] sm:$0xff]
    %v8370 = vld [vmem:[#allocation10 + $0x2b8] sm:$0xff]
    %v8371 = vld [vmem:[#allocation10 + $0x2c0] sm:$0xff]
    %v8372 = vld [vmem:[#allocation10 + $0x2c8] sm:$0xff]
    %v8373 = vld [vmem:[#allocation10 + $0x2d0] sm:$0xff]
    %v8374 = vld [vmem:[#allocation10 + $0x2d8] sm:$0xff]
    %v8375 = vld [vmem:[#allocation10 + $0x2e0] sm:$0xff]
    %v8376 = vld [vmem:[#allocation10 + $0x2e8] sm:$0xff]
    %v8377 = vld [vmem:[#allocation10 + $0x2f0] sm:$0xff]
    %v8378 = vld [vmem:[#allocation10 + $0x2f8] sm:$0xff]
    %v8379 = vld [vmem:[#allocation10 + $0x300] sm:$0xff]
    %v8380 = vld [vmem:[#allocation10 + $0x308] sm:$0xff]
    %v8381 = vld [vmem:[#allocation10 + $0x310] sm:$0xff]
    %v8382 = vld [vmem:[#allocation10 + $0x318] sm:$0xff]
    %v8383 = vld [vmem:[#allocation10 + $0x320] sm:$0xff]
    %v8384 = vld [vmem:[#allocation10 + $0x328] sm:$0xff]
    %v8385 = vld [vmem:[#allocation10 + $0x330] sm:$0xff]
    %v8386 = vld [vmem:[#allocation10 + $0x338] sm:$0xff]
    %v8387 = vld [vmem:[#allocation10 + $0x340] sm:$0xff]
    %v8388 = vld [vmem:[#allocation10 + $0x348] sm:$0xff]
    %v8389 = vld [vmem:[#allocation10 + $0x350] sm:$0xff]
    %v8390 = vld [vmem:[#allocation10 + $0x358] sm:$0xff]
    %v8391 = vld [vmem:[#allocation10 + $0x360] sm:$0xff]
    %v8392 = vld [vmem:[#allocation10 + $0x368] sm:$0xff]
    %v8393 = vld [vmem:[#allocation10 + $0x370] sm:$0xff]
    %v8394 = vld [vmem:[#allocation10 + $0x378] sm:$0xff]
    %v8395 = vld [vmem:[#allocation10 + $0x380] sm:$0xff]
    %v8396 = vld [vmem:[#allocation10 + $0x388] sm:$0xff]
    %v8397 = vld [vmem:[#allocation10 + $0x390] sm:$0xff]
    %v8398 = vld [vmem:[#allocation10 + $0x398] sm:$0xff]
    %v8399 = vld [vmem:[#allocation10 + $0x3a0] sm:$0xff]
    %v8400 = vld [vmem:[#allocation10 + $0x3a8] sm:$0xff]
    %v8401 = vld [vmem:[#allocation10 + $0x3b0] sm:$0xff]
    %v8402 = vld [vmem:[#allocation10 + $0x3b8] sm:$0xff]
    %v8403 = vld [vmem:[#allocation10 + $0x3c0] sm:$0xff]
    %v8404 = vld [vmem:[#allocation10 + $0x3c8] sm:$0xff]
    %v8405 = vld [vmem:[#allocation10 + $0x3d0] sm:$0xff]
    %v8406 = vld [vmem:[#allocation10 + $0x3d8] sm:$0xff]
    %v8407 = vld [vmem:[#allocation10 + $0x3e0] sm:$0xff]
    %v8408 = vld [vmem:[#allocation10 + $0x3e8] sm:$0xff]
    %v8409 = vld [vmem:[#allocation10 + $0x3f0] sm:$0xff]
    %v8410 = vld [vmem:[#allocation10 + $0x3f8] sm:$0xff]
    %v8411 = vld [vmem:[#allocation10 + $0x400] sm:$0xff]
    %v8412 = vld [vmem:[#allocation10 + $0x408] sm:$0xff]
    %v8413 = vld [vmem:[#allocation10 + $0x410] sm:$0xff]
    %v8414 = vld [vmem:[#allocation10 + $0x418] sm:$0xff]
    %v8415 = vld [vmem:[#allocation10 + $0x420] sm:$0xff]
    %v8416 = vld [vmem:[#allocation10 + $0x428] sm:$0xff]
    %v8417 = vld [vmem:[#allocation10 + $0x430] sm:$0xff]
    %v8418 = vld [vmem:[#allocation10 + $0x438] sm:$0xff]
    %v8419 = vld [vmem:[#allocation10 + $0x440] sm:$0xff]
    %v8420 = vld [vmem:[#allocation10 + $0x448] sm:$0xff]
    %v8421 = vld [vmem:[#allocation10 + $0x450] sm:$0xff]
    %v8422 = vld [vmem:[#allocation10 + $0x458] sm:$0xff]
    %v8423 = vld [vmem:[#allocation10 + $0x460] sm:$0xff]
    %v8424 = vld [vmem:[#allocation10 + $0x468] sm:$0xff]
    %v8425 = vld [vmem:[#allocation10 + $0x470] sm:$0xff]
    %v8426 = vld [vmem:[#allocation10 + $0x478] sm:$0xff]
    %v8427 = vld [vmem:[#allocation10 + $0x480] sm:$0xff]
    %v8428 = vld [vmem:[#allocation10 + $0x488] sm:$0xff]
    %v8429 = vld [vmem:[#allocation10 + $0x490] sm:$0xff]
    %v8430 = vld [vmem:[#allocation10 + $0x498] sm:$0xff]
    %v8431 = vld [vmem:[#allocation10 + $0x4a0] sm:$0xff]
    %v8432 = vld [vmem:[#allocation10 + $0x4a8] sm:$0xff]
    %v8433 = vld [vmem:[#allocation10 + $0x4b0] sm:$0xff]
    %v8434 = vld [vmem:[#allocation10 + $0x4b8] sm:$0xff]
    %v8435 = vld [vmem:[#allocation10 + $0x4c0] sm:$0xff]
    %v8436 = vld [vmem:[#allocation10 + $0x4c8] sm:$0xff]
    %v8437 = vld [vmem:[#allocation10 + $0x4d0] sm:$0xff]
    %v8438 = vld [vmem:[#allocation10 + $0x4d8] sm:$0xff]
    %v8439 = vld [vmem:[#allocation10 + $0x4e0] sm:$0xff]
    %v8440 = vld [vmem:[#allocation10 + $0x4e8] sm:$0xff]
    %v8441 = vld [vmem:[#allocation10 + $0x4f0] sm:$0xff]
    %v8442 = vld [vmem:[#allocation10 + $0x4f8] sm:$0xff]
    %v8443 = vld [vmem:[#allocation10 + $0x500] sm:$0xff]
    %v8444 = vld [vmem:[#allocation10 + $0x508] sm:$0xff]
    %v8445 = vld [vmem:[#allocation10 + $0x510] sm:$0xff]
    %v8446 = vld [vmem:[#allocation10 + $0x518] sm:$0xff]
    %v8447 = vld [vmem:[#allocation10 + $0x520] sm:$0xff]
    %v8448 = vld [vmem:[#allocation10 + $0x528] sm:$0xff]
    %v8449 = vld [vmem:[#allocation10 + $0x530] sm:$0xff]
    %v8450 = vld [vmem:[#allocation10 + $0x538] sm:$0xff]
    %v8451 = vld [vmem:[#allocation10 + $0x540] sm:$0xff]
    %v8452 = vld [vmem:[#allocation10 + $0x548] sm:$0xff]
    %v8453 = vld [vmem:[#allocation10 + $0x550] sm:$0xff]
    %v8454 = vld [vmem:[#allocation10 + $0x558] sm:$0xff]
    %v8455 = vld [vmem:[#allocation10 + $0x560] sm:$0xff]
    %v8456 = vld [vmem:[#allocation10 + $0x568] sm:$0xff]
    %v8457 = vld [vmem:[#allocation10 + $0x570] sm:$0xff]
    %v8458 = vld [vmem:[#allocation10 + $0x578] sm:$0xff]
    %v8459 = vld [vmem:[#allocation10 + $0x580] sm:$0xff]
    %v8460 = vld [vmem:[#allocation10 + $0x588] sm:$0xff]
    %v8461 = vld [vmem:[#allocation10 + $0x590] sm:$0xff]
    %v8462 = vld [vmem:[#allocation10 + $0x598] sm:$0xff]
    %v8463 = vld [vmem:[#allocation10 + $0x5a0] sm:$0xff]
    %v8464 = vld [vmem:[#allocation10 + $0x5a8] sm:$0xff]
    %v8465 = vld [vmem:[#allocation10 + $0x5b0] sm:$0xff]
    %v8466 = vld [vmem:[#allocation10 + $0x5b8] sm:$0xff]
    %v8467 = vld [vmem:[#allocation10 + $0x5c0] sm:$0xff]
    %v8468 = vld [vmem:[#allocation10 + $0x5c8] sm:$0xff]
    %v8469 = vld [vmem:[#allocation10 + $0x5d0] sm:$0xff]
    %v8470 = vld [vmem:[#allocation10 + $0x5d8] sm:$0xff]
    %v8471 = vld [vmem:[#allocation10 + $0x5e0] sm:$0xff]
    %v8472 = vld [vmem:[#allocation10 + $0x5e8] sm:$0xff]
    %v8473 = vld [vmem:[#allocation10 + $0x5f0] sm:$0xff]
    %v8474 = vld [vmem:[#allocation10 + $0x5f8] sm:$0xff]
    %v8475 = vld [vmem:[#allocation10 + $0x600] sm:$0xff]
    %v8476 = vld [vmem:[#allocation10 + $0x608] sm:$0xff]
    %v8477 = vld [vmem:[#allocation10 + $0x610] sm:$0xff]
    %v8478 = vld [vmem:[#allocation10 + $0x618] sm:$0xff]
    %v8479 = vld [vmem:[#allocation10 + $0x620] sm:$0xff]
    %v8480 = vld [vmem:[#allocation10 + $0x628] sm:$0xff]
    %v8481 = vld [vmem:[#allocation10 + $0x630] sm:$0xff]
    %v8482 = vld [vmem:[#allocation10 + $0x638] sm:$0xff]
    %v8483 = vld [vmem:[#allocation10 + $0x640] sm:$0xff]
    %v8484 = vld [vmem:[#allocation10 + $0x648] sm:$0xff]
    %v8485 = vld [vmem:[#allocation10 + $0x650] sm:$0xff]
    %v8486 = vld [vmem:[#allocation10 + $0x658] sm:$0xff]
    %v8487 = vld [vmem:[#allocation10 + $0x660] sm:$0xff]
    %v8488 = vld [vmem:[#allocation10 + $0x668] sm:$0xff]
    %v8489 = vld [vmem:[#allocation10 + $0x670] sm:$0xff]
    %v8490 = vld [vmem:[#allocation10 + $0x678] sm:$0xff]
    %v8491 = vld [vmem:[#allocation10 + $0x680] sm:$0xff]
    %v8492 = vld [vmem:[#allocation10 + $0x688] sm:$0xff]
    %v8493 = vld [vmem:[#allocation10 + $0x690] sm:$0xff]
    %v8494 = vld [vmem:[#allocation10 + $0x698] sm:$0xff]
    %v8495 = vld [vmem:[#allocation10 + $0x6a0] sm:$0xff]
    %v8496 = vld [vmem:[#allocation10 + $0x6a8] sm:$0xff]
    %v8497 = vld [vmem:[#allocation10 + $0x6b0] sm:$0xff]
    %v8498 = vld [vmem:[#allocation10 + $0x6b8] sm:$0xff]
    %v8499 = vld [vmem:[#allocation10 + $0x6c0] sm:$0xff]
    %v8500 = vld [vmem:[#allocation10 + $0x6c8] sm:$0xff]
    %v8501 = vld [vmem:[#allocation10 + $0x6d0] sm:$0xff]
    %v8502 = vld [vmem:[#allocation10 + $0x6d8] sm:$0xff]
    %v8503 = vld [vmem:[#allocation10 + $0x6e0] sm:$0xff]
    %v8504 = vld [vmem:[#allocation10 + $0x6e8] sm:$0xff]
    %v8505 = vld [vmem:[#allocation10 + $0x6f0] sm:$0xff]
    %v8506 = vld [vmem:[#allocation10 + $0x6f8] sm:$0xff]
    %v8507 = vld [vmem:[#allocation10 + $0x700] sm:$0xff]
    %v8508 = vld [vmem:[#allocation10 + $0x708] sm:$0xff]
    %v8509 = vld [vmem:[#allocation10 + $0x710] sm:$0xff]
    %v8510 = vld [vmem:[#allocation10 + $0x718] sm:$0xff]
    %v8511 = vld [vmem:[#allocation10 + $0x720] sm:$0xff]
    %v8512 = vld [vmem:[#allocation10 + $0x728] sm:$0xff]
    %v8513 = vld [vmem:[#allocation10 + $0x730] sm:$0xff]
    %v8514 = vld [vmem:[#allocation10 + $0x738] sm:$0xff]
    %v8515 = vld [vmem:[#allocation10 + $0x740] sm:$0xff]
    %v8516 = vld [vmem:[#allocation10 + $0x748] sm:$0xff]
    %v8517 = vld [vmem:[#allocation10 + $0x750] sm:$0xff]
    %v8518 = vld [vmem:[#allocation10 + $0x758] sm:$0xff]
    %v8519 = vld [vmem:[#allocation10 + $0x760] sm:$0xff]
    %v8520 = vld [vmem:[#allocation10 + $0x768] sm:$0xff]
    %v8521 = vld [vmem:[#allocation10 + $0x770] sm:$0xff]
    %v8522 = vld [vmem:[#allocation10 + $0x778] sm:$0xff]
    %v8523 = vld [vmem:[#allocation10 + $0x780] sm:$0xff]
    %v8524 = vld [vmem:[#allocation10 + $0x788] sm:$0xff]
    %v8525 = vld [vmem:[#allocation10 + $0x790] sm:$0xff]
    %v8526 = vld [vmem:[#allocation10 + $0x798] sm:$0xff]
    %v8527 = vld [vmem:[#allocation10 + $0x7a0] sm:$0xff]
    %v8528 = vld [vmem:[#allocation10 + $0x7a8] sm:$0xff]
    %v8529 = vld [vmem:[#allocation10 + $0x7b0] sm:$0xff]
    %v8530 = vld [vmem:[#allocation10 + $0x7b8] sm:$0xff]
    %v8531 = vld [vmem:[#allocation10 + $0x7c0] sm:$0xff]
    %v8532 = vld [vmem:[#allocation10 + $0x7c8] sm:$0xff]
    %v8533 = vld [vmem:[#allocation10 + $0x7d0] sm:$0xff]
    %v8534 = vld [vmem:[#allocation10 + $0x7d8] sm:$0xff]
    %v8535 = vld [vmem:[#allocation10 + $0x7e0] sm:$0xff]
    %v8536 = vld [vmem:[#allocation10 + $0x7e8] sm:$0xff]
    %v8537 = vld [vmem:[#allocation10 + $0x7f0] sm:$0xff]
    %v8538 = vld [vmem:[#allocation10 + $0x7f8] sm:$0xff]
    %v8539 = vlaneseq
    %v8540 = vshrl.u32 %v8539, 7
    %v8541 = vsub.s32 3, %v8540
    %v8542 = vrot.slane %v125, %v8541
    %v8543 = vlaneseq
    %v8544 = vshrl.u32 %v8543, 7
    %v8545 = vsub.s32 3, %v8544
    %v8546 = vrot.slane %v126, %v8545
    %v8547 = vlaneseq
    %v8548 = vshrl.u32 %v8547, 7
    %v8549 = vsub.s32 3, %v8548
    %v8550 = vrot.slane %v127, %v8549
    %v8551 = vlaneseq
    %v8552 = vshrl.u32 %v8551, 7
    %v8553 = vsub.s32 3, %v8552
    %v8554 = vrot.slane %v128, %v8553
    %v8811 = vunpack.c.l.b16 %v8283
    %v8812 = vunpack.c.h.b16 %v8283
    %v8813 = vunpack.c.l.b16 %v8284
    %v8814 = vunpack.c.h.b16 %v8284
    %v8815 = vunpack.c.l.b16 %v8285
    %v8816 = vunpack.c.h.b16 %v8285
    %v8817 = vunpack.c.l.b16 %v8286
    %v8818 = vunpack.c.h.b16 %v8286
    %v8819 = vunpack.c.l.b16 %v8287
    %v8820 = vunpack.c.h.b16 %v8287
    %v8821 = vunpack.c.l.b16 %v8288
    %v8822 = vunpack.c.h.b16 %v8288
    %v8823 = vunpack.c.l.b16 %v8289
    %v8824 = vunpack.c.h.b16 %v8289
    %v8825 = vunpack.c.l.b16 %v8290
    %v8826 = vunpack.c.h.b16 %v8290
    %v8827 = vunpack.c.l.b16 %v8291
    %v8828 = vunpack.c.h.b16 %v8291
    %v8829 = vunpack.c.l.b16 %v8292
    %v8830 = vunpack.c.h.b16 %v8292
    %v8831 = vunpack.c.l.b16 %v8293
    %v8832 = vunpack.c.h.b16 %v8293
    %v8833 = vunpack.c.l.b16 %v8294
    %v8834 = vunpack.c.h.b16 %v8294
    %v8835 = vunpack.c.l.b16 %v8295
    %v8836 = vunpack.c.h.b16 %v8295
    %v8837 = vunpack.c.l.b16 %v8296
    %v8838 = vunpack.c.h.b16 %v8296
    %v8839 = vunpack.c.l.b16 %v8297
    %v8840 = vunpack.c.h.b16 %v8297
    %v8841 = vunpack.c.l.b16 %v8298
    %v8842 = vunpack.c.h.b16 %v8298
    %v8843 = vunpack.c.l.b16 %v8299
    %v8844 = vunpack.c.h.b16 %v8299
    %v8845 = vunpack.c.l.b16 %v8300
    %v8846 = vunpack.c.h.b16 %v8300
    %v8847 = vunpack.c.l.b16 %v8301
    %v8848 = vunpack.c.h.b16 %v8301
    %v8849 = vunpack.c.l.b16 %v8302
    %v8850 = vunpack.c.h.b16 %v8302
    %v8851 = vunpack.c.l.b16 %v8303
    %v8852 = vunpack.c.h.b16 %v8303
    %v8853 = vunpack.c.l.b16 %v8304
    %v8854 = vunpack.c.h.b16 %v8304
    %v8855 = vunpack.c.l.b16 %v8305
    %v8856 = vunpack.c.h.b16 %v8305
    %v8857 = vunpack.c.l.b16 %v8306
    %v8858 = vunpack.c.h.b16 %v8306
    %v8859 = vunpack.c.l.b16 %v8307
    %v8860 = vunpack.c.h.b16 %v8307
    %v8861 = vunpack.c.l.b16 %v8308
    %v8862 = vunpack.c.h.b16 %v8308
    %v8863 = vunpack.c.l.b16 %v8309
    %v8864 = vunpack.c.h.b16 %v8309
    %v8865 = vunpack.c.l.b16 %v8310
    %v8866 = vunpack.c.h.b16 %v8310
    %v8867 = vunpack.c.l.b16 %v8311
    %v8868 = vunpack.c.h.b16 %v8311
    %v8869 = vunpack.c.l.b16 %v8312
    %v8870 = vunpack.c.h.b16 %v8312
    %v8871 = vunpack.c.l.b16 %v8313
    %v8872 = vunpack.c.h.b16 %v8313
    %v8873 = vunpack.c.l.b16 %v8314
    %v8874 = vunpack.c.h.b16 %v8314
    %v8875 = vunpack.c.l.b16 %v8315
    %v8876 = vunpack.c.h.b16 %v8315
    %v8877 = vunpack.c.l.b16 %v8316
    %v8878 = vunpack.c.h.b16 %v8316
    %v8879 = vunpack.c.l.b16 %v8317
    %v8880 = vunpack.c.h.b16 %v8317
    %v8881 = vunpack.c.l.b16 %v8318
    %v8882 = vunpack.c.h.b16 %v8318
    %v8883 = vunpack.c.l.b16 %v8319
    %v8884 = vunpack.c.h.b16 %v8319
    %v8885 = vunpack.c.l.b16 %v8320
    %v8886 = vunpack.c.h.b16 %v8320
    %v8887 = vunpack.c.l.b16 %v8321
    %v8888 = vunpack.c.h.b16 %v8321
    %v8889 = vunpack.c.l.b16 %v8322
    %v8890 = vunpack.c.h.b16 %v8322
    %v8891 = vunpack.c.l.b16 %v8323
    %v8892 = vunpack.c.h.b16 %v8323
    %v8893 = vunpack.c.l.b16 %v8324
    %v8894 = vunpack.c.h.b16 %v8324
    %v8895 = vunpack.c.l.b16 %v8325
    %v8896 = vunpack.c.h.b16 %v8325
    %v8897 = vunpack.c.l.b16 %v8326
    %v8898 = vunpack.c.h.b16 %v8326
    %v8899 = vunpack.c.l.b16 %v8327
    %v8900 = vunpack.c.h.b16 %v8327
    %v8901 = vunpack.c.l.b16 %v8328
    %v8902 = vunpack.c.h.b16 %v8328
    %v8903 = vunpack.c.l.b16 %v8329
    %v8904 = vunpack.c.h.b16 %v8329
    %v8905 = vunpack.c.l.b16 %v8330
    %v8906 = vunpack.c.h.b16 %v8330
    %v8907 = vunpack.c.l.b16 %v8331
    %v8908 = vunpack.c.h.b16 %v8331
    %v8909 = vunpack.c.l.b16 %v8332
    %v8910 = vunpack.c.h.b16 %v8332
    %v8911 = vunpack.c.l.b16 %v8333
    %v8912 = vunpack.c.h.b16 %v8333
    %v8913 = vunpack.c.l.b16 %v8334
    %v8914 = vunpack.c.h.b16 %v8334
    %v8915 = vunpack.c.l.b16 %v8335
    %v8916 = vunpack.c.h.b16 %v8335
    %v8917 = vunpack.c.l.b16 %v8336
    %v8918 = vunpack.c.h.b16 %v8336
    %v8919 = vunpack.c.l.b16 %v8337
    %v8920 = vunpack.c.h.b16 %v8337
    %v8921 = vunpack.c.l.b16 %v8338
    %v8922 = vunpack.c.h.b16 %v8338
    %v8923 = vunpack.c.l.b16 %v8339
    %v8924 = vunpack.c.h.b16 %v8339
    %v8925 = vunpack.c.l.b16 %v8340
    %v8926 = vunpack.c.h.b16 %v8340
    %v8927 = vunpack.c.l.b16 %v8341
    %v8928 = vunpack.c.h.b16 %v8341
    %v8929 = vunpack.c.l.b16 %v8342
    %v8930 = vunpack.c.h.b16 %v8342
    %v8931 = vunpack.c.l.b16 %v8343
    %v8932 = vunpack.c.h.b16 %v8343
    %v8933 = vunpack.c.l.b16 %v8344
    %v8934 = vunpack.c.h.b16 %v8344
    %v8935 = vunpack.c.l.b16 %v8345
    %v8936 = vunpack.c.h.b16 %v8345
    %v8937 = vunpack.c.l.b16 %v8346
    %v8938 = vunpack.c.h.b16 %v8346
    %v8939 = vunpack.c.l.b16 %v8347
    %v8940 = vunpack.c.h.b16 %v8347
    %v8941 = vunpack.c.l.b16 %v8348
    %v8942 = vunpack.c.h.b16 %v8348
    %v8943 = vunpack.c.l.b16 %v8349
    %v8944 = vunpack.c.h.b16 %v8349
    %v8945 = vunpack.c.l.b16 %v8350
    %v8946 = vunpack.c.h.b16 %v8350
    %v8947 = vunpack.c.l.b16 %v8351
    %v8948 = vunpack.c.h.b16 %v8351
    %v8949 = vunpack.c.l.b16 %v8352
    %v8950 = vunpack.c.h.b16 %v8352
    %v8951 = vunpack.c.l.b16 %v8353
    %v8952 = vunpack.c.h.b16 %v8353
    %v8953 = vunpack.c.l.b16 %v8354
    %v8954 = vunpack.c.h.b16 %v8354
    %v8955 = vunpack.c.l.b16 %v8355
    %v8956 = vunpack.c.h.b16 %v8355
    %v8957 = vunpack.c.l.b16 %v8356
    %v8958 = vunpack.c.h.b16 %v8356
    %v8959 = vunpack.c.l.b16 %v8357
    %v8960 = vunpack.c.h.b16 %v8357
    %v8961 = vunpack.c.l.b16 %v8358
    %v8962 = vunpack.c.h.b16 %v8358
    %v8963 = vunpack.c.l.b16 %v8359
    %v8964 = vunpack.c.h.b16 %v8359
    %v8965 = vunpack.c.l.b16 %v8360
    %v8966 = vunpack.c.h.b16 %v8360
    %v8967 = vunpack.c.l.b16 %v8361
    %v8968 = vunpack.c.h.b16 %v8361
    %v8969 = vunpack.c.l.b16 %v8362
    %v8970 = vunpack.c.h.b16 %v8362
    %v8971 = vunpack.c.l.b16 %v8363
    %v8972 = vunpack.c.h.b16 %v8363
    %v8973 = vunpack.c.l.b16 %v8364
    %v8974 = vunpack.c.h.b16 %v8364
    %v8975 = vunpack.c.l.b16 %v8365
    %v8976 = vunpack.c.h.b16 %v8365
    %v8977 = vunpack.c.l.b16 %v8366
    %v8978 = vunpack.c.h.b16 %v8366
    %v8979 = vunpack.c.l.b16 %v8367
    %v8980 = vunpack.c.h.b16 %v8367
    %v8981 = vunpack.c.l.b16 %v8368
    %v8982 = vunpack.c.h.b16 %v8368
    %v8983 = vunpack.c.l.b16 %v8369
    %v8984 = vunpack.c.h.b16 %v8369
    %v8985 = vunpack.c.l.b16 %v8370
    %v8986 = vunpack.c.h.b16 %v8370
    %v8987 = vunpack.c.l.b16 %v8371
    %v8988 = vunpack.c.h.b16 %v8371
    %v8989 = vunpack.c.l.b16 %v8372
    %v8990 = vunpack.c.h.b16 %v8372
    %v8991 = vunpack.c.l.b16 %v8373
    %v8992 = vunpack.c.h.b16 %v8373
    %v8993 = vunpack.c.l.b16 %v8374
    %v8994 = vunpack.c.h.b16 %v8374
    %v8995 = vunpack.c.l.b16 %v8375
    %v8996 = vunpack.c.h.b16 %v8375
    %v8997 = vunpack.c.l.b16 %v8376
    %v8998 = vunpack.c.h.b16 %v8376
    %v8999 = vunpack.c.l.b16 %v8377
    %v9000 = vunpack.c.h.b16 %v8377
    %v9001 = vunpack.c.l.b16 %v8378
    %v9002 = vunpack.c.h.b16 %v8378
    %v9003 = vunpack.c.l.b16 %v8379
    %v9004 = vunpack.c.h.b16 %v8379
    %v9005 = vunpack.c.l.b16 %v8380
    %v9006 = vunpack.c.h.b16 %v8380
    %v9007 = vunpack.c.l.b16 %v8381
    %v9008 = vunpack.c.h.b16 %v8381
    %v9009 = vunpack.c.l.b16 %v8382
    %v9010 = vunpack.c.h.b16 %v8382
    %v9011 = vunpack.c.l.b16 %v8383
    %v9012 = vunpack.c.h.b16 %v8383
    %v9013 = vunpack.c.l.b16 %v8384
    %v9014 = vunpack.c.h.b16 %v8384
    %v9015 = vunpack.c.l.b16 %v8385
    %v9016 = vunpack.c.h.b16 %v8385
    %v9017 = vunpack.c.l.b16 %v8386
    %v9018 = vunpack.c.h.b16 %v8386
    %v9019 = vunpack.c.l.b16 %v8387
    %v9020 = vunpack.c.h.b16 %v8387
    %v9021 = vunpack.c.l.b16 %v8388
    %v9022 = vunpack.c.h.b16 %v8388
    %v9023 = vunpack.c.l.b16 %v8389
    %v9024 = vunpack.c.h.b16 %v8389
    %v9025 = vunpack.c.l.b16 %v8390
    %v9026 = vunpack.c.h.b16 %v8390
    %v9027 = vunpack.c.l.b16 %v8391
    %v9028 = vunpack.c.h.b16 %v8391
    %v9029 = vunpack.c.l.b16 %v8392
    %v9030 = vunpack.c.h.b16 %v8392
    %v9031 = vunpack.c.l.b16 %v8393
    %v9032 = vunpack.c.h.b16 %v8393
    %v9033 = vunpack.c.l.b16 %v8394
    %v9034 = vunpack.c.h.b16 %v8394
    %v9035 = vunpack.c.l.b16 %v8395
    %v9036 = vunpack.c.h.b16 %v8395
    %v9037 = vunpack.c.l.b16 %v8396
    %v9038 = vunpack.c.h.b16 %v8396
    %v9039 = vunpack.c.l.b16 %v8397
    %v9040 = vunpack.c.h.b16 %v8397
    %v9041 = vunpack.c.l.b16 %v8398
    %v9042 = vunpack.c.h.b16 %v8398
    %v9043 = vunpack.c.l.b16 %v8399
    %v9044 = vunpack.c.h.b16 %v8399
    %v9045 = vunpack.c.l.b16 %v8400
    %v9046 = vunpack.c.h.b16 %v8400
    %v9047 = vunpack.c.l.b16 %v8401
    %v9048 = vunpack.c.h.b16 %v8401
    %v9049 = vunpack.c.l.b16 %v8402
    %v9050 = vunpack.c.h.b16 %v8402
    %v9051 = vunpack.c.l.b16 %v8403
    %v9052 = vunpack.c.h.b16 %v8403
    %v9053 = vunpack.c.l.b16 %v8404
    %v9054 = vunpack.c.h.b16 %v8404
    %v9055 = vunpack.c.l.b16 %v8405
    %v9056 = vunpack.c.h.b16 %v8405
    %v9057 = vunpack.c.l.b16 %v8406
    %v9058 = vunpack.c.h.b16 %v8406
    %v9059 = vunpack.c.l.b16 %v8407
    %v9060 = vunpack.c.h.b16 %v8407
    %v9061 = vunpack.c.l.b16 %v8408
    %v9062 = vunpack.c.h.b16 %v8408
    %v9063 = vunpack.c.l.b16 %v8409
    %v9064 = vunpack.c.h.b16 %v8409
    %v9065 = vunpack.c.l.b16 %v8410
    %v9066 = vunpack.c.h.b16 %v8410
    %v9067 = vunpack.c.l.b16 %v8411
    %v9068 = vunpack.c.h.b16 %v8411
    %v9069 = vunpack.c.l.b16 %v8412
    %v9070 = vunpack.c.h.b16 %v8412
    %v9071 = vunpack.c.l.b16 %v8413
    %v9072 = vunpack.c.h.b16 %v8413
    %v9073 = vunpack.c.l.b16 %v8414
    %v9074 = vunpack.c.h.b16 %v8414
    %v9075 = vunpack.c.l.b16 %v8415
    %v9076 = vunpack.c.h.b16 %v8415
    %v9077 = vunpack.c.l.b16 %v8416
    %v9078 = vunpack.c.h.b16 %v8416
    %v9079 = vunpack.c.l.b16 %v8417
    %v9080 = vunpack.c.h.b16 %v8417
    %v9081 = vunpack.c.l.b16 %v8418
    %v9082 = vunpack.c.h.b16 %v8418
    %v9083 = vunpack.c.l.b16 %v8419
    %v9084 = vunpack.c.h.b16 %v8419
    %v9085 = vunpack.c.l.b16 %v8420
    %v9086 = vunpack.c.h.b16 %v8420
    %v9087 = vunpack.c.l.b16 %v8421
    %v9088 = vunpack.c.h.b16 %v8421
    %v9089 = vunpack.c.l.b16 %v8422
    %v9090 = vunpack.c.h.b16 %v8422
    %v9091 = vunpack.c.l.b16 %v8423
    %v9092 = vunpack.c.h.b16 %v8423
    %v9093 = vunpack.c.l.b16 %v8424
    %v9094 = vunpack.c.h.b16 %v8424
    %v9095 = vunpack.c.l.b16 %v8425
    %v9096 = vunpack.c.h.b16 %v8425
    %v9097 = vunpack.c.l.b16 %v8426
    %v9098 = vunpack.c.h.b16 %v8426
    %v9099 = vunpack.c.l.b16 %v8427
    %v9100 = vunpack.c.h.b16 %v8427
    %v9101 = vunpack.c.l.b16 %v8428
    %v9102 = vunpack.c.h.b16 %v8428
    %v9103 = vunpack.c.l.b16 %v8429
    %v9104 = vunpack.c.h.b16 %v8429
    %v9105 = vunpack.c.l.b16 %v8430
    %v9106 = vunpack.c.h.b16 %v8430
    %v9107 = vunpack.c.l.b16 %v8431
    %v9108 = vunpack.c.h.b16 %v8431
    %v9109 = vunpack.c.l.b16 %v8432
    %v9110 = vunpack.c.h.b16 %v8432
    %v9111 = vunpack.c.l.b16 %v8433
    %v9112 = vunpack.c.h.b16 %v8433
    %v9113 = vunpack.c.l.b16 %v8434
    %v9114 = vunpack.c.h.b16 %v8434
    %v9115 = vunpack.c.l.b16 %v8435
    %v9116 = vunpack.c.h.b16 %v8435
    %v9117 = vunpack.c.l.b16 %v8436
    %v9118 = vunpack.c.h.b16 %v8436
    %v9119 = vunpack.c.l.b16 %v8437
    %v9120 = vunpack.c.h.b16 %v8437
    %v9121 = vunpack.c.l.b16 %v8438
    %v9122 = vunpack.c.h.b16 %v8438
    %v9123 = vunpack.c.l.b16 %v8439
    %v9124 = vunpack.c.h.b16 %v8439
    %v9125 = vunpack.c.l.b16 %v8440
    %v9126 = vunpack.c.h.b16 %v8440
    %v9127 = vunpack.c.l.b16 %v8441
    %v9128 = vunpack.c.h.b16 %v8441
    %v9129 = vunpack.c.l.b16 %v8442
    %v9130 = vunpack.c.h.b16 %v8442
    %v9131 = vunpack.c.l.b16 %v8443
    %v9132 = vunpack.c.h.b16 %v8443
    %v9133 = vunpack.c.l.b16 %v8444
    %v9134 = vunpack.c.h.b16 %v8444
    %v9135 = vunpack.c.l.b16 %v8445
    %v9136 = vunpack.c.h.b16 %v8445
    %v9137 = vunpack.c.l.b16 %v8446
    %v9138 = vunpack.c.h.b16 %v8446
    %v9139 = vunpack.c.l.b16 %v8447
    %v9140 = vunpack.c.h.b16 %v8447
    %v9141 = vunpack.c.l.b16 %v8448
    %v9142 = vunpack.c.h.b16 %v8448
    %v9143 = vunpack.c.l.b16 %v8449
    %v9144 = vunpack.c.h.b16 %v8449
    %v9145 = vunpack.c.l.b16 %v8450
    %v9146 = vunpack.c.h.b16 %v8450
    %v9147 = vunpack.c.l.b16 %v8451
    %v9148 = vunpack.c.h.b16 %v8451
    %v9149 = vunpack.c.l.b16 %v8452
    %v9150 = vunpack.c.h.b16 %v8452
    %v9151 = vunpack.c.l.b16 %v8453
    %v9152 = vunpack.c.h.b16 %v8453
    %v9153 = vunpack.c.l.b16 %v8454
    %v9154 = vunpack.c.h.b16 %v8454
    %v9155 = vunpack.c.l.b16 %v8455
    %v9156 = vunpack.c.h.b16 %v8455
    %v9157 = vunpack.c.l.b16 %v8456
    %v9158 = vunpack.c.h.b16 %v8456
    %v9159 = vunpack.c.l.b16 %v8457
    %v9160 = vunpack.c.h.b16 %v8457
    %v9161 = vunpack.c.l.b16 %v8458
    %v9162 = vunpack.c.h.b16 %v8458
    %v9163 = vunpack.c.l.b16 %v8459
    %v9164 = vunpack.c.h.b16 %v8459
    %v9165 = vunpack.c.l.b16 %v8460
    %v9166 = vunpack.c.h.b16 %v8460
    %v9167 = vunpack.c.l.b16 %v8461
    %v9168 = vunpack.c.h.b16 %v8461
    %v9169 = vunpack.c.l.b16 %v8462
    %v9170 = vunpack.c.h.b16 %v8462
    %v9171 = vunpack.c.l.b16 %v8463
    %v9172 = vunpack.c.h.b16 %v8463
    %v9173 = vunpack.c.l.b16 %v8464
    %v9174 = vunpack.c.h.b16 %v8464
    %v9175 = vunpack.c.l.b16 %v8465
    %v9176 = vunpack.c.h.b16 %v8465
    %v9177 = vunpack.c.l.b16 %v8466
    %v9178 = vunpack.c.h.b16 %v8466
    %v9179 = vunpack.c.l.b16 %v8467
    %v9180 = vunpack.c.h.b16 %v8467
    %v9181 = vunpack.c.l.b16 %v8468
    %v9182 = vunpack.c.h.b16 %v8468
    %v9183 = vunpack.c.l.b16 %v8469
    %v9184 = vunpack.c.h.b16 %v8469
    %v9185 = vunpack.c.l.b16 %v8470
    %v9186 = vunpack.c.h.b16 %v8470
    %v9187 = vunpack.c.l.b16 %v8471
    %v9188 = vunpack.c.h.b16 %v8471
    %v9189 = vunpack.c.l.b16 %v8472
    %v9190 = vunpack.c.h.b16 %v8472
    %v9191 = vunpack.c.l.b16 %v8473
    %v9192 = vunpack.c.h.b16 %v8473
    %v9193 = vunpack.c.l.b16 %v8474
    %v9194 = vunpack.c.h.b16 %v8474
    %v9195 = vunpack.c.l.b16 %v8475
    %v9196 = vunpack.c.h.b16 %v8475
    %v9197 = vunpack.c.l.b16 %v8476
    %v9198 = vunpack.c.h.b16 %v8476
    %v9199 = vunpack.c.l.b16 %v8477
    %v9200 = vunpack.c.h.b16 %v8477
    %v9201 = vunpack.c.l.b16 %v8478
    %v9202 = vunpack.c.h.b16 %v8478
    %v9203 = vunpack.c.l.b16 %v8479
    %v9204 = vunpack.c.h.b16 %v8479
    %v9205 = vunpack.c.l.b16 %v8480
    %v9206 = vunpack.c.h.b16 %v8480
    %v9207 = vunpack.c.l.b16 %v8481
    %v9208 = vunpack.c.h.b16 %v8481
    %v9209 = vunpack.c.l.b16 %v8482
    %v9210 = vunpack.c.h.b16 %v8482
    %v9211 = vunpack.c.l.b16 %v8483
    %v9212 = vunpack.c.h.b16 %v8483
    %v9213 = vunpack.c.l.b16 %v8484
    %v9214 = vunpack.c.h.b16 %v8484
    %v9215 = vunpack.c.l.b16 %v8485
    %v9216 = vunpack.c.h.b16 %v8485
    %v9217 = vunpack.c.l.b16 %v8486
    %v9218 = vunpack.c.h.b16 %v8486
    %v9219 = vunpack.c.l.b16 %v8487
    %v9220 = vunpack.c.h.b16 %v8487
    %v9221 = vunpack.c.l.b16 %v8488
    %v9222 = vunpack.c.h.b16 %v8488
    %v9223 = vunpack.c.l.b16 %v8489
    %v9224 = vunpack.c.h.b16 %v8489
    %v9225 = vunpack.c.l.b16 %v8490
    %v9226 = vunpack.c.h.b16 %v8490
    %v9227 = vunpack.c.l.b16 %v8491
    %v9228 = vunpack.c.h.b16 %v8491
    %v9229 = vunpack.c.l.b16 %v8492
    %v9230 = vunpack.c.h.b16 %v8492
    %v9231 = vunpack.c.l.b16 %v8493
    %v9232 = vunpack.c.h.b16 %v8493
    %v9233 = vunpack.c.l.b16 %v8494
    %v9234 = vunpack.c.h.b16 %v8494
    %v9235 = vunpack.c.l.b16 %v8495
    %v9236 = vunpack.c.h.b16 %v8495
    %v9237 = vunpack.c.l.b16 %v8496
    %v9238 = vunpack.c.h.b16 %v8496
    %v9239 = vunpack.c.l.b16 %v8497
    %v9240 = vunpack.c.h.b16 %v8497
    %v9241 = vunpack.c.l.b16 %v8498
    %v9242 = vunpack.c.h.b16 %v8498
    %v9243 = vunpack.c.l.b16 %v8499
    %v9244 = vunpack.c.h.b16 %v8499
    %v9245 = vunpack.c.l.b16 %v8500
    %v9246 = vunpack.c.h.b16 %v8500
    %v9247 = vunpack.c.l.b16 %v8501
    %v9248 = vunpack.c.h.b16 %v8501
    %v9249 = vunpack.c.l.b16 %v8502
    %v9250 = vunpack.c.h.b16 %v8502
    %v9251 = vunpack.c.l.b16 %v8503
    %v9252 = vunpack.c.h.b16 %v8503
    %v9253 = vunpack.c.l.b16 %v8504
    %v9254 = vunpack.c.h.b16 %v8504
    %v9255 = vunpack.c.l.b16 %v8505
    %v9256 = vunpack.c.h.b16 %v8505
    %v9257 = vunpack.c.l.b16 %v8506
    %v9258 = vunpack.c.h.b16 %v8506
    %v9259 = vunpack.c.l.b16 %v8507
    %v9260 = vunpack.c.h.b16 %v8507
    %v9261 = vunpack.c.l.b16 %v8508
    %v9262 = vunpack.c.h.b16 %v8508
    %v9263 = vunpack.c.l.b16 %v8509
    %v9264 = vunpack.c.h.b16 %v8509
    %v9265 = vunpack.c.l.b16 %v8510
    %v9266 = vunpack.c.h.b16 %v8510
    %v9267 = vunpack.c.l.b16 %v8511
    %v9268 = vunpack.c.h.b16 %v8511
    %v9269 = vunpack.c.l.b16 %v8512
    %v9270 = vunpack.c.h.b16 %v8512
    %v9271 = vunpack.c.l.b16 %v8513
    %v9272 = vunpack.c.h.b16 %v8513
    %v9273 = vunpack.c.l.b16 %v8514
    %v9274 = vunpack.c.h.b16 %v8514
    %v9275 = vunpack.c.l.b16 %v8515
    %v9276 = vunpack.c.h.b16 %v8515
    %v9277 = vunpack.c.l.b16 %v8516
    %v9278 = vunpack.c.h.b16 %v8516
    %v9279 = vunpack.c.l.b16 %v8517
    %v9280 = vunpack.c.h.b16 %v8517
    %v9281 = vunpack.c.l.b16 %v8518
    %v9282 = vunpack.c.h.b16 %v8518
    %v9283 = vunpack.c.l.b16 %v8519
    %v9284 = vunpack.c.h.b16 %v8519
    %v9285 = vunpack.c.l.b16 %v8520
    %v9286 = vunpack.c.h.b16 %v8520
    %v9287 = vunpack.c.l.b16 %v8521
    %v9288 = vunpack.c.h.b16 %v8521
    %v9289 = vunpack.c.l.b16 %v8522
    %v9290 = vunpack.c.h.b16 %v8522
    %v9291 = vunpack.c.l.b16 %v8523
    %v9292 = vunpack.c.h.b16 %v8523
    %v9293 = vunpack.c.l.b16 %v8524
    %v9294 = vunpack.c.h.b16 %v8524
    %v9295 = vunpack.c.l.b16 %v8525
    %v9296 = vunpack.c.h.b16 %v8525
    %v9297 = vunpack.c.l.b16 %v8526
    %v9298 = vunpack.c.h.b16 %v8526
    %v9299 = vunpack.c.l.b16 %v8527
    %v9300 = vunpack.c.h.b16 %v8527
    %v9301 = vunpack.c.l.b16 %v8528
    %v9302 = vunpack.c.h.b16 %v8528
    %v9303 = vunpack.c.l.b16 %v8529
    %v9304 = vunpack.c.h.b16 %v8529
    %v9305 = vunpack.c.l.b16 %v8530
    %v9306 = vunpack.c.h.b16 %v8530
    %v9307 = vunpack.c.l.b16 %v8531
    %v9308 = vunpack.c.h.b16 %v8531
    %v9309 = vunpack.c.l.b16 %v8532
    %v9310 = vunpack.c.h.b16 %v8532
    %v9311 = vunpack.c.l.b16 %v8533
    %v9312 = vunpack.c.h.b16 %v8533
    %v9313 = vunpack.c.l.b16 %v8534
    %v9314 = vunpack.c.h.b16 %v8534
    %v9315 = vunpack.c.l.b16 %v8535
    %v9316 = vunpack.c.h.b16 %v8535
    %v9317 = vunpack.c.l.b16 %v8536
    %v9318 = vunpack.c.h.b16 %v8536
    %v9319 = vunpack.c.l.b16 %v8537
    %v9320 = vunpack.c.h.b16 %v8537
    %v9321 = vunpack.c.l.b16 %v8538
    %v9322 = vunpack.c.h.b16 %v8538
    %v9323 = vpack.c.b16 %v8815, %v8811
    %v9324 = vpack.c.b16 %v8816, %v8812
    %v9325 = vpack.c.b16 %v8817, %v8813
    %v9326 = vpack.c.b16 %v8818, %v8814
    %v9327 = vpack.c.b16 %v8823, %v8819
    %v9328 = vpack.c.b16 %v8824, %v8820
    %v9329 = vpack.c.b16 %v8825, %v8821
    %v9330 = vpack.c.b16 %v8826, %v8822
    %v9331 = vpack.c.b16 %v8831, %v8827
    %v9332 = vpack.c.b16 %v8832, %v8828
    %v9333 = vpack.c.b16 %v8833, %v8829
    %v9334 = vpack.c.b16 %v8834, %v8830
    %v9335 = vpack.c.b16 %v8839, %v8835
    %v9336 = vpack.c.b16 %v8840, %v8836
    %v9337 = vpack.c.b16 %v8841, %v8837
    %v9338 = vpack.c.b16 %v8842, %v8838
    %v9339 = vpack.c.b16 %v8847, %v8843
    %v9340 = vpack.c.b16 %v8848, %v8844
    %v9341 = vpack.c.b16 %v8849, %v8845
    %v9342 = vpack.c.b16 %v8850, %v8846
    %v9343 = vpack.c.b16 %v8855, %v8851
    %v9344 = vpack.c.b16 %v8856, %v8852
    %v9345 = vpack.c.b16 %v8857, %v8853
    %v9346 = vpack.c.b16 %v8858, %v8854
    %v9347 = vpack.c.b16 %v8863, %v8859
    %v9348 = vpack.c.b16 %v8864, %v8860
    %v9349 = vpack.c.b16 %v8865, %v8861
    %v9350 = vpack.c.b16 %v8866, %v8862
    %v9351 = vpack.c.b16 %v8871, %v8867
    %v9352 = vpack.c.b16 %v8872, %v8868
    %v9353 = vpack.c.b16 %v8873, %v8869
    %v9354 = vpack.c.b16 %v8874, %v8870
    %v9355 = vpack.c.b16 %v8879, %v8875
    %v9356 = vpack.c.b16 %v8880, %v8876
    %v9357 = vpack.c.b16 %v8881, %v8877
    %v9358 = vpack.c.b16 %v8882, %v8878
    %v9359 = vpack.c.b16 %v8887, %v8883
    %v9360 = vpack.c.b16 %v8888, %v8884
    %v9361 = vpack.c.b16 %v8889, %v8885
    %v9362 = vpack.c.b16 %v8890, %v8886
    %v9363 = vpack.c.b16 %v8895, %v8891
    %v9364 = vpack.c.b16 %v8896, %v8892
    %v9365 = vpack.c.b16 %v8897, %v8893
    %v9366 = vpack.c.b16 %v8898, %v8894
    %v9367 = vpack.c.b16 %v8903, %v8899
    %v9368 = vpack.c.b16 %v8904, %v8900
    %v9369 = vpack.c.b16 %v8905, %v8901
    %v9370 = vpack.c.b16 %v8906, %v8902
    %v9371 = vpack.c.b16 %v8911, %v8907
    %v9372 = vpack.c.b16 %v8912, %v8908
    %v9373 = vpack.c.b16 %v8913, %v8909
    %v9374 = vpack.c.b16 %v8914, %v8910
    %v9375 = vpack.c.b16 %v8919, %v8915
    %v9376 = vpack.c.b16 %v8920, %v8916
    %v9377 = vpack.c.b16 %v8921, %v8917
    %v9378 = vpack.c.b16 %v8922, %v8918
    %v9379 = vpack.c.b16 %v8927, %v8923
    %v9380 = vpack.c.b16 %v8928, %v8924
    %v9381 = vpack.c.b16 %v8929, %v8925
    %v9382 = vpack.c.b16 %v8930, %v8926
    %v9383 = vpack.c.b16 %v8935, %v8931
    %v9384 = vpack.c.b16 %v8936, %v8932
    %v9385 = vpack.c.b16 %v8937, %v8933
    %v9386 = vpack.c.b16 %v8938, %v8934
    %v9387 = vpack.c.b16 %v8943, %v8939
    %v9388 = vpack.c.b16 %v8944, %v8940
    %v9389 = vpack.c.b16 %v8945, %v8941
    %v9390 = vpack.c.b16 %v8946, %v8942
    %v9391 = vpack.c.b16 %v8951, %v8947
    %v9392 = vpack.c.b16 %v8952, %v8948
    %v9393 = vpack.c.b16 %v8953, %v8949
    %v9394 = vpack.c.b16 %v8954, %v8950
    %v9395 = vpack.c.b16 %v8959, %v8955
    %v9396 = vpack.c.b16 %v8960, %v8956
    %v9397 = vpack.c.b16 %v8961, %v8957
    %v9398 = vpack.c.b16 %v8962, %v8958
    %v9399 = vpack.c.b16 %v8967, %v8963
    %v9400 = vpack.c.b16 %v8968, %v8964
    %v9401 = vpack.c.b16 %v8969, %v8965
    %v9402 = vpack.c.b16 %v8970, %v8966
    %v9403 = vpack.c.b16 %v8975, %v8971
    %v9404 = vpack.c.b16 %v8976, %v8972
    %v9405 = vpack.c.b16 %v8977, %v8973
    %v9406 = vpack.c.b16 %v8978, %v8974
    %v9407 = vpack.c.b16 %v8983, %v8979
    %v9408 = vpack.c.b16 %v8984, %v8980
    %v9409 = vpack.c.b16 %v8985, %v8981
    %v9410 = vpack.c.b16 %v8986, %v8982
    %v9411 = vpack.c.b16 %v8991, %v8987
    %v9412 = vpack.c.b16 %v8992, %v8988
    %v9413 = vpack.c.b16 %v8993, %v8989
    %v9414 = vpack.c.b16 %v8994, %v8990
    %v9415 = vpack.c.b16 %v8999, %v8995
    %v9416 = vpack.c.b16 %v9000, %v8996
    %v9417 = vpack.c.b16 %v9001, %v8997
    %v9418 = vpack.c.b16 %v9002, %v8998
    %v9419 = vpack.c.b16 %v9007, %v9003
    %v9420 = vpack.c.b16 %v9008, %v9004
    %v9421 = vpack.c.b16 %v9009, %v9005
    %v9422 = vpack.c.b16 %v9010, %v9006
    %v9423 = vpack.c.b16 %v9015, %v9011
    %v9424 = vpack.c.b16 %v9016, %v9012
    %v9425 = vpack.c.b16 %v9017, %v9013
    %v9426 = vpack.c.b16 %v9018, %v9014
    %v9427 = vpack.c.b16 %v9023, %v9019
    %v9428 = vpack.c.b16 %v9024, %v9020
    %v9429 = vpack.c.b16 %v9025, %v9021
    %v9430 = vpack.c.b16 %v9026, %v9022
    %v9431 = vpack.c.b16 %v9031, %v9027
    %v9432 = vpack.c.b16 %v9032, %v9028
    %v9433 = vpack.c.b16 %v9033, %v9029
    %v9434 = vpack.c.b16 %v9034, %v9030
    %v9435 = vpack.c.b16 %v9039, %v9035
    %v9436 = vpack.c.b16 %v9040, %v9036
    %v9437 = vpack.c.b16 %v9041, %v9037
    %v9438 = vpack.c.b16 %v9042, %v9038
    %v9439 = vpack.c.b16 %v9047, %v9043
    %v9440 = vpack.c.b16 %v9048, %v9044
    %v9441 = vpack.c.b16 %v9049, %v9045
    %v9442 = vpack.c.b16 %v9050, %v9046
    %v9443 = vpack.c.b16 %v9055, %v9051
    %v9444 = vpack.c.b16 %v9056, %v9052
    %v9445 = vpack.c.b16 %v9057, %v9053
    %v9446 = vpack.c.b16 %v9058, %v9054
    %v9447 = vpack.c.b16 %v9063, %v9059
    %v9448 = vpack.c.b16 %v9064, %v9060
    %v9449 = vpack.c.b16 %v9065, %v9061
    %v9450 = vpack.c.b16 %v9066, %v9062
    %v9451 = vpack.c.b16 %v9071, %v9067
    %v9452 = vpack.c.b16 %v9072, %v9068
    %v9453 = vpack.c.b16 %v9073, %v9069
    %v9454 = vpack.c.b16 %v9074, %v9070
    %v9455 = vpack.c.b16 %v9079, %v9075
    %v9456 = vpack.c.b16 %v9080, %v9076
    %v9457 = vpack.c.b16 %v9081, %v9077
    %v9458 = vpack.c.b16 %v9082, %v9078
    %v9459 = vpack.c.b16 %v9087, %v9083
    %v9460 = vpack.c.b16 %v9088, %v9084
    %v9461 = vpack.c.b16 %v9089, %v9085
    %v9462 = vpack.c.b16 %v9090, %v9086
    %v9463 = vpack.c.b16 %v9095, %v9091
    %v9464 = vpack.c.b16 %v9096, %v9092
    %v9465 = vpack.c.b16 %v9097, %v9093
    %v9466 = vpack.c.b16 %v9098, %v9094
    %v9467 = vpack.c.b16 %v9103, %v9099
    %v9468 = vpack.c.b16 %v9104, %v9100
    %v9469 = vpack.c.b16 %v9105, %v9101
    %v9470 = vpack.c.b16 %v9106, %v9102
    %v9471 = vpack.c.b16 %v9111, %v9107
    %v9472 = vpack.c.b16 %v9112, %v9108
    %v9473 = vpack.c.b16 %v9113, %v9109
    %v9474 = vpack.c.b16 %v9114, %v9110
    %v9475 = vpack.c.b16 %v9119, %v9115
    %v9476 = vpack.c.b16 %v9120, %v9116
    %v9477 = vpack.c.b16 %v9121, %v9117
    %v9478 = vpack.c.b16 %v9122, %v9118
    %v9479 = vpack.c.b16 %v9127, %v9123
    %v9480 = vpack.c.b16 %v9128, %v9124
    %v9481 = vpack.c.b16 %v9129, %v9125
    %v9482 = vpack.c.b16 %v9130, %v9126
    %v9483 = vpack.c.b16 %v9135, %v9131
    %v9484 = vpack.c.b16 %v9136, %v9132
    %v9485 = vpack.c.b16 %v9137, %v9133
    %v9486 = vpack.c.b16 %v9138, %v9134
    %v9487 = vpack.c.b16 %v9143, %v9139
    %v9488 = vpack.c.b16 %v9144, %v9140
    %v9489 = vpack.c.b16 %v9145, %v9141
    %v9490 = vpack.c.b16 %v9146, %v9142
    %v9491 = vpack.c.b16 %v9151, %v9147
    %v9492 = vpack.c.b16 %v9152, %v9148
    %v9493 = vpack.c.b16 %v9153, %v9149
    %v9494 = vpack.c.b16 %v9154, %v9150
    %v9495 = vpack.c.b16 %v9159, %v9155
    %v9496 = vpack.c.b16 %v9160, %v9156
    %v9497 = vpack.c.b16 %v9161, %v9157
    %v9498 = vpack.c.b16 %v9162, %v9158
    %v9499 = vpack.c.b16 %v9167, %v9163
    %v9500 = vpack.c.b16 %v9168, %v9164
    %v9501 = vpack.c.b16 %v9169, %v9165
    %v9502 = vpack.c.b16 %v9170, %v9166
    %v9503 = vpack.c.b16 %v9175, %v9171
    %v9504 = vpack.c.b16 %v9176, %v9172
    %v9505 = vpack.c.b16 %v9177, %v9173
    %v9506 = vpack.c.b16 %v9178, %v9174
    %v9507 = vpack.c.b16 %v9183, %v9179
    %v9508 = vpack.c.b16 %v9184, %v9180
    %v9509 = vpack.c.b16 %v9185, %v9181
    %v9510 = vpack.c.b16 %v9186, %v9182
    %v9511 = vpack.c.b16 %v9191, %v9187
    %v9512 = vpack.c.b16 %v9192, %v9188
    %v9513 = vpack.c.b16 %v9193, %v9189
    %v9514 = vpack.c.b16 %v9194, %v9190
    %v9515 = vpack.c.b16 %v9199, %v9195
    %v9516 = vpack.c.b16 %v9200, %v9196
    %v9517 = vpack.c.b16 %v9201, %v9197
    %v9518 = vpack.c.b16 %v9202, %v9198
    %v9519 = vpack.c.b16 %v9207, %v9203
    %v9520 = vpack.c.b16 %v9208, %v9204
    %v9521 = vpack.c.b16 %v9209, %v9205
    %v9522 = vpack.c.b16 %v9210, %v9206
    %v9523 = vpack.c.b16 %v9215, %v9211
    %v9524 = vpack.c.b16 %v9216, %v9212
    %v9525 = vpack.c.b16 %v9217, %v9213
    %v9526 = vpack.c.b16 %v9218, %v9214
    %v9527 = vpack.c.b16 %v9223, %v9219
    %v9528 = vpack.c.b16 %v9224, %v9220
    %v9529 = vpack.c.b16 %v9225, %v9221
    %v9530 = vpack.c.b16 %v9226, %v9222
    %v9531 = vpack.c.b16 %v9231, %v9227
    %v9532 = vpack.c.b16 %v9232, %v9228
    %v9533 = vpack.c.b16 %v9233, %v9229
    %v9534 = vpack.c.b16 %v9234, %v9230
    %v9535 = vpack.c.b16 %v9239, %v9235
    %v9536 = vpack.c.b16 %v9240, %v9236
    %v9537 = vpack.c.b16 %v9241, %v9237
    %v9538 = vpack.c.b16 %v9242, %v9238
    %v9539 = vpack.c.b16 %v9247, %v9243
    %v9540 = vpack.c.b16 %v9248, %v9244
    %v9541 = vpack.c.b16 %v9249, %v9245
    %v9542 = vpack.c.b16 %v9250, %v9246
    %v9543 = vpack.c.b16 %v9255, %v9251
    %v9544 = vpack.c.b16 %v9256, %v9252
    %v9545 = vpack.c.b16 %v9257, %v9253
    %v9546 = vpack.c.b16 %v9258, %v9254
    %v9547 = vpack.c.b16 %v9263, %v9259
    %v9548 = vpack.c.b16 %v9264, %v9260
    %v9549 = vpack.c.b16 %v9265, %v9261
    %v9550 = vpack.c.b16 %v9266, %v9262
    %v9551 = vpack.c.b16 %v9271, %v9267
    %v9552 = vpack.c.b16 %v9272, %v9268
    %v9553 = vpack.c.b16 %v9273, %v9269
    %v9554 = vpack.c.b16 %v9274, %v9270
    %v9555 = vpack.c.b16 %v9279, %v9275
    %v9556 = vpack.c.b16 %v9280, %v9276
    %v9557 = vpack.c.b16 %v9281, %v9277
    %v9558 = vpack.c.b16 %v9282, %v9278
    %v9559 = vpack.c.b16 %v9287, %v9283
    %v9560 = vpack.c.b16 %v9288, %v9284
    %v9561 = vpack.c.b16 %v9289, %v9285
    %v9562 = vpack.c.b16 %v9290, %v9286
    %v9563 = vpack.c.b16 %v9295, %v9291
    %v9564 = vpack.c.b16 %v9296, %v9292
    %v9565 = vpack.c.b16 %v9297, %v9293
    %v9566 = vpack.c.b16 %v9298, %v9294
    %v9567 = vpack.c.b16 %v9303, %v9299
    %v9568 = vpack.c.b16 %v9304, %v9300
    %v9569 = vpack.c.b16 %v9305, %v9301
    %v9570 = vpack.c.b16 %v9306, %v9302
    %v9571 = vpack.c.b16 %v9311, %v9307
    %v9572 = vpack.c.b16 %v9312, %v9308
    %v9573 = vpack.c.b16 %v9313, %v9309
    %v9574 = vpack.c.b16 %v9314, %v9310
    %v9575 = vpack.c.b16 %v9319, %v9315
    %v9576 = vpack.c.b16 %v9320, %v9316
    %v9577 = vpack.c.b16 %v9321, %v9317
    %v9578 = vpack.c.b16 %v9322, %v9318
    %9835 = vmatprep.subr.bf16.mxu0 %v9324
    %9836 = vmatpush1.bf16.msra.mxu0 %v9323
    %9837 = vmatprep.subr.bf16.mxu0 %v9328
    %9838 = vmatpush1.bf16.msra.mxu0 %v9327
    %9839 = vmatprep.subr.bf16.mxu0 %v9332
    %9840 = vmatpush1.bf16.msra.mxu0 %v9331
    %9841 = vmatprep.subr.bf16.mxu0 %v9336
    %9842 = vmatpush1.bf16.msra.mxu0 %v9335
    %9843 = vmatprep.subr.bf16.mxu0 %v9340
    %9844 = vmatpush1.bf16.msra.mxu0 %v9339
    %9845 = vmatprep.subr.bf16.mxu0 %v9344
    %9846 = vmatpush1.bf16.msra.mxu0 %v9343
    %9847 = vmatprep.subr.bf16.mxu0 %v9348
    %9848 = vmatpush1.bf16.msra.mxu0 %v9347
    %9849 = vmatprep.subr.bf16.mxu0 %v9352
    %9850 = vmatpush1.bf16.msra.mxu0 %v9351
    %9851 = vmatprep.subr.bf16.mxu0 %v9356
    %9852 = vmatpush1.bf16.msra.mxu0 %v9355
    %9853 = vmatprep.subr.bf16.mxu0 %v9360
    %9854 = vmatpush1.bf16.msra.mxu0 %v9359
    %9855 = vmatprep.subr.bf16.mxu0 %v9364
    %9856 = vmatpush1.bf16.msra.mxu0 %v9363
    %9857 = vmatprep.subr.bf16.mxu0 %v9368
    %9858 = vmatpush1.bf16.msra.mxu0 %v9367
    %9859 = vmatprep.subr.bf16.mxu0 %v9372
    %9860 = vmatpush1.bf16.msra.mxu0 %v9371
    %9861 = vmatprep.subr.bf16.mxu0 %v9376
    %9862 = vmatpush1.bf16.msra.mxu0 %v9375
    %9863 = vmatprep.subr.bf16.mxu0 %v9380
    %9864 = vmatpush1.bf16.msra.mxu0 %v9379
    %9865 = vmatprep.subr.bf16.mxu0 %v9384
    %9866 = vmatpush1.bf16.msra.mxu0 %v9383
    %9867 = vmatprep.mubr.bf16.mxu0 %v8276
    %9868 = vmatmul.mubr.bf16.gmra.mrb[0].mxu0 %v8275
    %v9869 = vpop.f32.mrb[0].mxu0
    %v9870 = vadd.f32 %v8542, %v9869
    %v9871 = vpop.f32.mrb[0].mxu0
    %v9872 = vadd.f32 %v8546, %v9871
    %v9873 = vpop.f32.mrb[0].mxu0
    %v9874 = vpop.f32.mrb[0].mxu0
    %9875 = vdwg.mxu0
    %9876 = vmatprep.subr.bf16.mxu0 %v9388
    %9877 = vmatpush1.bf16.msra.mxu0 %v9387
    %9878 = vmatprep.subr.bf16.mxu0 %v9392
    %9879 = vmatpush1.bf16.msra.mxu0 %v9391
    %9880 = vmatprep.subr.bf16.mxu0 %v9396
    %9881 = vmatpush1.bf16.msra.mxu0 %v9395
    %9882 = vmatprep.subr.bf16.mxu0 %v9400
    %9883 = vmatpush1.bf16.msra.mxu0 %v9399
    %9884 = vmatprep.subr.bf16.mxu0 %v9404
    %9885 = vmatpush1.bf16.msra.mxu0 %v9403
    %9886 = vmatprep.subr.bf16.mxu0 %v9408
    %9887 = vmatpush1.bf16.msra.mxu0 %v9407
    %9888 = vmatprep.subr.bf16.mxu0 %v9412
    %9889 = vmatpush1.bf16.msra.mxu0 %v9411
    %9890 = vmatprep.subr.bf16.mxu0 %v9416
    %9891 = vmatpush1.bf16.msra.mxu0 %v9415
    %9892 = vmatprep.subr.bf16.mxu0 %v9420
    %9893 = vmatpush1.bf16.msra.mxu0 %v9419
    %9894 = vmatprep.subr.bf16.mxu0 %v9424
    %9895 = vmatpush1.bf16.msra.mxu0 %v9423
    %9896 = vmatprep.subr.bf16.mxu0 %v9428
    %9897 = vmatpush1.bf16.msra.mxu0 %v9427
    %9898 = vmatprep.subr.bf16.mxu0 %v9432
    %9899 = vmatpush1.bf16.msra.mxu0 %v9431
    %9900 = vmatprep.subr.bf16.mxu0 %v9436
    %9901 = vmatpush1.bf16.msra.mxu0 %v9435
    %9902 = vmatprep.subr.bf16.mxu0 %v9440
    %9903 = vmatpush1.bf16.msra.mxu0 %v9439
    %9904 = vmatprep.subr.bf16.mxu0 %v9444
    %9905 = vmatpush1.bf16.msra.mxu0 %v9443
    %9906 = vmatprep.subr.bf16.mxu0 %v9448
    %9907 = vmatpush1.bf16.msra.mxu0 %v9447
    %9908 = vmatprep.mubr.bf16.mxu0 %v8278
    %9909 = vmatmul.mubr.bf16.gmra.mrb[0].mxu0 %v8277
    %v9910 = vpop.f32.mrb[0].mxu0
    %v9911 = vadd.f32 %v9870, %v9910
    %v9912 = vpop.f32.mrb[0].mxu0
    %v9913 = vadd.f32 %v9872, %v9912
    %v9914 = vpop.f32.mrb[0].mxu0
    %v9915 = vpop.f32.mrb[0].mxu0
    %9916 = vdwg.mxu0
    %9917 = vmatprep.subr.bf16.mxu0 %v9452
    %9918 = vmatpush1.bf16.msra.mxu0 %v9451
    %9919 = vmatprep.subr.bf16.mxu0 %v9456
    %9920 = vmatpush1.bf16.msra.mxu0 %v9455
    %9921 = vmatprep.subr.bf16.mxu0 %v9460
    %9922 = vmatpush1.bf16.msra.mxu0 %v9459
    %9923 = vmatprep.subr.bf16.mxu0 %v9464
    %9924 = vmatpush1.bf16.msra.mxu0 %v9463
    %9925 = vmatprep.subr.bf16.mxu0 %v9468
    %9926 = vmatpush1.bf16.msra.mxu0 %v9467
    %9927 = vmatprep.subr.bf16.mxu0 %v9472
    %9928 = vmatpush1.bf16.msra.mxu0 %v9471
    %9929 = vmatprep.subr.bf16.mxu0 %v9476
    %9930 = vmatpush1.bf16.msra.mxu0 %v9475
    %9931 = vmatprep.subr.bf16.mxu0 %v9480
    %9932 = vmatpush1.bf16.msra.mxu0 %v9479
    %9933 = vmatprep.subr.bf16.mxu0 %v9484
    %9934 = vmatpush1.bf16.msra.mxu0 %v9483
    %9935 = vmatprep.subr.bf16.mxu0 %v9488
    %9936 = vmatpush1.bf16.msra.mxu0 %v9487
    %9937 = vmatprep.subr.bf16.mxu0 %v9492
    %9938 = vmatpush1.bf16.msra.mxu0 %v9491
    %9939 = vmatprep.subr.bf16.mxu0 %v9496
    %9940 = vmatpush1.bf16.msra.mxu0 %v9495
    %9941 = vmatprep.subr.bf16.mxu0 %v9500
    %9942 = vmatpush1.bf16.msra.mxu0 %v9499
    %9943 = vmatprep.subr.bf16.mxu0 %v9504
    %9944 = vmatpush1.bf16.msra.mxu0 %v9503
    %9945 = vmatprep.subr.bf16.mxu0 %v9508
    %9946 = vmatpush1.bf16.msra.mxu0 %v9507
    %9947 = vmatprep.subr.bf16.mxu0 %v9512
    %9948 = vmatpush1.bf16.msra.mxu0 %v9511
    %9949 = vmatprep.mubr.bf16.mxu0 %v8280
    %9950 = vmatmul.mubr.bf16.gmra.mrb[0].mxu0 %v8279
    %v9951 = vpop.f32.mrb[0].mxu0
    %v9952 = vadd.f32 %v9911, %v9951
    %v9953 = vpop.f32.mrb[0].mxu0
    %v9954 = vadd.f32 %v9913, %v9953
    %v9955 = vpop.f32.mrb[0].mxu0
    %v9956 = vpop.f32.mrb[0].mxu0
    %9957 = vdwg.mxu0
    %9958 = vmatprep.subr.bf16.mxu0 %v9516
    %9959 = vmatpush1.bf16.msra.mxu0 %v9515
    %9960 = vmatprep.subr.bf16.mxu0 %v9520
    %9961 = vmatpush1.bf16.msra.mxu0 %v9519
    %9962 = vmatprep.subr.bf16.mxu0 %v9524
    %9963 = vmatpush1.bf16.msra.mxu0 %v9523
    %9964 = vmatprep.subr.bf16.mxu0 %v9528
    %9965 = vmatpush1.bf16.msra.mxu0 %v9527
    %9966 = vmatprep.subr.bf16.mxu0 %v9532
    %9967 = vmatpush1.bf16.msra.mxu0 %v9531
    %9968 = vmatprep.subr.bf16.mxu0 %v9536
    %9969 = vmatpush1.bf16.msra.mxu0 %v9535
    %9970 = vmatprep.subr.bf16.mxu0 %v9540
    %9971 = vmatpush1.bf16.msra.mxu0 %v9539
    %9972 = vmatprep.subr.bf16.mxu0 %v9544
    %9973 = vmatpush1.bf16.msra.mxu0 %v9543
    %9974 = vmatprep.subr.bf16.mxu0 %v9548
    %9975 = vmatpush1.bf16.msra.mxu0 %v9547
    %9976 = vmatprep.subr.bf16.mxu0 %v9552
    %9977 = vmatpush1.bf16.msra.mxu0 %v9551
    %9978 = vmatprep.subr.bf16.mxu0 %v9556
    %9979 = vmatpush1.bf16.msra.mxu0 %v9555
    %9980 = vmatprep.subr.bf16.mxu0 %v9560
    %9981 = vmatpush1.bf16.msra.mxu0 %v9559
    %9982 = vmatprep.subr.bf16.mxu0 %v9564
    %9983 = vmatpush1.bf16.msra.mxu0 %v9563
    %9984 = vmatprep.subr.bf16.mxu0 %v9568
    %9985 = vmatpush1.bf16.msra.mxu0 %v9567
    %9986 = vmatprep.subr.bf16.mxu0 %v9572
    %9987 = vmatpush1.bf16.msra.mxu0 %v9571
    %9988 = vmatprep.subr.bf16.mxu0 %v9576
    %9989 = vmatpush1.bf16.msra.mxu0 %v9575
    %9990 = vmatprep.mubr.bf16.mxu0 %v8282
    %9991 = vmatmul.mubr.bf16.gmra.mrb[0].mxu0 %v8281
    %v9992 = vpop.f32.mrb[0].mxu0
    %v9993 = vadd.f32 %v9952, %v9992
    %v9994 = vpop.f32.mrb[0].mxu0
    %v9995 = vadd.f32 %v9954, %v9994
    %v9996 = vpop.f32.mrb[0].mxu0
    %v9997 = vpop.f32.mrb[0].mxu0
    %9998 = vdwg.mxu0
    %9999 = vmatprep.subr.bf16.mxu0 %v9326
    %10000 = vmatpush1.bf16.msra.mxu0 %v9325
    %10001 = vmatprep.subr.bf16.mxu0 %v9330
    %10002 = vmatpush1.bf16.msra.mxu0 %v9329
    %10003 = vmatprep.subr.bf16.mxu0 %v9334
    %10004 = vmatpush1.bf16.msra.mxu0 %v9333
    %10005 = vmatprep.subr.bf16.mxu0 %v9338
    %10006 = vmatpush1.bf16.msra.mxu0 %v9337
    %10007 = vmatprep.subr.bf16.mxu0 %v9342
    %10008 = vmatpush1.bf16.msra.mxu0 %v9341
    %10009 = vmatprep.subr.bf16.mxu0 %v9346
    %10010 = vmatpush1.bf16.msra.mxu0 %v9345
    %10011 = vmatprep.subr.bf16.mxu0 %v9350
    %10012 = vmatpush1.bf16.msra.mxu0 %v9349
    %10013 = vmatprep.subr.bf16.mxu0 %v9354
    %10014 = vmatpush1.bf16.msra.mxu0 %v9353
    %10015 = vmatprep.subr.bf16.mxu0 %v9358
    %10016 = vmatpush1.bf16.msra.mxu0 %v9357
    %10017 = vmatprep.subr.bf16.mxu0 %v9362
    %10018 = vmatpush1.bf16.msra.mxu0 %v9361
    %10019 = vmatprep.subr.bf16.mxu0 %v9366
    %10020 = vmatpush1.bf16.msra.mxu0 %v9365
    %10021 = vmatprep.subr.bf16.mxu0 %v9370
    %10022 = vmatpush1.bf16.msra.mxu0 %v9369
    %10023 = vmatprep.subr.bf16.mxu0 %v9374
    %10024 = vmatpush1.bf16.msra.mxu0 %v9373
    %10025 = vmatprep.subr.bf16.mxu0 %v9378
    %10026 = vmatpush1.bf16.msra.mxu0 %v9377
    %10027 = vmatprep.subr.bf16.mxu0 %v9382
    %10028 = vmatpush1.bf16.msra.mxu0 %v9381
    %10029 = vmatprep.subr.bf16.mxu0 %v9386
    %10030 = vmatpush1.bf16.msra.mxu0 %v9385
    %10031 = vmatprep.mubr.bf16.mxu0 %v8276
    %10032 = vmatmul.mubr.bf16.gmra.mrb[0].mxu0 %v8275
    %v10033 = vpop.f32.mrb[0].mxu0
    %v10034 = vadd.f32 %v8550, %v10033
    %v10035 = vpop.f32.mrb[0].mxu0
    %v10036 = vadd.f32 %v8554, %v10035
    %v10037 = vpop.f32.mrb[0].mxu0
    %v10038 = vpop.f32.mrb[0].mxu0
    %10039 = vdwg.mxu0
    %10040 = vmatprep.subr.bf16.mxu0 %v9390
    %10041 = vmatpush1.bf16.msra.mxu0 %v9389
    %10042 = vmatprep.subr.bf16.mxu0 %v9394
    %10043 = vmatpush1.bf16.msra.mxu0 %v9393
    %10044 = vmatprep.subr.bf16.mxu0 %v9398
    %10045 = vmatpush1.bf16.msra.mxu0 %v9397
    %10046 = vmatprep.subr.bf16.mxu0 %v9402
    %10047 = vmatpush1.bf16.msra.mxu0 %v9401
    %10048 = vmatprep.subr.bf16.mxu0 %v9406
    %10049 = vmatpush1.bf16.msra.mxu0 %v9405
    %10050 = vmatprep.subr.bf16.mxu0 %v9410
    %10051 = vmatpush1.bf16.msra.mxu0 %v9409
    %10052 = vmatprep.subr.bf16.mxu0 %v9414
    %10053 = vmatpush1.bf16.msra.mxu0 %v9413
    %10054 = vmatprep.subr.bf16.mxu0 %v9418
    %10055 = vmatpush1.bf16.msra.mxu0 %v9417
    %10056 = vmatprep.subr.bf16.mxu0 %v9422
    %10057 = vmatpush1.bf16.msra.mxu0 %v9421
    %10058 = vmatprep.subr.bf16.mxu0 %v9426
    %10059 = vmatpush1.bf16.msra.mxu0 %v9425
    %10060 = vmatprep.subr.bf16.mxu0 %v9430
    %10061 = vmatpush1.bf16.msra.mxu0 %v9429
    %10062 = vmatprep.subr.bf16.mxu0 %v9434
    %10063 = vmatpush1.bf16.msra.mxu0 %v9433
    %10064 = vmatprep.subr.bf16.mxu0 %v9438
    %10065 = vmatpush1.bf16.msra.mxu0 %v9437
    %10066 = vmatprep.subr.bf16.mxu0 %v9442
    %10067 = vmatpush1.bf16.msra.mxu0 %v9441
    %10068 = vmatprep.subr.bf16.mxu0 %v9446
    %10069 = vmatpush1.bf16.msra.mxu0 %v9445
    %10070 = vmatprep.subr.bf16.mxu0 %v9450
    %10071 = vmatpush1.bf16.msra.mxu0 %v9449
    %10072 = vmatprep.mubr.bf16.mxu0 %v8278
    %10073 = vmatmul.mubr.bf16.gmra.mrb[0].mxu0 %v8277
    %v10074 = vpop.f32.mrb[0].mxu0
    %v10075 = vadd.f32 %v10034, %v10074
    %v10076 = vpop.f32.mrb[0].mxu0
    %v10077 = vadd.f32 %v10036, %v10076
    %v10078 = vpop.f32.mrb[0].mxu0
    %v10079 = vpop.f32.mrb[0].mxu0
    %10080 = vdwg.mxu0
    %10081 = vmatprep.subr.bf16.mxu0 %v9454
    %10082 = vmatpush1.bf16.msra.mxu0 %v9453
    %10083 = vmatprep.subr.bf16.mxu0 %v9458
    %10084 = vmatpush1.bf16.msra.mxu0 %v9457
    %10085 = vmatprep.subr.bf16.mxu0 %v9462
    %10086 = vmatpush1.bf16.msra.mxu0 %v9461
    %10087 = vmatprep.subr.bf16.mxu0 %v9466
    %10088 = vmatpush1.bf16.msra.mxu0 %v9465
    %10089 = vmatprep.subr.bf16.mxu0 %v9470
    %10090 = vmatpush1.bf16.msra.mxu0 %v9469
    %10091 = vmatprep.subr.bf16.mxu0 %v9474
    %10092 = vmatpush1.bf16.msra.mxu0 %v9473
    %10093 = vmatprep.subr.bf16.mxu0 %v9478
    %10094 = vmatpush1.bf16.msra.mxu0 %v9477
    %10095 = vmatprep.subr.bf16.mxu0 %v9482
    %10096 = vmatpush1.bf16.msra.mxu0 %v9481
    %10097 = vmatprep.subr.bf16.mxu0 %v9486
    %10098 = vmatpush1.bf16.msra.mxu0 %v9485
    %10099 = vmatprep.subr.bf16.mxu0 %v9490
    %10100 = vmatpush1.bf16.msra.mxu0 %v9489
    %10101 = vmatprep.subr.bf16.mxu0 %v9494
    %10102 = vmatpush1.bf16.msra.mxu0 %v9493
    %10103 = vmatprep.subr.bf16.mxu0 %v9498
    %10104 = vmatpush1.bf16.msra.mxu0 %v9497
    %10105 = vmatprep.subr.bf16.mxu0 %v9502
    %10106 = vmatpush1.bf16.msra.mxu0 %v9501
    %10107 = vmatprep.subr.bf16.mxu0 %v9506
    %10108 = vmatpush1.bf16.msra.mxu0 %v9505
    %10109 = vmatprep.subr.bf16.mxu0 %v9510
    %10110 = vmatpush1.bf16.msra.mxu0 %v9509
    %10111 = vmatprep.subr.bf16.mxu0 %v9514
    %10112 = vmatpush1.bf16.msra.mxu0 %v9513
    %10113 = vmatprep.mubr.bf16.mxu0 %v8280
    %10114 = vmatmul.mubr.bf16.gmra.mrb[0].mxu0 %v8279
    %v10115 = vpop.f32.mrb[0].mxu0
    %v10116 = vadd.f32 %v10075, %v10115
    %v10117 = vpop.f32.mrb[0].mxu0
    %v10118 = vadd.f32 %v10077, %v10117
    %v10119 = vpop.f32.mrb[0].mxu0
    %v10120 = vpop.f32.mrb[0].mxu0
    %10121 = vdwg.mxu0
    %10122 = vmatprep.subr.bf16.mxu0 %v9518
    %10123 = vmatpush1.bf16.msra.mxu0 %v9517
    %10124 = vmatprep.subr.bf16.mxu0 %v9522
    %10125 = vmatpush1.bf16.msra.mxu0 %v9521
    %10126 = vmatprep.subr.bf16.mxu0 %v9526
    %10127 = vmatpush1.bf16.msra.mxu0 %v9525
    %10128 = vmatprep.subr.bf16.mxu0 %v9530
    %10129 = vmatpush1.bf16.msra.mxu0 %v9529
    %10130 = vmatprep.subr.bf16.mxu0 %v9534
    %10131 = vmatpush1.bf16.msra.mxu0 %v9533
    %10132 = vmatprep.subr.bf16.mxu0 %v9538
    %10133 = vmatpush1.bf16.msra.mxu0 %v9537
    %10134 = vmatprep.subr.bf16.mxu0 %v9542
    %10135 = vmatpush1.bf16.msra.mxu0 %v9541
    %10136 = vmatprep.subr.bf16.mxu0 %v9546
    %10137 = vmatpush1.bf16.msra.mxu0 %v9545
    %10138 = vmatprep.subr.bf16.mxu0 %v9550
    %10139 = vmatpush1.bf16.msra.mxu0 %v9549
    %10140 = vmatprep.subr.bf16.mxu0 %v9554
    %10141 = vmatpush1.bf16.msra.mxu0 %v9553
    %10142 = vmatprep.subr.bf16.mxu0 %v9558
    %10143 = vmatpush1.bf16.msra.mxu0 %v9557
    %10144 = vmatprep.subr.bf16.mxu0 %v9562
    %10145 = vmatpush1.bf16.msra.mxu0 %v9561
    %10146 = vmatprep.subr.bf16.mxu0 %v9566
    %10147 = vmatpush1.bf16.msra.mxu0 %v9565
    %10148 = vmatprep.subr.bf16.mxu0 %v9570
    %10149 = vmatpush1.bf16.msra.mxu0 %v9569
    %10150 = vmatprep.subr.bf16.mxu0 %v9574
    %10151 = vmatpush1.bf16.msra.mxu0 %v9573
    %10152 = vmatprep.subr.bf16.mxu0 %v9578
    %10153 = vmatpush1.bf16.msra.mxu0 %v9577
    %10154 = vmatprep.mubr.bf16.mxu0 %v8282
    %10155 = vmatmul.mubr.bf16.gmra.mrb[0].mxu0 %v8281
    %v10156 = vpop.f32.mrb[0].mxu0
    %v10157 = vadd.f32 %v10116, %v10156
    %v10158 = vpop.f32.mrb[0].mxu0
    %v10159 = vadd.f32 %v10118, %v10158
    %v10160 = vpop.f32.mrb[0].mxu0
    %v10161 = vpop.f32.mrb[0].mxu0
    %10162 = vdwg.mxu0
    %v10163 = vmax.f32 %v9993, 0.0
    %v10164 = vmax.f32 %v9995, 0.0
    %v10165 = vmax.f32 %v10157, 0.0
    %v10166 = vmax.f32 %v10159, 0.0
    %v10167 = vpack.c.bf16 %v10163, %v10163
    %v10168 = vpack.c.bf16 %v10164, %v10164
    %v10169 = vpack.c.bf16 %v10165, %v10165
    %v10170 = vpack.c.bf16 %v10166, %v10166
    %v10171 = vld [vmem:[#allocation11] sm:$0xff]
    %v10172 = vld [vmem:[#allocation11 + $0x8] sm:$0xff]
    %v10173 = vld [vmem:[#allocation11 + $0x10] sm:$0xff]
    %v10174 = vld [vmem:[#allocation11 + $0x18] sm:$0xff]
    %v10175 = vld [vmem:[#allocation11 + $0x20] sm:$0xff]
    %v10176 = vld [vmem:[#allocation11 + $0x28] sm:$0xff]
    %v10177 = vld [vmem:[#allocation11 + $0x30] sm:$0xff]
    %v10178 = vld [vmem:[#allocation11 + $0x38] sm:$0xff]
    %v10179 = vld [vmem:[#allocation11 + $0x40] sm:$0xff]
    %v10180 = vld [vmem:[#allocation11 + $0x48] sm:$0xff]
    %v10181 = vld [vmem:[#allocation11 + $0x50] sm:$0xff]
    %v10182 = vld [vmem:[#allocation11 + $0x58] sm:$0xff]
    %v10183 = vld [vmem:[#allocation11 + $0x60] sm:$0xff]
    %v10184 = vld [vmem:[#allocation11 + $0x68] sm:$0xff]
    %v10185 = vld [vmem:[#allocation11 + $0x70] sm:$0xff]
    %v10186 = vld [vmem:[#allocation11 + $0x78] sm:$0xff]
    %v10187 = vld [vmem:[#allocation11 + $0x80] sm:$0xff]
    %v10188 = vld [vmem:[#allocation11 + $0x88] sm:$0xff]
    %v10189 = vld [vmem:[#allocation11 + $0x90] sm:$0xff]
    %v10190 = vld [vmem:[#allocation11 + $0x98] sm:$0xff]
    %v10191 = vld [vmem:[#allocation11 + $0xa0] sm:$0xff]
    %v10192 = vld [vmem:[#allocation11 + $0xa8] sm:$0xff]
    %v10193 = vld [vmem:[#allocation11 + $0xb0] sm:$0xff]
    %v10194 = vld [vmem:[#allocation11 + $0xb8] sm:$0xff]
    %v10195 = vld [vmem:[#allocation11 + $0xc0] sm:$0xff]
    %v10196 = vld [vmem:[#allocation11 + $0xc8] sm:$0xff]
    %v10197 = vld [vmem:[#allocation11 + $0xd0] sm:$0xff]
    %v10198 = vld [vmem:[#allocation11 + $0xd8] sm:$0xff]
    %v10199 = vld [vmem:[#allocation11 + $0xe0] sm:$0xff]
    %v10200 = vld [vmem:[#allocation11 + $0xe8] sm:$0xff]
    %v10201 = vld [vmem:[#allocation11 + $0xf0] sm:$0xff]
    %v10202 = vld [vmem:[#allocation11 + $0xf8] sm:$0xff]
    %v10203 = vld [vmem:[#allocation11 + $0x100] sm:$0xff]
    %v10204 = vld [vmem:[#allocation11 + $0x108] sm:$0xff]
    %v10205 = vld [vmem:[#allocation11 + $0x110] sm:$0xff]
    %v10206 = vld [vmem:[#allocation11 + $0x118] sm:$0xff]
    %v10207 = vld [vmem:[#allocation11 + $0x120] sm:$0xff]
    %v10208 = vld [vmem:[#allocation11 + $0x128] sm:$0xff]
    %v10209 = vld [vmem:[#allocation11 + $0x130] sm:$0xff]
    %v10210 = vld [vmem:[#allocation11 + $0x138] sm:$0xff]
    %v10211 = vld [vmem:[#allocation11 + $0x140] sm:$0xff]
    %v10212 = vld [vmem:[#allocation11 + $0x148] sm:$0xff]
    %v10213 = vld [vmem:[#allocation11 + $0x150] sm:$0xff]
    %v10214 = vld [vmem:[#allocation11 + $0x158] sm:$0xff]
    %v10215 = vld [vmem:[#allocation11 + $0x160] sm:$0xff]
    %v10216 = vld [vmem:[#allocation11 + $0x168] sm:$0xff]
    %v10217 = vld [vmem:[#allocation11 + $0x170] sm:$0xff]
    %v10218 = vld [vmem:[#allocation11 + $0x178] sm:$0xff]
    %v10219 = vld [vmem:[#allocation11 + $0x180] sm:$0xff]
    %v10220 = vld [vmem:[#allocation11 + $0x188] sm:$0xff]
    %v10221 = vld [vmem:[#allocation11 + $0x190] sm:$0xff]
    %v10222 = vld [vmem:[#allocation11 + $0x198] sm:$0xff]
    %v10223 = vld [vmem:[#allocation11 + $0x1a0] sm:$0xff]
    %v10224 = vld [vmem:[#allocation11 + $0x1a8] sm:$0xff]
    %v10225 = vld [vmem:[#allocation11 + $0x1b0] sm:$0xff]
    %v10226 = vld [vmem:[#allocation11 + $0x1b8] sm:$0xff]
    %v10227 = vld [vmem:[#allocation11 + $0x1c0] sm:$0xff]
    %v10228 = vld [vmem:[#allocation11 + $0x1c8] sm:$0xff]
    %v10229 = vld [vmem:[#allocation11 + $0x1d0] sm:$0xff]
    %v10230 = vld [vmem:[#allocation11 + $0x1d8] sm:$0xff]
    %v10231 = vld [vmem:[#allocation11 + $0x1e0] sm:$0xff]
    %v10232 = vld [vmem:[#allocation11 + $0x1e8] sm:$0xff]
    %v10233 = vld [vmem:[#allocation11 + $0x1f0] sm:$0xff]
    %v10234 = vld [vmem:[#allocation11 + $0x1f8] sm:$0xff]
    %v10235 = vld [vmem:[#allocation11 + $0x200] sm:$0xff]
    %v10236 = vld [vmem:[#allocation11 + $0x208] sm:$0xff]
    %v10237 = vld [vmem:[#allocation11 + $0x210] sm:$0xff]
    %v10238 = vld [vmem:[#allocation11 + $0x218] sm:$0xff]
    %v10239 = vld [vmem:[#allocation11 + $0x220] sm:$0xff]
    %v10240 = vld [vmem:[#allocation11 + $0x228] sm:$0xff]
    %v10241 = vld [vmem:[#allocation11 + $0x230] sm:$0xff]
    %v10242 = vld [vmem:[#allocation11 + $0x238] sm:$0xff]
    %v10243 = vld [vmem:[#allocation11 + $0x240] sm:$0xff]
    %v10244 = vld [vmem:[#allocation11 + $0x248] sm:$0xff]
    %v10245 = vld [vmem:[#allocation11 + $0x250] sm:$0xff]
    %v10246 = vld [vmem:[#allocation11 + $0x258] sm:$0xff]
    %v10247 = vld [vmem:[#allocation11 + $0x260] sm:$0xff]
    %v10248 = vld [vmem:[#allocation11 + $0x268] sm:$0xff]
    %v10249 = vld [vmem:[#allocation11 + $0x270] sm:$0xff]
    %v10250 = vld [vmem:[#allocation11 + $0x278] sm:$0xff]
    %v10251 = vld [vmem:[#allocation11 + $0x280] sm:$0xff]
    %v10252 = vld [vmem:[#allocation11 + $0x288] sm:$0xff]
    %v10253 = vld [vmem:[#allocation11 + $0x290] sm:$0xff]
    %v10254 = vld [vmem:[#allocation11 + $0x298] sm:$0xff]
    %v10255 = vld [vmem:[#allocation11 + $0x2a0] sm:$0xff]
    %v10256 = vld [vmem:[#allocation11 + $0x2a8] sm:$0xff]
    %v10257 = vld [vmem:[#allocation11 + $0x2b0] sm:$0xff]
    %v10258 = vld [vmem:[#allocation11 + $0x2b8] sm:$0xff]
    %v10259 = vld [vmem:[#allocation11 + $0x2c0] sm:$0xff]
    %v10260 = vld [vmem:[#allocation11 + $0x2c8] sm:$0xff]
    %v10261 = vld [vmem:[#allocation11 + $0x2d0] sm:$0xff]
    %v10262 = vld [vmem:[#allocation11 + $0x2d8] sm:$0xff]
    %v10263 = vld [vmem:[#allocation11 + $0x2e0] sm:$0xff]
    %v10264 = vld [vmem:[#allocation11 + $0x2e8] sm:$0xff]
    %v10265 = vld [vmem:[#allocation11 + $0x2f0] sm:$0xff]
    %v10266 = vld [vmem:[#allocation11 + $0x2f8] sm:$0xff]
    %v10267 = vld [vmem:[#allocation11 + $0x300] sm:$0xff]
    %v10268 = vld [vmem:[#allocation11 + $0x308] sm:$0xff]
    %v10269 = vld [vmem:[#allocation11 + $0x310] sm:$0xff]
    %v10270 = vld [vmem:[#allocation11 + $0x318] sm:$0xff]
    %v10271 = vld [vmem:[#allocation11 + $0x320] sm:$0xff]
    %v10272 = vld [vmem:[#allocation11 + $0x328] sm:$0xff]
    %v10273 = vld [vmem:[#allocation11 + $0x330] sm:$0xff]
    %v10274 = vld [vmem:[#allocation11 + $0x338] sm:$0xff]
    %v10275 = vld [vmem:[#allocation11 + $0x340] sm:$0xff]
    %v10276 = vld [vmem:[#allocation11 + $0x348] sm:$0xff]
    %v10277 = vld [vmem:[#allocation11 + $0x350] sm:$0xff]
    %v10278 = vld [vmem:[#allocation11 + $0x358] sm:$0xff]
    %v10279 = vld [vmem:[#allocation11 + $0x360] sm:$0xff]
    %v10280 = vld [vmem:[#allocation11 + $0x368] sm:$0xff]
    %v10281 = vld [vmem:[#allocation11 + $0x370] sm:$0xff]
    %v10282 = vld [vmem:[#allocation11 + $0x378] sm:$0xff]
    %v10283 = vld [vmem:[#allocation11 + $0x380] sm:$0xff]
    %v10284 = vld [vmem:[#allocation11 + $0x388] sm:$0xff]
    %v10285 = vld [vmem:[#allocation11 + $0x390] sm:$0xff]
    %v10286 = vld [vmem:[#allocation11 + $0x398] sm:$0xff]
    %v10287 = vld [vmem:[#allocation11 + $0x3a0] sm:$0xff]
    %v10288 = vld [vmem:[#allocation11 + $0x3a8] sm:$0xff]
    %v10289 = vld [vmem:[#allocation11 + $0x3b0] sm:$0xff]
    %v10290 = vld [vmem:[#allocation11 + $0x3b8] sm:$0xff]
    %v10291 = vld [vmem:[#allocation11 + $0x3c0] sm:$0xff]
    %v10292 = vld [vmem:[#allocation11 + $0x3c8] sm:$0xff]
    %v10293 = vld [vmem:[#allocation11 + $0x3d0] sm:$0xff]
    %v10294 = vld [vmem:[#allocation11 + $0x3d8] sm:$0xff]
    %v10295 = vld [vmem:[#allocation11 + $0x3e0] sm:$0xff]
    %v10296 = vld [vmem:[#allocation11 + $0x3e8] sm:$0xff]
    %v10297 = vld [vmem:[#allocation11 + $0x3f0] sm:$0xff]
    %v10298 = vld [vmem:[#allocation11 + $0x3f8] sm:$0xff]
    %v10299 = vlaneseq
    %v10300 = vshrl.u32 %v10299, 7
    %v10301 = vsub.s32 4, %v10300
    %v10302 = vrot.slane %v125, %v10301
    %v10303 = vlaneseq
    %v10304 = vshrl.u32 %v10303, 7
    %v10305 = vsub.s32 4, %v10304
    %v10306 = vrot.slane %v126, %v10305
    %v10307 = vlaneseq
    %v10308 = vshrl.u32 %v10307, 7
    %v10309 = vsub.s32 4, %v10308
    %v10310 = vrot.slane %v127, %v10309
    %v10311 = vlaneseq
    %v10312 = vshrl.u32 %v10311, 7
    %v10313 = vsub.s32 4, %v10312
    %v10314 = vrot.slane %v128, %v10313
    %v10443 = vunpack.c.l.b16 %v10171
    %v10444 = vunpack.c.h.b16 %v10171
    %v10445 = vunpack.c.l.b16 %v10172
    %v10446 = vunpack.c.h.b16 %v10172
    %v10447 = vunpack.c.l.b16 %v10173
    %v10448 = vunpack.c.h.b16 %v10173
    %v10449 = vunpack.c.l.b16 %v10174
    %v10450 = vunpack.c.h.b16 %v10174
    %v10451 = vunpack.c.l.b16 %v10175
    %v10452 = vunpack.c.h.b16 %v10175
    %v10453 = vunpack.c.l.b16 %v10176
    %v10454 = vunpack.c.h.b16 %v10176
    %v10455 = vunpack.c.l.b16 %v10177
    %v10456 = vunpack.c.h.b16 %v10177
    %v10457 = vunpack.c.l.b16 %v10178
    %v10458 = vunpack.c.h.b16 %v10178
    %v10459 = vunpack.c.l.b16 %v10179
    %v10460 = vunpack.c.h.b16 %v10179
    %v10461 = vunpack.c.l.b16 %v10180
    %v10462 = vunpack.c.h.b16 %v10180
    %v10463 = vunpack.c.l.b16 %v10181
    %v10464 = vunpack.c.h.b16 %v10181
    %v10465 = vunpack.c.l.b16 %v10182
    %v10466 = vunpack.c.h.b16 %v10182
    %v10467 = vunpack.c.l.b16 %v10183
    %v10468 = vunpack.c.h.b16 %v10183
    %v10469 = vunpack.c.l.b16 %v10184
    %v10470 = vunpack.c.h.b16 %v10184
    %v10471 = vunpack.c.l.b16 %v10185
    %v10472 = vunpack.c.h.b16 %v10185
    %v10473 = vunpack.c.l.b16 %v10186
    %v10474 = vunpack.c.h.b16 %v10186
    %v10475 = vunpack.c.l.b16 %v10187
    %v10476 = vunpack.c.h.b16 %v10187
    %v10477 = vunpack.c.l.b16 %v10188
    %v10478 = vunpack.c.h.b16 %v10188
    %v10479 = vunpack.c.l.b16 %v10189
    %v10480 = vunpack.c.h.b16 %v10189
    %v10481 = vunpack.c.l.b16 %v10190
    %v10482 = vunpack.c.h.b16 %v10190
    %v10483 = vunpack.c.l.b16 %v10191
    %v10484 = vunpack.c.h.b16 %v10191
    %v10485 = vunpack.c.l.b16 %v10192
    %v10486 = vunpack.c.h.b16 %v10192
    %v10487 = vunpack.c.l.b16 %v10193
    %v10488 = vunpack.c.h.b16 %v10193
    %v10489 = vunpack.c.l.b16 %v10194
    %v10490 = vunpack.c.h.b16 %v10194
    %v10491 = vunpack.c.l.b16 %v10195
    %v10492 = vunpack.c.h.b16 %v10195
    %v10493 = vunpack.c.l.b16 %v10196
    %v10494 = vunpack.c.h.b16 %v10196
    %v10495 = vunpack.c.l.b16 %v10197
    %v10496 = vunpack.c.h.b16 %v10197
    %v10497 = vunpack.c.l.b16 %v10198
    %v10498 = vunpack.c.h.b16 %v10198
    %v10499 = vunpack.c.l.b16 %v10199
    %v10500 = vunpack.c.h.b16 %v10199
    %v10501 = vunpack.c.l.b16 %v10200
    %v10502 = vunpack.c.h.b16 %v10200
    %v10503 = vunpack.c.l.b16 %v10201
    %v10504 = vunpack.c.h.b16 %v10201
    %v10505 = vunpack.c.l.b16 %v10202
    %v10506 = vunpack.c.h.b16 %v10202
    %v10507 = vunpack.c.l.b16 %v10203
    %v10508 = vunpack.c.h.b16 %v10203
    %v10509 = vunpack.c.l.b16 %v10204
    %v10510 = vunpack.c.h.b16 %v10204
    %v10511 = vunpack.c.l.b16 %v10205
    %v10512 = vunpack.c.h.b16 %v10205
    %v10513 = vunpack.c.l.b16 %v10206
    %v10514 = vunpack.c.h.b16 %v10206
    %v10515 = vunpack.c.l.b16 %v10207
    %v10516 = vunpack.c.h.b16 %v10207
    %v10517 = vunpack.c.l.b16 %v10208
    %v10518 = vunpack.c.h.b16 %v10208
    %v10519 = vunpack.c.l.b16 %v10209
    %v10520 = vunpack.c.h.b16 %v10209
    %v10521 = vunpack.c.l.b16 %v10210
    %v10522 = vunpack.c.h.b16 %v10210
    %v10523 = vunpack.c.l.b16 %v10211
    %v10524 = vunpack.c.h.b16 %v10211
    %v10525 = vunpack.c.l.b16 %v10212
    %v10526 = vunpack.c.h.b16 %v10212
    %v10527 = vunpack.c.l.b16 %v10213
    %v10528 = vunpack.c.h.b16 %v10213
    %v10529 = vunpack.c.l.b16 %v10214
    %v10530 = vunpack.c.h.b16 %v10214
    %v10531 = vunpack.c.l.b16 %v10215
    %v10532 = vunpack.c.h.b16 %v10215
    %v10533 = vunpack.c.l.b16 %v10216
    %v10534 = vunpack.c.h.b16 %v10216
    %v10535 = vunpack.c.l.b16 %v10217
    %v10536 = vunpack.c.h.b16 %v10217
    %v10537 = vunpack.c.l.b16 %v10218
    %v10538 = vunpack.c.h.b16 %v10218
    %v10539 = vunpack.c.l.b16 %v10219
    %v10540 = vunpack.c.h.b16 %v10219
    %v10541 = vunpack.c.l.b16 %v10220
    %v10542 = vunpack.c.h.b16 %v10220
    %v10543 = vunpack.c.l.b16 %v10221
    %v10544 = vunpack.c.h.b16 %v10221
    %v10545 = vunpack.c.l.b16 %v10222
    %v10546 = vunpack.c.h.b16 %v10222
    %v10547 = vunpack.c.l.b16 %v10223
    %v10548 = vunpack.c.h.b16 %v10223
    %v10549 = vunpack.c.l.b16 %v10224
    %v10550 = vunpack.c.h.b16 %v10224
    %v10551 = vunpack.c.l.b16 %v10225
    %v10552 = vunpack.c.h.b16 %v10225
    %v10553 = vunpack.c.l.b16 %v10226
    %v10554 = vunpack.c.h.b16 %v10226
    %v10555 = vunpack.c.l.b16 %v10227
    %v10556 = vunpack.c.h.b16 %v10227
    %v10557 = vunpack.c.l.b16 %v10228
    %v10558 = vunpack.c.h.b16 %v10228
    %v10559 = vunpack.c.l.b16 %v10229
    %v10560 = vunpack.c.h.b16 %v10229
    %v10561 = vunpack.c.l.b16 %v10230
    %v10562 = vunpack.c.h.b16 %v10230
    %v10563 = vunpack.c.l.b16 %v10231
    %v10564 = vunpack.c.h.b16 %v10231
    %v10565 = vunpack.c.l.b16 %v10232
    %v10566 = vunpack.c.h.b16 %v10232
    %v10567 = vunpack.c.l.b16 %v10233
    %v10568 = vunpack.c.h.b16 %v10233
    %v10569 = vunpack.c.l.b16 %v10234
    %v10570 = vunpack.c.h.b16 %v10234
    %v10571 = vunpack.c.l.b16 %v10235
    %v10572 = vunpack.c.h.b16 %v10235
    %v10573 = vunpack.c.l.b16 %v10236
    %v10574 = vunpack.c.h.b16 %v10236
    %v10575 = vunpack.c.l.b16 %v10237
    %v10576 = vunpack.c.h.b16 %v10237
    %v10577 = vunpack.c.l.b16 %v10238
    %v10578 = vunpack.c.h.b16 %v10238
    %v10579 = vunpack.c.l.b16 %v10239
    %v10580 = vunpack.c.h.b16 %v10239
    %v10581 = vunpack.c.l.b16 %v10240
    %v10582 = vunpack.c.h.b16 %v10240
    %v10583 = vunpack.c.l.b16 %v10241
    %v10584 = vunpack.c.h.b16 %v10241
    %v10585 = vunpack.c.l.b16 %v10242
    %v10586 = vunpack.c.h.b16 %v10242
    %v10587 = vunpack.c.l.b16 %v10243
    %v10588 = vunpack.c.h.b16 %v10243
    %v10589 = vunpack.c.l.b16 %v10244
    %v10590 = vunpack.c.h.b16 %v10244
    %v10591 = vunpack.c.l.b16 %v10245
    %v10592 = vunpack.c.h.b16 %v10245
    %v10593 = vunpack.c.l.b16 %v10246
    %v10594 = vunpack.c.h.b16 %v10246
    %v10595 = vunpack.c.l.b16 %v10247
    %v10596 = vunpack.c.h.b16 %v10247
    %v10597 = vunpack.c.l.b16 %v10248
    %v10598 = vunpack.c.h.b16 %v10248
    %v10599 = vunpack.c.l.b16 %v10249
    %v10600 = vunpack.c.h.b16 %v10249
    %v10601 = vunpack.c.l.b16 %v10250
    %v10602 = vunpack.c.h.b16 %v10250
    %v10603 = vunpack.c.l.b16 %v10251
    %v10604 = vunpack.c.h.b16 %v10251
    %v10605 = vunpack.c.l.b16 %v10252
    %v10606 = vunpack.c.h.b16 %v10252
    %v10607 = vunpack.c.l.b16 %v10253
    %v10608 = vunpack.c.h.b16 %v10253
    %v10609 = vunpack.c.l.b16 %v10254
    %v10610 = vunpack.c.h.b16 %v10254
    %v10611 = vunpack.c.l.b16 %v10255
    %v10612 = vunpack.c.h.b16 %v10255
    %v10613 = vunpack.c.l.b16 %v10256
    %v10614 = vunpack.c.h.b16 %v10256
    %v10615 = vunpack.c.l.b16 %v10257
    %v10616 = vunpack.c.h.b16 %v10257
    %v10617 = vunpack.c.l.b16 %v10258
    %v10618 = vunpack.c.h.b16 %v10258
    %v10619 = vunpack.c.l.b16 %v10259
    %v10620 = vunpack.c.h.b16 %v10259
    %v10621 = vunpack.c.l.b16 %v10260
    %v10622 = vunpack.c.h.b16 %v10260
    %v10623 = vunpack.c.l.b16 %v10261
    %v10624 = vunpack.c.h.b16 %v10261
    %v10625 = vunpack.c.l.b16 %v10262
    %v10626 = vunpack.c.h.b16 %v10262
    %v10627 = vunpack.c.l.b16 %v10263
    %v10628 = vunpack.c.h.b16 %v10263
    %v10629 = vunpack.c.l.b16 %v10264
    %v10630 = vunpack.c.h.b16 %v10264
    %v10631 = vunpack.c.l.b16 %v10265
    %v10632 = vunpack.c.h.b16 %v10265
    %v10633 = vunpack.c.l.b16 %v10266
    %v10634 = vunpack.c.h.b16 %v10266
    %v10635 = vunpack.c.l.b16 %v10267
    %v10636 = vunpack.c.h.b16 %v10267
    %v10637 = vunpack.c.l.b16 %v10268
    %v10638 = vunpack.c.h.b16 %v10268
    %v10639 = vunpack.c.l.b16 %v10269
    %v10640 = vunpack.c.h.b16 %v10269
    %v10641 = vunpack.c.l.b16 %v10270
    %v10642 = vunpack.c.h.b16 %v10270
    %v10643 = vunpack.c.l.b16 %v10271
    %v10644 = vunpack.c.h.b16 %v10271
    %v10645 = vunpack.c.l.b16 %v10272
    %v10646 = vunpack.c.h.b16 %v10272
    %v10647 = vunpack.c.l.b16 %v10273
    %v10648 = vunpack.c.h.b16 %v10273
    %v10649 = vunpack.c.l.b16 %v10274
    %v10650 = vunpack.c.h.b16 %v10274
    %v10651 = vunpack.c.l.b16 %v10275
    %v10652 = vunpack.c.h.b16 %v10275
    %v10653 = vunpack.c.l.b16 %v10276
    %v10654 = vunpack.c.h.b16 %v10276
    %v10655 = vunpack.c.l.b16 %v10277
    %v10656 = vunpack.c.h.b16 %v10277
    %v10657 = vunpack.c.l.b16 %v10278
    %v10658 = vunpack.c.h.b16 %v10278
    %v10659 = vunpack.c.l.b16 %v10279
    %v10660 = vunpack.c.h.b16 %v10279
    %v10661 = vunpack.c.l.b16 %v10280
    %v10662 = vunpack.c.h.b16 %v10280
    %v10663 = vunpack.c.l.b16 %v10281
    %v10664 = vunpack.c.h.b16 %v10281
    %v10665 = vunpack.c.l.b16 %v10282
    %v10666 = vunpack.c.h.b16 %v10282
    %v10667 = vunpack.c.l.b16 %v10283
    %v10668 = vunpack.c.h.b16 %v10283
    %v10669 = vunpack.c.l.b16 %v10284
    %v10670 = vunpack.c.h.b16 %v10284
    %v10671 = vunpack.c.l.b16 %v10285
    %v10672 = vunpack.c.h.b16 %v10285
    %v10673 = vunpack.c.l.b16 %v10286
    %v10674 = vunpack.c.h.b16 %v10286
    %v10675 = vunpack.c.l.b16 %v10287
    %v10676 = vunpack.c.h.b16 %v10287
    %v10677 = vunpack.c.l.b16 %v10288
    %v10678 = vunpack.c.h.b16 %v10288
    %v10679 = vunpack.c.l.b16 %v10289
    %v10680 = vunpack.c.h.b16 %v10289
    %v10681 = vunpack.c.l.b16 %v10290
    %v10682 = vunpack.c.h.b16 %v10290
    %v10683 = vunpack.c.l.b16 %v10291
    %v10684 = vunpack.c.h.b16 %v10291
    %v10685 = vunpack.c.l.b16 %v10292
    %v10686 = vunpack.c.h.b16 %v10292
    %v10687 = vunpack.c.l.b16 %v10293
    %v10688 = vunpack.c.h.b16 %v10293
    %v10689 = vunpack.c.l.b16 %v10294
    %v10690 = vunpack.c.h.b16 %v10294
    %v10691 = vunpack.c.l.b16 %v10295
    %v10692 = vunpack.c.h.b16 %v10295
    %v10693 = vunpack.c.l.b16 %v10296
    %v10694 = vunpack.c.h.b16 %v10296
    %v10695 = vunpack.c.l.b16 %v10297
    %v10696 = vunpack.c.h.b16 %v10297
    %v10697 = vunpack.c.l.b16 %v10298
    %v10698 = vunpack.c.h.b16 %v10298
    %v10699 = vpack.c.b16 %v10447, %v10443
    %v10700 = vpack.c.b16 %v10448, %v10444
    %v10701 = vpack.c.b16 %v10449, %v10445
    %v10702 = vpack.c.b16 %v10450, %v10446
    %v10703 = vpack.c.b16 %v10455, %v10451
    %v10704 = vpack.c.b16 %v10456, %v10452
    %v10705 = vpack.c.b16 %v10457, %v10453
    %v10706 = vpack.c.b16 %v10458, %v10454
    %v10707 = vpack.c.b16 %v10463, %v10459
    %v10708 = vpack.c.b16 %v10464, %v10460
    %v10709 = vpack.c.b16 %v10465, %v10461
    %v10710 = vpack.c.b16 %v10466, %v10462
    %v10711 = vpack.c.b16 %v10471, %v10467
    %v10712 = vpack.c.b16 %v10472, %v10468
    %v10713 = vpack.c.b16 %v10473, %v10469
    %v10714 = vpack.c.b16 %v10474, %v10470
    %v10715 = vpack.c.b16 %v10479, %v10475
    %v10716 = vpack.c.b16 %v10480, %v10476
    %v10717 = vpack.c.b16 %v10481, %v10477
    %v10718 = vpack.c.b16 %v10482, %v10478
    %v10719 = vpack.c.b16 %v10487, %v10483
    %v10720 = vpack.c.b16 %v10488, %v10484
    %v10721 = vpack.c.b16 %v10489, %v10485
    %v10722 = vpack.c.b16 %v10490, %v10486
    %v10723 = vpack.c.b16 %v10495, %v10491
    %v10724 = vpack.c.b16 %v10496, %v10492
    %v10725 = vpack.c.b16 %v10497, %v10493
    %v10726 = vpack.c.b16 %v10498, %v10494
    %v10727 = vpack.c.b16 %v10503, %v10499
    %v10728 = vpack.c.b16 %v10504, %v10500
    %v10729 = vpack.c.b16 %v10505, %v10501
    %v10730 = vpack.c.b16 %v10506, %v10502
    %v10731 = vpack.c.b16 %v10511, %v10507
    %v10732 = vpack.c.b16 %v10512, %v10508
    %v10733 = vpack.c.b16 %v10513, %v10509
    %v10734 = vpack.c.b16 %v10514, %v10510
    %v10735 = vpack.c.b16 %v10519, %v10515
    %v10736 = vpack.c.b16 %v10520, %v10516
    %v10737 = vpack.c.b16 %v10521, %v10517
    %v10738 = vpack.c.b16 %v10522, %v10518
    %v10739 = vpack.c.b16 %v10527, %v10523
    %v10740 = vpack.c.b16 %v10528, %v10524
    %v10741 = vpack.c.b16 %v10529, %v10525
    %v10742 = vpack.c.b16 %v10530, %v10526
    %v10743 = vpack.c.b16 %v10535, %v10531
    %v10744 = vpack.c.b16 %v10536, %v10532
    %v10745 = vpack.c.b16 %v10537, %v10533
    %v10746 = vpack.c.b16 %v10538, %v10534
    %v10747 = vpack.c.b16 %v10543, %v10539
    %v10748 = vpack.c.b16 %v10544, %v10540
    %v10749 = vpack.c.b16 %v10545, %v10541
    %v10750 = vpack.c.b16 %v10546, %v10542
    %v10751 = vpack.c.b16 %v10551, %v10547
    %v10752 = vpack.c.b16 %v10552, %v10548
    %v10753 = vpack.c.b16 %v10553, %v10549
    %v10754 = vpack.c.b16 %v10554, %v10550
    %v10755 = vpack.c.b16 %v10559, %v10555
    %v10756 = vpack.c.b16 %v10560, %v10556
    %v10757 = vpack.c.b16 %v10561, %v10557
    %v10758 = vpack.c.b16 %v10562, %v10558
    %v10759 = vpack.c.b16 %v10567, %v10563
    %v10760 = vpack.c.b16 %v10568, %v10564
    %v10761 = vpack.c.b16 %v10569, %v10565
    %v10762 = vpack.c.b16 %v10570, %v10566
    %v10763 = vpack.c.b16 %v10575, %v10571
    %v10764 = vpack.c.b16 %v10576, %v10572
    %v10765 = vpack.c.b16 %v10577, %v10573
    %v10766 = vpack.c.b16 %v10578, %v10574
    %v10767 = vpack.c.b16 %v10583, %v10579
    %v10768 = vpack.c.b16 %v10584, %v10580
    %v10769 = vpack.c.b16 %v10585, %v10581
    %v10770 = vpack.c.b16 %v10586, %v10582
    %v10771 = vpack.c.b16 %v10591, %v10587
    %v10772 = vpack.c.b16 %v10592, %v10588
    %v10773 = vpack.c.b16 %v10593, %v10589
    %v10774 = vpack.c.b16 %v10594, %v10590
    %v10775 = vpack.c.b16 %v10599, %v10595
    %v10776 = vpack.c.b16 %v10600, %v10596
    %v10777 = vpack.c.b16 %v10601, %v10597
    %v10778 = vpack.c.b16 %v10602, %v10598
    %v10779 = vpack.c.b16 %v10607, %v10603
    %v10780 = vpack.c.b16 %v10608, %v10604
    %v10781 = vpack.c.b16 %v10609, %v10605
    %v10782 = vpack.c.b16 %v10610, %v10606
    %v10783 = vpack.c.b16 %v10615, %v10611
    %v10784 = vpack.c.b16 %v10616, %v10612
    %v10785 = vpack.c.b16 %v10617, %v10613
    %v10786 = vpack.c.b16 %v10618, %v10614
    %v10787 = vpack.c.b16 %v10623, %v10619
    %v10788 = vpack.c.b16 %v10624, %v10620
    %v10789 = vpack.c.b16 %v10625, %v10621
    %v10790 = vpack.c.b16 %v10626, %v10622
    %v10791 = vpack.c.b16 %v10631, %v10627
    %v10792 = vpack.c.b16 %v10632, %v10628
    %v10793 = vpack.c.b16 %v10633, %v10629
    %v10794 = vpack.c.b16 %v10634, %v10630
    %v10795 = vpack.c.b16 %v10639, %v10635
    %v10796 = vpack.c.b16 %v10640, %v10636
    %v10797 = vpack.c.b16 %v10641, %v10637
    %v10798 = vpack.c.b16 %v10642, %v10638
    %v10799 = vpack.c.b16 %v10647, %v10643
    %v10800 = vpack.c.b16 %v10648, %v10644
    %v10801 = vpack.c.b16 %v10649, %v10645
    %v10802 = vpack.c.b16 %v10650, %v10646
    %v10803 = vpack.c.b16 %v10655, %v10651
    %v10804 = vpack.c.b16 %v10656, %v10652
    %v10805 = vpack.c.b16 %v10657, %v10653
    %v10806 = vpack.c.b16 %v10658, %v10654
    %v10807 = vpack.c.b16 %v10663, %v10659
    %v10808 = vpack.c.b16 %v10664, %v10660
    %v10809 = vpack.c.b16 %v10665, %v10661
    %v10810 = vpack.c.b16 %v10666, %v10662
    %v10811 = vpack.c.b16 %v10671, %v10667
    %v10812 = vpack.c.b16 %v10672, %v10668
    %v10813 = vpack.c.b16 %v10673, %v10669
    %v10814 = vpack.c.b16 %v10674, %v10670
    %v10815 = vpack.c.b16 %v10679, %v10675
    %v10816 = vpack.c.b16 %v10680, %v10676
    %v10817 = vpack.c.b16 %v10681, %v10677
    %v10818 = vpack.c.b16 %v10682, %v10678
    %v10819 = vpack.c.b16 %v10687, %v10683
    %v10820 = vpack.c.b16 %v10688, %v10684
    %v10821 = vpack.c.b16 %v10689, %v10685
    %v10822 = vpack.c.b16 %v10690, %v10686
    %v10823 = vpack.c.b16 %v10695, %v10691
    %v10824 = vpack.c.b16 %v10696, %v10692
    %v10825 = vpack.c.b16 %v10697, %v10693
    %v10826 = vpack.c.b16 %v10698, %v10694
    %10955 = vmatprep.subr.bf16.mxu0 %v10700
    %10956 = vmatpush1.bf16.msra.mxu0 %v10699
    %10957 = vmatprep.subr.bf16.mxu0 %v10704
    %10958 = vmatpush1.bf16.msra.mxu0 %v10703
    %10959 = vmatprep.subr.bf16.mxu0 %v10708
    %10960 = vmatpush1.bf16.msra.mxu0 %v10707
    %10961 = vmatprep.subr.bf16.mxu0 %v10712
    %10962 = vmatpush1.bf16.msra.mxu0 %v10711
    %10963 = vmatprep.subr.bf16.mxu0 %v10716
    %10964 = vmatpush1.bf16.msra.mxu0 %v10715
    %10965 = vmatprep.subr.bf16.mxu0 %v10720
    %10966 = vmatpush1.bf16.msra.mxu0 %v10719
    %10967 = vmatprep.subr.bf16.mxu0 %v10724
    %10968 = vmatpush1.bf16.msra.mxu0 %v10723
    %10969 = vmatprep.subr.bf16.mxu0 %v10728
    %10970 = vmatpush1.bf16.msra.mxu0 %v10727
    %10971 = vmatprep.subr.bf16.mxu0 %v10732
    %10972 = vmatpush1.bf16.msra.mxu0 %v10731
    %10973 = vmatprep.subr.bf16.mxu0 %v10736
    %10974 = vmatpush1.bf16.msra.mxu0 %v10735
    %10975 = vmatprep.subr.bf16.mxu0 %v10740
    %10976 = vmatpush1.bf16.msra.mxu0 %v10739
    %10977 = vmatprep.subr.bf16.mxu0 %v10744
    %10978 = vmatpush1.bf16.msra.mxu0 %v10743
    %10979 = vmatprep.subr.bf16.mxu0 %v10748
    %10980 = vmatpush1.bf16.msra.mxu0 %v10747
    %10981 = vmatprep.subr.bf16.mxu0 %v10752
    %10982 = vmatpush1.bf16.msra.mxu0 %v10751
    %10983 = vmatprep.subr.bf16.mxu0 %v10756
    %10984 = vmatpush1.bf16.msra.mxu0 %v10755
    %10985 = vmatprep.subr.bf16.mxu0 %v10760
    %10986 = vmatpush1.bf16.msra.mxu0 %v10759
    %10987 = vmatprep.mubr.bf16.mxu0 %v10168
    %10988 = vmatmul.mubr.bf16.gmra.mrb[0].mxu0 %v10167
    %v10989 = vpop.f32.mrb[0].mxu0
    %v10990 = vadd.f32 %v10302, %v10989
    %v10991 = vpop.f32.mrb[0].mxu0
    %v10992 = vadd.f32 %v10306, %v10991
    %v10993 = vpop.f32.mrb[0].mxu0
    %v10994 = vpop.f32.mrb[0].mxu0
    %10995 = vdwg.mxu0
    %10996 = vmatprep.subr.bf16.mxu0 %v10764
    %10997 = vmatpush1.bf16.msra.mxu0 %v10763
    %10998 = vmatprep.subr.bf16.mxu0 %v10768
    %10999 = vmatpush1.bf16.msra.mxu0 %v10767
    %11000 = vmatprep.subr.bf16.mxu0 %v10772
    %11001 = vmatpush1.bf16.msra.mxu0 %v10771
    %11002 = vmatprep.subr.bf16.mxu0 %v10776
    %11003 = vmatpush1.bf16.msra.mxu0 %v10775
    %11004 = vmatprep.subr.bf16.mxu0 %v10780
    %11005 = vmatpush1.bf16.msra.mxu0 %v10779
    %11006 = vmatprep.subr.bf16.mxu0 %v10784
    %11007 = vmatpush1.bf16.msra.mxu0 %v10783
    %11008 = vmatprep.subr.bf16.mxu0 %v10788
    %11009 = vmatpush1.bf16.msra.mxu0 %v10787
    %11010 = vmatprep.subr.bf16.mxu0 %v10792
    %11011 = vmatpush1.bf16.msra.mxu0 %v10791
    %11012 = vmatprep.subr.bf16.mxu0 %v10796
    %11013 = vmatpush1.bf16.msra.mxu0 %v10795
    %11014 = vmatprep.subr.bf16.mxu0 %v10800
    %11015 = vmatpush1.bf16.msra.mxu0 %v10799
    %11016 = vmatprep.subr.bf16.mxu0 %v10804
    %11017 = vmatpush1.bf16.msra.mxu0 %v10803
    %11018 = vmatprep.subr.bf16.mxu0 %v10808
    %11019 = vmatpush1.bf16.msra.mxu0 %v10807
    %11020 = vmatprep.subr.bf16.mxu0 %v10812
    %11021 = vmatpush1.bf16.msra.mxu0 %v10811
    %11022 = vmatprep.subr.bf16.mxu0 %v10816
    %11023 = vmatpush1.bf16.msra.mxu0 %v10815
    %11024 = vmatprep.subr.bf16.mxu0 %v10820
    %11025 = vmatpush1.bf16.msra.mxu0 %v10819
    %11026 = vmatprep.subr.bf16.mxu0 %v10824
    %11027 = vmatpush1.bf16.msra.mxu0 %v10823
    %11028 = vmatprep.mubr.bf16.mxu0 %v10170
    %11029 = vmatmul.mubr.bf16.gmra.mrb[0].mxu0 %v10169
    %v11030 = vpop.f32.mrb[0].mxu0
    %v11031 = vadd.f32 %v10990, %v11030
    %v11032 = vpop.f32.mrb[0].mxu0
    %v11033 = vadd.f32 %v10992, %v11032
    %v11034 = vpop.f32.mrb[0].mxu0
    %v11035 = vpop.f32.mrb[0].mxu0
    %11036 = vdwg.mxu0
    %11037 = vmatprep.subr.bf16.mxu0 %v10702
    %11038 = vmatpush1.bf16.msra.mxu0 %v10701
    %11039 = vmatprep.subr.bf16.mxu0 %v10706
    %11040 = vmatpush1.bf16.msra.mxu0 %v10705
    %11041 = vmatprep.subr.bf16.mxu0 %v10710
    %11042 = vmatpush1.bf16.msra.mxu0 %v10709
    %11043 = vmatprep.subr.bf16.mxu0 %v10714
    %11044 = vmatpush1.bf16.msra.mxu0 %v10713
    %11045 = vmatprep.subr.bf16.mxu0 %v10718
    %11046 = vmatpush1.bf16.msra.mxu0 %v10717
    %11047 = vmatprep.subr.bf16.mxu0 %v10722
    %11048 = vmatpush1.bf16.msra.mxu0 %v10721
    %11049 = vmatprep.subr.bf16.mxu0 %v10726
    %11050 = vmatpush1.bf16.msra.mxu0 %v10725
    %11051 = vmatprep.subr.bf16.mxu0 %v10730
    %11052 = vmatpush1.bf16.msra.mxu0 %v10729
    %11053 = vmatprep.subr.bf16.mxu0 %v10734
    %11054 = vmatpush1.bf16.msra.mxu0 %v10733
    %11055 = vmatprep.subr.bf16.mxu0 %v10738
    %11056 = vmatpush1.bf16.msra.mxu0 %v10737
    %11057 = vmatprep.subr.bf16.mxu0 %v10742
    %11058 = vmatpush1.bf16.msra.mxu0 %v10741
    %11059 = vmatprep.subr.bf16.mxu0 %v10746
    %11060 = vmatpush1.bf16.msra.mxu0 %v10745
    %11061 = vmatprep.subr.bf16.mxu0 %v10750
    %11062 = vmatpush1.bf16.msra.mxu0 %v10749
    %11063 = vmatprep.subr.bf16.mxu0 %v10754
    %11064 = vmatpush1.bf16.msra.mxu0 %v10753
    %11065 = vmatprep.subr.bf16.mxu0 %v10758
    %11066 = vmatpush1.bf16.msra.mxu0 %v10757
    %11067 = vmatprep.subr.bf16.mxu0 %v10762
    %11068 = vmatpush1.bf16.msra.mxu0 %v10761
    %11069 = vmatprep.mubr.bf16.mxu0 %v10168
    %11070 = vmatmul.mubr.bf16.gmra.mrb[0].mxu0 %v10167
    %v11071 = vpop.f32.mrb[0].mxu0
    %v11072 = vadd.f32 %v10310, %v11071
    %v11073 = vpop.f32.mrb[0].mxu0
    %v11074 = vadd.f32 %v10314, %v11073
    %v11075 = vpop.f32.mrb[0].mxu0
    %v11076 = vpop.f32.mrb[0].mxu0
    %11077 = vdwg.mxu0
    %11078 = vmatprep.subr.bf16.mxu0 %v10766
    %11079 = vmatpush1.bf16.msra.mxu0 %v10765
    %11080 = vmatprep.subr.bf16.mxu0 %v10770
    %11081 = vmatpush1.bf16.msra.mxu0 %v10769
    %11082 = vmatprep.subr.bf16.mxu0 %v10774
    %11083 = vmatpush1.bf16.msra.mxu0 %v10773
    %11084 = vmatprep.subr.bf16.mxu0 %v10778
    %11085 = vmatpush1.bf16.msra.mxu0 %v10777
    %11086 = vmatprep.subr.bf16.mxu0 %v10782
    %11087 = vmatpush1.bf16.msra.mxu0 %v10781
    %11088 = vmatprep.subr.bf16.mxu0 %v10786
    %11089 = vmatpush1.bf16.msra.mxu0 %v10785
    %11090 = vmatprep.subr.bf16.mxu0 %v10790
    %11091 = vmatpush1.bf16.msra.mxu0 %v10789
    %11092 = vmatprep.subr.bf16.mxu0 %v10794
    %11093 = vmatpush1.bf16.msra.mxu0 %v10793
    %11094 = vmatprep.subr.bf16.mxu0 %v10798
    %11095 = vmatpush1.bf16.msra.mxu0 %v10797
    %11096 = vmatprep.subr.bf16.mxu0 %v10802
    %11097 = vmatpush1.bf16.msra.mxu0 %v10801
    %11098 = vmatprep.subr.bf16.mxu0 %v10806
    %11099 = vmatpush1.bf16.msra.mxu0 %v10805
    %11100 = vmatprep.subr.bf16.mxu0 %v10810
    %11101 = vmatpush1.bf16.msra.mxu0 %v10809
    %11102 = vmatprep.subr.bf16.mxu0 %v10814
    %11103 = vmatpush1.bf16.msra.mxu0 %v10813
    %11104 = vmatprep.subr.bf16.mxu0 %v10818
    %11105 = vmatpush1.bf16.msra.mxu0 %v10817
    %11106 = vmatprep.subr.bf16.mxu0 %v10822
    %11107 = vmatpush1.bf16.msra.mxu0 %v10821
    %11108 = vmatprep.subr.bf16.mxu0 %v10826
    %11109 = vmatpush1.bf16.msra.mxu0 %v10825
    %11110 = vmatprep.mubr.bf16.mxu0 %v10170
    %11111 = vmatmul.mubr.bf16.gmra.mrb[0].mxu0 %v10169
    %v11112 = vpop.f32.mrb[0].mxu0
    %v11113 = vadd.f32 %v11072, %v11112
    %v11114 = vpop.f32.mrb[0].mxu0
    %v11115 = vadd.f32 %v11074, %v11114
    %v11116 = vpop.f32.mrb[0].mxu0
    %v11117 = vpop.f32.mrb[0].mxu0
    %11118 = vdwg.mxu0
    %v11119 = vmax.f32 %v11031, 0.0
    %v11120 = vmax.f32 %v11033, 0.0
    %v11121 = vmax.f32 %v11113, 0.0
    %v11122 = vmax.f32 %v11115, 0.0
    %v11123 = vpack.c.bf16 %v11119, %v11119
    %v11124 = vpack.c.bf16 %v11120, %v11120
    %v11125 = vpack.c.bf16 %v11121, %v11121
    %v11126 = vpack.c.bf16 %v11122, %v11122
    %v11127 = vld [vmem:[%s6] sm:$0xf]
    %v11128 = vld [vmem:[%s6 + $0x4] sm:$0xf]
    %v11129 = vld [vmem:[%s6 + $0x8] sm:$0xf]
    %v11130 = vld [vmem:[%s6 + $0xc] sm:$0xf]
    %v11131 = vld [vmem:[%s6 + $0x10] sm:$0xf]
    %v11132 = vld [vmem:[%s6 + $0x14] sm:$0xf]
    %v11133 = vld [vmem:[%s6 + $0x18] sm:$0xf]
    %v11134 = vld [vmem:[%s6 + $0x1c] sm:$0xf]
    %v11135 = vld [vmem:[%s6 + $0x20] sm:$0xf]
    %v11136 = vld [vmem:[%s6 + $0x24] sm:$0xf]
    %v11137 = vld [vmem:[%s6 + $0x28] sm:$0xf]
    %v11138 = vld [vmem:[%s6 + $0x2c] sm:$0xf]
    %v11139 = vld [vmem:[%s6 + $0x30] sm:$0xf]
    %v11140 = vld [vmem:[%s6 + $0x34] sm:$0xf]
    %v11141 = vld [vmem:[%s6 + $0x38] sm:$0xf]
    %v11142 = vld [vmem:[%s6 + $0x3c] sm:$0xf]
    %v11143 = vld [vmem:[%s6 + $0x40] sm:$0xf]
    %v11144 = vld [vmem:[%s6 + $0x44] sm:$0xf]
    %v11145 = vld [vmem:[%s6 + $0x48] sm:$0xf]
    %v11146 = vld [vmem:[%s6 + $0x4c] sm:$0xf]
    %v11147 = vld [vmem:[%s6 + $0x50] sm:$0xf]
    %v11148 = vld [vmem:[%s6 + $0x54] sm:$0xf]
    %v11149 = vld [vmem:[%s6 + $0x58] sm:$0xf]
    %v11150 = vld [vmem:[%s6 + $0x5c] sm:$0xf]
    %v11151 = vld [vmem:[%s6 + $0x60] sm:$0xf]
    %v11152 = vld [vmem:[%s6 + $0x64] sm:$0xf]
    %v11153 = vld [vmem:[%s6 + $0x68] sm:$0xf]
    %v11154 = vld [vmem:[%s6 + $0x6c] sm:$0xf]
    %v11155 = vld [vmem:[%s6 + $0x70] sm:$0xf]
    %v11156 = vld [vmem:[%s6 + $0x74] sm:$0xf]
    %v11157 = vld [vmem:[%s6 + $0x78] sm:$0xf]
    %v11158 = vld [vmem:[%s6 + $0x7c] sm:$0xf]
    %v11159 = vld [vmem:[%s6 + $0x80] sm:$0xf]
    %v11160 = vld [vmem:[%s6 + $0x84] sm:$0xf]
    %v11161 = vld [vmem:[%s6 + $0x88] sm:$0xf]
    %v11162 = vld [vmem:[%s6 + $0x8c] sm:$0xf]
    %v11163 = vld [vmem:[%s6 + $0x90] sm:$0xf]
    %v11164 = vld [vmem:[%s6 + $0x94] sm:$0xf]
    %v11165 = vld [vmem:[%s6 + $0x98] sm:$0xf]
    %v11166 = vld [vmem:[%s6 + $0x9c] sm:$0xf]
    %v11167 = vld [vmem:[%s6 + $0xa0] sm:$0xf]
    %v11168 = vld [vmem:[%s6 + $0xa4] sm:$0xf]
    %v11169 = vld [vmem:[%s6 + $0xa8] sm:$0xf]
    %v11170 = vld [vmem:[%s6 + $0xac] sm:$0xf]
    %v11171 = vld [vmem:[%s6 + $0xb0] sm:$0xf]
    %v11172 = vld [vmem:[%s6 + $0xb4] sm:$0xf]
    %v11173 = vld [vmem:[%s6 + $0xb8] sm:$0xf]
    %v11174 = vld [vmem:[%s6 + $0xbc] sm:$0xf]
    %v11175 = vld [vmem:[%s6 + $0xc0] sm:$0xf]
    %v11176 = vld [vmem:[%s6 + $0xc4] sm:$0xf]
    %v11177 = vld [vmem:[%s6 + $0xc8] sm:$0xf]
    %v11178 = vld [vmem:[%s6 + $0xcc] sm:$0xf]
    %v11179 = vld [vmem:[%s6 + $0xd0] sm:$0xf]
    %v11180 = vld [vmem:[%s6 + $0xd4] sm:$0xf]
    %v11181 = vld [vmem:[%s6 + $0xd8] sm:$0xf]
    %v11182 = vld [vmem:[%s6 + $0xdc] sm:$0xf]
    %v11183 = vld [vmem:[%s6 + $0xe0] sm:$0xf]
    %v11184 = vld [vmem:[%s6 + $0xe4] sm:$0xf]
    %v11185 = vld [vmem:[%s6 + $0xe8] sm:$0xf]
    %v11186 = vld [vmem:[%s6 + $0xec] sm:$0xf]
    %v11187 = vld [vmem:[%s6 + $0xf0] sm:$0xf]
    %v11188 = vld [vmem:[%s6 + $0xf4] sm:$0xf]
    %v11189 = vld [vmem:[%s6 + $0xf8] sm:$0xf]
    %v11190 = vld [vmem:[%s6 + $0xfc] sm:$0xf]
    %v11191 = vlaneseq
    %v11192 = vshrl.u32 %v11191, 7
    %v11193 = vsub.s32 5, %v11192
    %v11194 = vrot.slane %v125, %v11193
    %v11259 = vunpack.c.l.b16 %v11127
    %v11260 = vunpack.c.l.b16 %v11128
    %v11261 = vunpack.c.l.b16 %v11129
    %v11262 = vunpack.c.l.b16 %v11130
    %v11263 = vunpack.c.l.b16 %v11131
    %v11264 = vunpack.c.l.b16 %v11132
    %v11265 = vunpack.c.l.b16 %v11133
    %v11266 = vunpack.c.l.b16 %v11134
    %v11267 = vunpack.c.l.b16 %v11135
    %v11268 = vunpack.c.l.b16 %v11136
    %v11269 = vunpack.c.l.b16 %v11137
    %v11270 = vunpack.c.l.b16 %v11138
    %v11271 = vunpack.c.l.b16 %v11139
    %v11272 = vunpack.c.l.b16 %v11140
    %v11273 = vunpack.c.l.b16 %v11141
    %v11274 = vunpack.c.l.b16 %v11142
    %v11275 = vunpack.c.l.b16 %v11143
    %v11276 = vunpack.c.l.b16 %v11144
    %v11277 = vunpack.c.l.b16 %v11145
    %v11278 = vunpack.c.l.b16 %v11146
    %v11279 = vunpack.c.l.b16 %v11147
    %v11280 = vunpack.c.l.b16 %v11148
    %v11281 = vunpack.c.l.b16 %v11149
    %v11282 = vunpack.c.l.b16 %v11150
    %v11283 = vunpack.c.l.b16 %v11151
    %v11284 = vunpack.c.l.b16 %v11152
    %v11285 = vunpack.c.l.b16 %v11153
    %v11286 = vunpack.c.l.b16 %v11154
    %v11287 = vunpack.c.l.b16 %v11155
    %v11288 = vunpack.c.l.b16 %v11156
    %v11289 = vunpack.c.l.b16 %v11157
    %v11290 = vunpack.c.l.b16 %v11158
    %v11291 = vunpack.c.l.b16 %v11159
    %v11292 = vunpack.c.l.b16 %v11160
    %v11293 = vunpack.c.l.b16 %v11161
    %v11294 = vunpack.c.l.b16 %v11162
    %v11295 = vunpack.c.l.b16 %v11163
    %v11296 = vunpack.c.l.b16 %v11164
    %v11297 = vunpack.c.l.b16 %v11165
    %v11298 = vunpack.c.l.b16 %v11166
    %v11299 = vunpack.c.l.b16 %v11167
    %v11300 = vunpack.c.l.b16 %v11168
    %v11301 = vunpack.c.l.b16 %v11169
    %v11302 = vunpack.c.l.b16 %v11170
    %v11303 = vunpack.c.l.b16 %v11171
    %v11304 = vunpack.c.l.b16 %v11172
    %v11305 = vunpack.c.l.b16 %v11173
    %v11306 = vunpack.c.l.b16 %v11174
    %v11307 = vunpack.c.l.b16 %v11175
    %v11308 = vunpack.c.l.b16 %v11176
    %v11309 = vunpack.c.l.b16 %v11177
    %v11310 = vunpack.c.l.b16 %v11178
    %v11311 = vunpack.c.l.b16 %v11179
    %v11312 = vunpack.c.l.b16 %v11180
    %v11313 = vunpack.c.l.b16 %v11181
    %v11314 = vunpack.c.l.b16 %v11182
    %v11315 = vunpack.c.l.b16 %v11183
    %v11316 = vunpack.c.l.b16 %v11184
    %v11317 = vunpack.c.l.b16 %v11185
    %v11318 = vunpack.c.l.b16 %v11186
    %v11319 = vunpack.c.l.b16 %v11187
    %v11320 = vunpack.c.l.b16 %v11188
    %v11321 = vunpack.c.l.b16 %v11189
    %v11322 = vunpack.c.l.b16 %v11190
    %v11323 = vpack.c.b16 %v11260, %v11259
    %v11324 = vpack.c.b16 %v11262, %v11261
    %v11325 = vpack.c.b16 %v11264, %v11263
    %v11326 = vpack.c.b16 %v11266, %v11265
    %v11327 = vpack.c.b16 %v11268, %v11267
    %v11328 = vpack.c.b16 %v11270, %v11269
    %v11329 = vpack.c.b16 %v11272, %v11271
    %v11330 = vpack.c.b16 %v11274, %v11273
    %v11331 = vpack.c.b16 %v11276, %v11275
    %v11332 = vpack.c.b16 %v11278, %v11277
    %v11333 = vpack.c.b16 %v11280, %v11279
    %v11334 = vpack.c.b16 %v11282, %v11281
    %v11335 = vpack.c.b16 %v11284, %v11283
    %v11336 = vpack.c.b16 %v11286, %v11285
    %v11337 = vpack.c.b16 %v11288, %v11287
    %v11338 = vpack.c.b16 %v11290, %v11289
    %v11339 = vpack.c.b16 %v11292, %v11291
    %v11340 = vpack.c.b16 %v11294, %v11293
    %v11341 = vpack.c.b16 %v11296, %v11295
    %v11342 = vpack.c.b16 %v11298, %v11297
    %v11343 = vpack.c.b16 %v11300, %v11299
    %v11344 = vpack.c.b16 %v11302, %v11301
    %v11345 = vpack.c.b16 %v11304, %v11303
    %v11346 = vpack.c.b16 %v11306, %v11305
    %v11347 = vpack.c.b16 %v11308, %v11307
    %v11348 = vpack.c.b16 %v11310, %v11309
    %v11349 = vpack.c.b16 %v11312, %v11311
    %v11350 = vpack.c.b16 %v11314, %v11313
    %v11351 = vpack.c.b16 %v11316, %v11315
    %v11352 = vpack.c.b16 %v11318, %v11317
    %v11353 = vpack.c.b16 %v11320, %v11319
    %v11354 = vpack.c.b16 %v11322, %v11321
    %11387 = vmatprep.subr.bf16.mxu0 0
    %11388 = vmatpush1.bf16.msra.mxu0 %v11323
    %11389 = vmatprep.subr.bf16.mxu0 0
    %11390 = vmatpush1.bf16.msra.mxu0 %v11324
    %11391 = vmatprep.subr.bf16.mxu0 0
    %11392 = vmatpush1.bf16.msra.mxu0 %v11325
    %11393 = vmatprep.subr.bf16.mxu0 0
    %11394 = vmatpush1.bf16.msra.mxu0 %v11326
    %11395 = vmatprep.subr.bf16.mxu0 0
    %11396 = vmatpush1.bf16.msra.mxu0 %v11327
    %11397 = vmatprep.subr.bf16.mxu0 0
    %11398 = vmatpush1.bf16.msra.mxu0 %v11328
    %11399 = vmatprep.subr.bf16.mxu0 0
    %11400 = vmatpush1.bf16.msra.mxu0 %v11329
    %11401 = vmatprep.subr.bf16.mxu0 0
    %11402 = vmatpush1.bf16.msra.mxu0 %v11330
    %11403 = vmatprep.subr.bf16.mxu0 0
    %11404 = vmatpush1.bf16.msra.mxu0 %v11331
    %11405 = vmatprep.subr.bf16.mxu0 0
    %11406 = vmatpush1.bf16.msra.mxu0 %v11332
    %11407 = vmatprep.subr.bf16.mxu0 0
    %11408 = vmatpush1.bf16.msra.mxu0 %v11333
    %11409 = vmatprep.subr.bf16.mxu0 0
    %11410 = vmatpush1.bf16.msra.mxu0 %v11334
    %11411 = vmatprep.subr.bf16.mxu0 0
    %11412 = vmatpush1.bf16.msra.mxu0 %v11335
    %11413 = vmatprep.subr.bf16.mxu0 0
    %11414 = vmatpush1.bf16.msra.mxu0 %v11336
    %11415 = vmatprep.subr.bf16.mxu0 0
    %11416 = vmatpush1.bf16.msra.mxu0 %v11337
    %11417 = vmatprep.subr.bf16.mxu0 0
    %11418 = vmatpush1.bf16.msra.mxu0 %v11338
    %11419 = vmatprep.mubr.bf16.mxu0 %v11124
    %11420 = vmatmul.mubr.bf16.gmra.mrb[0].mxu0 %v11123
    %v11421 = vpop.f32.mrb[0].mxu0
    %v11422 = vadd.f32 %v11194, %v11421
    %v11423 = vpop.f32.mrb[0].mxu0
    %v11424 = vpop.f32.mrb[0].mxu0
    %v11425 = vpop.f32.mrb[0].mxu0
    %11426 = vdwg.mxu0
    %11427 = vmatprep.subr.bf16.mxu0 0
    %11428 = vmatpush1.bf16.msra.mxu0 %v11339
    %11429 = vmatprep.subr.bf16.mxu0 0
    %11430 = vmatpush1.bf16.msra.mxu0 %v11340
    %11431 = vmatprep.subr.bf16.mxu0 0
    %11432 = vmatpush1.bf16.msra.mxu0 %v11341
    %11433 = vmatprep.subr.bf16.mxu0 0
    %11434 = vmatpush1.bf16.msra.mxu0 %v11342
    %11435 = vmatprep.subr.bf16.mxu0 0
    %11436 = vmatpush1.bf16.msra.mxu0 %v11343
    %11437 = vmatprep.subr.bf16.mxu0 0
    %11438 = vmatpush1.bf16.msra.mxu0 %v11344
    %11439 = vmatprep.subr.bf16.mxu0 0
    %11440 = vmatpush1.bf16.msra.mxu0 %v11345
    %11441 = vmatprep.subr.bf16.mxu0 0
    %11442 = vmatpush1.bf16.msra.mxu0 %v11346
    %11443 = vmatprep.subr.bf16.mxu0 0
    %11444 = vmatpush1.bf16.msra.mxu0 %v11347
    %11445 = vmatprep.subr.bf16.mxu0 0
    %11446 = vmatpush1.bf16.msra.mxu0 %v11348
    %11447 = vmatprep.subr.bf16.mxu0 0
    %11448 = vmatpush1.bf16.msra.mxu0 %v11349
    %11449 = vmatprep.subr.bf16.mxu0 0
    %11450 = vmatpush1.bf16.msra.mxu0 %v11350
    %11451 = vmatprep.subr.bf16.mxu0 0
    %11452 = vmatpush1.bf16.msra.mxu0 %v11351
    %11453 = vmatprep.subr.bf16.mxu0 0
    %11454 = vmatpush1.bf16.msra.mxu0 %v11352
    %11455 = vmatprep.subr.bf16.mxu0 0
    %11456 = vmatpush1.bf16.msra.mxu0 %v11353
    %11457 = vmatprep.subr.bf16.mxu0 0
    %11458 = vmatpush1.bf16.msra.mxu0 %v11354
    %11459 = vmatprep.mubr.bf16.mxu0 %v11126
    %11460 = vmatmul.mubr.bf16.gmra.mrb[0].mxu0 %v11125
    %v11461 = vpop.f32.mrb[0].mxu0
    %v11462 = vadd.f32 %v11422, %v11461
    %v11463 = vpop.f32.mrb[0].mxu0
    %v11464 = vpop.f32.mrb[0].mxu0
    %v11465 = vpop.f32.mrb[0].mxu0
    %11466 = vdwg.mxu0
    %v11467 = vmax.f32 %v11462, 0.0
    %v11468 = vpack.c.bf16 %v11467, %v11467
    %v11469 = vld [vmem:[%s7] sm:$0xf]
    %v11470 = vld [vmem:[%s7 + $0x4] sm:$0xf]
    %v11471 = vld [vmem:[%s7 + $0x8] sm:$0xf]
    %v11472 = vld [vmem:[%s7 + $0xc] sm:$0xf]
    %v11473 = vld [vmem:[%s7 + $0x10] sm:$0xf]
    %v11474 = vld [vmem:[%s7 + $0x14] sm:$0xf]
    %v11475 = vld [vmem:[%s7 + $0x18] sm:$0xf]
    %v11476 = vld [vmem:[%s7 + $0x1c] sm:$0xf]
    %v11477 = vlaneseq
    %v11478 = vshrl.u32 %v11477, 7
    %v11479 = vsub.s32 6, %v11478
    %v11480 = vrot.slane %v125, %v11479
    %v11489 = vunpack.c.l.b16 %v11469
    %v11490 = vunpack.c.l.b16 %v11470
    %v11491 = vunpack.c.l.b16 %v11471
    %v11492 = vunpack.c.l.b16 %v11472
    %v11493 = vunpack.c.l.b16 %v11473
    %v11494 = vunpack.c.l.b16 %v11474
    %v11495 = vunpack.c.l.b16 %v11475
    %v11496 = vunpack.c.l.b16 %v11476
    %v11497 = vpack.c.b16 %v11490, %v11489
    %v11498 = vpack.c.b16 %v11492, %v11491
    %v11499 = vpack.c.b16 %v11494, %v11493
    %v11500 = vpack.c.b16 %v11496, %v11495
    %vm11505 = vcmask 523264
    %v11507 = vsel %vm11505, %v11468, 0
    %11509 = vmatprep.subr.bf16.mxu0 0
    %11510 = vmatpush1.bf16.msra.mxu0 %v11497
    %11511 = vmatprep.subr.bf16.mxu0 0
    %11512 = vmatpush1.bf16.msra.mxu0 %v11498
    %11513 = vmatprep.subr.bf16.mxu0 0
    %11514 = vmatpush1.bf16.msra.mxu0 %v11499
    %11515 = vmatprep.subr.bf16.mxu0 0
    %11516 = vmatpush1.bf16.msra.mxu0 %v11500
    %11517 = vmatprep.subr.bf16.mxu0 0
    %11518 = vmatpush1.bf16.msra.mxu0 0
    %11519 = vmatprep.subr.bf16.mxu0 0
    %11520 = vmatpush1.bf16.msra.mxu0 0
    %11521 = vmatprep.subr.bf16.mxu0 0
    %11522 = vmatpush1.bf16.msra.mxu0 0
    %11523 = vmatprep.subr.bf16.mxu0 0
    %11524 = vmatpush1.bf16.msra.mxu0 0
    %11525 = vmatprep.subr.bf16.mxu0 0
    %11526 = vmatpush1.bf16.msra.mxu0 0
    %11527 = vmatprep.subr.bf16.mxu0 0
    %11528 = vmatpush1.bf16.msra.mxu0 0
    %11529 = vmatprep.subr.bf16.mxu0 0
    %11530 = vmatpush1.bf16.msra.mxu0 0
    %11531 = vmatprep.subr.bf16.mxu0 0
    %11532 = vmatpush1.bf16.msra.mxu0 0
    %11533 = vmatprep.subr.bf16.mxu0 0
    %11534 = vmatpush1.bf16.msra.mxu0 0
    %11535 = vmatprep.subr.bf16.mxu0 0
    %11536 = vmatpush1.bf16.msra.mxu0 0
    %11537 = vmatprep.subr.bf16.mxu0 0
    %11538 = vmatpush1.bf16.msra.mxu0 0
    %11539 = vmatprep.subr.bf16.mxu0 0
    %11540 = vmatpush1.bf16.msra.mxu0 0
    %11541 = vmatprep.mubr.bf16.mxu0 0
    %11542 = vmatmul.mubr.bf16.gmra.mrb[0].mxu0 %v11507
    %v11543 = vpop.f32.mrb[0].mxu0
    %v11544 = vadd.f32 %v11480, %v11543
    %v11545 = vpop.f32.mrb[0].mxu0
    %v11546 = vpop.f32.mrb[0].mxu0
    %v11547 = vpop.f32.mrb[0].mxu0
    %11548 = vdwg.mxu0
    %vm11549 = vcmask 80896
    %v11550 = vsel %vm11549, %v11544, -inf
    %11551 = vmax.xlane.f32.xlu0 %v11550
    %v11552 = vpop.xlane.xlu0 %11551
    %v11553 = vsub.f32 %v11544, %v11552
    %v11554 = vmul.f32 %v11553, 1.442695
    %v11555 = vpow.pop %v11554
    %v11556 = vsel %vm11549, %v11555, 0.0
    %11557 = vadd.xlane.f32.xlu0 %v11556
    %v11558 = vpop.xlane.xlu0 %11557
    %v11559 = vlog2.pop %v11558
    %v11560 = vmul.f32 %v11559, 0.6931472
    %v11561 = vadd.f32 %v11552, %v11560
    %v11562 = vsub.f32 %v11544, %v11561
    %11563 = vst.msk [vmem:[#allocation14] sm:$0xff] %vm11549, %v11562
    // Predicated region
    $region66: #{tpu_custom_call.1} parent=1 // pred_check
      _
    $region67: #{tpu_custom_call.1} parent=1 // pred_check_branch
      %11565 = sbr.rel (0) target = $region69
    $region68: #{tpu_custom_call.1} parent=1 // pred_region
      %s11567 = ssub.s32 128, 128
      %11568 = vsyncadd [#allocation4], %s11567
      %s11570 = sshll.u32 [#allocation14], 4
      %s11571 = int_to_ptr.vmem [resolvable:$true] %s11570
      %11573 = dma.vmem_to_hbm [thread:$0]  %s11571, 128, %s9, [#allocation4]
    $region69: #{tpu_custom_call.1} parent=1 // pred_fallthru
      _
    // Predicated region
    $region70: #{tpu_custom_call.1} parent=1 // pred_check
      _
    $region71: #{tpu_custom_call.1} parent=1 // pred_check_branch
      %11575 = sbr.rel (0) target = $region73
    $region72: #{tpu_custom_call.1} parent=1 // pred_region
      %11576 = dma.done [#allocation4], 128
    $region73: #{tpu_custom_call.1} parent=1 // pred_fallthru
      _
    %11577 = vsyncpa [#allocation3], 1
    %11578 = vsyncpa [#allocation6], 1
    %11579 = vsyncpa [#allocation9], 1
    %11580 = vsyncpa [#allocation12], 1
    %11581 = vsyncpa [#allocation4], 1

</llo_original>
